<compile_context>
chip_gen: v6e
topology: v6e:2x2x1
jax: 0.10.0
libtpu: 0.0.40
codegen_flags: <defaults>
</compile_context>

<pallas_src>
import jax
import jax.numpy as jnp
from jax import lax
from jax.experimental import pallas as pl
from jax.experimental.pallas import tpu as pltpu

# Problem sizes (in_ch -> 64 -> 64 -> 64 -> out_ch)
N, H, W = 2, 16, 16
IN_CH, OUT_CH = 4, 4
MID = 64
EPS = 1e-5

TAPS = 9                      # 3x3 kernel taps
WP = W + 2                    # padded row width (18)
M_EXT = H * WP                # 288 rows computed per layer (incl. 2 garbage cols/row)
LEAD = 5                      # leading slack rows so interior store starts at row 24 (x8)
INT0 = LEAD + WP + 1          # 24: first interior row of the flattened padded buffer
RP = INT0 + M_EXT + INT0      # 336: flattened padded activation rows (covers all tap reads)
K1 = TAPS * IN_CH             # 36: dense layer-1 im2col contraction
KD = TAPS * MID               # 576: dense contraction for the 64-channel layers
KP = 640                      # cols lane width (5 x 128); rows [576,640) have zero weights
OUT_PAD = 128                 # lane-dense padded output channels


# ------------------------------- kernel ------------------------------------

def cascade_kernel(xcols_ref, mask_ref,
                   w1_ref, b1_ref, w2_ref, b2_ref,
                   w3_ref, b3_ref, w4_ref, b4_ref,
                   out_ref,
                   pad_a, pad_b, cols):
    """Per-image fused Cascade_Block.

    xcols_ref: (M_EXT, 36)   layer-1 im2col over the extended (W+2-wide) rows.
    mask_ref : (M_EXT, 1)    1.0 on valid columns, 0.0 on the 2 garbage cols/row.
    wK_ref   : folded 2-D weights; bK_ref: (1, cout) per-channel shifts.
    out_ref  : (M_EXT, OUT_PAD) lane-dense output (channels zero-padded).
    pad_a/pad_b: (RP, MID)   flattened zero-padded activation scratch.
    cols     : (M_EXT, KP)   dense im2col scratch (tap t at lanes [t*64,(t+1)*64)).
    """
    # Zero ONLY the never-written regions, once per grid step (not per layer):
    # top/bottom border rows of both padded buffers and the 64-lane cols tail.
    zrows = jnp.zeros((INT0, MID), jnp.float32)
    pad_a[0:INT0, :] = zrows
    pad_a[INT0 + M_EXT:RP, :] = zrows
    pad_b[0:INT0, :] = zrows
    pad_b[INT0 + M_EXT:RP, :] = zrows
    cols[:, KD:KP] = jnp.zeros((M_EXT, KP - KD), jnp.float32)

    mask = mask_ref[...]                              # (M_EXT, 1)

    def store_interior(dst_ref, y):
        # Garbage columns -> 0; they land exactly on the pad border positions
        # of the next layer's buffer, so the whole 288-row store is contiguous.
        dst_ref[INT0:INT0 + M_EXT, :] = y * mask

    def im2col(src_ref):
        # Dense tap packing: tap (dy,dx) is the contiguous row slice starting
        # at LEAD + dy*WP + dx; it fills lanes [t*64, (t+1)*64) of cols.
        for dy in range(3):
            for dx in range(3):
                t = dy * 3 + dx
                off = LEAD + dy * WP + dx
                cols[:, t * MID:(t + 1) * MID] = src_ref[off:off + M_EXT, :]
        return cols[...]                              # (M_EXT, KP)

    # layer 1: conv3x3 (+ folded BN) + ReLU — single matmul, K = 36.
    y = jnp.dot(xcols_ref[...], w1_ref[...], preferred_element_type=jnp.float32)
    y = jnp.maximum(y + b1_ref[...], 0.0)
    store_interior(pad_a, y)

    # layer 2: conv3x3 (+ folded BN) + ReLU — single matmul, dense K.
    y = jnp.dot(im2col(pad_a), w2_ref[...], preferred_element_type=jnp.float32)
    y = jnp.maximum(y + b2_ref[...], 0.0)
    store_interior(pad_b, y)

    # layer 3: conv3x3 (+ folded BN) + ReLU.
    y = jnp.dot(im2col(pad_b), w3_ref[...], preferred_element_type=jnp.float32)
    y = jnp.maximum(y + b3_ref[...], 0.0)
    store_interior(pad_a, y)

    # layer 4: conv3x3 only (bias, no BN / ReLU); lane-dense padded output.
    y = jnp.dot(im2col(pad_a), w4_ref[...], preferred_element_type=jnp.float32)
    out_ref[...] = y + b4_ref[...]


# ------------------------------- wrapper ------------------------------------

def cascade_block_pallas(x_nchw, params):
    """x_nchw: (N, IN_CH, H, W) float32. Returns (N, OUT_CH, H, W) float32."""
    assert x_nchw.shape == (N, IN_CH, H, W), x_nchw.shape
    w1, b1, w2, b2, w3, b3, w4, b4 = params

    # NCHW -> NHWC, pad, and extended-row layer-1 im2col: layout plumbing in XLA.
    x = jnp.transpose(x_nchw, (0, 2, 3, 1)).astype(jnp.float32)
    # pad 1 top/bottom/left and 3 right so the W+2-wide extended rows stay in range
    xpad = jnp.pad(x, ((0, 0), (1, 1), (1, 3), (0, 0)))          # (N, H+2, W+4, C)
    taps = [xpad[:, dy:dy + H, dx:dx + WP, :]
            for dy in range(3) for dx in range(3)]               # each (N, H, W+2, C)
    x_cols = jnp.concatenate(taps, axis=-1).reshape(N, M_EXT, K1)

    # 1.0 on valid columns (j < W), 0.0 on the 2 garbage columns of each row.
    jcol = jnp.arange(M_EXT, dtype=jnp.int32) % WP
    mask = (jcol < W).astype(jnp.float32).reshape(M_EXT, 1)

    vmem = pl.BlockSpec(memory_space=pltpu.MemorySpace.VMEM)
    out = pl.pallas_call(
        cascade_kernel,
        out_shape=jax.ShapeDtypeStruct((N, M_EXT, OUT_PAD), jnp.float32),
        grid=(N,),
        in_specs=[pl.BlockSpec((None, M_EXT, K1), lambda n: (n, 0, 0))]
                 + [vmem] * 9,
        out_specs=pl.BlockSpec((None, M_EXT, OUT_PAD), lambda n: (n, 0, 0)),
        scratch_shapes=[pltpu.VMEM((RP, MID), jnp.float32),
                        pltpu.VMEM((RP, MID), jnp.float32),
                        pltpu.VMEM((M_EXT, KP), jnp.float32)],
        compiler_params=pltpu.CompilerParams(
            dimension_semantics=("parallel",)),
    )(x_cols, mask, w1, b1, w2, b2, w3, b3, w4, b4)

    # drop garbage columns and channel padding, back to NCHW
    out = out.reshape(N, H, WP, OUT_PAD)[:, :, :W, :OUT_CH]
    return jnp.transpose(out, (0, 3, 1, 2))


# ----------------------------- parameters -----------------------------------

def init_raw_params(key):
    """Deterministic synthetic PyTorch-style parameters.
    Conv weights HWIO (3,3,Cin,Cout); BatchNorm as (gamma, beta, mean, var)."""
    ks = jax.random.split(key, 24)
    it = iter(range(24))

    def conv_p(cin, cout):
        w = 0.1 * jax.random.normal(ks[next(it)], (3, 3, cin, cout), jnp.float32)
        b = 0.1 * jax.random.normal(ks[next(it)], (cout,), jnp.float32)
        return w, b

    def bn_p(c):
        gamma = 1.0 + 0.1 * jax.random.normal(ks[next(it)], (c,), jnp.float32)
        beta = 0.1 * jax.random.normal(ks[next(it)], (c,), jnp.float32)
        mean = 0.1 * jax.random.normal(ks[next(it)], (c,), jnp.float32)
        var = 0.5 + jnp.abs(jax.random.normal(ks[next(it)], (c,), jnp.float32))
        return gamma, beta, mean, var

    w1, b1 = conv_p(IN_CH, MID); bn1 = bn_p(MID)
    w2, b2 = conv_p(MID, MID);   bn2 = bn_p(MID)
    w3, b3 = conv_p(MID, MID);   bn3 = bn_p(MID)
    w4, b4 = conv_p(MID, OUT_CH)
    return (w1, b1, bn1, w2, b2, bn2, w3, b3, bn3, w4, b4)


def fold_params(raw):
    """Fold inference-mode BN + bias into 2-D matmul weights / shifts with the
    DENSE tap layout (tap t -> rows [t*cin, (t+1)*cin); tail rows up to KP zero)."""
    (w1, b1, bn1, w2, b2, bn2, w3, b3, bn3, w4, b4) = raw

    def bn_scale_shift(b, bn):
        gamma, beta, mean, var = bn
        s = gamma / jnp.sqrt(var + EPS)          # per out-channel scale
        return s, (b - mean) * s + beta          # folded per-channel shift

    def dense_taps(w):                           # (3,3,cin,cout) -> (KP, cout)
        cin, cout = w.shape[2], w.shape[3]
        k = w.reshape(TAPS * cin, cout)
        return jnp.pad(k, ((0, KP - TAPS * cin), (0, 0)))

    s1, t1 = bn_scale_shift(b1, bn1)
    s2, t2 = bn_scale_shift(b2, bn2)
    s3, t3 = bn_scale_shift(b3, bn3)

    W1 = (w1 * s1).reshape(K1, MID)              # layer-1 im2col is dense (K=36)
    W2 = dense_taps(w2 * s2)
    W3 = dense_taps(w3 * s3)
    W4 = jnp.pad(dense_taps(w4), ((0, 0), (0, OUT_PAD - OUT_CH)))
    B4 = jnp.pad(b4, (0, OUT_PAD - OUT_CH))

    r = lambda v: v.reshape(1, -1)               # (C,) -> (1, C) for broadcasting
    return (W1, r(t1), W2, r(t2), W3, r(t3), W4, r(B4))


# ----------------------------- pure-JAX reference ---------------------------

def cascade_block_ref(x_nchw, raw):
    (w1, b1, bn1, w2, b2, bn2, w3, b3, bn3, w4, b4) = raw
    x = jnp.transpose(x_nchw, (0, 2, 3, 1)).astype(jnp.float32)

    def conv(x, w, b):
        y = lax.conv_general_dilated(
            x, w, window_strides=(1, 1), padding='SAME',
            dimension_numbers=('NHWC', 'HWIO', 'NHWC'),
            precision=lax.Precision.HIGHEST)
        return y + b.reshape(1, 1, 1, -1)

    def bn(y, p):
        gamma, beta, mean, var = p
        return gamma * (y - mean) / jnp.sqrt(var + EPS) + beta

    y = jax.nn.relu(bn(conv(x, w1, b1), bn1))
    y = jax.nn.relu(bn(conv(y, w2, b2), bn2))
    y = jax.nn.relu(bn(conv(y, w3, b3), bn3))
    y = conv(y, w4, b4)
    return jnp.transpose(y, (0, 3, 1, 2))


if __name__ == "__main__":
    key = jax.random.PRNGKey(0)
    kx, kp = jax.random.split(key)
    x = jax.random.normal(kx, (N, IN_CH, H, W), jnp.float32)   # NCHW, PyTorch-style
    raw = init_raw_params(kp)
    params = fold_params(raw)

    out = jax.jit(cascade_block_pallas)(x, params)
    out = jax.block_until_ready(out)

    ref = cascade_block_ref(x, raw)
    assert out.shape == (N, OUT_CH, H, W)
    err = jnp.max(jnp.abs(out - ref))
    assert jnp.allclose(out, ref, rtol=1e-3, atol=1e-3), f"max abs err {err}"

    print("KERNEL_OK")
</pallas_src>

<mosaic_0001>
module attributes {stable_mosaic.version = 11 : i64} {
  func.func @cascade_kernel(%arg0: i32, %arg1: memref<1x288x36xf32, #tpu.memory_space<vmem>>, %arg2: memref<288x1xf32, #tpu.memory_space<vmem>>, %arg3: memref<36x64xf32, #tpu.memory_space<vmem>>, %arg4: memref<1x64xf32, #tpu.memory_space<vmem>>, %arg5: memref<640x64xf32, #tpu.memory_space<vmem>>, %arg6: memref<1x64xf32, #tpu.memory_space<vmem>>, %arg7: memref<640x64xf32, #tpu.memory_space<vmem>>, %arg8: memref<1x64xf32, #tpu.memory_space<vmem>>, %arg9: memref<640x128xf32, #tpu.memory_space<vmem>>, %arg10: memref<1x128xf32, #tpu.memory_space<vmem>>, %arg11: memref<1x288x128xf32, #tpu.memory_space<vmem>>, %arg12: memref<336x64xf32, #tpu.memory_space<vmem>>, %arg13: memref<336x64xf32, #tpu.memory_space<vmem>>, %arg14: memref<288x640xf32, #tpu.memory_space<vmem>>) attributes {dimension_semantics = [#tpu.dimension_semantics<parallel>], iteration_bounds = array<i64: 2>, scalar_prefetch = 0 : i64, scratch_operands = 3 : i64, tpu.core_type = #tpu.core_type<tc>, window_params = [{transform_indices = @transform_0, window_bounds = array<i64: 1, 288, 36>}, {pipeline_mode = #tpu.pipeline_mode<synchronous>, transform_indices = @transform_1, window_bounds = array<i64: 288, 1>}, {pipeline_mode = #tpu.pipeline_mode<synchronous>, transform_indices = @transform_2, window_bounds = array<i64: 36, 64>}, {pipeline_mode = #tpu.pipeline_mode<synchronous>, transform_indices = @transform_3, window_bounds = array<i64: 1, 64>}, {pipeline_mode = #tpu.pipeline_mode<synchronous>, transform_indices = @transform_4, window_bounds = array<i64: 640, 64>}, {pipeline_mode = #tpu.pipeline_mode<synchronous>, transform_indices = @transform_5, window_bounds = array<i64: 1, 64>}, {pipeline_mode = #tpu.pipeline_mode<synchronous>, transform_indices = @transform_6, window_bounds = array<i64: 640, 64>}, {pipeline_mode = #tpu.pipeline_mode<synchronous>, transform_indices = @transform_7, window_bounds = array<i64: 1, 64>}, {pipeline_mode = #tpu.pipeline_mode<synchronous>, transform_indices = @transform_8, window_bounds = array<i64: 640, 128>}, {pipeline_mode = #tpu.pipeline_mode<synchronous>, transform_indices = @transform_9, window_bounds = array<i64: 1, 128>}, {transform_indices = @transform_10, window_bounds = array<i64: 1, 288, 128>}]} {
    %cst = arith.constant 0.000000e+00 : f32
    %0 = vector.broadcast %cst : f32 to vector<24x64xf32>
    %c0 = arith.constant 0 : index
    %c0_0 = arith.constant 0 : index
    %1 = vector.load %arg12[%c0, %c0_0] : memref<336x64xf32, #tpu.memory_space<vmem>>, vector<24x64xf32>
    tpu.vector_store %arg12[%c0, %c0_0], %0 {strides = array<i32>} : memref<336x64xf32, #tpu.memory_space<vmem>>, vector<24x64xf32>,
    %c312 = arith.constant 312 : index
    %c0_1 = arith.constant 0 : index
    %2 = vector.load %arg12[%c312, %c0_1] : memref<336x64xf32, #tpu.memory_space<vmem>>, vector<24x64xf32>
    tpu.vector_store %arg12[%c312, %c0_1], %0 {strides = array<i32>} : memref<336x64xf32, #tpu.memory_space<vmem>>, vector<24x64xf32>,
    %c0_2 = arith.constant 0 : index
    %c0_3 = arith.constant 0 : index
    %3 = vector.load %arg13[%c0_2, %c0_3] : memref<336x64xf32, #tpu.memory_space<vmem>>, vector<24x64xf32>
    tpu.vector_store %arg13[%c0_2, %c0_3], %0 {strides = array<i32>} : memref<336x64xf32, #tpu.memory_space<vmem>>, vector<24x64xf32>,
    %c312_4 = arith.constant 312 : index
    %c0_5 = arith.constant 0 : index
    %4 = vector.load %arg13[%c312_4, %c0_5] : memref<336x64xf32, #tpu.memory_space<vmem>>, vector<24x64xf32>
    tpu.vector_store %arg13[%c312_4, %c0_5], %0 {strides = array<i32>} : memref<336x64xf32, #tpu.memory_space<vmem>>, vector<24x64xf32>,
    %cst_6 = arith.constant 0.000000e+00 : f32
    %5 = vector.broadcast %cst_6 : f32 to vector<288x64xf32>
    %c0_7 = arith.constant 0 : index
    %c576 = arith.constant 576 : index
    %6 = vector.load %arg14[%c0_7, %c576] : memref<288x640xf32, #tpu.memory_space<vmem>>, vector<288x64xf32>
    tpu.vector_store %arg14[%c0_7, %c576], %5 {strides = array<i32>} : memref<288x640xf32, #tpu.memory_space<vmem>>, vector<288x64xf32>,
    %c0_8 = arith.constant 0 : index
    %c0_9 = arith.constant 0 : index
    %7 = vector.load %arg2[%c0_8, %c0_9] : memref<288x1xf32, #tpu.memory_space<vmem>>, vector<288x1xf32>
    %c0_10 = arith.constant 0 : index
    %c0_11 = arith.constant 0 : index
    %c0_12 = arith.constant 0 : index
    %8 = vector.load %arg1[%c0_10, %c0_11, %c0_12] : memref<1x288x36xf32, #tpu.memory_space<vmem>>, vector<1x288x36xf32>
    %9 = vector.shape_cast %8 : vector<1x288x36xf32> to vector<288x36xf32>
    %c0_13 = arith.constant 0 : index
    %c0_14 = arith.constant 0 : index
    %10 = vector.load %arg3[%c0_13, %c0_14] : memref<36x64xf32, #tpu.memory_space<vmem>>, vector<36x64xf32>
    %cst_15 = arith.constant dense<0.000000e+00> : vector<288x64xf32>
    %11 = tpu.matmul %9, %10, %cst_15 {dimension_numbers = #tpu.dot_dimension_numbers<[1], [0], [0], [1], [0, 0, 1, 1], [], []>} : vector<288x36xf32>, vector<36x64xf32>, vector<288x64xf32> -> vector<288x64xf32>
    %c0_16 = arith.constant 0 : index
    %c0_17 = arith.constant 0 : index
    %12 = vector.load %arg4[%c0_16, %c0_17] : memref<1x64xf32, #tpu.memory_space<vmem>>, vector<1x64xf32>
    %13 = vector.broadcast %12 : vector<1x64xf32> to vector<288x64xf32>
    %14 = arith.addf %11, %13 : vector<288x64xf32>
    %cst_18 = arith.constant 0.000000e+00 : f32
    %15 = vector.broadcast %cst_18 : f32 to vector<288x64xf32>
    %16 = arith.maximumf %14, %15 : vector<288x64xf32>
    %17 = vector.broadcast %7 : vector<288x1xf32> to vector<288x64xf32>
    %18 = arith.mulf %16, %17 : vector<288x64xf32>
    %c24 = arith.constant 24 : index
    %c0_19 = arith.constant 0 : index
    %19 = vector.load %arg12[%c24, %c0_19] : memref<336x64xf32, #tpu.memory_space<vmem>>, vector<288x64xf32>
    tpu.vector_store %arg12[%c24, %c0_19], %18 {strides = array<i32>} : memref<336x64xf32, #tpu.memory_space<vmem>>, vector<288x64xf32>,
    %c5 = arith.constant 5 : index
    %c0_20 = arith.constant 0 : index
    %20 = vector.load %arg12[%c5, %c0_20] : memref<336x64xf32, #tpu.memory_space<vmem>>, vector<288x64xf32>
    %c0_21 = arith.constant 0 : index
    %c0_22 = arith.constant 0 : index
    %21 = vector.load %arg14[%c0_21, %c0_22] : memref<288x640xf32, #tpu.memory_space<vmem>>, vector<288x64xf32>
    tpu.vector_store %arg14[%c0_21, %c0_22], %20 {strides = array<i32>} : memref<288x640xf32, #tpu.memory_space<vmem>>, vector<288x64xf32>,
    %c6 = arith.constant 6 : index
    %c0_23 = arith.constant 0 : index
    %22 = vector.load %arg12[%c6, %c0_23] : memref<336x64xf32, #tpu.memory_space<vmem>>, vector<288x64xf32>
    %c0_24 = arith.constant 0 : index
    %c64 = arith.constant 64 : index
    %23 = vector.load %arg14[%c0_24, %c64] : memref<288x640xf32, #tpu.memory_space<vmem>>, vector<288x64xf32>
    tpu.vector_store %arg14[%c0_24, %c64], %22 {strides = array<i32>} : memref<288x640xf32, #tpu.memory_space<vmem>>, vector<288x64xf32>,
    %c7 = arith.constant 7 : index
    %c0_25 = arith.constant 0 : index
    %24 = vector.load %arg12[%c7, %c0_25] : memref<336x64xf32, #tpu.memory_space<vmem>>, vector<288x64xf32>
    %c0_26 = arith.constant 0 : index
    %c128 = arith.constant 128 : index
    %25 = vector.load %arg14[%c0_26, %c128] : memref<288x640xf32, #tpu.memory_space<vmem>>, vector<288x64xf32>
    tpu.vector_store %arg14[%c0_26, %c128], %24 {strides = array<i32>} : memref<288x640xf32, #tpu.memory_space<vmem>>, vector<288x64xf32>,
    %c23 = arith.constant 23 : index
    %c0_27 = arith.constant 0 : index
    %26 = vector.load %arg12[%c23, %c0_27] : memref<336x64xf32, #tpu.memory_space<vmem>>, vector<288x64xf32>
    %c0_28 = arith.constant 0 : index
    %c192 = arith.constant 192 : index
    %27 = vector.load %arg14[%c0_28, %c192] : memref<288x640xf32, #tpu.memory_space<vmem>>, vector<288x64xf32>
    tpu.vector_store %arg14[%c0_28, %c192], %26 {strides = array<i32>} : memref<288x640xf32, #tpu.memory_space<vmem>>, vector<288x64xf32>,
    %c24_29 = arith.constant 24 : index
    %c0_30 = arith.constant 0 : index
    %28 = vector.load %arg12[%c24_29, %c0_30] : memref<336x64xf32, #tpu.memory_space<vmem>>, vector<288x64xf32>
    %c0_31 = arith.constant 0 : index
    %c256 = arith.constant 256 : index
    %29 = vector.load %arg14[%c0_31, %c256] : memref<288x640xf32, #tpu.memory_space<vmem>>, vector<288x64xf32>
    tpu.vector_store %arg14[%c0_31, %c256], %28 {strides = array<i32>} : memref<288x640xf32, #tpu.memory_space<vmem>>, vector<288x64xf32>,
    %c25 = arith.constant 25 : index
    %c0_32 = arith.constant 0 : index
    %30 = vector.load %arg12[%c25, %c0_32] : memref<336x64xf32, #tpu.memory_space<vmem>>, vector<288x64xf32>
    %c0_33 = arith.constant 0 : index
    %c320 = arith.constant 320 : index
    %31 = vector.load %arg14[%c0_33, %c320] : memref<288x640xf32, #tpu.memory_space<vmem>>, vector<288x64xf32>
    tpu.vector_store %arg14[%c0_33, %c320], %30 {strides = array<i32>} : memref<288x640xf32, #tpu.memory_space<vmem>>, vector<288x64xf32>,
    %c41 = arith.constant 41 : index
    %c0_34 = arith.constant 0 : index
    %32 = vector.load %arg12[%c41, %c0_34] : memref<336x64xf32, #tpu.memory_space<vmem>>, vector<288x64xf32>
    %c0_35 = arith.constant 0 : index
    %c384 = arith.constant 384 : index
    %33 = vector.load %arg14[%c0_35, %c384] : memref<288x640xf32, #tpu.memory_space<vmem>>, vector<288x64xf32>
    tpu.vector_store %arg14[%c0_35, %c384], %32 {strides = array<i32>} : memref<288x640xf32, #tpu.memory_space<vmem>>, vector<288x64xf32>,
    %c42 = arith.constant 42 : index
    %c0_36 = arith.constant 0 : index
    %34 = vector.load %arg12[%c42, %c0_36] : memref<336x64xf32, #tpu.memory_space<vmem>>, vector<288x64xf32>
    %c0_37 = arith.constant 0 : index
    %c448 = arith.constant 448 : index
    %35 = vector.load %arg14[%c0_37, %c448] : memref<288x640xf32, #tpu.memory_space<vmem>>, vector<288x64xf32>
    tpu.vector_store %arg14[%c0_37, %c448], %34 {strides = array<i32>} : memref<288x640xf32, #tpu.memory_space<vmem>>, vector<288x64xf32>,
    %c43 = arith.constant 43 : index
    %c0_38 = arith.constant 0 : index
    %36 = vector.load %arg12[%c43, %c0_38] : memref<336x64xf32, #tpu.memory_space<vmem>>, vector<288x64xf32>
    %c0_39 = arith.constant 0 : index
    %c512 = arith.constant 512 : index
    %37 = vector.load %arg14[%c0_39, %c512] : memref<288x640xf32, #tpu.memory_space<vmem>>, vector<288x64xf32>
    tpu.vector_store %arg14[%c0_39, %c512], %36 {strides = array<i32>} : memref<288x640xf32, #tpu.memory_space<vmem>>, vector<288x64xf32>,
    %c0_40 = arith.constant 0 : index
    %c0_41 = arith.constant 0 : index
    %38 = vector.load %arg14[%c0_40, %c0_41] : memref<288x640xf32, #tpu.memory_space<vmem>>, vector<288x640xf32>
    %c0_42 = arith.constant 0 : index
    %c0_43 = arith.constant 0 : index
    %39 = vector.load %arg5[%c0_42, %c0_43] : memref<640x64xf32, #tpu.memory_space<vmem>>, vector<640x64xf32>
    %cst_44 = arith.constant dense<0.000000e+00> : vector<288x64xf32>
    %40 = tpu.matmul %38, %39, %cst_44 {dimension_numbers = #tpu.dot_dimension_numbers<[1], [0], [0], [1], [0, 0, 1, 1], [], []>} : vector<288x640xf32>, vector<640x64xf32>, vector<288x64xf32> -> vector<288x64xf32>
    %c0_45 = arith.constant 0 : index
    %c0_46 = arith.constant 0 : index
    %41 = vector.load %arg6[%c0_45, %c0_46] : memref<1x64xf32, #tpu.memory_space<vmem>>, vector<1x64xf32>
    %42 = vector.broadcast %41 : vector<1x64xf32> to vector<288x64xf32>
    %43 = arith.addf %40, %42 : vector<288x64xf32>
    %cst_47 = arith.constant 0.000000e+00 : f32
    %44 = vector.broadcast %cst_47 : f32 to vector<288x64xf32>
    %45 = arith.maximumf %43, %44 : vector<288x64xf32>
    %46 = vector.broadcast %7 : vector<288x1xf32> to vector<288x64xf32>
    %47 = arith.mulf %45, %46 : vector<288x64xf32>
    %c24_48 = arith.constant 24 : index
    %c0_49 = arith.constant 0 : index
    %48 = vector.load %arg13[%c24_48, %c0_49] : memref<336x64xf32, #tpu.memory_space<vmem>>, vector<288x64xf32>
    tpu.vector_store %arg13[%c24_48, %c0_49], %47 {strides = array<i32>} : memref<336x64xf32, #tpu.memory_space<vmem>>, vector<288x64xf32>,
    %c5_50 = arith.constant 5 : index
    %c0_51 = arith.constant 0 : index
    %49 = vector.load %arg13[%c5_50, %c0_51] : memref<336x64xf32, #tpu.memory_space<vmem>>, vector<288x64xf32>
    %c0_52 = arith.constant 0 : index
    %c0_53 = arith.constant 0 : index
    %50 = vector.load %arg14[%c0_52, %c0_53] : memref<288x640xf32, #tpu.memory_space<vmem>>, vector<288x64xf32>
    tpu.vector_store %arg14[%c0_52, %c0_53], %49 {strides = array<i32>} : memref<288x640xf32, #tpu.memory_space<vmem>>, vector<288x64xf32>,
    %c6_54 = arith.constant 6 : index
    %c0_55 = arith.constant 0 : index
    %51 = vector.load %arg13[%c6_54, %c0_55] : memref<336x64xf32, #tpu.memory_space<vmem>>, vector<288x64xf32>
    %c0_56 = arith.constant 0 : index
    %c64_57 = arith.constant 64 : index
    %52 = vector.load %arg14[%c0_56, %c64_57] : memref<288x640xf32, #tpu.memory_space<vmem>>, vector<288x64xf32>
    tpu.vector_store %arg14[%c0_56, %c64_57], %51 {strides = array<i32>} : memref<288x640xf32, #tpu.memory_space<vmem>>, vector<288x64xf32>,
    %c7_58 = arith.constant 7 : index
    %c0_59 = arith.constant 0 : index
    %53 = vector.load %arg13[%c7_58, %c0_59] : memref<336x64xf32, #tpu.memory_space<vmem>>, vector<288x64xf32>
    %c0_60 = arith.constant 0 : index
    %c128_61 = arith.constant 128 : index
    %54 = vector.load %arg14[%c0_60, %c128_61] : memref<288x640xf32, #tpu.memory_space<vmem>>, vector<288x64xf32>
    tpu.vector_store %arg14[%c0_60, %c128_61], %53 {strides = array<i32>} : memref<288x640xf32, #tpu.memory_space<vmem>>, vector<288x64xf32>,
    %c23_62 = arith.constant 23 : index
    %c0_63 = arith.constant 0 : index
    %55 = vector.load %arg13[%c23_62, %c0_63] : memref<336x64xf32, #tpu.memory_space<vmem>>, vector<288x64xf32>
    %c0_64 = arith.constant 0 : index
    %c192_65 = arith.constant 192 : index
    %56 = vector.load %arg14[%c0_64, %c192_65] : memref<288x640xf32, #tpu.memory_space<vmem>>, vector<288x64xf32>
    tpu.vector_store %arg14[%c0_64, %c192_65], %55 {strides = array<i32>} : memref<288x640xf32, #tpu.memory_space<vmem>>, vector<288x64xf32>,
    %c24_66 = arith.constant 24 : index
    %c0_67 = arith.constant 0 : index
    %57 = vector.load %arg13[%c24_66, %c0_67] : memref<336x64xf32, #tpu.memory_space<vmem>>, vector<288x64xf32>
    %c0_68 = arith.constant 0 : index
    %c256_69 = arith.constant 256 : index
    %58 = vector.load %arg14[%c0_68, %c256_69] : memref<288x640xf32, #tpu.memory_space<vmem>>, vector<288x64xf32>
    tpu.vector_store %arg14[%c0_68, %c256_69], %57 {strides = array<i32>} : memref<288x640xf32, #tpu.memory_space<vmem>>, vector<288x64xf32>,
    %c25_70 = arith.constant 25 : index
    %c0_71 = arith.constant 0 : index
    %59 = vector.load %arg13[%c25_70, %c0_71] : memref<336x64xf32, #tpu.memory_space<vmem>>, vector<288x64xf32>
    %c0_72 = arith.constant 0 : index
    %c320_73 = arith.constant 320 : index
    %60 = vector.load %arg14[%c0_72, %c320_73] : memref<288x640xf32, #tpu.memory_space<vmem>>, vector<288x64xf32>
    tpu.vector_store %arg14[%c0_72, %c320_73], %59 {strides = array<i32>} : memref<288x640xf32, #tpu.memory_space<vmem>>, vector<288x64xf32>,
    %c41_74 = arith.constant 41 : index
    %c0_75 = arith.constant 0 : index
    %61 = vector.load %arg13[%c41_74, %c0_75] : memref<336x64xf32, #tpu.memory_space<vmem>>, vector<288x64xf32>
    %c0_76 = arith.constant 0 : index
    %c384_77 = arith.constant 384 : index
    %62 = vector.load %arg14[%c0_76, %c384_77] : memref<288x640xf32, #tpu.memory_space<vmem>>, vector<288x64xf32>
    tpu.vector_store %arg14[%c0_76, %c384_77], %61 {strides = array<i32>} : memref<288x640xf32, #tpu.memory_space<vmem>>, vector<288x64xf32>,
    %c42_78 = arith.constant 42 : index
    %c0_79 = arith.constant 0 : index
    %63 = vector.load %arg13[%c42_78, %c0_79] : memref<336x64xf32, #tpu.memory_space<vmem>>, vector<288x64xf32>
    %c0_80 = arith.constant 0 : index
    %c448_81 = arith.constant 448 : index
    %64 = vector.load %arg14[%c0_80, %c448_81] : memref<288x640xf32, #tpu.memory_space<vmem>>, vector<288x64xf32>
    tpu.vector_store %arg14[%c0_80, %c448_81], %63 {strides = array<i32>} : memref<288x640xf32, #tpu.memory_space<vmem>>, vector<288x64xf32>,
    %c43_82 = arith.constant 43 : index
    %c0_83 = arith.constant 0 : index
    %65 = vector.load %arg13[%c43_82, %c0_83] : memref<336x64xf32, #tpu.memory_space<vmem>>, vector<288x64xf32>
    %c0_84 = arith.constant 0 : index
    %c512_85 = arith.constant 512 : index
    %66 = vector.load %arg14[%c0_84, %c512_85] : memref<288x640xf32, #tpu.memory_space<vmem>>, vector<288x64xf32>
    tpu.vector_store %arg14[%c0_84, %c512_85], %65 {strides = array<i32>} : memref<288x640xf32, #tpu.memory_space<vmem>>, vector<288x64xf32>,
    %c0_86 = arith.constant 0 : index
    %c0_87 = arith.constant 0 : index
    %67 = vector.load %arg14[%c0_86, %c0_87] : memref<288x640xf32, #tpu.memory_space<vmem>>, vector<288x640xf32>
    %c0_88 = arith.constant 0 : index
    %c0_89 = arith.constant 0 : index
    %68 = vector.load %arg7[%c0_88, %c0_89] : memref<640x64xf32, #tpu.memory_space<vmem>>, vector<640x64xf32>
    %cst_90 = arith.constant dense<0.000000e+00> : vector<288x64xf32>
    %69 = tpu.matmul %67, %68, %cst_90 {dimension_numbers = #tpu.dot_dimension_numbers<[1], [0], [0], [1], [0, 0, 1, 1], [], []>} : vector<288x640xf32>, vector<640x64xf32>, vector<288x64xf32> -> vector<288x64xf32>
    %c0_91 = arith.constant 0 : index
    %c0_92 = arith.constant 0 : index
    %70 = vector.load %arg8[%c0_91, %c0_92] : memref<1x64xf32, #tpu.memory_space<vmem>>, vector<1x64xf32>
    %71 = vector.broadcast %70 : vector<1x64xf32> to vector<288x64xf32>
    %72 = arith.addf %69, %71 : vector<288x64xf32>
    %cst_93 = arith.constant 0.000000e+00 : f32
    %73 = vector.broadcast %cst_93 : f32 to vector<288x64xf32>
    %74 = arith.maximumf %72, %73 : vector<288x64xf32>
    %75 = vector.broadcast %7 : vector<288x1xf32> to vector<288x64xf32>
    %76 = arith.mulf %74, %75 : vector<288x64xf32>
    %c24_94 = arith.constant 24 : index
    %c0_95 = arith.constant 0 : index
    %77 = vector.load %arg12[%c24_94, %c0_95] : memref<336x64xf32, #tpu.memory_space<vmem>>, vector<288x64xf32>
    tpu.vector_store %arg12[%c24_94, %c0_95], %76 {strides = array<i32>} : memref<336x64xf32, #tpu.memory_space<vmem>>, vector<288x64xf32>,
    %c5_96 = arith.constant 5 : index
    %c0_97 = arith.constant 0 : index
    %78 = vector.load %arg12[%c5_96, %c0_97] : memref<336x64xf32, #tpu.memory_space<vmem>>, vector<288x64xf32>
    %c0_98 = arith.constant 0 : index
    %c0_99 = arith.constant 0 : index
    %79 = vector.load %arg14[%c0_98, %c0_99] : memref<288x640xf32, #tpu.memory_space<vmem>>, vector<288x64xf32>
    tpu.vector_store %arg14[%c0_98, %c0_99], %78 {strides = array<i32>} : memref<288x640xf32, #tpu.memory_space<vmem>>, vector<288x64xf32>,
    %c6_100 = arith.constant 6 : index
    %c0_101 = arith.constant 0 : index
    %80 = vector.load %arg12[%c6_100, %c0_101] : memref<336x64xf32, #tpu.memory_space<vmem>>, vector<288x64xf32>
    %c0_102 = arith.constant 0 : index
    %c64_103 = arith.constant 64 : index
    %81 = vector.load %arg14[%c0_102, %c64_103] : memref<288x640xf32, #tpu.memory_space<vmem>>, vector<288x64xf32>
    tpu.vector_store %arg14[%c0_102, %c64_103], %80 {strides = array<i32>} : memref<288x640xf32, #tpu.memory_space<vmem>>, vector<288x64xf32>,
    %c7_104 = arith.constant 7 : index
    %c0_105 = arith.constant 0 : index
    %82 = vector.load %arg12[%c7_104, %c0_105] : memref<336x64xf32, #tpu.memory_space<vmem>>, vector<288x64xf32>
    %c0_106 = arith.constant 0 : index
    %c128_107 = arith.constant 128 : index
    %83 = vector.load %arg14[%c0_106, %c128_107] : memref<288x640xf32, #tpu.memory_space<vmem>>, vector<288x64xf32>
    tpu.vector_store %arg14[%c0_106, %c128_107], %82 {strides = array<i32>} : memref<288x640xf32, #tpu.memory_space<vmem>>, vector<288x64xf32>,
    %c23_108 = arith.constant 23 : index
    %c0_109 = arith.constant 0 : index
    %84 = vector.load %arg12[%c23_108, %c0_109] : memref<336x64xf32, #tpu.memory_space<vmem>>, vector<288x64xf32>
    %c0_110 = arith.constant 0 : index
    %c192_111 = arith.constant 192 : index
    %85 = vector.load %arg14[%c0_110, %c192_111] : memref<288x640xf32, #tpu.memory_space<vmem>>, vector<288x64xf32>
    tpu.vector_store %arg14[%c0_110, %c192_111], %84 {strides = array<i32>} : memref<288x640xf32, #tpu.memory_space<vmem>>, vector<288x64xf32>,
    %c24_112 = arith.constant 24 : index
    %c0_113 = arith.constant 0 : index
    %86 = vector.load %arg12[%c24_112, %c0_113] : memref<336x64xf32, #tpu.memory_space<vmem>>, vector<288x64xf32>
    %c0_114 = arith.constant 0 : index
    %c256_115 = arith.constant 256 : index
    %87 = vector.load %arg14[%c0_114, %c256_115] : memref<288x640xf32, #tpu.memory_space<vmem>>, vector<288x64xf32>
    tpu.vector_store %arg14[%c0_114, %c256_115], %86 {strides = array<i32>} : memref<288x640xf32, #tpu.memory_space<vmem>>, vector<288x64xf32>,
    %c25_116 = arith.constant 25 : index
    %c0_117 = arith.constant 0 : index
    %88 = vector.load %arg12[%c25_116, %c0_117] : memref<336x64xf32, #tpu.memory_space<vmem>>, vector<288x64xf32>
    %c0_118 = arith.constant 0 : index
    %c320_119 = arith.constant 320 : index
    %89 = vector.load %arg14[%c0_118, %c320_119] : memref<288x640xf32, #tpu.memory_space<vmem>>, vector<288x64xf32>
    tpu.vector_store %arg14[%c0_118, %c320_119], %88 {strides = array<i32>} : memref<288x640xf32, #tpu.memory_space<vmem>>, vector<288x64xf32>,
    %c41_120 = arith.constant 41 : index
    %c0_121 = arith.constant 0 : index
    %90 = vector.load %arg12[%c41_120, %c0_121] : memref<336x64xf32, #tpu.memory_space<vmem>>, vector<288x64xf32>
    %c0_122 = arith.constant 0 : index
    %c384_123 = arith.constant 384 : index
    %91 = vector.load %arg14[%c0_122, %c384_123] : memref<288x640xf32, #tpu.memory_space<vmem>>, vector<288x64xf32>
    tpu.vector_store %arg14[%c0_122, %c384_123], %90 {strides = array<i32>} : memref<288x640xf32, #tpu.memory_space<vmem>>, vector<288x64xf32>,
    %c42_124 = arith.constant 42 : index
    %c0_125 = arith.constant 0 : index
    %92 = vector.load %arg12[%c42_124, %c0_125] : memref<336x64xf32, #tpu.memory_space<vmem>>, vector<288x64xf32>
    %c0_126 = arith.constant 0 : index
    %c448_127 = arith.constant 448 : index
    %93 = vector.load %arg14[%c0_126, %c448_127] : memref<288x640xf32, #tpu.memory_space<vmem>>, vector<288x64xf32>
    tpu.vector_store %arg14[%c0_126, %c448_127], %92 {strides = array<i32>} : memref<288x640xf32, #tpu.memory_space<vmem>>, vector<288x64xf32>,
    %c43_128 = arith.constant 43 : index
    %c0_129 = arith.constant 0 : index
    %94 = vector.load %arg12[%c43_128, %c0_129] : memref<336x64xf32, #tpu.memory_space<vmem>>, vector<288x64xf32>
    %c0_130 = arith.constant 0 : index
    %c512_131 = arith.constant 512 : index
    %95 = vector.load %arg14[%c0_130, %c512_131] : memref<288x640xf32, #tpu.memory_space<vmem>>, vector<288x64xf32>
    tpu.vector_store %arg14[%c0_130, %c512_131], %94 {strides = array<i32>} : memref<288x640xf32, #tpu.memory_space<vmem>>, vector<288x64xf32>,
    %c0_132 = arith.constant 0 : index
    %c0_133 = arith.constant 0 : index
    %96 = vector.load %arg14[%c0_132, %c0_133] : memref<288x640xf32, #tpu.memory_space<vmem>>, vector<288x640xf32>
    %c0_134 = arith.constant 0 : index
    %c0_135 = arith.constant 0 : index
    %97 = vector.load %arg9[%c0_134, %c0_135] : memref<640x128xf32, #tpu.memory_space<vmem>>, vector<640x128xf32>
    %cst_136 = arith.constant dense<0.000000e+00> : vector<288x128xf32>
    %98 = tpu.matmul %96, %97, %cst_136 {dimension_numbers = #tpu.dot_dimension_numbers<[1], [0], [0], [1], [0, 0, 1, 1], [], []>} : vector<288x640xf32>, vector<640x128xf32>, vector<288x128xf32> -> vector<288x128xf32>
    %c0_137 = arith.constant 0 : index
    %c0_138 = arith.constant 0 : index
    %99 = vector.load %arg10[%c0_137, %c0_138] : memref<1x128xf32, #tpu.memory_space<vmem>>, vector<1x128xf32>
    %100 = vector.broadcast %99 : vector<1x128xf32> to vector<288x128xf32>
    %101 = arith.addf %98, %100 : vector<288x128xf32>
    %c0_139 = arith.constant 0 : index
    %c0_140 = arith.constant 0 : index
    %c0_141 = arith.constant 0 : index
    %102 = vector.load %arg11[%c0_139, %c0_140, %c0_141] : memref<1x288x128xf32, #tpu.memory_space<vmem>>, vector<1x288x128xf32>
    %103 = vector.shape_cast %102 : vector<1x288x128xf32> to vector<288x128xf32>
    %104 = vector.shape_cast %101 : vector<288x128xf32> to vector<1x288x128xf32>
    tpu.vector_store %arg11[%c0_139, %c0_140, %c0_141], %104 {strides = array<i32>} : memref<1x288x128xf32, #tpu.memory_space<vmem>>, vector<1x288x128xf32>,
    return
  }
  func.func @transform_0(%arg0: i32) -> (i32, i32, i32) {
    %c0_i32 = arith.constant 0 : i32
    %c0_i32_0 = arith.constant 0 : i32
    %c0_i32_1 = arith.constant 0 : i32
    return %arg0, %c0_i32, %c0_i32_0 : i32, i32, i32
  }
  func.func @transform_1(%arg0: i32) -> (i32, i32) {
    %c0_i32 = arith.constant 0 : i32
    %c0_i32_0 = arith.constant 0 : i32
    %c0_i32_1 = arith.constant 0 : i32
    return %c0_i32, %c0_i32_0 : i32, i32
  }
  func.func @transform_2(%arg0: i32) -> (i32, i32) {
    %c0_i32 = arith.constant 0 : i32
    %c0_i32_0 = arith.constant 0 : i32
    %c0_i32_1 = arith.constant 0 : i32
    return %c0_i32, %c0_i32_0 : i32, i32
  }
  func.func @transform_3(%arg0: i32) -> (i32, i32) {
    %c0_i32 = arith.constant 0 : i32
    %c0_i32_0 = arith.constant 0 : i32
    %c0_i32_1 = arith.constant 0 : i32
    return %c0_i32, %c0_i32_0 : i32, i32
  }
  func.func @transform_4(%arg0: i32) -> (i32, i32) {
    %c0_i32 = arith.constant 0 : i32
    %c0_i32_0 = arith.constant 0 : i32
    %c0_i32_1 = arith.constant 0 : i32
    return %c0_i32, %c0_i32_0 : i32, i32
  }
  func.func @transform_5(%arg0: i32) -> (i32, i32) {
    %c0_i32 = arith.constant 0 : i32
    %c0_i32_0 = arith.constant 0 : i32
    %c0_i32_1 = arith.constant 0 : i32
    return %c0_i32, %c0_i32_0 : i32, i32
  }
  func.func @transform_6(%arg0: i32) -> (i32, i32) {
    %c0_i32 = arith.constant 0 : i32
    %c0_i32_0 = arith.constant 0 : i32
    %c0_i32_1 = arith.constant 0 : i32
    return %c0_i32, %c0_i32_0 : i32, i32
  }
  func.func @transform_7(%arg0: i32) -> (i32, i32) {
    %c0_i32 = arith.constant 0 : i32
    %c0_i32_0 = arith.constant 0 : i32
    %c0_i32_1 = arith.constant 0 : i32
    return %c0_i32, %c0_i32_0 : i32, i32
  }
  func.func @transform_8(%arg0: i32) -> (i32, i32) {
    %c0_i32 = arith.constant 0 : i32
    %c0_i32_0 = arith.constant 0 : i32
    %c0_i32_1 = arith.constant 0 : i32
    return %c0_i32, %c0_i32_0 : i32, i32
  }
  func.func @transform_9(%arg0: i32) -> (i32, i32) {
    %c0_i32 = arith.constant 0 : i32
    %c0_i32_0 = arith.constant 0 : i32
    %c0_i32_1 = arith.constant 0 : i32
    return %c0_i32, %c0_i32_0 : i32, i32
  }
  func.func @transform_10(%arg0: i32) -> (i32, i32, i32) {
    %c0_i32 = arith.constant 0 : i32
    %c0_i32_0 = arith.constant 0 : i32
    %c0_i32_1 = arith.constant 0 : i32
    return %arg0, %c0_i32, %c0_i32_0 : i32, i32, i32
  }
}

</mosaic_0001>

<llo_original>
// kernel: cascade_block_pallas.1
$region0: #{cascade_block_pallas.1}
  #allocation0 [shape = 'u32[]', space=smem, size = 0x4, offset = 0x4, fixed_abs, tag = 'smem constant byte address 0x4 - core index']
  #allocation1 [shape = 'u32[144,128]{1,0:T(1,128)}', space=vmem, size = 0x12000, scoped, tag = 'internal scratch']
  #allocation2 [shape = 'f32[336,64]{1,0:T(8,128)}', space=vmem, size = 0x2a000, scoped, tag = 'scratch operand']
  #allocation3 [shape = 'f32[336,64]{1,0:T(8,128)}', space=vmem, size = 0x2a000, scoped, tag = 'scratch operand']
  #allocation4 [shape = 'f32[288,640]{1,0:T(8,128)}', space=vmem, size = 0xb4000, scoped, tag = 'scratch operand']
  %s0 = inlined_call_operand.vmem [shape: f32[2,288,36], index: 0, kind: input, shape index: {}]
  %s1 = inlined_call_operand.vmem [shape: f32[288,1], index: 1, kind: input, shape index: {}]
  %s2 = inlined_call_operand.vmem [shape: f32[36,64], index: 2, kind: input, shape index: {}]
  %s3 = inlined_call_operand.vmem [shape: f32[1,64], index: 3, kind: input, shape index: {}]
  %s4 = inlined_call_operand.vmem [shape: f32[640,64], index: 4, kind: input, shape index: {}]
  %s5 = inlined_call_operand.vmem [shape: f32[1,64], index: 5, kind: input, shape index: {}]
  %s6 = inlined_call_operand.vmem [shape: f32[640,64], index: 6, kind: input, shape index: {}]
  %s7 = inlined_call_operand.vmem [shape: f32[1,64], index: 7, kind: input, shape index: {}]
  %s8 = inlined_call_operand.vmem [shape: f32[640,128], index: 8, kind: input, shape index: {}]
  %s9 = inlined_call_operand.vmem [shape: f32[1,128], index: 9, kind: input, shape index: {}]
  %s10 = inlined_call_operand.vmem [shape: f32[2,288,128], index: 10, kind: output, shape index: {}]
  %s11 = sld [smem:[#allocation0]]
  $region73: #{cascade_block_pallas.1} parent=0
    _
  %s13 = ssub.s32 1, %s11
  %s14 = scalar_select 0, %s13, %s11
  loop: start=0, step=1, limit=4
  $region2: #{cascade_block_pallas.1} parent=0 // loop_pre_header
    _
  $region3: #{cascade_block_pallas.1} parent=0 // loop_header
    %s16 = sphi 0, %s20
    %p17 = scmp.ge.s32.totalorder %s16, 4
    %s26 = sphi 0, %s28
    %s29 = sphi 0, %s26
    %s30 = sphi 0, %s29
    %s46 = sphi 0, %s30
    %s50 = sphi 0, %s50
    %s52 = sphi 0, %s50
    %s53 = sphi 0, %s52
    %s67 = sphi 0, %s53
    %s71 = sphi 0, %s71
    %s73 = sphi 0, %s71
    %s74 = sphi 0, %s73
    %s88 = sphi 0, %s74
    %s92 = sphi 0, %s92
    %s94 = sphi 0, %s92
    %s95 = sphi 0, %s94
    %s109 = sphi 0, %s95
    %s113 = sphi 0, %s113
    %s115 = sphi 0, %s113
    %s116 = sphi 0, %s115
    %s130 = sphi 0, %s116
    %s134 = sphi 0, %s134
    %s136 = sphi 0, %s134
    %s137 = sphi 0, %s136
    %s151 = sphi 0, %s137
    %s155 = sphi 0, %s155
    %s157 = sphi 0, %s155
    %s158 = sphi 0, %s157
    %s172 = sphi 0, %s158
    %s176 = sphi 0, %s176
    %s178 = sphi 0, %s176
    %s179 = sphi 0, %s178
    %s193 = sphi 0, %s179
    %s197 = sphi 0, %s197
    %s199 = sphi 0, %s197
    %s200 = sphi 0, %s199
    %s214 = sphi 0, %s200
    %s218 = sphi 0, %s218
    %s220 = sphi 0, %s218
    %s221 = sphi 0, %s220
    %s235 = sphi 0, %s221
    %s241 = sphi 0, %s243
    %s244 = sphi 0, %s241
    %s245 = sphi 0, %s244
    %s261 = sphi 0, %s245
  $region4: #{cascade_block_pallas.1} parent=0 // loop_header_branch
    %19 = sbr.rel (%p17) target = $region8
  $region5: #{cascade_block_pallas.1} parent=0 // loop_body
    %s21 = ssub.s32 %s16, 1
    %s22 = ssub.s32 %s16, 2
    %s23 = sadd.s32 %s16, 1
    %s24 = ssub.s32 %s16, %s23
    %p25 = scmp.eq.s32.totalorder %s24, 0
    %s27 = sadd.s32 %s26, 1
    %s28 = scalar_select %p25, %s26, %s27
    %p31 = pneg %p25
    %p32 = scmp.eq.s32.totalorder %s16, 1
    %p33 = por %p31, %p32
    %p34 = scmp.ne.s32.totalorder %s26, %s29
    %p35 = scmp.eq.s32.totalorder %s16, 0
    %p36 = por %p34, %p35
    %p37 = scmp.ne.s32.totalorder %s26, %s29
    %p38 = scmp.eq.s32.totalorder %s21, 1
    %p39 = por %p37, %p38
    %p40 = scmp.ne.s32.totalorder %s29, %s30
    %p41 = scmp.eq.s32.totalorder %s21, 0
    %p42 = por %p40, %p41
    %p43 = scmp.ne.s32.totalorder %s29, %s30
    %p44 = scmp.eq.s32.totalorder %s22, 1
    %p45 = por %p43, %p44
    %p47 = scmp.ne.s32.totalorder %s30, %s46
    %p48 = scmp.eq.s32.totalorder %s22, 0
    %p49 = por %p47, %p48
    %s51 = sadd.s32 %s50, 1
    %p54 = scmp.eq.s32.totalorder %s16, 1
    %p55 = scmp.ne.s32.totalorder %s50, %s52
    %p56 = scmp.eq.s32.totalorder %s16, 0
    %p57 = por %p55, %p56
    %p58 = scmp.ne.s32.totalorder %s50, %s52
    %p59 = scmp.eq.s32.totalorder %s21, 1
    %p60 = por %p58, %p59
    %p61 = scmp.ne.s32.totalorder %s52, %s53
    %p62 = scmp.eq.s32.totalorder %s21, 0
    %p63 = por %p61, %p62
    %p64 = scmp.ne.s32.totalorder %s52, %s53
    %p65 = scmp.eq.s32.totalorder %s22, 1
    %p66 = por %p64, %p65
    %p68 = scmp.ne.s32.totalorder %s53, %s67
    %p69 = scmp.eq.s32.totalorder %s22, 0
    %p70 = por %p68, %p69
    %s72 = sadd.s32 %s71, 1
    %p75 = scmp.eq.s32.totalorder %s16, 1
    %p76 = scmp.ne.s32.totalorder %s71, %s73
    %p77 = scmp.eq.s32.totalorder %s16, 0
    %p78 = por %p76, %p77
    %p79 = scmp.ne.s32.totalorder %s71, %s73
    %p80 = scmp.eq.s32.totalorder %s21, 1
    %p81 = por %p79, %p80
    %p82 = scmp.ne.s32.totalorder %s73, %s74
    %p83 = scmp.eq.s32.totalorder %s21, 0
    %p84 = por %p82, %p83
    %p85 = scmp.ne.s32.totalorder %s73, %s74
    %p86 = scmp.eq.s32.totalorder %s22, 1
    %p87 = por %p85, %p86
    %p89 = scmp.ne.s32.totalorder %s74, %s88
    %p90 = scmp.eq.s32.totalorder %s22, 0
    %p91 = por %p89, %p90
    %s93 = sadd.s32 %s92, 1
    %p96 = scmp.eq.s32.totalorder %s16, 1
    %p97 = scmp.ne.s32.totalorder %s92, %s94
    %p98 = scmp.eq.s32.totalorder %s16, 0
    %p99 = por %p97, %p98
    %p100 = scmp.ne.s32.totalorder %s92, %s94
    %p101 = scmp.eq.s32.totalorder %s21, 1
    %p102 = por %p100, %p101
    %p103 = scmp.ne.s32.totalorder %s94, %s95
    %p104 = scmp.eq.s32.totalorder %s21, 0
    %p105 = por %p103, %p104
    %p106 = scmp.ne.s32.totalorder %s94, %s95
    %p107 = scmp.eq.s32.totalorder %s22, 1
    %p108 = por %p106, %p107
    %p110 = scmp.ne.s32.totalorder %s95, %s109
    %p111 = scmp.eq.s32.totalorder %s22, 0
    %p112 = por %p110, %p111
    %s114 = sadd.s32 %s113, 1
    %p117 = scmp.eq.s32.totalorder %s16, 1
    %p118 = scmp.ne.s32.totalorder %s113, %s115
    %p119 = scmp.eq.s32.totalorder %s16, 0
    %p120 = por %p118, %p119
    %p121 = scmp.ne.s32.totalorder %s113, %s115
    %p122 = scmp.eq.s32.totalorder %s21, 1
    %p123 = por %p121, %p122
    %p124 = scmp.ne.s32.totalorder %s115, %s116
    %p125 = scmp.eq.s32.totalorder %s21, 0
    %p126 = por %p124, %p125
    %p127 = scmp.ne.s32.totalorder %s115, %s116
    %p128 = scmp.eq.s32.totalorder %s22, 1
    %p129 = por %p127, %p128
    %p131 = scmp.ne.s32.totalorder %s116, %s130
    %p132 = scmp.eq.s32.totalorder %s22, 0
    %p133 = por %p131, %p132
    %s135 = sadd.s32 %s134, 1
    %p138 = scmp.eq.s32.totalorder %s16, 1
    %p139 = scmp.ne.s32.totalorder %s134, %s136
    %p140 = scmp.eq.s32.totalorder %s16, 0
    %p141 = por %p139, %p140
    %p142 = scmp.ne.s32.totalorder %s134, %s136
    %p143 = scmp.eq.s32.totalorder %s21, 1
    %p144 = por %p142, %p143
    %p145 = scmp.ne.s32.totalorder %s136, %s137
    %p146 = scmp.eq.s32.totalorder %s21, 0
    %p147 = por %p145, %p146
    %p148 = scmp.ne.s32.totalorder %s136, %s137
    %p149 = scmp.eq.s32.totalorder %s22, 1
    %p150 = por %p148, %p149
    %p152 = scmp.ne.s32.totalorder %s137, %s151
    %p153 = scmp.eq.s32.totalorder %s22, 0
    %p154 = por %p152, %p153
    %s156 = sadd.s32 %s155, 1
    %p159 = scmp.eq.s32.totalorder %s16, 1
    %p160 = scmp.ne.s32.totalorder %s155, %s157
    %p161 = scmp.eq.s32.totalorder %s16, 0
    %p162 = por %p160, %p161
    %p163 = scmp.ne.s32.totalorder %s155, %s157
    %p164 = scmp.eq.s32.totalorder %s21, 1
    %p165 = por %p163, %p164
    %p166 = scmp.ne.s32.totalorder %s157, %s158
    %p167 = scmp.eq.s32.totalorder %s21, 0
    %p168 = por %p166, %p167
    %p169 = scmp.ne.s32.totalorder %s157, %s158
    %p170 = scmp.eq.s32.totalorder %s22, 1
    %p171 = por %p169, %p170
    %p173 = scmp.ne.s32.totalorder %s158, %s172
    %p174 = scmp.eq.s32.totalorder %s22, 0
    %p175 = por %p173, %p174
    %s177 = sadd.s32 %s176, 1
    %p180 = scmp.eq.s32.totalorder %s16, 1
    %p181 = scmp.ne.s32.totalorder %s176, %s178
    %p182 = scmp.eq.s32.totalorder %s16, 0
    %p183 = por %p181, %p182
    %p184 = scmp.ne.s32.totalorder %s176, %s178
    %p185 = scmp.eq.s32.totalorder %s21, 1
    %p186 = por %p184, %p185
    %p187 = scmp.ne.s32.totalorder %s178, %s179
    %p188 = scmp.eq.s32.totalorder %s21, 0
    %p189 = por %p187, %p188
    %p190 = scmp.ne.s32.totalorder %s178, %s179
    %p191 = scmp.eq.s32.totalorder %s22, 1
    %p192 = por %p190, %p191
    %p194 = scmp.ne.s32.totalorder %s179, %s193
    %p195 = scmp.eq.s32.totalorder %s22, 0
    %p196 = por %p194, %p195
    %s198 = sadd.s32 %s197, 1
    %p201 = scmp.eq.s32.totalorder %s16, 1
    %p202 = scmp.ne.s32.totalorder %s197, %s199
    %p203 = scmp.eq.s32.totalorder %s16, 0
    %p204 = por %p202, %p203
    %p205 = scmp.ne.s32.totalorder %s197, %s199
    %p206 = scmp.eq.s32.totalorder %s21, 1
    %p207 = por %p205, %p206
    %p208 = scmp.ne.s32.totalorder %s199, %s200
    %p209 = scmp.eq.s32.totalorder %s21, 0
    %p210 = por %p208, %p209
    %p211 = scmp.ne.s32.totalorder %s199, %s200
    %p212 = scmp.eq.s32.totalorder %s22, 1
    %p213 = por %p211, %p212
    %p215 = scmp.ne.s32.totalorder %s200, %s214
    %p216 = scmp.eq.s32.totalorder %s22, 0
    %p217 = por %p215, %p216
    %s219 = sadd.s32 %s218, 1
    %p222 = scmp.eq.s32.totalorder %s16, 1
    %p223 = scmp.ne.s32.totalorder %s218, %s220
    %p224 = scmp.eq.s32.totalorder %s16, 0
    %p225 = por %p223, %p224
    %p226 = scmp.ne.s32.totalorder %s218, %s220
    %p227 = scmp.eq.s32.totalorder %s21, 1
    %p228 = por %p226, %p227
    %p229 = scmp.ne.s32.totalorder %s220, %s221
    %p230 = scmp.eq.s32.totalorder %s21, 0
    %p231 = por %p229, %p230
    %p232 = scmp.ne.s32.totalorder %s220, %s221
    %p233 = scmp.eq.s32.totalorder %s22, 1
    %p234 = por %p232, %p233
    %p236 = scmp.ne.s32.totalorder %s221, %s235
    %p237 = scmp.eq.s32.totalorder %s22, 0
    %p238 = por %p236, %p237
    %s239 = ssub.s32 %s16, %s23
    %p240 = scmp.eq.s32.totalorder %s239, 0
    %s242 = sadd.s32 %s241, 1
    %s243 = scalar_select %p240, %s241, %s242
    %p246 = pneg %p240
    %p247 = scmp.eq.s32.totalorder %s16, 1
    %p248 = por %p246, %p247
    %p249 = scmp.ne.s32.totalorder %s241, %s244
    %p250 = scmp.eq.s32.totalorder %s16, 0
    %p251 = por %p249, %p250
    %p252 = scmp.ne.s32.totalorder %s241, %s244
    %p253 = scmp.eq.s32.totalorder %s21, 1
    %p254 = por %p252, %p253
    %p255 = scmp.ne.s32.totalorder %s244, %s245
    %p256 = scmp.eq.s32.totalorder %s21, 0
    %p257 = por %p255, %p256
    %p258 = scmp.ne.s32.totalorder %s244, %s245
    %p259 = scmp.eq.s32.totalorder %s22, 1
    %p260 = por %p258, %p259
    %p262 = scmp.ne.s32.totalorder %s245, %s261
    %p263 = scmp.eq.s32.totalorder %s22, 0
    %p264 = por %p262, %p263
    %p265 = scmp.le.s32.totalorder 1, %s16
    %p266 = scmp.lt.s32.totalorder %s16, 3
    %p267 = pnand %p265, %p266
    %p268 = pneg %p267
    // Predicated region
    $region9: #{cascade_block_pallas.1} parent=5 // pred_check
      _
    $region10: #{cascade_block_pallas.1} parent=5 // pred_check_branch
      %270 = sbr.rel (%p267) target = $region12
    $region11: #{cascade_block_pallas.1} parent=5 // pred_region
      %s271 = ssub.s32 %s16, 1
      // Predicated region
      $region13: #{cascade_block_pallas.1} parent=11 // pred_check
        %p272 = pneg %p63
      $region14: #{cascade_block_pallas.1} parent=11 // pred_check_branch
        %274 = sbr.rel (%p272) target = $region16
      $region15: #{cascade_block_pallas.1} parent=11 // pred_region
        _
      $region16: #{cascade_block_pallas.1} parent=11 // pred_fallthru
        _
      // Predicated region
      $region17: #{cascade_block_pallas.1} parent=11 // pred_check
        %p275 = pneg %p84
      $region18: #{cascade_block_pallas.1} parent=11 // pred_check_branch
        %277 = sbr.rel (%p275) target = $region20
      $region19: #{cascade_block_pallas.1} parent=11 // pred_region
        _
      $region20: #{cascade_block_pallas.1} parent=11 // pred_fallthru
        _
      // Predicated region
      $region21: #{cascade_block_pallas.1} parent=11 // pred_check
        %p278 = pneg %p105
      $region22: #{cascade_block_pallas.1} parent=11 // pred_check_branch
        %280 = sbr.rel (%p278) target = $region24
      $region23: #{cascade_block_pallas.1} parent=11 // pred_region
        _
      $region24: #{cascade_block_pallas.1} parent=11 // pred_fallthru
        _
      // Predicated region
      $region25: #{cascade_block_pallas.1} parent=11 // pred_check
        %p281 = pneg %p126
      $region26: #{cascade_block_pallas.1} parent=11 // pred_check_branch
        %283 = sbr.rel (%p281) target = $region28
      $region27: #{cascade_block_pallas.1} parent=11 // pred_region
        _
      $region28: #{cascade_block_pallas.1} parent=11 // pred_fallthru
        _
      // Predicated region
      $region29: #{cascade_block_pallas.1} parent=11 // pred_check
        %p284 = pneg %p147
      $region30: #{cascade_block_pallas.1} parent=11 // pred_check_branch
        %286 = sbr.rel (%p284) target = $region32
      $region31: #{cascade_block_pallas.1} parent=11 // pred_region
        _
      $region32: #{cascade_block_pallas.1} parent=11 // pred_fallthru
        _
      // Predicated region
      $region33: #{cascade_block_pallas.1} parent=11 // pred_check
        %p287 = pneg %p168
      $region34: #{cascade_block_pallas.1} parent=11 // pred_check_branch
        %289 = sbr.rel (%p287) target = $region36
      $region35: #{cascade_block_pallas.1} parent=11 // pred_region
        _
      $region36: #{cascade_block_pallas.1} parent=11 // pred_fallthru
        _
      // Predicated region
      $region37: #{cascade_block_pallas.1} parent=11 // pred_check
        %p290 = pneg %p189
      $region38: #{cascade_block_pallas.1} parent=11 // pred_check_branch
        %292 = sbr.rel (%p290) target = $region40
      $region39: #{cascade_block_pallas.1} parent=11 // pred_region
        _
      $region40: #{cascade_block_pallas.1} parent=11 // pred_fallthru
        _
      // Predicated region
      $region41: #{cascade_block_pallas.1} parent=11 // pred_check
        %p293 = pneg %p210
      $region42: #{cascade_block_pallas.1} parent=11 // pred_check_branch
        %295 = sbr.rel (%p293) target = $region44
      $region43: #{cascade_block_pallas.1} parent=11 // pred_region
        _
      $region44: #{cascade_block_pallas.1} parent=11 // pred_fallthru
        _
      // Predicated region
      $region45: #{cascade_block_pallas.1} parent=11 // pred_check
        %p296 = pneg %p231
      $region46: #{cascade_block_pallas.1} parent=11 // pred_check_branch
        %298 = sbr.rel (%p296) target = $region48
      $region47: #{cascade_block_pallas.1} parent=11 // pred_region
        _
      $region48: #{cascade_block_pallas.1} parent=11 // pred_fallthru
        _
    $region12: #{cascade_block_pallas.1} parent=5 // pred_fallthru
      _
    %p299 = scmp.lt.s32.totalorder %s16, 2
    // Predicated region
    $region49: #{cascade_block_pallas.1} parent=5 // pred_check
      %p300 = pneg %p299
    $region50: #{cascade_block_pallas.1} parent=5 // pred_check_branch
      %302 = sbr.rel (%p300) target = $region52
    $region51: #{cascade_block_pallas.1} parent=5 // pred_region
      // Predicated region
      $region53: #{cascade_block_pallas.1} parent=51 // pred_check
        %p303 = pneg %p36
      $region54: #{cascade_block_pallas.1} parent=51 // pred_check_branch
        %305 = sbr.rel (%p303) target = $region56
      $region55: #{cascade_block_pallas.1} parent=51 // pred_region
        %p306 = scmp.lt.s32.totalorder %s16, 1
        %s307 = scalar_select %p306, %s16, 1
        %s308 = smul.addr %s307, 36
        %s309 = smul.addr %s308, 8
        %s310 = scalar_lea.vmem %s0, %s309
      $region56: #{cascade_block_pallas.1} parent=51 // pred_fallthru
        _
    $region52: #{cascade_block_pallas.1} parent=5 // pred_fallthru
      _
    %p311 = scmp.le.s32.totalorder 1, %s16
    %p312 = scmp.lt.s32.totalorder %s16, 3
    %p313 = pnand %p311, %p312
    %p314 = pneg %p313
    // Predicated region
    $region57: #{cascade_block_pallas.1} parent=5 // pred_check
      _
    $region58: #{cascade_block_pallas.1} parent=5 // pred_check_branch
      %316 = sbr.rel (%p313) target = $region60
    $region59: #{cascade_block_pallas.1} parent=5 // pred_region
      %s317 = ssub.s32 %s16, 1
      %p318 = scmp.lt.s32.totalorder %s21, 1
      %s319 = scalar_select %p318, %s21, 1
      %s320 = smul.addr %s319, 36
      %s321 = smul.addr %s320, 8
      %s322 = scalar_lea.vmem %s0, %s321
      %p323 = pneg %p42
      %p324 = pneg %p39
      %p325 = pneg %p63
      %p326 = pneg %p60
      %p327 = pneg %p84
      %p328 = pneg %p81
      %p329 = pneg %p105
      %p330 = pneg %p102
      %p331 = pneg %p126
      %p332 = pneg %p123
      %p333 = pneg %p147
      %p334 = pneg %p144
      %p335 = pneg %p168
      %p336 = pneg %p165
      %p337 = pneg %p189
      %p338 = pneg %p186
      %p339 = pneg %p210
      %p340 = pneg %p207
      %p341 = pneg %p231
      %p342 = pneg %p228
      %p343 = pneg %p257
      %p344 = pneg %p254
      %p345 = scmp.lt.s32.totalorder %s21, 1
      %s346 = scalar_select %p345, %s21, 1
      %s347 = smul.addr %s346, 36
      %s348 = smul.addr %s347, 8
      %s349 = scalar_lea.vmem %s10, %s348
      %p350 = scmp.lt.s32.totalorder %s21, 1
      %s351 = scalar_select %p350, %s21, 1
      %s352 = smul.addr %s351, 36
      %s353 = smul.addr %s352, 8
      %s354 = scalar_lea.vmem %s0, %s353
      %p355 = scmp.lt.s32.totalorder %s21, 1
      %s356 = scalar_select %p355, %s21, 1
      %s357 = smul.addr %s356, 36
      %s358 = smul.addr %s357, 8
      %s359 = scalar_lea.vmem %s10, %s358
      %vm360 = vcmask 523264
      %361 = vst.msk [vmem:[#allocation2] sm:$0xff] %vm360, 0.0
      %362 = vst.msk [vmem:[#allocation2 + $0x8] sm:$0xff] %vm360, 0.0
      %363 = vst.msk [vmem:[#allocation2 + $0x10] sm:$0xff] %vm360, 0.0
      %364 = vst.msk [vmem:[#allocation2 + $0x138] sm:$0xff] %vm360, 0.0
      %365 = vst.msk [vmem:[#allocation2 + $0x140] sm:$0xff] %vm360, 0.0
      %366 = vst.msk [vmem:[#allocation2 + $0x148] sm:$0xff] %vm360, 0.0
      %367 = vst.msk [vmem:[#allocation3] sm:$0xff] %vm360, 0.0
      %368 = vst.msk [vmem:[#allocation3 + $0x8] sm:$0xff] %vm360, 0.0
      %369 = vst.msk [vmem:[#allocation3 + $0x10] sm:$0xff] %vm360, 0.0
      %370 = vst.msk [vmem:[#allocation3 + $0x138] sm:$0xff] %vm360, 0.0
      %371 = vst.msk [vmem:[#allocation3 + $0x140] sm:$0xff] %vm360, 0.0
      %372 = vst.msk [vmem:[#allocation3 + $0x148] sm:$0xff] %vm360, 0.0
      %vm373 = vcmask 1048064
      %374 = vst.msk [vmem:[#allocation4 + $0x20] sm:$0xff] %vm373, 0.0
      %375 = vst.msk [vmem:[#allocation4 + $0x48] sm:$0xff] %vm373, 0.0
      %376 = vst.msk [vmem:[#allocation4 + $0x70] sm:$0xff] %vm373, 0.0
      %377 = vst.msk [vmem:[#allocation4 + $0x98] sm:$0xff] %vm373, 0.0
      %378 = vst.msk [vmem:[#allocation4 + $0xc0] sm:$0xff] %vm373, 0.0
      %379 = vst.msk [vmem:[#allocation4 + $0xe8] sm:$0xff] %vm373, 0.0
      %380 = vst.msk [vmem:[#allocation4 + $0x110] sm:$0xff] %vm373, 0.0
      %381 = vst.msk [vmem:[#allocation4 + $0x138] sm:$0xff] %vm373, 0.0
      %382 = vst.msk [vmem:[#allocation4 + $0x160] sm:$0xff] %vm373, 0.0
      %383 = vst.msk [vmem:[#allocation4 + $0x188] sm:$0xff] %vm373, 0.0
      %384 = vst.msk [vmem:[#allocation4 + $0x1b0] sm:$0xff] %vm373, 0.0
      %385 = vst.msk [vmem:[#allocation4 + $0x1d8] sm:$0xff] %vm373, 0.0
      %386 = vst.msk [vmem:[#allocation4 + $0x200] sm:$0xff] %vm373, 0.0
      %387 = vst.msk [vmem:[#allocation4 + $0x228] sm:$0xff] %vm373, 0.0
      %388 = vst.msk [vmem:[#allocation4 + $0x250] sm:$0xff] %vm373, 0.0
      %389 = vst.msk [vmem:[#allocation4 + $0x278] sm:$0xff] %vm373, 0.0
      %390 = vst.msk [vmem:[#allocation4 + $0x2a0] sm:$0xff] %vm373, 0.0
      %391 = vst.msk [vmem:[#allocation4 + $0x2c8] sm:$0xff] %vm373, 0.0
      %392 = vst.msk [vmem:[#allocation4 + $0x2f0] sm:$0xff] %vm373, 0.0
      %393 = vst.msk [vmem:[#allocation4 + $0x318] sm:$0xff] %vm373, 0.0
      %394 = vst.msk [vmem:[#allocation4 + $0x340] sm:$0xff] %vm373, 0.0
      %395 = vst.msk [vmem:[#allocation4 + $0x368] sm:$0xff] %vm373, 0.0
      %396 = vst.msk [vmem:[#allocation4 + $0x390] sm:$0xff] %vm373, 0.0
      %397 = vst.msk [vmem:[#allocation4 + $0x3b8] sm:$0xff] %vm373, 0.0
      %398 = vst.msk [vmem:[#allocation4 + $0x3e0] sm:$0xff] %vm373, 0.0
      %399 = vst.msk [vmem:[#allocation4 + $0x408] sm:$0xff] %vm373, 0.0
      %400 = vst.msk [vmem:[#allocation4 + $0x430] sm:$0xff] %vm373, 0.0
      %401 = vst.msk [vmem:[#allocation4 + $0x458] sm:$0xff] %vm373, 0.0
      %402 = vst.msk [vmem:[#allocation4 + $0x480] sm:$0xff] %vm373, 0.0
      %403 = vst.msk [vmem:[#allocation4 + $0x4a8] sm:$0xff] %vm373, 0.0
      %404 = vst.msk [vmem:[#allocation4 + $0x4d0] sm:$0xff] %vm373, 0.0
      %405 = vst.msk [vmem:[#allocation4 + $0x4f8] sm:$0xff] %vm373, 0.0
      %406 = vst.msk [vmem:[#allocation4 + $0x520] sm:$0xff] %vm373, 0.0
      %407 = vst.msk [vmem:[#allocation4 + $0x548] sm:$0xff] %vm373, 0.0
      %408 = vst.msk [vmem:[#allocation4 + $0x570] sm:$0xff] %vm373, 0.0
      %409 = vst.msk [vmem:[#allocation4 + $0x598] sm:$0xff] %vm373, 0.0
      %v410 = vld [vmem:[%s1] sm:$0xff]
      %v411 = vld [vmem:[%s1 + $0x8] sm:$0xff]
      %v412 = vld [vmem:[%s1 + $0x10] sm:$0xff]
      %v413 = vld [vmem:[%s1 + $0x18] sm:$0xff]
      %v414 = vld [vmem:[%s1 + $0x20] sm:$0xff]
      %v415 = vld [vmem:[%s1 + $0x28] sm:$0xff]
      %v416 = vld [vmem:[%s1 + $0x30] sm:$0xff]
      %v417 = vld [vmem:[%s1 + $0x38] sm:$0xff]
      %v418 = vld [vmem:[%s1 + $0x40] sm:$0xff]
      %v419 = vld [vmem:[%s1 + $0x48] sm:$0xff]
      %v420 = vld [vmem:[%s1 + $0x50] sm:$0xff]
      %v421 = vld [vmem:[%s1 + $0x58] sm:$0xff]
      %v422 = vld [vmem:[%s1 + $0x60] sm:$0xff]
      %v423 = vld [vmem:[%s1 + $0x68] sm:$0xff]
      %v424 = vld [vmem:[%s1 + $0x70] sm:$0xff]
      %v425 = vld [vmem:[%s1 + $0x78] sm:$0xff]
      %v426 = vld [vmem:[%s1 + $0x80] sm:$0xff]
      %v427 = vld [vmem:[%s1 + $0x88] sm:$0xff]
      %v428 = vld [vmem:[%s1 + $0x90] sm:$0xff]
      %v429 = vld [vmem:[%s1 + $0x98] sm:$0xff]
      %v430 = vld [vmem:[%s1 + $0xa0] sm:$0xff]
      %v431 = vld [vmem:[%s1 + $0xa8] sm:$0xff]
      %v432 = vld [vmem:[%s1 + $0xb0] sm:$0xff]
      %v433 = vld [vmem:[%s1 + $0xb8] sm:$0xff]
      %v434 = vld [vmem:[%s1 + $0xc0] sm:$0xff]
      %v435 = vld [vmem:[%s1 + $0xc8] sm:$0xff]
      %v436 = vld [vmem:[%s1 + $0xd0] sm:$0xff]
      %v437 = vld [vmem:[%s1 + $0xd8] sm:$0xff]
      %v438 = vld [vmem:[%s1 + $0xe0] sm:$0xff]
      %v439 = vld [vmem:[%s1 + $0xe8] sm:$0xff]
      %v440 = vld [vmem:[%s1 + $0xf0] sm:$0xff]
      %v441 = vld [vmem:[%s1 + $0xf8] sm:$0xff]
      %v442 = vld [vmem:[%s1 + $0x100] sm:$0xff]
      %v443 = vld [vmem:[%s1 + $0x108] sm:$0xff]
      %v444 = vld [vmem:[%s1 + $0x110] sm:$0xff]
      %v445 = vld [vmem:[%s1 + $0x118] sm:$0xff]
      %v446 = vld [vmem:[%s354] sm:$0xff]
      %v447 = vld [vmem:[%s354 + $0x8] sm:$0xff]
      %v448 = vld [vmem:[%s354 + $0x10] sm:$0xff]
      %v449 = vld [vmem:[%s354 + $0x18] sm:$0xff]
      %v450 = vld [vmem:[%s354 + $0x20] sm:$0xff]
      %v451 = vld [vmem:[%s354 + $0x28] sm:$0xff]
      %v452 = vld [vmem:[%s354 + $0x30] sm:$0xff]
      %v453 = vld [vmem:[%s354 + $0x38] sm:$0xff]
      %v454 = vld [vmem:[%s354 + $0x40] sm:$0xff]
      %v455 = vld [vmem:[%s354 + $0x48] sm:$0xff]
      %v456 = vld [vmem:[%s354 + $0x50] sm:$0xff]
      %v457 = vld [vmem:[%s354 + $0x58] sm:$0xff]
      %v458 = vld [vmem:[%s354 + $0x60] sm:$0xff]
      %v459 = vld [vmem:[%s354 + $0x68] sm:$0xff]
      %v460 = vld [vmem:[%s354 + $0x70] sm:$0xff]
      %v461 = vld [vmem:[%s354 + $0x78] sm:$0xff]
      %v462 = vld [vmem:[%s354 + $0x80] sm:$0xff]
      %v463 = vld [vmem:[%s354 + $0x88] sm:$0xff]
      %v464 = vld [vmem:[%s354 + $0x90] sm:$0xff]
      %v465 = vld [vmem:[%s354 + $0x98] sm:$0xff]
      %v466 = vld [vmem:[%s354 + $0xa0] sm:$0xff]
      %v467 = vld [vmem:[%s354 + $0xa8] sm:$0xff]
      %v468 = vld [vmem:[%s354 + $0xb0] sm:$0xff]
      %v469 = vld [vmem:[%s354 + $0xb8] sm:$0xff]
      %v470 = vld [vmem:[%s354 + $0xc0] sm:$0xff]
      %v471 = vld [vmem:[%s354 + $0xc8] sm:$0xff]
      %v472 = vld [vmem:[%s354 + $0xd0] sm:$0xff]
      %v473 = vld [vmem:[%s354 + $0xd8] sm:$0xff]
      %v474 = vld [vmem:[%s354 + $0xe0] sm:$0xff]
      %v475 = vld [vmem:[%s354 + $0xe8] sm:$0xff]
      %v476 = vld [vmem:[%s354 + $0xf0] sm:$0xff]
      %v477 = vld [vmem:[%s354 + $0xf8] sm:$0xff]
      %v478 = vld [vmem:[%s354 + $0x100] sm:$0xff]
      %v479 = vld [vmem:[%s354 + $0x108] sm:$0xff]
      %v480 = vld [vmem:[%s354 + $0x110] sm:$0xff]
      %v481 = vld [vmem:[%s354 + $0x118] sm:$0xff]
      %v482 = vld [vmem:[%s2] sm:$0xff]
      %v483 = vld [vmem:[%s2 + $0x8] sm:$0xff]
      %v484 = vld [vmem:[%s2 + $0x10] sm:$0xff]
      %v485 = vld [vmem:[%s2 + $0x18] sm:$0xff]
      %v486 = vld [vmem:[%s2 + $0x20] sm:$0xf]
      %v487 = vld [vmem:[%s3] sm:$0x1]
      %v489 = vlaneseq
      %v490 = vshrl.u32 %v489, 7
      %v491 = vsub.s32 0, %v490
      %v492 = vrot.slane %v487, %v491
      %vm494 = vcmask 293888
      %v496 = vsel %vm494, %v446, 0
      %v499 = vsel %vm494, %v447, 0
      %v502 = vsel %vm494, %v448, 0
      %v505 = vsel %vm494, %v449, 0
      %v508 = vsel %vm494, %v450, 0
      %v511 = vsel %vm494, %v451, 0
      %v514 = vsel %vm494, %v452, 0
      %v517 = vsel %vm494, %v453, 0
      %v520 = vsel %vm494, %v454, 0
      %v523 = vsel %vm494, %v455, 0
      %v526 = vsel %vm494, %v456, 0
      %v529 = vsel %vm494, %v457, 0
      %v532 = vsel %vm494, %v458, 0
      %v535 = vsel %vm494, %v459, 0
      %v538 = vsel %vm494, %v460, 0
      %v541 = vsel %vm494, %v461, 0
      %v544 = vsel %vm494, %v462, 0
      %v547 = vsel %vm494, %v463, 0
      %v550 = vsel %vm494, %v464, 0
      %v553 = vsel %vm494, %v465, 0
      %v556 = vsel %vm494, %v466, 0
      %v559 = vsel %vm494, %v467, 0
      %v562 = vsel %vm494, %v468, 0
      %v565 = vsel %vm494, %v469, 0
      %v568 = vsel %vm494, %v470, 0
      %v571 = vsel %vm494, %v471, 0
      %v574 = vsel %vm494, %v472, 0
      %v577 = vsel %vm494, %v473, 0
      %v580 = vsel %vm494, %v474, 0
      %v583 = vsel %vm494, %v475, 0
      %v586 = vsel %vm494, %v476, 0
      %v589 = vsel %vm494, %v477, 0
      %v592 = vsel %vm494, %v478, 0
      %v595 = vsel %vm494, %v479, 0
      %v598 = vsel %vm494, %v480, 0
      %v601 = vsel %vm494, %v481, 0
      %vm603 = vcmask 1043456
      %v605 = vsel %vm603, %v486, 0
      %607 = vmatprep.subr.mxu0 0.0
      %608 = vmatpush1.msra.mxu0 0.0
      %609 = vmatprep.subr.mxu0 0.0
      %610 = vmatpush1.msra.mxu0 0.0
      %611 = vmatprep.subr.mxu0 0.0
      %612 = vmatpush1.msra.mxu0 0.0
      %613 = vmatprep.subr.mxu0 0.0
      %614 = vmatpush1.msra.mxu0 0.0
      %615 = vmatprep.subr.mxu0 0.0
      %616 = vmatpush1.msra.mxu0 0.0
      %617 = vmatprep.subr.mxu0 0.0
      %618 = vmatpush1.msra.mxu0 0.0
      %619 = vmatprep.subr.mxu0 0.0
      %620 = vmatpush1.msra.mxu0 0.0
      %621 = vmatprep.subr.mxu0 0.0
      %622 = vmatpush1.msra.mxu0 0.0
      %623 = vmatprep.subr.mxu0 0.0
      %624 = vmatpush1.msra.mxu0 0.0
      %625 = vmatprep.subr.mxu0 0.0
      %626 = vmatpush1.msra.mxu0 0.0
      %627 = vmatprep.subr.mxu0 0.0
      %628 = vmatpush1.msra.mxu0 0.0
      %629 = vmatprep.subr.mxu0 0.0
      %630 = vmatpush1.msra.mxu0 %v605
      %631 = vmatprep.subr.mxu0 0.0
      %632 = vmatpush1.msra.mxu0 %v485
      %633 = vmatprep.subr.mxu0 0.0
      %634 = vmatpush1.msra.mxu0 %v484
      %635 = vmatprep.subr.mxu0 0.0
      %636 = vmatpush1.msra.mxu0 %v483
      %637 = vmatprep.subr.mxu0 0.0
      %638 = vmatpush1.msra.mxu0 %v482
      %639 = vmatprep.subr.mxu0 0.0
      %640 = vmatpush2.msra.mxu0 0.0
      %641 = vmatprep.subr.mxu0 0.0
      %642 = vmatpush2.msra.mxu0 0.0
      %643 = vmatprep.subr.mxu0 0.0
      %644 = vmatpush2.msra.mxu0 0.0
      %645 = vmatprep.subr.mxu0 0.0
      %646 = vmatpush2.msra.mxu0 0.0
      %647 = vmatprep.subr.mxu0 0.0
      %648 = vmatpush2.msra.mxu0 0.0
      %649 = vmatprep.subr.mxu0 0.0
      %650 = vmatpush2.msra.mxu0 0.0
      %651 = vmatprep.subr.mxu0 0.0
      %652 = vmatpush2.msra.mxu0 0.0
      %653 = vmatprep.subr.mxu0 0.0
      %654 = vmatpush2.msra.mxu0 0.0
      %655 = vmatprep.subr.mxu0 0.0
      %656 = vmatpush2.msra.mxu0 0.0
      %657 = vmatprep.subr.mxu0 0.0
      %658 = vmatpush2.msra.mxu0 0.0
      %659 = vmatprep.subr.mxu0 0.0
      %660 = vmatpush2.msra.mxu0 0.0
      %661 = vmatprep.subr.mxu0 0.0
      %662 = vmatpush2.msra.mxu0 0.0
      %663 = vmatprep.subr.mxu0 0.0
      %664 = vmatpush2.msra.mxu0 0.0
      %665 = vmatprep.subr.mxu0 0.0
      %666 = vmatpush2.msra.mxu0 0.0
      %667 = vmatprep.subr.mxu0 0.0
      %668 = vmatpush2.msra.mxu0 0.0
      %669 = vmatprep.subr.mxu0 0.0
      %670 = vmatpush2.msra.mxu0 0.0
      %671 = vmatprep.mubr.f32.mxu0 0.0
      %672 = vmatmul.mubr.f32.gmra.mxu0 %v496
      %v673 = vpop.f32.mrf.mxu0
      %v674 = vadd.f32 %v492, %v673
      %v675 = vpop.f32.mrf.mxu0
      %676 = vmatprep.mubr.f32.mxu0 0.0
      %677 = vmatmul.mubr.f32.gmra.mxu0 %v499
      %v678 = vpop.f32.mrf.mxu0
      %v679 = vadd.f32 %v492, %v678
      %v680 = vpop.f32.mrf.mxu0
      %681 = vmatprep.mubr.f32.mxu0 0.0
      %682 = vmatmul.mubr.f32.gmra.mxu0 %v502
      %v683 = vpop.f32.mrf.mxu0
      %v684 = vadd.f32 %v492, %v683
      %v685 = vpop.f32.mrf.mxu0
      %686 = vmatprep.mubr.f32.mxu0 0.0
      %687 = vmatmul.mubr.f32.gmra.mxu0 %v505
      %v688 = vpop.f32.mrf.mxu0
      %v689 = vadd.f32 %v492, %v688
      %v690 = vpop.f32.mrf.mxu0
      %691 = vmatprep.mubr.f32.mxu0 0.0
      %692 = vmatmul.mubr.f32.gmra.mxu0 %v508
      %v693 = vpop.f32.mrf.mxu0
      %v694 = vadd.f32 %v492, %v693
      %v695 = vpop.f32.mrf.mxu0
      %696 = vmatprep.mubr.f32.mxu0 0.0
      %697 = vmatmul.mubr.f32.gmra.mxu0 %v511
      %v698 = vpop.f32.mrf.mxu0
      %v699 = vadd.f32 %v492, %v698
      %v700 = vpop.f32.mrf.mxu0
      %701 = vmatprep.mubr.f32.mxu0 0.0
      %702 = vmatmul.mubr.f32.gmra.mxu0 %v514
      %v703 = vpop.f32.mrf.mxu0
      %v704 = vadd.f32 %v492, %v703
      %v705 = vpop.f32.mrf.mxu0
      %706 = vmatprep.mubr.f32.mxu0 0.0
      %707 = vmatmul.mubr.f32.gmra.mxu0 %v517
      %v708 = vpop.f32.mrf.mxu0
      %v709 = vadd.f32 %v492, %v708
      %v710 = vpop.f32.mrf.mxu0
      %711 = vmatprep.mubr.f32.mxu0 0.0
      %712 = vmatmul.mubr.f32.gmra.mxu0 %v520
      %v713 = vpop.f32.mrf.mxu0
      %v714 = vadd.f32 %v492, %v713
      %v715 = vpop.f32.mrf.mxu0
      %716 = vmatprep.mubr.f32.mxu0 0.0
      %717 = vmatmul.mubr.f32.gmra.mxu0 %v523
      %v718 = vpop.f32.mrf.mxu0
      %v719 = vadd.f32 %v492, %v718
      %v720 = vpop.f32.mrf.mxu0
      %721 = vmatprep.mubr.f32.mxu0 0.0
      %722 = vmatmul.mubr.f32.gmra.mxu0 %v526
      %v723 = vpop.f32.mrf.mxu0
      %v724 = vadd.f32 %v492, %v723
      %v725 = vpop.f32.mrf.mxu0
      %726 = vmatprep.mubr.f32.mxu0 0.0
      %727 = vmatmul.mubr.f32.gmra.mxu0 %v529
      %v728 = vpop.f32.mrf.mxu0
      %v729 = vadd.f32 %v492, %v728
      %v730 = vpop.f32.mrf.mxu0
      %731 = vmatprep.mubr.f32.mxu0 0.0
      %732 = vmatmul.mubr.f32.gmra.mxu0 %v532
      %v733 = vpop.f32.mrf.mxu0
      %v734 = vadd.f32 %v492, %v733
      %v735 = vpop.f32.mrf.mxu0
      %736 = vmatprep.mubr.f32.mxu0 0.0
      %737 = vmatmul.mubr.f32.gmra.mxu0 %v535
      %v738 = vpop.f32.mrf.mxu0
      %v739 = vadd.f32 %v492, %v738
      %v740 = vpop.f32.mrf.mxu0
      %741 = vmatprep.mubr.f32.mxu0 0.0
      %742 = vmatmul.mubr.f32.gmra.mxu0 %v538
      %v743 = vpop.f32.mrf.mxu0
      %v744 = vadd.f32 %v492, %v743
      %v745 = vpop.f32.mrf.mxu0
      %746 = vmatprep.mubr.f32.mxu0 0.0
      %747 = vmatmul.mubr.f32.gmra.mxu0 %v541
      %v748 = vpop.f32.mrf.mxu0
      %v749 = vadd.f32 %v492, %v748
      %v750 = vpop.f32.mrf.mxu0
      %751 = vmatprep.mubr.f32.mxu0 0.0
      %752 = vmatmul.mubr.f32.gmra.mxu0 %v544
      %v753 = vpop.f32.mrf.mxu0
      %v754 = vadd.f32 %v492, %v753
      %v755 = vpop.f32.mrf.mxu0
      %756 = vmatprep.mubr.f32.mxu0 0.0
      %757 = vmatmul.mubr.f32.gmra.mxu0 %v547
      %v758 = vpop.f32.mrf.mxu0
      %v759 = vadd.f32 %v492, %v758
      %v760 = vpop.f32.mrf.mxu0
      %761 = vmatprep.mubr.f32.mxu0 0.0
      %762 = vmatmul.mubr.f32.gmra.mxu0 %v550
      %v763 = vpop.f32.mrf.mxu0
      %v764 = vadd.f32 %v492, %v763
      %v765 = vpop.f32.mrf.mxu0
      %766 = vmatprep.mubr.f32.mxu0 0.0
      %767 = vmatmul.mubr.f32.gmra.mxu0 %v553
      %v768 = vpop.f32.mrf.mxu0
      %v769 = vadd.f32 %v492, %v768
      %v770 = vpop.f32.mrf.mxu0
      %771 = vmatprep.mubr.f32.mxu0 0.0
      %772 = vmatmul.mubr.f32.gmra.mxu0 %v556
      %v773 = vpop.f32.mrf.mxu0
      %v774 = vadd.f32 %v492, %v773
      %v775 = vpop.f32.mrf.mxu0
      %776 = vmatprep.mubr.f32.mxu0 0.0
      %777 = vmatmul.mubr.f32.gmra.mxu0 %v559
      %v778 = vpop.f32.mrf.mxu0
      %v779 = vadd.f32 %v492, %v778
      %v780 = vpop.f32.mrf.mxu0
      %781 = vmatprep.mubr.f32.mxu0 0.0
      %782 = vmatmul.mubr.f32.gmra.mxu0 %v562
      %v783 = vpop.f32.mrf.mxu0
      %v784 = vadd.f32 %v492, %v783
      %v785 = vpop.f32.mrf.mxu0
      %786 = vmatprep.mubr.f32.mxu0 0.0
      %787 = vmatmul.mubr.f32.gmra.mxu0 %v565
      %v788 = vpop.f32.mrf.mxu0
      %v789 = vadd.f32 %v492, %v788
      %v790 = vpop.f32.mrf.mxu0
      %791 = vmatprep.mubr.f32.mxu0 0.0
      %792 = vmatmul.mubr.f32.gmra.mxu0 %v568
      %v793 = vpop.f32.mrf.mxu0
      %v794 = vadd.f32 %v492, %v793
      %v795 = vpop.f32.mrf.mxu0
      %796 = vmatprep.mubr.f32.mxu0 0.0
      %797 = vmatmul.mubr.f32.gmra.mxu0 %v571
      %v798 = vpop.f32.mrf.mxu0
      %v799 = vadd.f32 %v492, %v798
      %v800 = vpop.f32.mrf.mxu0
      %801 = vmatprep.mubr.f32.mxu0 0.0
      %802 = vmatmul.mubr.f32.gmra.mxu0 %v574
      %v803 = vpop.f32.mrf.mxu0
      %v804 = vadd.f32 %v492, %v803
      %v805 = vpop.f32.mrf.mxu0
      %806 = vmatprep.mubr.f32.mxu0 0.0
      %807 = vmatmul.mubr.f32.gmra.mxu0 %v577
      %v808 = vpop.f32.mrf.mxu0
      %v809 = vadd.f32 %v492, %v808
      %v810 = vpop.f32.mrf.mxu0
      %811 = vmatprep.mubr.f32.mxu0 0.0
      %812 = vmatmul.mubr.f32.gmra.mxu0 %v580
      %v813 = vpop.f32.mrf.mxu0
      %v814 = vadd.f32 %v492, %v813
      %v815 = vpop.f32.mrf.mxu0
      %816 = vmatprep.mubr.f32.mxu0 0.0
      %817 = vmatmul.mubr.f32.gmra.mxu0 %v583
      %v818 = vpop.f32.mrf.mxu0
      %v819 = vadd.f32 %v492, %v818
      %v820 = vpop.f32.mrf.mxu0
      %821 = vmatprep.mubr.f32.mxu0 0.0
      %822 = vmatmul.mubr.f32.gmra.mxu0 %v586
      %v823 = vpop.f32.mrf.mxu0
      %v824 = vadd.f32 %v492, %v823
      %v825 = vpop.f32.mrf.mxu0
      %826 = vmatprep.mubr.f32.mxu0 0.0
      %827 = vmatmul.mubr.f32.gmra.mxu0 %v589
      %v828 = vpop.f32.mrf.mxu0
      %v829 = vadd.f32 %v492, %v828
      %v830 = vpop.f32.mrf.mxu0
      %831 = vmatprep.mubr.f32.mxu0 0.0
      %832 = vmatmul.mubr.f32.gmra.mxu0 %v592
      %v833 = vpop.f32.mrf.mxu0
      %v834 = vadd.f32 %v492, %v833
      %v835 = vpop.f32.mrf.mxu0
      %836 = vmatprep.mubr.f32.mxu0 0.0
      %837 = vmatmul.mubr.f32.gmra.mxu0 %v595
      %v838 = vpop.f32.mrf.mxu0
      %v839 = vadd.f32 %v492, %v838
      %v840 = vpop.f32.mrf.mxu0
      %841 = vmatprep.mubr.f32.mxu0 0.0
      %842 = vmatmul.mubr.f32.gmra.mxu0 %v598
      %v843 = vpop.f32.mrf.mxu0
      %v844 = vadd.f32 %v492, %v843
      %v845 = vpop.f32.mrf.mxu0
      %846 = vmatprep.mubr.f32.mxu0 0.0
      %847 = vmatmul.mubr.f32.gmra.mxu0 %v601
      %v848 = vpop.f32.mrf.mxu0
      %v849 = vadd.f32 %v492, %v848
      %v850 = vpop.f32.mrf.mxu0
      %851 = vdwg.mxu0
      %v852 = vmax.f32 %v674, 0.0
      %v853 = vmax.f32 %v679, 0.0
      %v854 = vmax.f32 %v684, 0.0
      %v855 = vmax.f32 %v689, 0.0
      %v856 = vmax.f32 %v694, 0.0
      %v857 = vmax.f32 %v699, 0.0
      %v858 = vmax.f32 %v704, 0.0
      %v859 = vmax.f32 %v709, 0.0
      %v860 = vmax.f32 %v714, 0.0
      %v861 = vmax.f32 %v719, 0.0
      %v862 = vmax.f32 %v724, 0.0
      %v863 = vmax.f32 %v729, 0.0
      %v864 = vmax.f32 %v734, 0.0
      %v865 = vmax.f32 %v739, 0.0
      %v866 = vmax.f32 %v744, 0.0
      %v867 = vmax.f32 %v749, 0.0
      %v868 = vmax.f32 %v754, 0.0
      %v869 = vmax.f32 %v759, 0.0
      %v870 = vmax.f32 %v764, 0.0
      %v871 = vmax.f32 %v769, 0.0
      %v872 = vmax.f32 %v774, 0.0
      %v873 = vmax.f32 %v779, 0.0
      %v874 = vmax.f32 %v784, 0.0
      %v875 = vmax.f32 %v789, 0.0
      %v876 = vmax.f32 %v794, 0.0
      %v877 = vmax.f32 %v799, 0.0
      %v878 = vmax.f32 %v804, 0.0
      %v879 = vmax.f32 %v809, 0.0
      %v880 = vmax.f32 %v814, 0.0
      %v881 = vmax.f32 %v819, 0.0
      %v882 = vmax.f32 %v824, 0.0
      %v883 = vmax.f32 %v829, 0.0
      %v884 = vmax.f32 %v834, 0.0
      %v885 = vmax.f32 %v839, 0.0
      %v886 = vmax.f32 %v844, 0.0
      %v887 = vmax.f32 %v849, 0.0
      %889 = vset.pattern.permute.xlu0 0
      %890 = vperm.xlu0 %889, %v410
      %v891 = vpop.permute.xlu0 %890
      %894 = vset.pattern.permute.xlu0 0
      %895 = vperm.xlu0 %894, %v411
      %v896 = vpop.permute.xlu0 %895
      %899 = vset.pattern.permute.xlu0 0
      %900 = vperm.xlu0 %899, %v412
      %v901 = vpop.permute.xlu0 %900
      %904 = vset.pattern.permute.xlu0 0
      %905 = vperm.xlu0 %904, %v413
      %v906 = vpop.permute.xlu0 %905
      %909 = vset.pattern.permute.xlu0 0
      %910 = vperm.xlu0 %909, %v414
      %v911 = vpop.permute.xlu0 %910
      %914 = vset.pattern.permute.xlu0 0
      %915 = vperm.xlu0 %914, %v415
      %v916 = vpop.permute.xlu0 %915
      %919 = vset.pattern.permute.xlu0 0
      %920 = vperm.xlu0 %919, %v416
      %v921 = vpop.permute.xlu0 %920
      %924 = vset.pattern.permute.xlu0 0
      %925 = vperm.xlu0 %924, %v417
      %v926 = vpop.permute.xlu0 %925
      %929 = vset.pattern.permute.xlu0 0
      %930 = vperm.xlu0 %929, %v418
      %v931 = vpop.permute.xlu0 %930
      %934 = vset.pattern.permute.xlu0 0
      %935 = vperm.xlu0 %934, %v419
      %v936 = vpop.permute.xlu0 %935
      %939 = vset.pattern.permute.xlu0 0
      %940 = vperm.xlu0 %939, %v420
      %v941 = vpop.permute.xlu0 %940
      %944 = vset.pattern.permute.xlu0 0
      %945 = vperm.xlu0 %944, %v421
      %v946 = vpop.permute.xlu0 %945
      %949 = vset.pattern.permute.xlu0 0
      %950 = vperm.xlu0 %949, %v422
      %v951 = vpop.permute.xlu0 %950
      %954 = vset.pattern.permute.xlu0 0
      %955 = vperm.xlu0 %954, %v423
      %v956 = vpop.permute.xlu0 %955
      %959 = vset.pattern.permute.xlu0 0
      %960 = vperm.xlu0 %959, %v424
      %v961 = vpop.permute.xlu0 %960
      %964 = vset.pattern.permute.xlu0 0
      %965 = vperm.xlu0 %964, %v425
      %v966 = vpop.permute.xlu0 %965
      %969 = vset.pattern.permute.xlu0 0
      %970 = vperm.xlu0 %969, %v426
      %v971 = vpop.permute.xlu0 %970
      %974 = vset.pattern.permute.xlu0 0
      %975 = vperm.xlu0 %974, %v427
      %v976 = vpop.permute.xlu0 %975
      %979 = vset.pattern.permute.xlu0 0
      %980 = vperm.xlu0 %979, %v428
      %v981 = vpop.permute.xlu0 %980
      %984 = vset.pattern.permute.xlu0 0
      %985 = vperm.xlu0 %984, %v429
      %v986 = vpop.permute.xlu0 %985
      %989 = vset.pattern.permute.xlu0 0
      %990 = vperm.xlu0 %989, %v430
      %v991 = vpop.permute.xlu0 %990
      %994 = vset.pattern.permute.xlu0 0
      %995 = vperm.xlu0 %994, %v431
      %v996 = vpop.permute.xlu0 %995
      %999 = vset.pattern.permute.xlu0 0
      %1000 = vperm.xlu0 %999, %v432
      %v1001 = vpop.permute.xlu0 %1000
      %1004 = vset.pattern.permute.xlu0 0
      %1005 = vperm.xlu0 %1004, %v433
      %v1006 = vpop.permute.xlu0 %1005
      %1009 = vset.pattern.permute.xlu0 0
      %1010 = vperm.xlu0 %1009, %v434
      %v1011 = vpop.permute.xlu0 %1010
      %1014 = vset.pattern.permute.xlu0 0
      %1015 = vperm.xlu0 %1014, %v435
      %v1016 = vpop.permute.xlu0 %1015
      %1019 = vset.pattern.permute.xlu0 0
      %1020 = vperm.xlu0 %1019, %v436
      %v1021 = vpop.permute.xlu0 %1020
      %1024 = vset.pattern.permute.xlu0 0
      %1025 = vperm.xlu0 %1024, %v437
      %v1026 = vpop.permute.xlu0 %1025
      %1029 = vset.pattern.permute.xlu0 0
      %1030 = vperm.xlu0 %1029, %v438
      %v1031 = vpop.permute.xlu0 %1030
      %1034 = vset.pattern.permute.xlu0 0
      %1035 = vperm.xlu0 %1034, %v439
      %v1036 = vpop.permute.xlu0 %1035
      %1039 = vset.pattern.permute.xlu0 0
      %1040 = vperm.xlu0 %1039, %v440
      %v1041 = vpop.permute.xlu0 %1040
      %1044 = vset.pattern.permute.xlu0 0
      %1045 = vperm.xlu0 %1044, %v441
      %v1046 = vpop.permute.xlu0 %1045
      %1049 = vset.pattern.permute.xlu0 0
      %1050 = vperm.xlu0 %1049, %v442
      %v1051 = vpop.permute.xlu0 %1050
      %1054 = vset.pattern.permute.xlu0 0
      %1055 = vperm.xlu0 %1054, %v443
      %v1056 = vpop.permute.xlu0 %1055
      %1059 = vset.pattern.permute.xlu0 0
      %1060 = vperm.xlu0 %1059, %v444
      %v1061 = vpop.permute.xlu0 %1060
      %1064 = vset.pattern.permute.xlu0 0
      %1065 = vperm.xlu0 %1064, %v445
      %v1066 = vpop.permute.xlu0 %1065
      %v1068 = vmul.f32 %v852, %v891
      %v1069 = vmul.f32 %v853, %v896
      %v1070 = vmul.f32 %v854, %v901
      %v1071 = vmul.f32 %v855, %v906
      %v1072 = vmul.f32 %v856, %v911
      %v1073 = vmul.f32 %v857, %v916
      %v1074 = vmul.f32 %v858, %v921
      %v1075 = vmul.f32 %v859, %v926
      %v1076 = vmul.f32 %v860, %v931
      %v1077 = vmul.f32 %v861, %v936
      %v1078 = vmul.f32 %v862, %v941
      %v1079 = vmul.f32 %v863, %v946
      %v1080 = vmul.f32 %v864, %v951
      %v1081 = vmul.f32 %v865, %v956
      %v1082 = vmul.f32 %v866, %v961
      %v1083 = vmul.f32 %v867, %v966
      %v1084 = vmul.f32 %v868, %v971
      %v1085 = vmul.f32 %v869, %v976
      %v1086 = vmul.f32 %v870, %v981
      %v1087 = vmul.f32 %v871, %v986
      %v1088 = vmul.f32 %v872, %v991
      %v1089 = vmul.f32 %v873, %v996
      %v1090 = vmul.f32 %v874, %v1001
      %v1091 = vmul.f32 %v875, %v1006
      %v1092 = vmul.f32 %v876, %v1011
      %v1093 = vmul.f32 %v877, %v1016
      %v1094 = vmul.f32 %v878, %v1021
      %v1095 = vmul.f32 %v879, %v1026
      %v1096 = vmul.f32 %v880, %v1031
      %v1097 = vmul.f32 %v881, %v1036
      %v1098 = vmul.f32 %v882, %v1041
      %v1099 = vmul.f32 %v883, %v1046
      %v1100 = vmul.f32 %v884, %v1051
      %v1101 = vmul.f32 %v885, %v1056
      %v1102 = vmul.f32 %v886, %v1061
      %v1103 = vmul.f32 %v887, %v1066
      %1104 = vst.msk [vmem:[#allocation2 + $0x18] sm:$0xff] %vm360, %v1068
      %1105 = vst.msk [vmem:[#allocation2 + $0x20] sm:$0xff] %vm360, %v1069
      %1106 = vst.msk [vmem:[#allocation2 + $0x28] sm:$0xff] %vm360, %v1070
      %1107 = vst.msk [vmem:[#allocation2 + $0x30] sm:$0xff] %vm360, %v1071
      %1108 = vst.msk [vmem:[#allocation2 + $0x38] sm:$0xff] %vm360, %v1072
      %1109 = vst.msk [vmem:[#allocation2 + $0x40] sm:$0xff] %vm360, %v1073
      %1110 = vst.msk [vmem:[#allocation2 + $0x48] sm:$0xff] %vm360, %v1074
      %1111 = vst.msk [vmem:[#allocation2 + $0x50] sm:$0xff] %vm360, %v1075
      %1112 = vst.msk [vmem:[#allocation2 + $0x58] sm:$0xff] %vm360, %v1076
      %1113 = vst.msk [vmem:[#allocation2 + $0x60] sm:$0xff] %vm360, %v1077
      %1114 = vst.msk [vmem:[#allocation2 + $0x68] sm:$0xff] %vm360, %v1078
      %1115 = vst.msk [vmem:[#allocation2 + $0x70] sm:$0xff] %vm360, %v1079
      %1116 = vst.msk [vmem:[#allocation2 + $0x78] sm:$0xff] %vm360, %v1080
      %1117 = vst.msk [vmem:[#allocation2 + $0x80] sm:$0xff] %vm360, %v1081
      %1118 = vst.msk [vmem:[#allocation2 + $0x88] sm:$0xff] %vm360, %v1082
      %1119 = vst.msk [vmem:[#allocation2 + $0x90] sm:$0xff] %vm360, %v1083
      %1120 = vst.msk [vmem:[#allocation2 + $0x98] sm:$0xff] %vm360, %v1084
      %1121 = vst.msk [vmem:[#allocation2 + $0xa0] sm:$0xff] %vm360, %v1085
      %1122 = vst.msk [vmem:[#allocation2 + $0xa8] sm:$0xff] %vm360, %v1086
      %1123 = vst.msk [vmem:[#allocation2 + $0xb0] sm:$0xff] %vm360, %v1087
      %1124 = vst.msk [vmem:[#allocation2 + $0xb8] sm:$0xff] %vm360, %v1088
      %1125 = vst.msk [vmem:[#allocation2 + $0xc0] sm:$0xff] %vm360, %v1089
      %1126 = vst.msk [vmem:[#allocation2 + $0xc8] sm:$0xff] %vm360, %v1090
      %1127 = vst.msk [vmem:[#allocation2 + $0xd0] sm:$0xff] %vm360, %v1091
      %1128 = vst.msk [vmem:[#allocation2 + $0xd8] sm:$0xff] %vm360, %v1092
      %1129 = vst.msk [vmem:[#allocation2 + $0xe0] sm:$0xff] %vm360, %v1093
      %1130 = vst.msk [vmem:[#allocation2 + $0xe8] sm:$0xff] %vm360, %v1094
      %1131 = vst.msk [vmem:[#allocation2 + $0xf0] sm:$0xff] %vm360, %v1095
      %1132 = vst.msk [vmem:[#allocation2 + $0xf8] sm:$0xff] %vm360, %v1096
      %1133 = vst.msk [vmem:[#allocation2 + $0x100] sm:$0xff] %vm360, %v1097
      %1134 = vst.msk [vmem:[#allocation2 + $0x108] sm:$0xff] %vm360, %v1098
      %1135 = vst.msk [vmem:[#allocation2 + $0x110] sm:$0xff] %vm360, %v1099
      %1136 = vst.msk [vmem:[#allocation2 + $0x118] sm:$0xff] %vm360, %v1100
      %1137 = vst.msk [vmem:[#allocation2 + $0x120] sm:$0xff] %vm360, %v1101
      %1138 = vst.msk [vmem:[#allocation2 + $0x128] sm:$0xff] %vm360, %v1102
      %1139 = vst.msk [vmem:[#allocation2 + $0x130] sm:$0xff] %vm360, %v1103
      %v1140 = vld [vmem:[#allocation2 + $0x5] sm:$0xff]
      %v1141 = vld [vmem:[#allocation2 + $0xd] sm:$0xff]
      %v1142 = vld [vmem:[#allocation2 + $0x15] sm:$0xff]
      %v1143 = vld [vmem:[#allocation2 + $0x1d] sm:$0xff]
      %v1144 = vld [vmem:[#allocation2 + $0x25] sm:$0xff]
      %v1145 = vld [vmem:[#allocation2 + $0x2d] sm:$0xff]
      %v1146 = vld [vmem:[#allocation2 + $0x35] sm:$0xff]
      %v1147 = vld [vmem:[#allocation2 + $0x3d] sm:$0xff]
      %v1148 = vld [vmem:[#allocation2 + $0x45] sm:$0xff]
      %v1149 = vld [vmem:[#allocation2 + $0x4d] sm:$0xff]
      %v1150 = vld [vmem:[#allocation2 + $0x55] sm:$0xff]
      %v1151 = vld [vmem:[#allocation2 + $0x5d] sm:$0xff]
      %v1152 = vld [vmem:[#allocation2 + $0x65] sm:$0xff]
      %v1153 = vld [vmem:[#allocation2 + $0x6d] sm:$0xff]
      %v1154 = vld [vmem:[#allocation2 + $0x75] sm:$0xff]
      %v1155 = vld [vmem:[#allocation2 + $0x7d] sm:$0xff]
      %v1156 = vld [vmem:[#allocation2 + $0x85] sm:$0xff]
      %v1157 = vld [vmem:[#allocation2 + $0x8d] sm:$0xff]
      %v1158 = vld [vmem:[#allocation2 + $0x95] sm:$0xff]
      %v1159 = vld [vmem:[#allocation2 + $0x9d] sm:$0xff]
      %v1160 = vld [vmem:[#allocation2 + $0xa5] sm:$0xff]
      %v1161 = vld [vmem:[#allocation2 + $0xad] sm:$0xff]
      %v1162 = vld [vmem:[#allocation2 + $0xb5] sm:$0xff]
      %v1163 = vld [vmem:[#allocation2 + $0xbd] sm:$0xff]
      %v1164 = vld [vmem:[#allocation2 + $0xc5] sm:$0xff]
      %v1165 = vld [vmem:[#allocation2 + $0xcd] sm:$0xff]
      %v1166 = vld [vmem:[#allocation2 + $0xd5] sm:$0xff]
      %v1167 = vld [vmem:[#allocation2 + $0xdd] sm:$0xff]
      %v1168 = vld [vmem:[#allocation2 + $0xe5] sm:$0xff]
      %v1169 = vld [vmem:[#allocation2 + $0xed] sm:$0xff]
      %v1170 = vld [vmem:[#allocation2 + $0xf5] sm:$0xff]
      %v1171 = vld [vmem:[#allocation2 + $0xfd] sm:$0xff]
      %v1172 = vld [vmem:[#allocation2 + $0x105] sm:$0xff]
      %v1173 = vld [vmem:[#allocation2 + $0x10d] sm:$0xff]
      %v1174 = vld [vmem:[#allocation2 + $0x115] sm:$0xff]
      %v1175 = vld [vmem:[#allocation2 + $0x11d] sm:$0xff]
      %1176 = vst.msk [vmem:[#allocation4] sm:$0xff] %vm360, %v1140
      %1177 = vst.msk [vmem:[#allocation4 + $0x28] sm:$0xff] %vm360, %v1141
      %1178 = vst.msk [vmem:[#allocation4 + $0x50] sm:$0xff] %vm360, %v1142
      %1179 = vst.msk [vmem:[#allocation4 + $0x78] sm:$0xff] %vm360, %v1143
      %1180 = vst.msk [vmem:[#allocation4 + $0xa0] sm:$0xff] %vm360, %v1144
      %1181 = vst.msk [vmem:[#allocation4 + $0xc8] sm:$0xff] %vm360, %v1145
      %1182 = vst.msk [vmem:[#allocation4 + $0xf0] sm:$0xff] %vm360, %v1146
      %1183 = vst.msk [vmem:[#allocation4 + $0x118] sm:$0xff] %vm360, %v1147
      %1184 = vst.msk [vmem:[#allocation4 + $0x140] sm:$0xff] %vm360, %v1148
      %1185 = vst.msk [vmem:[#allocation4 + $0x168] sm:$0xff] %vm360, %v1149
      %1186 = vst.msk [vmem:[#allocation4 + $0x190] sm:$0xff] %vm360, %v1150
      %1187 = vst.msk [vmem:[#allocation4 + $0x1b8] sm:$0xff] %vm360, %v1151
      %1188 = vst.msk [vmem:[#allocation4 + $0x1e0] sm:$0xff] %vm360, %v1152
      %1189 = vst.msk [vmem:[#allocation4 + $0x208] sm:$0xff] %vm360, %v1153
      %1190 = vst.msk [vmem:[#allocation4 + $0x230] sm:$0xff] %vm360, %v1154
      %1191 = vst.msk [vmem:[#allocation4 + $0x258] sm:$0xff] %vm360, %v1155
      %1192 = vst.msk [vmem:[#allocation4 + $0x280] sm:$0xff] %vm360, %v1156
      %1193 = vst.msk [vmem:[#allocation4 + $0x2a8] sm:$0xff] %vm360, %v1157
      %1194 = vst.msk [vmem:[#allocation4 + $0x2d0] sm:$0xff] %vm360, %v1158
      %1195 = vst.msk [vmem:[#allocation4 + $0x2f8] sm:$0xff] %vm360, %v1159
      %1196 = vst.msk [vmem:[#allocation4 + $0x320] sm:$0xff] %vm360, %v1160
      %1197 = vst.msk [vmem:[#allocation4 + $0x348] sm:$0xff] %vm360, %v1161
      %1198 = vst.msk [vmem:[#allocation4 + $0x370] sm:$0xff] %vm360, %v1162
      %1199 = vst.msk [vmem:[#allocation4 + $0x398] sm:$0xff] %vm360, %v1163
      %1200 = vst.msk [vmem:[#allocation4 + $0x3c0] sm:$0xff] %vm360, %v1164
      %1201 = vst.msk [vmem:[#allocation4 + $0x3e8] sm:$0xff] %vm360, %v1165
      %1202 = vst.msk [vmem:[#allocation4 + $0x410] sm:$0xff] %vm360, %v1166
      %1203 = vst.msk [vmem:[#allocation4 + $0x438] sm:$0xff] %vm360, %v1167
      %1204 = vst.msk [vmem:[#allocation4 + $0x460] sm:$0xff] %vm360, %v1168
      %1205 = vst.msk [vmem:[#allocation4 + $0x488] sm:$0xff] %vm360, %v1169
      %1206 = vst.msk [vmem:[#allocation4 + $0x4b0] sm:$0xff] %vm360, %v1170
      %1207 = vst.msk [vmem:[#allocation4 + $0x4d8] sm:$0xff] %vm360, %v1171
      %1208 = vst.msk [vmem:[#allocation4 + $0x500] sm:$0xff] %vm360, %v1172
      %1209 = vst.msk [vmem:[#allocation4 + $0x528] sm:$0xff] %vm360, %v1173
      %1210 = vst.msk [vmem:[#allocation4 + $0x550] sm:$0xff] %vm360, %v1174
      %1211 = vst.msk [vmem:[#allocation4 + $0x578] sm:$0xff] %vm360, %v1175
      %v1212 = vld [vmem:[#allocation2 + $0x6] sm:$0xff]
      %v1213 = vld [vmem:[#allocation2 + $0xe] sm:$0xff]
      %v1214 = vld [vmem:[#allocation2 + $0x16] sm:$0xff]
      %v1215 = vld [vmem:[#allocation2 + $0x1e] sm:$0xff]
      %v1216 = vld [vmem:[#allocation2 + $0x26] sm:$0xff]
      %v1217 = vld [vmem:[#allocation2 + $0x2e] sm:$0xff]
      %v1218 = vld [vmem:[#allocation2 + $0x36] sm:$0xff]
      %v1219 = vld [vmem:[#allocation2 + $0x3e] sm:$0xff]
      %v1220 = vld [vmem:[#allocation2 + $0x46] sm:$0xff]
      %v1221 = vld [vmem:[#allocation2 + $0x4e] sm:$0xff]
      %v1222 = vld [vmem:[#allocation2 + $0x56] sm:$0xff]
      %v1223 = vld [vmem:[#allocation2 + $0x5e] sm:$0xff]
      %v1224 = vld [vmem:[#allocation2 + $0x66] sm:$0xff]
      %v1225 = vld [vmem:[#allocation2 + $0x6e] sm:$0xff]
      %v1226 = vld [vmem:[#allocation2 + $0x76] sm:$0xff]
      %v1227 = vld [vmem:[#allocation2 + $0x7e] sm:$0xff]
      %v1228 = vld [vmem:[#allocation2 + $0x86] sm:$0xff]
      %v1229 = vld [vmem:[#allocation2 + $0x8e] sm:$0xff]
      %v1230 = vld [vmem:[#allocation2 + $0x96] sm:$0xff]
      %v1231 = vld [vmem:[#allocation2 + $0x9e] sm:$0xff]
      %v1232 = vld [vmem:[#allocation2 + $0xa6] sm:$0xff]
      %v1233 = vld [vmem:[#allocation2 + $0xae] sm:$0xff]
      %v1234 = vld [vmem:[#allocation2 + $0xb6] sm:$0xff]
      %v1235 = vld [vmem:[#allocation2 + $0xbe] sm:$0xff]
      %v1236 = vld [vmem:[#allocation2 + $0xc6] sm:$0xff]
      %v1237 = vld [vmem:[#allocation2 + $0xce] sm:$0xff]
      %v1238 = vld [vmem:[#allocation2 + $0xd6] sm:$0xff]
      %v1239 = vld [vmem:[#allocation2 + $0xde] sm:$0xff]
      %v1240 = vld [vmem:[#allocation2 + $0xe6] sm:$0xff]
      %v1241 = vld [vmem:[#allocation2 + $0xee] sm:$0xff]
      %v1242 = vld [vmem:[#allocation2 + $0xf6] sm:$0xff]
      %v1243 = vld [vmem:[#allocation2 + $0xfe] sm:$0xff]
      %v1244 = vld [vmem:[#allocation2 + $0x106] sm:$0xff]
      %v1245 = vld [vmem:[#allocation2 + $0x10e] sm:$0xff]
      %v1246 = vld [vmem:[#allocation2 + $0x116] sm:$0xff]
      %v1247 = vld [vmem:[#allocation2 + $0x11e] sm:$0xff]
      %1284 = vrot.lane.b32.xlu0 %v1212, 64
      %v1285 = vpop.permute.xlu0 %1284
      %1286 = vrot.lane.b32.xlu0 %v1213, 64
      %v1287 = vpop.permute.xlu0 %1286
      %1288 = vrot.lane.b32.xlu0 %v1214, 64
      %v1289 = vpop.permute.xlu0 %1288
      %1290 = vrot.lane.b32.xlu0 %v1215, 64
      %v1291 = vpop.permute.xlu0 %1290
      %1292 = vrot.lane.b32.xlu0 %v1216, 64
      %v1293 = vpop.permute.xlu0 %1292
      %1294 = vrot.lane.b32.xlu0 %v1217, 64
      %v1295 = vpop.permute.xlu0 %1294
      %1296 = vrot.lane.b32.xlu0 %v1218, 64
      %v1297 = vpop.permute.xlu0 %1296
      %1298 = vrot.lane.b32.xlu0 %v1219, 64
      %v1299 = vpop.permute.xlu0 %1298
      %1300 = vrot.lane.b32.xlu0 %v1220, 64
      %v1301 = vpop.permute.xlu0 %1300
      %1302 = vrot.lane.b32.xlu0 %v1221, 64
      %v1303 = vpop.permute.xlu0 %1302
      %1304 = vrot.lane.b32.xlu0 %v1222, 64
      %v1305 = vpop.permute.xlu0 %1304
      %1306 = vrot.lane.b32.xlu0 %v1223, 64
      %v1307 = vpop.permute.xlu0 %1306
      %1308 = vrot.lane.b32.xlu0 %v1224, 64
      %v1309 = vpop.permute.xlu0 %1308
      %1310 = vrot.lane.b32.xlu0 %v1225, 64
      %v1311 = vpop.permute.xlu0 %1310
      %1312 = vrot.lane.b32.xlu0 %v1226, 64
      %v1313 = vpop.permute.xlu0 %1312
      %1314 = vrot.lane.b32.xlu0 %v1227, 64
      %v1315 = vpop.permute.xlu0 %1314
      %1316 = vrot.lane.b32.xlu0 %v1228, 64
      %v1317 = vpop.permute.xlu0 %1316
      %1318 = vrot.lane.b32.xlu0 %v1229, 64
      %v1319 = vpop.permute.xlu0 %1318
      %1320 = vrot.lane.b32.xlu0 %v1230, 64
      %v1321 = vpop.permute.xlu0 %1320
      %1322 = vrot.lane.b32.xlu0 %v1231, 64
      %v1323 = vpop.permute.xlu0 %1322
      %1324 = vrot.lane.b32.xlu0 %v1232, 64
      %v1325 = vpop.permute.xlu0 %1324
      %1326 = vrot.lane.b32.xlu0 %v1233, 64
      %v1327 = vpop.permute.xlu0 %1326
      %1328 = vrot.lane.b32.xlu0 %v1234, 64
      %v1329 = vpop.permute.xlu0 %1328
      %1330 = vrot.lane.b32.xlu0 %v1235, 64
      %v1331 = vpop.permute.xlu0 %1330
      %1332 = vrot.lane.b32.xlu0 %v1236, 64
      %v1333 = vpop.permute.xlu0 %1332
      %1334 = vrot.lane.b32.xlu0 %v1237, 64
      %v1335 = vpop.permute.xlu0 %1334
      %1336 = vrot.lane.b32.xlu0 %v1238, 64
      %v1337 = vpop.permute.xlu0 %1336
      %1338 = vrot.lane.b32.xlu0 %v1239, 64
      %v1339 = vpop.permute.xlu0 %1338
      %1340 = vrot.lane.b32.xlu0 %v1240, 64
      %v1341 = vpop.permute.xlu0 %1340
      %1342 = vrot.lane.b32.xlu0 %v1241, 64
      %v1343 = vpop.permute.xlu0 %1342
      %1344 = vrot.lane.b32.xlu0 %v1242, 64
      %v1345 = vpop.permute.xlu0 %1344
      %1346 = vrot.lane.b32.xlu0 %v1243, 64
      %v1347 = vpop.permute.xlu0 %1346
      %1348 = vrot.lane.b32.xlu0 %v1244, 64
      %v1349 = vpop.permute.xlu0 %1348
      %1350 = vrot.lane.b32.xlu0 %v1245, 64
      %v1351 = vpop.permute.xlu0 %1350
      %1352 = vrot.lane.b32.xlu0 %v1246, 64
      %v1353 = vpop.permute.xlu0 %1352
      %1354 = vrot.lane.b32.xlu0 %v1247, 64
      %v1355 = vpop.permute.xlu0 %1354
      %1392 = vst.msk [vmem:[#allocation4] sm:$0xff] %vm373, %v1285
      %1393 = vst.msk [vmem:[#allocation4 + $0x28] sm:$0xff] %vm373, %v1287
      %1394 = vst.msk [vmem:[#allocation4 + $0x50] sm:$0xff] %vm373, %v1289
      %1395 = vst.msk [vmem:[#allocation4 + $0x78] sm:$0xff] %vm373, %v1291
      %1396 = vst.msk [vmem:[#allocation4 + $0xa0] sm:$0xff] %vm373, %v1293
      %1397 = vst.msk [vmem:[#allocation4 + $0xc8] sm:$0xff] %vm373, %v1295
      %1398 = vst.msk [vmem:[#allocation4 + $0xf0] sm:$0xff] %vm373, %v1297
      %1399 = vst.msk [vmem:[#allocation4 + $0x118] sm:$0xff] %vm373, %v1299
      %1400 = vst.msk [vmem:[#allocation4 + $0x140] sm:$0xff] %vm373, %v1301
      %1401 = vst.msk [vmem:[#allocation4 + $0x168] sm:$0xff] %vm373, %v1303
      %1402 = vst.msk [vmem:[#allocation4 + $0x190] sm:$0xff] %vm373, %v1305
      %1403 = vst.msk [vmem:[#allocation4 + $0x1b8] sm:$0xff] %vm373, %v1307
      %1404 = vst.msk [vmem:[#allocation4 + $0x1e0] sm:$0xff] %vm373, %v1309
      %1405 = vst.msk [vmem:[#allocation4 + $0x208] sm:$0xff] %vm373, %v1311
      %1406 = vst.msk [vmem:[#allocation4 + $0x230] sm:$0xff] %vm373, %v1313
      %1407 = vst.msk [vmem:[#allocation4 + $0x258] sm:$0xff] %vm373, %v1315
      %1408 = vst.msk [vmem:[#allocation4 + $0x280] sm:$0xff] %vm373, %v1317
      %1409 = vst.msk [vmem:[#allocation4 + $0x2a8] sm:$0xff] %vm373, %v1319
      %1410 = vst.msk [vmem:[#allocation4 + $0x2d0] sm:$0xff] %vm373, %v1321
      %1411 = vst.msk [vmem:[#allocation4 + $0x2f8] sm:$0xff] %vm373, %v1323
      %1412 = vst.msk [vmem:[#allocation4 + $0x320] sm:$0xff] %vm373, %v1325
      %1413 = vst.msk [vmem:[#allocation4 + $0x348] sm:$0xff] %vm373, %v1327
      %1414 = vst.msk [vmem:[#allocation4 + $0x370] sm:$0xff] %vm373, %v1329
      %1415 = vst.msk [vmem:[#allocation4 + $0x398] sm:$0xff] %vm373, %v1331
      %1416 = vst.msk [vmem:[#allocation4 + $0x3c0] sm:$0xff] %vm373, %v1333
      %1417 = vst.msk [vmem:[#allocation4 + $0x3e8] sm:$0xff] %vm373, %v1335
      %1418 = vst.msk [vmem:[#allocation4 + $0x410] sm:$0xff] %vm373, %v1337
      %1419 = vst.msk [vmem:[#allocation4 + $0x438] sm:$0xff] %vm373, %v1339
      %1420 = vst.msk [vmem:[#allocation4 + $0x460] sm:$0xff] %vm373, %v1341
      %1421 = vst.msk [vmem:[#allocation4 + $0x488] sm:$0xff] %vm373, %v1343
      %1422 = vst.msk [vmem:[#allocation4 + $0x4b0] sm:$0xff] %vm373, %v1345
      %1423 = vst.msk [vmem:[#allocation4 + $0x4d8] sm:$0xff] %vm373, %v1347
      %1424 = vst.msk [vmem:[#allocation4 + $0x500] sm:$0xff] %vm373, %v1349
      %1425 = vst.msk [vmem:[#allocation4 + $0x528] sm:$0xff] %vm373, %v1351
      %1426 = vst.msk [vmem:[#allocation4 + $0x550] sm:$0xff] %vm373, %v1353
      %1427 = vst.msk [vmem:[#allocation4 + $0x578] sm:$0xff] %vm373, %v1355
      %v1428 = vld [vmem:[#allocation2 + $0x7] sm:$0xff]
      %v1429 = vld [vmem:[#allocation2 + $0xf] sm:$0xff]
      %v1430 = vld [vmem:[#allocation2 + $0x17] sm:$0xff]
      %v1431 = vld [vmem:[#allocation2 + $0x1f] sm:$0xff]
      %v1432 = vld [vmem:[#allocation2 + $0x27] sm:$0xff]
      %v1433 = vld [vmem:[#allocation2 + $0x2f] sm:$0xff]
      %v1434 = vld [vmem:[#allocation2 + $0x37] sm:$0xff]
      %v1435 = vld [vmem:[#allocation2 + $0x3f] sm:$0xff]
      %v1436 = vld [vmem:[#allocation2 + $0x47] sm:$0xff]
      %v1437 = vld [vmem:[#allocation2 + $0x4f] sm:$0xff]
      %v1438 = vld [vmem:[#allocation2 + $0x57] sm:$0xff]
      %v1439 = vld [vmem:[#allocation2 + $0x5f] sm:$0xff]
      %v1440 = vld [vmem:[#allocation2 + $0x67] sm:$0xff]
      %v1441 = vld [vmem:[#allocation2 + $0x6f] sm:$0xff]
      %v1442 = vld [vmem:[#allocation2 + $0x77] sm:$0xff]
      %v1443 = vld [vmem:[#allocation2 + $0x7f] sm:$0xff]
      %v1444 = vld [vmem:[#allocation2 + $0x87] sm:$0xff]
      %v1445 = vld [vmem:[#allocation2 + $0x8f] sm:$0xff]
      %v1446 = vld [vmem:[#allocation2 + $0x97] sm:$0xff]
      %v1447 = vld [vmem:[#allocation2 + $0x9f] sm:$0xff]
      %v1448 = vld [vmem:[#allocation2 + $0xa7] sm:$0xff]
      %v1449 = vld [vmem:[#allocation2 + $0xaf] sm:$0xff]
      %v1450 = vld [vmem:[#allocation2 + $0xb7] sm:$0xff]
      %v1451 = vld [vmem:[#allocation2 + $0xbf] sm:$0xff]
      %v1452 = vld [vmem:[#allocation2 + $0xc7] sm:$0xff]
      %v1453 = vld [vmem:[#allocation2 + $0xcf] sm:$0xff]
      %v1454 = vld [vmem:[#allocation2 + $0xd7] sm:$0xff]
      %v1455 = vld [vmem:[#allocation2 + $0xdf] sm:$0xff]
      %v1456 = vld [vmem:[#allocation2 + $0xe7] sm:$0xff]
      %v1457 = vld [vmem:[#allocation2 + $0xef] sm:$0xff]
      %v1458 = vld [vmem:[#allocation2 + $0xf7] sm:$0xff]
      %v1459 = vld [vmem:[#allocation2 + $0xff] sm:$0xff]
      %v1460 = vld [vmem:[#allocation2 + $0x107] sm:$0xff]
      %v1461 = vld [vmem:[#allocation2 + $0x10f] sm:$0xff]
      %v1462 = vld [vmem:[#allocation2 + $0x117] sm:$0xff]
      %v1463 = vld [vmem:[#allocation2 + $0x11f] sm:$0xff]
      %1464 = vst.msk [vmem:[#allocation4 + $0x8] sm:$0xff] %vm360, %v1428
      %1465 = vst.msk [vmem:[#allocation4 + $0x30] sm:$0xff] %vm360, %v1429
      %1466 = vst.msk [vmem:[#allocation4 + $0x58] sm:$0xff] %vm360, %v1430
      %1467 = vst.msk [vmem:[#allocation4 + $0x80] sm:$0xff] %vm360, %v1431
      %1468 = vst.msk [vmem:[#allocation4 + $0xa8] sm:$0xff] %vm360, %v1432
      %1469 = vst.msk [vmem:[#allocation4 + $0xd0] sm:$0xff] %vm360, %v1433
      %1470 = vst.msk [vmem:[#allocation4 + $0xf8] sm:$0xff] %vm360, %v1434
      %1471 = vst.msk [vmem:[#allocation4 + $0x120] sm:$0xff] %vm360, %v1435
      %1472 = vst.msk [vmem:[#allocation4 + $0x148] sm:$0xff] %vm360, %v1436
      %1473 = vst.msk [vmem:[#allocation4 + $0x170] sm:$0xff] %vm360, %v1437
      %1474 = vst.msk [vmem:[#allocation4 + $0x198] sm:$0xff] %vm360, %v1438
      %1475 = vst.msk [vmem:[#allocation4 + $0x1c0] sm:$0xff] %vm360, %v1439
      %1476 = vst.msk [vmem:[#allocation4 + $0x1e8] sm:$0xff] %vm360, %v1440
      %1477 = vst.msk [vmem:[#allocation4 + $0x210] sm:$0xff] %vm360, %v1441
      %1478 = vst.msk [vmem:[#allocation4 + $0x238] sm:$0xff] %vm360, %v1442
      %1479 = vst.msk [vmem:[#allocation4 + $0x260] sm:$0xff] %vm360, %v1443
      %1480 = vst.msk [vmem:[#allocation4 + $0x288] sm:$0xff] %vm360, %v1444
      %1481 = vst.msk [vmem:[#allocation4 + $0x2b0] sm:$0xff] %vm360, %v1445
      %1482 = vst.msk [vmem:[#allocation4 + $0x2d8] sm:$0xff] %vm360, %v1446
      %1483 = vst.msk [vmem:[#allocation4 + $0x300] sm:$0xff] %vm360, %v1447
      %1484 = vst.msk [vmem:[#allocation4 + $0x328] sm:$0xff] %vm360, %v1448
      %1485 = vst.msk [vmem:[#allocation4 + $0x350] sm:$0xff] %vm360, %v1449
      %1486 = vst.msk [vmem:[#allocation4 + $0x378] sm:$0xff] %vm360, %v1450
      %1487 = vst.msk [vmem:[#allocation4 + $0x3a0] sm:$0xff] %vm360, %v1451
      %1488 = vst.msk [vmem:[#allocation4 + $0x3c8] sm:$0xff] %vm360, %v1452
      %1489 = vst.msk [vmem:[#allocation4 + $0x3f0] sm:$0xff] %vm360, %v1453
      %1490 = vst.msk [vmem:[#allocation4 + $0x418] sm:$0xff] %vm360, %v1454
      %1491 = vst.msk [vmem:[#allocation4 + $0x440] sm:$0xff] %vm360, %v1455
      %1492 = vst.msk [vmem:[#allocation4 + $0x468] sm:$0xff] %vm360, %v1456
      %1493 = vst.msk [vmem:[#allocation4 + $0x490] sm:$0xff] %vm360, %v1457
      %1494 = vst.msk [vmem:[#allocation4 + $0x4b8] sm:$0xff] %vm360, %v1458
      %1495 = vst.msk [vmem:[#allocation4 + $0x4e0] sm:$0xff] %vm360, %v1459
      %1496 = vst.msk [vmem:[#allocation4 + $0x508] sm:$0xff] %vm360, %v1460
      %1497 = vst.msk [vmem:[#allocation4 + $0x530] sm:$0xff] %vm360, %v1461
      %1498 = vst.msk [vmem:[#allocation4 + $0x558] sm:$0xff] %vm360, %v1462
      %1499 = vst.msk [vmem:[#allocation4 + $0x580] sm:$0xff] %vm360, %v1463
      %v1500 = vld [vmem:[#allocation2 + $0x17] sm:$0xff]
      %v1501 = vld [vmem:[#allocation2 + $0x1f] sm:$0xff]
      %v1502 = vld [vmem:[#allocation2 + $0x27] sm:$0xff]
      %v1503 = vld [vmem:[#allocation2 + $0x2f] sm:$0xff]
      %v1504 = vld [vmem:[#allocation2 + $0x37] sm:$0xff]
      %v1505 = vld [vmem:[#allocation2 + $0x3f] sm:$0xff]
      %v1506 = vld [vmem:[#allocation2 + $0x47] sm:$0xff]
      %v1507 = vld [vmem:[#allocation2 + $0x4f] sm:$0xff]
      %v1508 = vld [vmem:[#allocation2 + $0x57] sm:$0xff]
      %v1509 = vld [vmem:[#allocation2 + $0x5f] sm:$0xff]
      %v1510 = vld [vmem:[#allocation2 + $0x67] sm:$0xff]
      %v1511 = vld [vmem:[#allocation2 + $0x6f] sm:$0xff]
      %v1512 = vld [vmem:[#allocation2 + $0x77] sm:$0xff]
      %v1513 = vld [vmem:[#allocation2 + $0x7f] sm:$0xff]
      %v1514 = vld [vmem:[#allocation2 + $0x87] sm:$0xff]
      %v1515 = vld [vmem:[#allocation2 + $0x8f] sm:$0xff]
      %v1516 = vld [vmem:[#allocation2 + $0x97] sm:$0xff]
      %v1517 = vld [vmem:[#allocation2 + $0x9f] sm:$0xff]
      %v1518 = vld [vmem:[#allocation2 + $0xa7] sm:$0xff]
      %v1519 = vld [vmem:[#allocation2 + $0xaf] sm:$0xff]
      %v1520 = vld [vmem:[#allocation2 + $0xb7] sm:$0xff]
      %v1521 = vld [vmem:[#allocation2 + $0xbf] sm:$0xff]
      %v1522 = vld [vmem:[#allocation2 + $0xc7] sm:$0xff]
      %v1523 = vld [vmem:[#allocation2 + $0xcf] sm:$0xff]
      %v1524 = vld [vmem:[#allocation2 + $0xd7] sm:$0xff]
      %v1525 = vld [vmem:[#allocation2 + $0xdf] sm:$0xff]
      %v1526 = vld [vmem:[#allocation2 + $0xe7] sm:$0xff]
      %v1527 = vld [vmem:[#allocation2 + $0xef] sm:$0xff]
      %v1528 = vld [vmem:[#allocation2 + $0xf7] sm:$0xff]
      %v1529 = vld [vmem:[#allocation2 + $0xff] sm:$0xff]
      %v1530 = vld [vmem:[#allocation2 + $0x107] sm:$0xff]
      %v1531 = vld [vmem:[#allocation2 + $0x10f] sm:$0xff]
      %v1532 = vld [vmem:[#allocation2 + $0x117] sm:$0xff]
      %v1533 = vld [vmem:[#allocation2 + $0x11f] sm:$0xff]
      %v1534 = vld [vmem:[#allocation2 + $0x127] sm:$0xff]
      %v1535 = vld [vmem:[#allocation2 + $0x12f] sm:$0xff]
      %1572 = vrot.lane.b32.xlu0 %v1500, 64
      %v1573 = vpop.permute.xlu0 %1572
      %1574 = vrot.lane.b32.xlu0 %v1501, 64
      %v1575 = vpop.permute.xlu0 %1574
      %1576 = vrot.lane.b32.xlu0 %v1502, 64
      %v1577 = vpop.permute.xlu0 %1576
      %1578 = vrot.lane.b32.xlu0 %v1503, 64
      %v1579 = vpop.permute.xlu0 %1578
      %1580 = vrot.lane.b32.xlu0 %v1504, 64
      %v1581 = vpop.permute.xlu0 %1580
      %1582 = vrot.lane.b32.xlu0 %v1505, 64
      %v1583 = vpop.permute.xlu0 %1582
      %1584 = vrot.lane.b32.xlu0 %v1506, 64
      %v1585 = vpop.permute.xlu0 %1584
      %1586 = vrot.lane.b32.xlu0 %v1507, 64
      %v1587 = vpop.permute.xlu0 %1586
      %1588 = vrot.lane.b32.xlu0 %v1508, 64
      %v1589 = vpop.permute.xlu0 %1588
      %1590 = vrot.lane.b32.xlu0 %v1509, 64
      %v1591 = vpop.permute.xlu0 %1590
      %1592 = vrot.lane.b32.xlu0 %v1510, 64
      %v1593 = vpop.permute.xlu0 %1592
      %1594 = vrot.lane.b32.xlu0 %v1511, 64
      %v1595 = vpop.permute.xlu0 %1594
      %1596 = vrot.lane.b32.xlu0 %v1512, 64
      %v1597 = vpop.permute.xlu0 %1596
      %1598 = vrot.lane.b32.xlu0 %v1513, 64
      %v1599 = vpop.permute.xlu0 %1598
      %1600 = vrot.lane.b32.xlu0 %v1514, 64
      %v1601 = vpop.permute.xlu0 %1600
      %1602 = vrot.lane.b32.xlu0 %v1515, 64
      %v1603 = vpop.permute.xlu0 %1602
      %1604 = vrot.lane.b32.xlu0 %v1516, 64
      %v1605 = vpop.permute.xlu0 %1604
      %1606 = vrot.lane.b32.xlu0 %v1517, 64
      %v1607 = vpop.permute.xlu0 %1606
      %1608 = vrot.lane.b32.xlu0 %v1518, 64
      %v1609 = vpop.permute.xlu0 %1608
      %1610 = vrot.lane.b32.xlu0 %v1519, 64
      %v1611 = vpop.permute.xlu0 %1610
      %1612 = vrot.lane.b32.xlu0 %v1520, 64
      %v1613 = vpop.permute.xlu0 %1612
      %1614 = vrot.lane.b32.xlu0 %v1521, 64
      %v1615 = vpop.permute.xlu0 %1614
      %1616 = vrot.lane.b32.xlu0 %v1522, 64
      %v1617 = vpop.permute.xlu0 %1616
      %1618 = vrot.lane.b32.xlu0 %v1523, 64
      %v1619 = vpop.permute.xlu0 %1618
      %1620 = vrot.lane.b32.xlu0 %v1524, 64
      %v1621 = vpop.permute.xlu0 %1620
      %1622 = vrot.lane.b32.xlu0 %v1525, 64
      %v1623 = vpop.permute.xlu0 %1622
      %1624 = vrot.lane.b32.xlu0 %v1526, 64
      %v1625 = vpop.permute.xlu0 %1624
      %1626 = vrot.lane.b32.xlu0 %v1527, 64
      %v1627 = vpop.permute.xlu0 %1626
      %1628 = vrot.lane.b32.xlu0 %v1528, 64
      %v1629 = vpop.permute.xlu0 %1628
      %1630 = vrot.lane.b32.xlu0 %v1529, 64
      %v1631 = vpop.permute.xlu0 %1630
      %1632 = vrot.lane.b32.xlu0 %v1530, 64
      %v1633 = vpop.permute.xlu0 %1632
      %1634 = vrot.lane.b32.xlu0 %v1531, 64
      %v1635 = vpop.permute.xlu0 %1634
      %1636 = vrot.lane.b32.xlu0 %v1532, 64
      %v1637 = vpop.permute.xlu0 %1636
      %1638 = vrot.lane.b32.xlu0 %v1533, 64
      %v1639 = vpop.permute.xlu0 %1638
      %1640 = vrot.lane.b32.xlu0 %v1534, 64
      %v1641 = vpop.permute.xlu0 %1640
      %1642 = vrot.lane.b32.xlu0 %v1535, 64
      %v1643 = vpop.permute.xlu0 %1642
      %1680 = vst.msk [vmem:[#allocation4 + $0x8] sm:$0xff] %vm373, %v1573
      %1681 = vst.msk [vmem:[#allocation4 + $0x30] sm:$0xff] %vm373, %v1575
      %1682 = vst.msk [vmem:[#allocation4 + $0x58] sm:$0xff] %vm373, %v1577
      %1683 = vst.msk [vmem:[#allocation4 + $0x80] sm:$0xff] %vm373, %v1579
      %1684 = vst.msk [vmem:[#allocation4 + $0xa8] sm:$0xff] %vm373, %v1581
      %1685 = vst.msk [vmem:[#allocation4 + $0xd0] sm:$0xff] %vm373, %v1583
      %1686 = vst.msk [vmem:[#allocation4 + $0xf8] sm:$0xff] %vm373, %v1585
      %1687 = vst.msk [vmem:[#allocation4 + $0x120] sm:$0xff] %vm373, %v1587
      %1688 = vst.msk [vmem:[#allocation4 + $0x148] sm:$0xff] %vm373, %v1589
      %1689 = vst.msk [vmem:[#allocation4 + $0x170] sm:$0xff] %vm373, %v1591
      %1690 = vst.msk [vmem:[#allocation4 + $0x198] sm:$0xff] %vm373, %v1593
      %1691 = vst.msk [vmem:[#allocation4 + $0x1c0] sm:$0xff] %vm373, %v1595
      %1692 = vst.msk [vmem:[#allocation4 + $0x1e8] sm:$0xff] %vm373, %v1597
      %1693 = vst.msk [vmem:[#allocation4 + $0x210] sm:$0xff] %vm373, %v1599
      %1694 = vst.msk [vmem:[#allocation4 + $0x238] sm:$0xff] %vm373, %v1601
      %1695 = vst.msk [vmem:[#allocation4 + $0x260] sm:$0xff] %vm373, %v1603
      %1696 = vst.msk [vmem:[#allocation4 + $0x288] sm:$0xff] %vm373, %v1605
      %1697 = vst.msk [vmem:[#allocation4 + $0x2b0] sm:$0xff] %vm373, %v1607
      %1698 = vst.msk [vmem:[#allocation4 + $0x2d8] sm:$0xff] %vm373, %v1609
      %1699 = vst.msk [vmem:[#allocation4 + $0x300] sm:$0xff] %vm373, %v1611
      %1700 = vst.msk [vmem:[#allocation4 + $0x328] sm:$0xff] %vm373, %v1613
      %1701 = vst.msk [vmem:[#allocation4 + $0x350] sm:$0xff] %vm373, %v1615
      %1702 = vst.msk [vmem:[#allocation4 + $0x378] sm:$0xff] %vm373, %v1617
      %1703 = vst.msk [vmem:[#allocation4 + $0x3a0] sm:$0xff] %vm373, %v1619
      %1704 = vst.msk [vmem:[#allocation4 + $0x3c8] sm:$0xff] %vm373, %v1621
      %1705 = vst.msk [vmem:[#allocation4 + $0x3f0] sm:$0xff] %vm373, %v1623
      %1706 = vst.msk [vmem:[#allocation4 + $0x418] sm:$0xff] %vm373, %v1625
      %1707 = vst.msk [vmem:[#allocation4 + $0x440] sm:$0xff] %vm373, %v1627
      %1708 = vst.msk [vmem:[#allocation4 + $0x468] sm:$0xff] %vm373, %v1629
      %1709 = vst.msk [vmem:[#allocation4 + $0x490] sm:$0xff] %vm373, %v1631
      %1710 = vst.msk [vmem:[#allocation4 + $0x4b8] sm:$0xff] %vm373, %v1633
      %1711 = vst.msk [vmem:[#allocation4 + $0x4e0] sm:$0xff] %vm373, %v1635
      %1712 = vst.msk [vmem:[#allocation4 + $0x508] sm:$0xff] %vm373, %v1637
      %1713 = vst.msk [vmem:[#allocation4 + $0x530] sm:$0xff] %vm373, %v1639
      %1714 = vst.msk [vmem:[#allocation4 + $0x558] sm:$0xff] %vm373, %v1641
      %1715 = vst.msk [vmem:[#allocation4 + $0x580] sm:$0xff] %vm373, %v1643
      %v1716 = vld [vmem:[#allocation2 + $0x18] sm:$0xff]
      %v1717 = vld [vmem:[#allocation2 + $0x20] sm:$0xff]
      %v1718 = vld [vmem:[#allocation2 + $0x28] sm:$0xff]
      %v1719 = vld [vmem:[#allocation2 + $0x30] sm:$0xff]
      %v1720 = vld [vmem:[#allocation2 + $0x38] sm:$0xff]
      %v1721 = vld [vmem:[#allocation2 + $0x40] sm:$0xff]
      %v1722 = vld [vmem:[#allocation2 + $0x48] sm:$0xff]
      %v1723 = vld [vmem:[#allocation2 + $0x50] sm:$0xff]
      %v1724 = vld [vmem:[#allocation2 + $0x58] sm:$0xff]
      %v1725 = vld [vmem:[#allocation2 + $0x60] sm:$0xff]
      %v1726 = vld [vmem:[#allocation2 + $0x68] sm:$0xff]
      %v1727 = vld [vmem:[#allocation2 + $0x70] sm:$0xff]
      %v1728 = vld [vmem:[#allocation2 + $0x78] sm:$0xff]
      %v1729 = vld [vmem:[#allocation2 + $0x80] sm:$0xff]
      %v1730 = vld [vmem:[#allocation2 + $0x88] sm:$0xff]
      %v1731 = vld [vmem:[#allocation2 + $0x90] sm:$0xff]
      %v1732 = vld [vmem:[#allocation2 + $0x98] sm:$0xff]
      %v1733 = vld [vmem:[#allocation2 + $0xa0] sm:$0xff]
      %v1734 = vld [vmem:[#allocation2 + $0xa8] sm:$0xff]
      %v1735 = vld [vmem:[#allocation2 + $0xb0] sm:$0xff]
      %v1736 = vld [vmem:[#allocation2 + $0xb8] sm:$0xff]
      %v1737 = vld [vmem:[#allocation2 + $0xc0] sm:$0xff]
      %v1738 = vld [vmem:[#allocation2 + $0xc8] sm:$0xff]
      %v1739 = vld [vmem:[#allocation2 + $0xd0] sm:$0xff]
      %v1740 = vld [vmem:[#allocation2 + $0xd8] sm:$0xff]
      %v1741 = vld [vmem:[#allocation2 + $0xe0] sm:$0xff]
      %v1742 = vld [vmem:[#allocation2 + $0xe8] sm:$0xff]
      %v1743 = vld [vmem:[#allocation2 + $0xf0] sm:$0xff]
      %v1744 = vld [vmem:[#allocation2 + $0xf8] sm:$0xff]
      %v1745 = vld [vmem:[#allocation2 + $0x100] sm:$0xff]
      %v1746 = vld [vmem:[#allocation2 + $0x108] sm:$0xff]
      %v1747 = vld [vmem:[#allocation2 + $0x110] sm:$0xff]
      %v1748 = vld [vmem:[#allocation2 + $0x118] sm:$0xff]
      %v1749 = vld [vmem:[#allocation2 + $0x120] sm:$0xff]
      %v1750 = vld [vmem:[#allocation2 + $0x128] sm:$0xff]
      %v1751 = vld [vmem:[#allocation2 + $0x130] sm:$0xff]
      %1752 = vst.msk [vmem:[#allocation4 + $0x10] sm:$0xff] %vm360, %v1716
      %1753 = vst.msk [vmem:[#allocation4 + $0x38] sm:$0xff] %vm360, %v1717
      %1754 = vst.msk [vmem:[#allocation4 + $0x60] sm:$0xff] %vm360, %v1718
      %1755 = vst.msk [vmem:[#allocation4 + $0x88] sm:$0xff] %vm360, %v1719
      %1756 = vst.msk [vmem:[#allocation4 + $0xb0] sm:$0xff] %vm360, %v1720
      %1757 = vst.msk [vmem:[#allocation4 + $0xd8] sm:$0xff] %vm360, %v1721
      %1758 = vst.msk [vmem:[#allocation4 + $0x100] sm:$0xff] %vm360, %v1722
      %1759 = vst.msk [vmem:[#allocation4 + $0x128] sm:$0xff] %vm360, %v1723
      %1760 = vst.msk [vmem:[#allocation4 + $0x150] sm:$0xff] %vm360, %v1724
      %1761 = vst.msk [vmem:[#allocation4 + $0x178] sm:$0xff] %vm360, %v1725
      %1762 = vst.msk [vmem:[#allocation4 + $0x1a0] sm:$0xff] %vm360, %v1726
      %1763 = vst.msk [vmem:[#allocation4 + $0x1c8] sm:$0xff] %vm360, %v1727
      %1764 = vst.msk [vmem:[#allocation4 + $0x1f0] sm:$0xff] %vm360, %v1728
      %1765 = vst.msk [vmem:[#allocation4 + $0x218] sm:$0xff] %vm360, %v1729
      %1766 = vst.msk [vmem:[#allocation4 + $0x240] sm:$0xff] %vm360, %v1730
      %1767 = vst.msk [vmem:[#allocation4 + $0x268] sm:$0xff] %vm360, %v1731
      %1768 = vst.msk [vmem:[#allocation4 + $0x290] sm:$0xff] %vm360, %v1732
      %1769 = vst.msk [vmem:[#allocation4 + $0x2b8] sm:$0xff] %vm360, %v1733
      %1770 = vst.msk [vmem:[#allocation4 + $0x2e0] sm:$0xff] %vm360, %v1734
      %1771 = vst.msk [vmem:[#allocation4 + $0x308] sm:$0xff] %vm360, %v1735
      %1772 = vst.msk [vmem:[#allocation4 + $0x330] sm:$0xff] %vm360, %v1736
      %1773 = vst.msk [vmem:[#allocation4 + $0x358] sm:$0xff] %vm360, %v1737
      %1774 = vst.msk [vmem:[#allocation4 + $0x380] sm:$0xff] %vm360, %v1738
      %1775 = vst.msk [vmem:[#allocation4 + $0x3a8] sm:$0xff] %vm360, %v1739
      %1776 = vst.msk [vmem:[#allocation4 + $0x3d0] sm:$0xff] %vm360, %v1740
      %1777 = vst.msk [vmem:[#allocation4 + $0x3f8] sm:$0xff] %vm360, %v1741
      %1778 = vst.msk [vmem:[#allocation4 + $0x420] sm:$0xff] %vm360, %v1742
      %1779 = vst.msk [vmem:[#allocation4 + $0x448] sm:$0xff] %vm360, %v1743
      %1780 = vst.msk [vmem:[#allocation4 + $0x470] sm:$0xff] %vm360, %v1744
      %1781 = vst.msk [vmem:[#allocation4 + $0x498] sm:$0xff] %vm360, %v1745
      %1782 = vst.msk [vmem:[#allocation4 + $0x4c0] sm:$0xff] %vm360, %v1746
      %1783 = vst.msk [vmem:[#allocation4 + $0x4e8] sm:$0xff] %vm360, %v1747
      %1784 = vst.msk [vmem:[#allocation4 + $0x510] sm:$0xff] %vm360, %v1748
      %1785 = vst.msk [vmem:[#allocation4 + $0x538] sm:$0xff] %vm360, %v1749
      %1786 = vst.msk [vmem:[#allocation4 + $0x560] sm:$0xff] %vm360, %v1750
      %1787 = vst.msk [vmem:[#allocation4 + $0x588] sm:$0xff] %vm360, %v1751
      %v1788 = vld [vmem:[#allocation2 + $0x19] sm:$0xff]
      %v1789 = vld [vmem:[#allocation2 + $0x21] sm:$0xff]
      %v1790 = vld [vmem:[#allocation2 + $0x29] sm:$0xff]
      %v1791 = vld [vmem:[#allocation2 + $0x31] sm:$0xff]
      %v1792 = vld [vmem:[#allocation2 + $0x39] sm:$0xff]
      %v1793 = vld [vmem:[#allocation2 + $0x41] sm:$0xff]
      %v1794 = vld [vmem:[#allocation2 + $0x49] sm:$0xff]
      %v1795 = vld [vmem:[#allocation2 + $0x51] sm:$0xff]
      %v1796 = vld [vmem:[#allocation2 + $0x59] sm:$0xff]
      %v1797 = vld [vmem:[#allocation2 + $0x61] sm:$0xff]
      %v1798 = vld [vmem:[#allocation2 + $0x69] sm:$0xff]
      %v1799 = vld [vmem:[#allocation2 + $0x71] sm:$0xff]
      %v1800 = vld [vmem:[#allocation2 + $0x79] sm:$0xff]
      %v1801 = vld [vmem:[#allocation2 + $0x81] sm:$0xff]
      %v1802 = vld [vmem:[#allocation2 + $0x89] sm:$0xff]
      %v1803 = vld [vmem:[#allocation2 + $0x91] sm:$0xff]
      %v1804 = vld [vmem:[#allocation2 + $0x99] sm:$0xff]
      %v1805 = vld [vmem:[#allocation2 + $0xa1] sm:$0xff]
      %v1806 = vld [vmem:[#allocation2 + $0xa9] sm:$0xff]
      %v1807 = vld [vmem:[#allocation2 + $0xb1] sm:$0xff]
      %v1808 = vld [vmem:[#allocation2 + $0xb9] sm:$0xff]
      %v1809 = vld [vmem:[#allocation2 + $0xc1] sm:$0xff]
      %v1810 = vld [vmem:[#allocation2 + $0xc9] sm:$0xff]
      %v1811 = vld [vmem:[#allocation2 + $0xd1] sm:$0xff]
      %v1812 = vld [vmem:[#allocation2 + $0xd9] sm:$0xff]
      %v1813 = vld [vmem:[#allocation2 + $0xe1] sm:$0xff]
      %v1814 = vld [vmem:[#allocation2 + $0xe9] sm:$0xff]
      %v1815 = vld [vmem:[#allocation2 + $0xf1] sm:$0xff]
      %v1816 = vld [vmem:[#allocation2 + $0xf9] sm:$0xff]
      %v1817 = vld [vmem:[#allocation2 + $0x101] sm:$0xff]
      %v1818 = vld [vmem:[#allocation2 + $0x109] sm:$0xff]
      %v1819 = vld [vmem:[#allocation2 + $0x111] sm:$0xff]
      %v1820 = vld [vmem:[#allocation2 + $0x119] sm:$0xff]
      %v1821 = vld [vmem:[#allocation2 + $0x121] sm:$0xff]
      %v1822 = vld [vmem:[#allocation2 + $0x129] sm:$0xff]
      %v1823 = vld [vmem:[#allocation2 + $0x131] sm:$0xff]
      %1860 = vrot.lane.b32.xlu0 %v1788, 64
      %v1861 = vpop.permute.xlu0 %1860
      %1862 = vrot.lane.b32.xlu0 %v1789, 64
      %v1863 = vpop.permute.xlu0 %1862
      %1864 = vrot.lane.b32.xlu0 %v1790, 64
      %v1865 = vpop.permute.xlu0 %1864
      %1866 = vrot.lane.b32.xlu0 %v1791, 64
      %v1867 = vpop.permute.xlu0 %1866
      %1868 = vrot.lane.b32.xlu0 %v1792, 64
      %v1869 = vpop.permute.xlu0 %1868
      %1870 = vrot.lane.b32.xlu0 %v1793, 64
      %v1871 = vpop.permute.xlu0 %1870
      %1872 = vrot.lane.b32.xlu0 %v1794, 64
      %v1873 = vpop.permute.xlu0 %1872
      %1874 = vrot.lane.b32.xlu0 %v1795, 64
      %v1875 = vpop.permute.xlu0 %1874
      %1876 = vrot.lane.b32.xlu0 %v1796, 64
      %v1877 = vpop.permute.xlu0 %1876
      %1878 = vrot.lane.b32.xlu0 %v1797, 64
      %v1879 = vpop.permute.xlu0 %1878
      %1880 = vrot.lane.b32.xlu0 %v1798, 64
      %v1881 = vpop.permute.xlu0 %1880
      %1882 = vrot.lane.b32.xlu0 %v1799, 64
      %v1883 = vpop.permute.xlu0 %1882
      %1884 = vrot.lane.b32.xlu0 %v1800, 64
      %v1885 = vpop.permute.xlu0 %1884
      %1886 = vrot.lane.b32.xlu0 %v1801, 64
      %v1887 = vpop.permute.xlu0 %1886
      %1888 = vrot.lane.b32.xlu0 %v1802, 64
      %v1889 = vpop.permute.xlu0 %1888
      %1890 = vrot.lane.b32.xlu0 %v1803, 64
      %v1891 = vpop.permute.xlu0 %1890
      %1892 = vrot.lane.b32.xlu0 %v1804, 64
      %v1893 = vpop.permute.xlu0 %1892
      %1894 = vrot.lane.b32.xlu0 %v1805, 64
      %v1895 = vpop.permute.xlu0 %1894
      %1896 = vrot.lane.b32.xlu0 %v1806, 64
      %v1897 = vpop.permute.xlu0 %1896
      %1898 = vrot.lane.b32.xlu0 %v1807, 64
      %v1899 = vpop.permute.xlu0 %1898
      %1900 = vrot.lane.b32.xlu0 %v1808, 64
      %v1901 = vpop.permute.xlu0 %1900
      %1902 = vrot.lane.b32.xlu0 %v1809, 64
      %v1903 = vpop.permute.xlu0 %1902
      %1904 = vrot.lane.b32.xlu0 %v1810, 64
      %v1905 = vpop.permute.xlu0 %1904
      %1906 = vrot.lane.b32.xlu0 %v1811, 64
      %v1907 = vpop.permute.xlu0 %1906
      %1908 = vrot.lane.b32.xlu0 %v1812, 64
      %v1909 = vpop.permute.xlu0 %1908
      %1910 = vrot.lane.b32.xlu0 %v1813, 64
      %v1911 = vpop.permute.xlu0 %1910
      %1912 = vrot.lane.b32.xlu0 %v1814, 64
      %v1913 = vpop.permute.xlu0 %1912
      %1914 = vrot.lane.b32.xlu0 %v1815, 64
      %v1915 = vpop.permute.xlu0 %1914
      %1916 = vrot.lane.b32.xlu0 %v1816, 64
      %v1917 = vpop.permute.xlu0 %1916
      %1918 = vrot.lane.b32.xlu0 %v1817, 64
      %v1919 = vpop.permute.xlu0 %1918
      %1920 = vrot.lane.b32.xlu0 %v1818, 64
      %v1921 = vpop.permute.xlu0 %1920
      %1922 = vrot.lane.b32.xlu0 %v1819, 64
      %v1923 = vpop.permute.xlu0 %1922
      %1924 = vrot.lane.b32.xlu0 %v1820, 64
      %v1925 = vpop.permute.xlu0 %1924
      %1926 = vrot.lane.b32.xlu0 %v1821, 64
      %v1927 = vpop.permute.xlu0 %1926
      %1928 = vrot.lane.b32.xlu0 %v1822, 64
      %v1929 = vpop.permute.xlu0 %1928
      %1930 = vrot.lane.b32.xlu0 %v1823, 64
      %v1931 = vpop.permute.xlu0 %1930
      %1968 = vst.msk [vmem:[#allocation4 + $0x10] sm:$0xff] %vm373, %v1861
      %1969 = vst.msk [vmem:[#allocation4 + $0x38] sm:$0xff] %vm373, %v1863
      %1970 = vst.msk [vmem:[#allocation4 + $0x60] sm:$0xff] %vm373, %v1865
      %1971 = vst.msk [vmem:[#allocation4 + $0x88] sm:$0xff] %vm373, %v1867
      %1972 = vst.msk [vmem:[#allocation4 + $0xb0] sm:$0xff] %vm373, %v1869
      %1973 = vst.msk [vmem:[#allocation4 + $0xd8] sm:$0xff] %vm373, %v1871
      %1974 = vst.msk [vmem:[#allocation4 + $0x100] sm:$0xff] %vm373, %v1873
      %1975 = vst.msk [vmem:[#allocation4 + $0x128] sm:$0xff] %vm373, %v1875
      %1976 = vst.msk [vmem:[#allocation4 + $0x150] sm:$0xff] %vm373, %v1877
      %1977 = vst.msk [vmem:[#allocation4 + $0x178] sm:$0xff] %vm373, %v1879
      %1978 = vst.msk [vmem:[#allocation4 + $0x1a0] sm:$0xff] %vm373, %v1881
      %1979 = vst.msk [vmem:[#allocation4 + $0x1c8] sm:$0xff] %vm373, %v1883
      %1980 = vst.msk [vmem:[#allocation4 + $0x1f0] sm:$0xff] %vm373, %v1885
      %1981 = vst.msk [vmem:[#allocation4 + $0x218] sm:$0xff] %vm373, %v1887
      %1982 = vst.msk [vmem:[#allocation4 + $0x240] sm:$0xff] %vm373, %v1889
      %1983 = vst.msk [vmem:[#allocation4 + $0x268] sm:$0xff] %vm373, %v1891
      %1984 = vst.msk [vmem:[#allocation4 + $0x290] sm:$0xff] %vm373, %v1893
      %1985 = vst.msk [vmem:[#allocation4 + $0x2b8] sm:$0xff] %vm373, %v1895
      %1986 = vst.msk [vmem:[#allocation4 + $0x2e0] sm:$0xff] %vm373, %v1897
      %1987 = vst.msk [vmem:[#allocation4 + $0x308] sm:$0xff] %vm373, %v1899
      %1988 = vst.msk [vmem:[#allocation4 + $0x330] sm:$0xff] %vm373, %v1901
      %1989 = vst.msk [vmem:[#allocation4 + $0x358] sm:$0xff] %vm373, %v1903
      %1990 = vst.msk [vmem:[#allocation4 + $0x380] sm:$0xff] %vm373, %v1905
      %1991 = vst.msk [vmem:[#allocation4 + $0x3a8] sm:$0xff] %vm373, %v1907
      %1992 = vst.msk [vmem:[#allocation4 + $0x3d0] sm:$0xff] %vm373, %v1909
      %1993 = vst.msk [vmem:[#allocation4 + $0x3f8] sm:$0xff] %vm373, %v1911
      %1994 = vst.msk [vmem:[#allocation4 + $0x420] sm:$0xff] %vm373, %v1913
      %1995 = vst.msk [vmem:[#allocation4 + $0x448] sm:$0xff] %vm373, %v1915
      %1996 = vst.msk [vmem:[#allocation4 + $0x470] sm:$0xff] %vm373, %v1917
      %1997 = vst.msk [vmem:[#allocation4 + $0x498] sm:$0xff] %vm373, %v1919
      %1998 = vst.msk [vmem:[#allocation4 + $0x4c0] sm:$0xff] %vm373, %v1921
      %1999 = vst.msk [vmem:[#allocation4 + $0x4e8] sm:$0xff] %vm373, %v1923
      %2000 = vst.msk [vmem:[#allocation4 + $0x510] sm:$0xff] %vm373, %v1925
      %2001 = vst.msk [vmem:[#allocation4 + $0x538] sm:$0xff] %vm373, %v1927
      %2002 = vst.msk [vmem:[#allocation4 + $0x560] sm:$0xff] %vm373, %v1929
      %2003 = vst.msk [vmem:[#allocation4 + $0x588] sm:$0xff] %vm373, %v1931
      %v2004 = vld [vmem:[#allocation2 + $0x29] sm:$0xff]
      %v2005 = vld [vmem:[#allocation2 + $0x31] sm:$0xff]
      %v2006 = vld [vmem:[#allocation2 + $0x39] sm:$0xff]
      %v2007 = vld [vmem:[#allocation2 + $0x41] sm:$0xff]
      %v2008 = vld [vmem:[#allocation2 + $0x49] sm:$0xff]
      %v2009 = vld [vmem:[#allocation2 + $0x51] sm:$0xff]
      %v2010 = vld [vmem:[#allocation2 + $0x59] sm:$0xff]
      %v2011 = vld [vmem:[#allocation2 + $0x61] sm:$0xff]
      %v2012 = vld [vmem:[#allocation2 + $0x69] sm:$0xff]
      %v2013 = vld [vmem:[#allocation2 + $0x71] sm:$0xff]
      %v2014 = vld [vmem:[#allocation2 + $0x79] sm:$0xff]
      %v2015 = vld [vmem:[#allocation2 + $0x81] sm:$0xff]
      %v2016 = vld [vmem:[#allocation2 + $0x89] sm:$0xff]
      %v2017 = vld [vmem:[#allocation2 + $0x91] sm:$0xff]
      %v2018 = vld [vmem:[#allocation2 + $0x99] sm:$0xff]
      %v2019 = vld [vmem:[#allocation2 + $0xa1] sm:$0xff]
      %v2020 = vld [vmem:[#allocation2 + $0xa9] sm:$0xff]
      %v2021 = vld [vmem:[#allocation2 + $0xb1] sm:$0xff]
      %v2022 = vld [vmem:[#allocation2 + $0xb9] sm:$0xff]
      %v2023 = vld [vmem:[#allocation2 + $0xc1] sm:$0xff]
      %v2024 = vld [vmem:[#allocation2 + $0xc9] sm:$0xff]
      %v2025 = vld [vmem:[#allocation2 + $0xd1] sm:$0xff]
      %v2026 = vld [vmem:[#allocation2 + $0xd9] sm:$0xff]
      %v2027 = vld [vmem:[#allocation2 + $0xe1] sm:$0xff]
      %v2028 = vld [vmem:[#allocation2 + $0xe9] sm:$0xff]
      %v2029 = vld [vmem:[#allocation2 + $0xf1] sm:$0xff]
      %v2030 = vld [vmem:[#allocation2 + $0xf9] sm:$0xff]
      %v2031 = vld [vmem:[#allocation2 + $0x101] sm:$0xff]
      %v2032 = vld [vmem:[#allocation2 + $0x109] sm:$0xff]
      %v2033 = vld [vmem:[#allocation2 + $0x111] sm:$0xff]
      %v2034 = vld [vmem:[#allocation2 + $0x119] sm:$0xff]
      %v2035 = vld [vmem:[#allocation2 + $0x121] sm:$0xff]
      %v2036 = vld [vmem:[#allocation2 + $0x129] sm:$0xff]
      %v2037 = vld [vmem:[#allocation2 + $0x131] sm:$0xff]
      %v2038 = vld [vmem:[#allocation2 + $0x139] sm:$0xff]
      %v2039 = vld [vmem:[#allocation2 + $0x141] sm:$0xff]
      %2040 = vst.msk [vmem:[#allocation4 + $0x18] sm:$0xff] %vm360, %v2004
      %2041 = vst.msk [vmem:[#allocation4 + $0x40] sm:$0xff] %vm360, %v2005
      %2042 = vst.msk [vmem:[#allocation4 + $0x68] sm:$0xff] %vm360, %v2006
      %2043 = vst.msk [vmem:[#allocation4 + $0x90] sm:$0xff] %vm360, %v2007
      %2044 = vst.msk [vmem:[#allocation4 + $0xb8] sm:$0xff] %vm360, %v2008
      %2045 = vst.msk [vmem:[#allocation4 + $0xe0] sm:$0xff] %vm360, %v2009
      %2046 = vst.msk [vmem:[#allocation4 + $0x108] sm:$0xff] %vm360, %v2010
      %2047 = vst.msk [vmem:[#allocation4 + $0x130] sm:$0xff] %vm360, %v2011
      %2048 = vst.msk [vmem:[#allocation4 + $0x158] sm:$0xff] %vm360, %v2012
      %2049 = vst.msk [vmem:[#allocation4 + $0x180] sm:$0xff] %vm360, %v2013
      %2050 = vst.msk [vmem:[#allocation4 + $0x1a8] sm:$0xff] %vm360, %v2014
      %2051 = vst.msk [vmem:[#allocation4 + $0x1d0] sm:$0xff] %vm360, %v2015
      %2052 = vst.msk [vmem:[#allocation4 + $0x1f8] sm:$0xff] %vm360, %v2016
      %2053 = vst.msk [vmem:[#allocation4 + $0x220] sm:$0xff] %vm360, %v2017
      %2054 = vst.msk [vmem:[#allocation4 + $0x248] sm:$0xff] %vm360, %v2018
      %2055 = vst.msk [vmem:[#allocation4 + $0x270] sm:$0xff] %vm360, %v2019
      %2056 = vst.msk [vmem:[#allocation4 + $0x298] sm:$0xff] %vm360, %v2020
      %2057 = vst.msk [vmem:[#allocation4 + $0x2c0] sm:$0xff] %vm360, %v2021
      %2058 = vst.msk [vmem:[#allocation4 + $0x2e8] sm:$0xff] %vm360, %v2022
      %2059 = vst.msk [vmem:[#allocation4 + $0x310] sm:$0xff] %vm360, %v2023
      %2060 = vst.msk [vmem:[#allocation4 + $0x338] sm:$0xff] %vm360, %v2024
      %2061 = vst.msk [vmem:[#allocation4 + $0x360] sm:$0xff] %vm360, %v2025
      %2062 = vst.msk [vmem:[#allocation4 + $0x388] sm:$0xff] %vm360, %v2026
      %2063 = vst.msk [vmem:[#allocation4 + $0x3b0] sm:$0xff] %vm360, %v2027
      %2064 = vst.msk [vmem:[#allocation4 + $0x3d8] sm:$0xff] %vm360, %v2028
      %2065 = vst.msk [vmem:[#allocation4 + $0x400] sm:$0xff] %vm360, %v2029
      %2066 = vst.msk [vmem:[#allocation4 + $0x428] sm:$0xff] %vm360, %v2030
      %2067 = vst.msk [vmem:[#allocation4 + $0x450] sm:$0xff] %vm360, %v2031
      %2068 = vst.msk [vmem:[#allocation4 + $0x478] sm:$0xff] %vm360, %v2032
      %2069 = vst.msk [vmem:[#allocation4 + $0x4a0] sm:$0xff] %vm360, %v2033
      %2070 = vst.msk [vmem:[#allocation4 + $0x4c8] sm:$0xff] %vm360, %v2034
      %2071 = vst.msk [vmem:[#allocation4 + $0x4f0] sm:$0xff] %vm360, %v2035
      %2072 = vst.msk [vmem:[#allocation4 + $0x518] sm:$0xff] %vm360, %v2036
      %2073 = vst.msk [vmem:[#allocation4 + $0x540] sm:$0xff] %vm360, %v2037
      %2074 = vst.msk [vmem:[#allocation4 + $0x568] sm:$0xff] %vm360, %v2038
      %2075 = vst.msk [vmem:[#allocation4 + $0x590] sm:$0xff] %vm360, %v2039
      %v2076 = vld [vmem:[#allocation2 + $0x2a] sm:$0xff]
      %v2077 = vld [vmem:[#allocation2 + $0x32] sm:$0xff]
      %v2078 = vld [vmem:[#allocation2 + $0x3a] sm:$0xff]
      %v2079 = vld [vmem:[#allocation2 + $0x42] sm:$0xff]
      %v2080 = vld [vmem:[#allocation2 + $0x4a] sm:$0xff]
      %v2081 = vld [vmem:[#allocation2 + $0x52] sm:$0xff]
      %v2082 = vld [vmem:[#allocation2 + $0x5a] sm:$0xff]
      %v2083 = vld [vmem:[#allocation2 + $0x62] sm:$0xff]
      %v2084 = vld [vmem:[#allocation2 + $0x6a] sm:$0xff]
      %v2085 = vld [vmem:[#allocation2 + $0x72] sm:$0xff]
      %v2086 = vld [vmem:[#allocation2 + $0x7a] sm:$0xff]
      %v2087 = vld [vmem:[#allocation2 + $0x82] sm:$0xff]
      %v2088 = vld [vmem:[#allocation2 + $0x8a] sm:$0xff]
      %v2089 = vld [vmem:[#allocation2 + $0x92] sm:$0xff]
      %v2090 = vld [vmem:[#allocation2 + $0x9a] sm:$0xff]
      %v2091 = vld [vmem:[#allocation2 + $0xa2] sm:$0xff]
      %v2092 = vld [vmem:[#allocation2 + $0xaa] sm:$0xff]
      %v2093 = vld [vmem:[#allocation2 + $0xb2] sm:$0xff]
      %v2094 = vld [vmem:[#allocation2 + $0xba] sm:$0xff]
      %v2095 = vld [vmem:[#allocation2 + $0xc2] sm:$0xff]
      %v2096 = vld [vmem:[#allocation2 + $0xca] sm:$0xff]
      %v2097 = vld [vmem:[#allocation2 + $0xd2] sm:$0xff]
      %v2098 = vld [vmem:[#allocation2 + $0xda] sm:$0xff]
      %v2099 = vld [vmem:[#allocation2 + $0xe2] sm:$0xff]
      %v2100 = vld [vmem:[#allocation2 + $0xea] sm:$0xff]
      %v2101 = vld [vmem:[#allocation2 + $0xf2] sm:$0xff]
      %v2102 = vld [vmem:[#allocation2 + $0xfa] sm:$0xff]
      %v2103 = vld [vmem:[#allocation2 + $0x102] sm:$0xff]
      %v2104 = vld [vmem:[#allocation2 + $0x10a] sm:$0xff]
      %v2105 = vld [vmem:[#allocation2 + $0x112] sm:$0xff]
      %v2106 = vld [vmem:[#allocation2 + $0x11a] sm:$0xff]
      %v2107 = vld [vmem:[#allocation2 + $0x122] sm:$0xff]
      %v2108 = vld [vmem:[#allocation2 + $0x12a] sm:$0xff]
      %v2109 = vld [vmem:[#allocation2 + $0x132] sm:$0xff]
      %v2110 = vld [vmem:[#allocation2 + $0x13a] sm:$0xff]
      %v2111 = vld [vmem:[#allocation2 + $0x142] sm:$0xff]
      %2148 = vrot.lane.b32.xlu0 %v2076, 64
      %v2149 = vpop.permute.xlu0 %2148
      %2150 = vrot.lane.b32.xlu0 %v2077, 64
      %v2151 = vpop.permute.xlu0 %2150
      %2152 = vrot.lane.b32.xlu0 %v2078, 64
      %v2153 = vpop.permute.xlu0 %2152
      %2154 = vrot.lane.b32.xlu0 %v2079, 64
      %v2155 = vpop.permute.xlu0 %2154
      %2156 = vrot.lane.b32.xlu0 %v2080, 64
      %v2157 = vpop.permute.xlu0 %2156
      %2158 = vrot.lane.b32.xlu0 %v2081, 64
      %v2159 = vpop.permute.xlu0 %2158
      %2160 = vrot.lane.b32.xlu0 %v2082, 64
      %v2161 = vpop.permute.xlu0 %2160
      %2162 = vrot.lane.b32.xlu0 %v2083, 64
      %v2163 = vpop.permute.xlu0 %2162
      %2164 = vrot.lane.b32.xlu0 %v2084, 64
      %v2165 = vpop.permute.xlu0 %2164
      %2166 = vrot.lane.b32.xlu0 %v2085, 64
      %v2167 = vpop.permute.xlu0 %2166
      %2168 = vrot.lane.b32.xlu0 %v2086, 64
      %v2169 = vpop.permute.xlu0 %2168
      %2170 = vrot.lane.b32.xlu0 %v2087, 64
      %v2171 = vpop.permute.xlu0 %2170
      %2172 = vrot.lane.b32.xlu0 %v2088, 64
      %v2173 = vpop.permute.xlu0 %2172
      %2174 = vrot.lane.b32.xlu0 %v2089, 64
      %v2175 = vpop.permute.xlu0 %2174
      %2176 = vrot.lane.b32.xlu0 %v2090, 64
      %v2177 = vpop.permute.xlu0 %2176
      %2178 = vrot.lane.b32.xlu0 %v2091, 64
      %v2179 = vpop.permute.xlu0 %2178
      %2180 = vrot.lane.b32.xlu0 %v2092, 64
      %v2181 = vpop.permute.xlu0 %2180
      %2182 = vrot.lane.b32.xlu0 %v2093, 64
      %v2183 = vpop.permute.xlu0 %2182
      %2184 = vrot.lane.b32.xlu0 %v2094, 64
      %v2185 = vpop.permute.xlu0 %2184
      %2186 = vrot.lane.b32.xlu0 %v2095, 64
      %v2187 = vpop.permute.xlu0 %2186
      %2188 = vrot.lane.b32.xlu0 %v2096, 64
      %v2189 = vpop.permute.xlu0 %2188
      %2190 = vrot.lane.b32.xlu0 %v2097, 64
      %v2191 = vpop.permute.xlu0 %2190
      %2192 = vrot.lane.b32.xlu0 %v2098, 64
      %v2193 = vpop.permute.xlu0 %2192
      %2194 = vrot.lane.b32.xlu0 %v2099, 64
      %v2195 = vpop.permute.xlu0 %2194
      %2196 = vrot.lane.b32.xlu0 %v2100, 64
      %v2197 = vpop.permute.xlu0 %2196
      %2198 = vrot.lane.b32.xlu0 %v2101, 64
      %v2199 = vpop.permute.xlu0 %2198
      %2200 = vrot.lane.b32.xlu0 %v2102, 64
      %v2201 = vpop.permute.xlu0 %2200
      %2202 = vrot.lane.b32.xlu0 %v2103, 64
      %v2203 = vpop.permute.xlu0 %2202
      %2204 = vrot.lane.b32.xlu0 %v2104, 64
      %v2205 = vpop.permute.xlu0 %2204
      %2206 = vrot.lane.b32.xlu0 %v2105, 64
      %v2207 = vpop.permute.xlu0 %2206
      %2208 = vrot.lane.b32.xlu0 %v2106, 64
      %v2209 = vpop.permute.xlu0 %2208
      %2210 = vrot.lane.b32.xlu0 %v2107, 64
      %v2211 = vpop.permute.xlu0 %2210
      %2212 = vrot.lane.b32.xlu0 %v2108, 64
      %v2213 = vpop.permute.xlu0 %2212
      %2214 = vrot.lane.b32.xlu0 %v2109, 64
      %v2215 = vpop.permute.xlu0 %2214
      %2216 = vrot.lane.b32.xlu0 %v2110, 64
      %v2217 = vpop.permute.xlu0 %2216
      %2218 = vrot.lane.b32.xlu0 %v2111, 64
      %v2219 = vpop.permute.xlu0 %2218
      %2256 = vst.msk [vmem:[#allocation4 + $0x18] sm:$0xff] %vm373, %v2149
      %2257 = vst.msk [vmem:[#allocation4 + $0x40] sm:$0xff] %vm373, %v2151
      %2258 = vst.msk [vmem:[#allocation4 + $0x68] sm:$0xff] %vm373, %v2153
      %2259 = vst.msk [vmem:[#allocation4 + $0x90] sm:$0xff] %vm373, %v2155
      %2260 = vst.msk [vmem:[#allocation4 + $0xb8] sm:$0xff] %vm373, %v2157
      %2261 = vst.msk [vmem:[#allocation4 + $0xe0] sm:$0xff] %vm373, %v2159
      %2262 = vst.msk [vmem:[#allocation4 + $0x108] sm:$0xff] %vm373, %v2161
      %2263 = vst.msk [vmem:[#allocation4 + $0x130] sm:$0xff] %vm373, %v2163
      %2264 = vst.msk [vmem:[#allocation4 + $0x158] sm:$0xff] %vm373, %v2165
      %2265 = vst.msk [vmem:[#allocation4 + $0x180] sm:$0xff] %vm373, %v2167
      %2266 = vst.msk [vmem:[#allocation4 + $0x1a8] sm:$0xff] %vm373, %v2169
      %2267 = vst.msk [vmem:[#allocation4 + $0x1d0] sm:$0xff] %vm373, %v2171
      %2268 = vst.msk [vmem:[#allocation4 + $0x1f8] sm:$0xff] %vm373, %v2173
      %2269 = vst.msk [vmem:[#allocation4 + $0x220] sm:$0xff] %vm373, %v2175
      %2270 = vst.msk [vmem:[#allocation4 + $0x248] sm:$0xff] %vm373, %v2177
      %2271 = vst.msk [vmem:[#allocation4 + $0x270] sm:$0xff] %vm373, %v2179
      %2272 = vst.msk [vmem:[#allocation4 + $0x298] sm:$0xff] %vm373, %v2181
      %2273 = vst.msk [vmem:[#allocation4 + $0x2c0] sm:$0xff] %vm373, %v2183
      %2274 = vst.msk [vmem:[#allocation4 + $0x2e8] sm:$0xff] %vm373, %v2185
      %2275 = vst.msk [vmem:[#allocation4 + $0x310] sm:$0xff] %vm373, %v2187
      %2276 = vst.msk [vmem:[#allocation4 + $0x338] sm:$0xff] %vm373, %v2189
      %2277 = vst.msk [vmem:[#allocation4 + $0x360] sm:$0xff] %vm373, %v2191
      %2278 = vst.msk [vmem:[#allocation4 + $0x388] sm:$0xff] %vm373, %v2193
      %2279 = vst.msk [vmem:[#allocation4 + $0x3b0] sm:$0xff] %vm373, %v2195
      %2280 = vst.msk [vmem:[#allocation4 + $0x3d8] sm:$0xff] %vm373, %v2197
      %2281 = vst.msk [vmem:[#allocation4 + $0x400] sm:$0xff] %vm373, %v2199
      %2282 = vst.msk [vmem:[#allocation4 + $0x428] sm:$0xff] %vm373, %v2201
      %2283 = vst.msk [vmem:[#allocation4 + $0x450] sm:$0xff] %vm373, %v2203
      %2284 = vst.msk [vmem:[#allocation4 + $0x478] sm:$0xff] %vm373, %v2205
      %2285 = vst.msk [vmem:[#allocation4 + $0x4a0] sm:$0xff] %vm373, %v2207
      %2286 = vst.msk [vmem:[#allocation4 + $0x4c8] sm:$0xff] %vm373, %v2209
      %2287 = vst.msk [vmem:[#allocation4 + $0x4f0] sm:$0xff] %vm373, %v2211
      %2288 = vst.msk [vmem:[#allocation4 + $0x518] sm:$0xff] %vm373, %v2213
      %2289 = vst.msk [vmem:[#allocation4 + $0x540] sm:$0xff] %vm373, %v2215
      %2290 = vst.msk [vmem:[#allocation4 + $0x568] sm:$0xff] %vm373, %v2217
      %2291 = vst.msk [vmem:[#allocation4 + $0x590] sm:$0xff] %vm373, %v2219
      %v2292 = vld [vmem:[#allocation2 + $0x2b] sm:$0xff]
      %v2293 = vld [vmem:[#allocation2 + $0x33] sm:$0xff]
      %v2294 = vld [vmem:[#allocation2 + $0x3b] sm:$0xff]
      %v2295 = vld [vmem:[#allocation2 + $0x43] sm:$0xff]
      %v2296 = vld [vmem:[#allocation2 + $0x4b] sm:$0xff]
      %v2297 = vld [vmem:[#allocation2 + $0x53] sm:$0xff]
      %v2298 = vld [vmem:[#allocation2 + $0x5b] sm:$0xff]
      %v2299 = vld [vmem:[#allocation2 + $0x63] sm:$0xff]
      %v2300 = vld [vmem:[#allocation2 + $0x6b] sm:$0xff]
      %v2301 = vld [vmem:[#allocation2 + $0x73] sm:$0xff]
      %v2302 = vld [vmem:[#allocation2 + $0x7b] sm:$0xff]
      %v2303 = vld [vmem:[#allocation2 + $0x83] sm:$0xff]
      %v2304 = vld [vmem:[#allocation2 + $0x8b] sm:$0xff]
      %v2305 = vld [vmem:[#allocation2 + $0x93] sm:$0xff]
      %v2306 = vld [vmem:[#allocation2 + $0x9b] sm:$0xff]
      %v2307 = vld [vmem:[#allocation2 + $0xa3] sm:$0xff]
      %v2308 = vld [vmem:[#allocation2 + $0xab] sm:$0xff]
      %v2309 = vld [vmem:[#allocation2 + $0xb3] sm:$0xff]
      %v2310 = vld [vmem:[#allocation2 + $0xbb] sm:$0xff]
      %v2311 = vld [vmem:[#allocation2 + $0xc3] sm:$0xff]
      %v2312 = vld [vmem:[#allocation2 + $0xcb] sm:$0xff]
      %v2313 = vld [vmem:[#allocation2 + $0xd3] sm:$0xff]
      %v2314 = vld [vmem:[#allocation2 + $0xdb] sm:$0xff]
      %v2315 = vld [vmem:[#allocation2 + $0xe3] sm:$0xff]
      %v2316 = vld [vmem:[#allocation2 + $0xeb] sm:$0xff]
      %v2317 = vld [vmem:[#allocation2 + $0xf3] sm:$0xff]
      %v2318 = vld [vmem:[#allocation2 + $0xfb] sm:$0xff]
      %v2319 = vld [vmem:[#allocation2 + $0x103] sm:$0xff]
      %v2320 = vld [vmem:[#allocation2 + $0x10b] sm:$0xff]
      %v2321 = vld [vmem:[#allocation2 + $0x113] sm:$0xff]
      %v2322 = vld [vmem:[#allocation2 + $0x11b] sm:$0xff]
      %v2323 = vld [vmem:[#allocation2 + $0x123] sm:$0xff]
      %v2324 = vld [vmem:[#allocation2 + $0x12b] sm:$0xff]
      %v2325 = vld [vmem:[#allocation2 + $0x133] sm:$0xff]
      %v2326 = vld [vmem:[#allocation2 + $0x13b] sm:$0xff]
      %v2327 = vld [vmem:[#allocation2 + $0x143] sm:$0xff]
      %2328 = vst.msk [vmem:[#allocation4 + $0x20] sm:$0xff] %vm360, %v2292
      %2329 = vst.msk [vmem:[#allocation4 + $0x48] sm:$0xff] %vm360, %v2293
      %2330 = vst.msk [vmem:[#allocation4 + $0x70] sm:$0xff] %vm360, %v2294
      %2331 = vst.msk [vmem:[#allocation4 + $0x98] sm:$0xff] %vm360, %v2295
      %2332 = vst.msk [vmem:[#allocation4 + $0xc0] sm:$0xff] %vm360, %v2296
      %2333 = vst.msk [vmem:[#allocation4 + $0xe8] sm:$0xff] %vm360, %v2297
      %2334 = vst.msk [vmem:[#allocation4 + $0x110] sm:$0xff] %vm360, %v2298
      %2335 = vst.msk [vmem:[#allocation4 + $0x138] sm:$0xff] %vm360, %v2299
      %2336 = vst.msk [vmem:[#allocation4 + $0x160] sm:$0xff] %vm360, %v2300
      %2337 = vst.msk [vmem:[#allocation4 + $0x188] sm:$0xff] %vm360, %v2301
      %2338 = vst.msk [vmem:[#allocation4 + $0x1b0] sm:$0xff] %vm360, %v2302
      %2339 = vst.msk [vmem:[#allocation4 + $0x1d8] sm:$0xff] %vm360, %v2303
      %2340 = vst.msk [vmem:[#allocation4 + $0x200] sm:$0xff] %vm360, %v2304
      %2341 = vst.msk [vmem:[#allocation4 + $0x228] sm:$0xff] %vm360, %v2305
      %2342 = vst.msk [vmem:[#allocation4 + $0x250] sm:$0xff] %vm360, %v2306
      %2343 = vst.msk [vmem:[#allocation4 + $0x278] sm:$0xff] %vm360, %v2307
      %2344 = vst.msk [vmem:[#allocation4 + $0x2a0] sm:$0xff] %vm360, %v2308
      %2345 = vst.msk [vmem:[#allocation4 + $0x2c8] sm:$0xff] %vm360, %v2309
      %2346 = vst.msk [vmem:[#allocation4 + $0x2f0] sm:$0xff] %vm360, %v2310
      %2347 = vst.msk [vmem:[#allocation4 + $0x318] sm:$0xff] %vm360, %v2311
      %2348 = vst.msk [vmem:[#allocation4 + $0x340] sm:$0xff] %vm360, %v2312
      %2349 = vst.msk [vmem:[#allocation4 + $0x368] sm:$0xff] %vm360, %v2313
      %2350 = vst.msk [vmem:[#allocation4 + $0x390] sm:$0xff] %vm360, %v2314
      %2351 = vst.msk [vmem:[#allocation4 + $0x3b8] sm:$0xff] %vm360, %v2315
      %2352 = vst.msk [vmem:[#allocation4 + $0x3e0] sm:$0xff] %vm360, %v2316
      %2353 = vst.msk [vmem:[#allocation4 + $0x408] sm:$0xff] %vm360, %v2317
      %2354 = vst.msk [vmem:[#allocation4 + $0x430] sm:$0xff] %vm360, %v2318
      %2355 = vst.msk [vmem:[#allocation4 + $0x458] sm:$0xff] %vm360, %v2319
      %2356 = vst.msk [vmem:[#allocation4 + $0x480] sm:$0xff] %vm360, %v2320
      %2357 = vst.msk [vmem:[#allocation4 + $0x4a8] sm:$0xff] %vm360, %v2321
      %2358 = vst.msk [vmem:[#allocation4 + $0x4d0] sm:$0xff] %vm360, %v2322
      %2359 = vst.msk [vmem:[#allocation4 + $0x4f8] sm:$0xff] %vm360, %v2323
      %2360 = vst.msk [vmem:[#allocation4 + $0x520] sm:$0xff] %vm360, %v2324
      %2361 = vst.msk [vmem:[#allocation4 + $0x548] sm:$0xff] %vm360, %v2325
      %2362 = vst.msk [vmem:[#allocation4 + $0x570] sm:$0xff] %vm360, %v2326
      %2363 = vst.msk [vmem:[#allocation4 + $0x598] sm:$0xff] %vm360, %v2327
      %v2364 = vld [vmem:[#allocation4] sm:$0xff]
      %v2365 = vld [vmem:[#allocation4 + $0x8] sm:$0xff]
      %v2366 = vld [vmem:[#allocation4 + $0x10] sm:$0xff]
      %v2367 = vld [vmem:[#allocation4 + $0x18] sm:$0xff]
      %v2368 = vld [vmem:[#allocation4 + $0x20] sm:$0xff]
      %v2369 = vld [vmem:[#allocation4 + $0x28] sm:$0xff]
      %v2370 = vld [vmem:[#allocation4 + $0x30] sm:$0xff]
      %v2371 = vld [vmem:[#allocation4 + $0x38] sm:$0xff]
      %v2372 = vld [vmem:[#allocation4 + $0x40] sm:$0xff]
      %v2373 = vld [vmem:[#allocation4 + $0x48] sm:$0xff]
      %v2374 = vld [vmem:[#allocation4 + $0x50] sm:$0xff]
      %v2375 = vld [vmem:[#allocation4 + $0x58] sm:$0xff]
      %v2376 = vld [vmem:[#allocation4 + $0x60] sm:$0xff]
      %v2377 = vld [vmem:[#allocation4 + $0x68] sm:$0xff]
      %v2378 = vld [vmem:[#allocation4 + $0x70] sm:$0xff]
      %v2379 = vld [vmem:[#allocation4 + $0x78] sm:$0xff]
      %v2380 = vld [vmem:[#allocation4 + $0x80] sm:$0xff]
      %v2381 = vld [vmem:[#allocation4 + $0x88] sm:$0xff]
      %v2382 = vld [vmem:[#allocation4 + $0x90] sm:$0xff]
      %v2383 = vld [vmem:[#allocation4 + $0x98] sm:$0xff]
      %v2384 = vld [vmem:[#allocation4 + $0xa0] sm:$0xff]
      %v2385 = vld [vmem:[#allocation4 + $0xa8] sm:$0xff]
      %v2386 = vld [vmem:[#allocation4 + $0xb0] sm:$0xff]
      %v2387 = vld [vmem:[#allocation4 + $0xb8] sm:$0xff]
      %v2388 = vld [vmem:[#allocation4 + $0xc0] sm:$0xff]
      %v2389 = vld [vmem:[#allocation4 + $0xc8] sm:$0xff]
      %v2390 = vld [vmem:[#allocation4 + $0xd0] sm:$0xff]
      %v2391 = vld [vmem:[#allocation4 + $0xd8] sm:$0xff]
      %v2392 = vld [vmem:[#allocation4 + $0xe0] sm:$0xff]
      %v2393 = vld [vmem:[#allocation4 + $0xe8] sm:$0xff]
      %v2394 = vld [vmem:[#allocation4 + $0xf0] sm:$0xff]
      %v2395 = vld [vmem:[#allocation4 + $0xf8] sm:$0xff]
      %v2396 = vld [vmem:[#allocation4 + $0x100] sm:$0xff]
      %v2397 = vld [vmem:[#allocation4 + $0x108] sm:$0xff]
      %v2398 = vld [vmem:[#allocation4 + $0x110] sm:$0xff]
      %v2399 = vld [vmem:[#allocation4 + $0x118] sm:$0xff]
      %v2400 = vld [vmem:[#allocation4 + $0x120] sm:$0xff]
      %v2401 = vld [vmem:[#allocation4 + $0x128] sm:$0xff]
      %v2402 = vld [vmem:[#allocation4 + $0x130] sm:$0xff]
      %v2403 = vld [vmem:[#allocation4 + $0x138] sm:$0xff]
      %v2404 = vld [vmem:[#allocation4 + $0x140] sm:$0xff]
      %v2405 = vld [vmem:[#allocation4 + $0x148] sm:$0xff]
      %v2406 = vld [vmem:[#allocation4 + $0x150] sm:$0xff]
      %v2407 = vld [vmem:[#allocation4 + $0x158] sm:$0xff]
      %v2408 = vld [vmem:[#allocation4 + $0x160] sm:$0xff]
      %v2409 = vld [vmem:[#allocation4 + $0x168] sm:$0xff]
      %v2410 = vld [vmem:[#allocation4 + $0x170] sm:$0xff]
      %v2411 = vld [vmem:[#allocation4 + $0x178] sm:$0xff]
      %v2412 = vld [vmem:[#allocation4 + $0x180] sm:$0xff]
      %v2413 = vld [vmem:[#allocation4 + $0x188] sm:$0xff]
      %v2414 = vld [vmem:[#allocation4 + $0x190] sm:$0xff]
      %v2415 = vld [vmem:[#allocation4 + $0x198] sm:$0xff]
      %v2416 = vld [vmem:[#allocation4 + $0x1a0] sm:$0xff]
      %v2417 = vld [vmem:[#allocation4 + $0x1a8] sm:$0xff]
      %v2418 = vld [vmem:[#allocation4 + $0x1b0] sm:$0xff]
      %v2419 = vld [vmem:[#allocation4 + $0x1b8] sm:$0xff]
      %v2420 = vld [vmem:[#allocation4 + $0x1c0] sm:$0xff]
      %v2421 = vld [vmem:[#allocation4 + $0x1c8] sm:$0xff]
      %v2422 = vld [vmem:[#allocation4 + $0x1d0] sm:$0xff]
      %v2423 = vld [vmem:[#allocation4 + $0x1d8] sm:$0xff]
      %v2424 = vld [vmem:[#allocation4 + $0x1e0] sm:$0xff]
      %v2425 = vld [vmem:[#allocation4 + $0x1e8] sm:$0xff]
      %v2426 = vld [vmem:[#allocation4 + $0x1f0] sm:$0xff]
      %v2427 = vld [vmem:[#allocation4 + $0x1f8] sm:$0xff]
      %v2428 = vld [vmem:[#allocation4 + $0x200] sm:$0xff]
      %v2429 = vld [vmem:[#allocation4 + $0x208] sm:$0xff]
      %v2430 = vld [vmem:[#allocation4 + $0x210] sm:$0xff]
      %v2431 = vld [vmem:[#allocation4 + $0x218] sm:$0xff]
      %v2432 = vld [vmem:[#allocation4 + $0x220] sm:$0xff]
      %v2433 = vld [vmem:[#allocation4 + $0x228] sm:$0xff]
      %v2434 = vld [vmem:[#allocation4 + $0x230] sm:$0xff]
      %v2435 = vld [vmem:[#allocation4 + $0x238] sm:$0xff]
      %v2436 = vld [vmem:[#allocation4 + $0x240] sm:$0xff]
      %v2437 = vld [vmem:[#allocation4 + $0x248] sm:$0xff]
      %v2438 = vld [vmem:[#allocation4 + $0x250] sm:$0xff]
      %v2439 = vld [vmem:[#allocation4 + $0x258] sm:$0xff]
      %v2440 = vld [vmem:[#allocation4 + $0x260] sm:$0xff]
      %v2441 = vld [vmem:[#allocation4 + $0x268] sm:$0xff]
      %v2442 = vld [vmem:[#allocation4 + $0x270] sm:$0xff]
      %v2443 = vld [vmem:[#allocation4 + $0x278] sm:$0xff]
      %v2444 = vld [vmem:[#allocation4 + $0x280] sm:$0xff]
      %v2445 = vld [vmem:[#allocation4 + $0x288] sm:$0xff]
      %v2446 = vld [vmem:[#allocation4 + $0x290] sm:$0xff]
      %v2447 = vld [vmem:[#allocation4 + $0x298] sm:$0xff]
      %v2448 = vld [vmem:[#allocation4 + $0x2a0] sm:$0xff]
      %v2449 = vld [vmem:[#allocation4 + $0x2a8] sm:$0xff]
      %v2450 = vld [vmem:[#allocation4 + $0x2b0] sm:$0xff]
      %v2451 = vld [vmem:[#allocation4 + $0x2b8] sm:$0xff]
      %v2452 = vld [vmem:[#allocation4 + $0x2c0] sm:$0xff]
      %v2453 = vld [vmem:[#allocation4 + $0x2c8] sm:$0xff]
      %v2454 = vld [vmem:[#allocation4 + $0x2d0] sm:$0xff]
      %v2455 = vld [vmem:[#allocation4 + $0x2d8] sm:$0xff]
      %v2456 = vld [vmem:[#allocation4 + $0x2e0] sm:$0xff]
      %v2457 = vld [vmem:[#allocation4 + $0x2e8] sm:$0xff]
      %v2458 = vld [vmem:[#allocation4 + $0x2f0] sm:$0xff]
      %v2459 = vld [vmem:[#allocation4 + $0x2f8] sm:$0xff]
      %v2460 = vld [vmem:[#allocation4 + $0x300] sm:$0xff]
      %v2461 = vld [vmem:[#allocation4 + $0x308] sm:$0xff]
      %v2462 = vld [vmem:[#allocation4 + $0x310] sm:$0xff]
      %v2463 = vld [vmem:[#allocation4 + $0x318] sm:$0xff]
      %v2464 = vld [vmem:[#allocation4 + $0x320] sm:$0xff]
      %v2465 = vld [vmem:[#allocation4 + $0x328] sm:$0xff]
      %v2466 = vld [vmem:[#allocation4 + $0x330] sm:$0xff]
      %v2467 = vld [vmem:[#allocation4 + $0x338] sm:$0xff]
      %v2468 = vld [vmem:[#allocation4 + $0x340] sm:$0xff]
      %v2469 = vld [vmem:[#allocation4 + $0x348] sm:$0xff]
      %v2470 = vld [vmem:[#allocation4 + $0x350] sm:$0xff]
      %v2471 = vld [vmem:[#allocation4 + $0x358] sm:$0xff]
      %v2472 = vld [vmem:[#allocation4 + $0x360] sm:$0xff]
      %v2473 = vld [vmem:[#allocation4 + $0x368] sm:$0xff]
      %v2474 = vld [vmem:[#allocation4 + $0x370] sm:$0xff]
      %v2475 = vld [vmem:[#allocation4 + $0x378] sm:$0xff]
      %v2476 = vld [vmem:[#allocation4 + $0x380] sm:$0xff]
      %v2477 = vld [vmem:[#allocation4 + $0x388] sm:$0xff]
      %v2478 = vld [vmem:[#allocation4 + $0x390] sm:$0xff]
      %v2479 = vld [vmem:[#allocation4 + $0x398] sm:$0xff]
      %v2480 = vld [vmem:[#allocation4 + $0x3a0] sm:$0xff]
      %v2481 = vld [vmem:[#allocation4 + $0x3a8] sm:$0xff]
      %v2482 = vld [vmem:[#allocation4 + $0x3b0] sm:$0xff]
      %v2483 = vld [vmem:[#allocation4 + $0x3b8] sm:$0xff]
      %v2484 = vld [vmem:[#allocation4 + $0x3c0] sm:$0xff]
      %v2485 = vld [vmem:[#allocation4 + $0x3c8] sm:$0xff]
      %v2486 = vld [vmem:[#allocation4 + $0x3d0] sm:$0xff]
      %v2487 = vld [vmem:[#allocation4 + $0x3d8] sm:$0xff]
      %v2488 = vld [vmem:[#allocation4 + $0x3e0] sm:$0xff]
      %v2489 = vld [vmem:[#allocation4 + $0x3e8] sm:$0xff]
      %v2490 = vld [vmem:[#allocation4 + $0x3f0] sm:$0xff]
      %v2491 = vld [vmem:[#allocation4 + $0x3f8] sm:$0xff]
      %v2492 = vld [vmem:[#allocation4 + $0x400] sm:$0xff]
      %v2493 = vld [vmem:[#allocation4 + $0x408] sm:$0xff]
      %v2494 = vld [vmem:[#allocation4 + $0x410] sm:$0xff]
      %v2495 = vld [vmem:[#allocation4 + $0x418] sm:$0xff]
      %v2496 = vld [vmem:[#allocation4 + $0x420] sm:$0xff]
      %v2497 = vld [vmem:[#allocation4 + $0x428] sm:$0xff]
      %v2498 = vld [vmem:[#allocation4 + $0x430] sm:$0xff]
      %v2499 = vld [vmem:[#allocation4 + $0x438] sm:$0xff]
      %v2500 = vld [vmem:[#allocation4 + $0x440] sm:$0xff]
      %v2501 = vld [vmem:[#allocation4 + $0x448] sm:$0xff]
      %v2502 = vld [vmem:[#allocation4 + $0x450] sm:$0xff]
      %v2503 = vld [vmem:[#allocation4 + $0x458] sm:$0xff]
      %v2504 = vld [vmem:[#allocation4 + $0x460] sm:$0xff]
      %v2505 = vld [vmem:[#allocation4 + $0x468] sm:$0xff]
      %v2506 = vld [vmem:[#allocation4 + $0x470] sm:$0xff]
      %v2507 = vld [vmem:[#allocation4 + $0x478] sm:$0xff]
      %v2508 = vld [vmem:[#allocation4 + $0x480] sm:$0xff]
      %v2509 = vld [vmem:[#allocation4 + $0x488] sm:$0xff]
      %v2510 = vld [vmem:[#allocation4 + $0x490] sm:$0xff]
      %v2511 = vld [vmem:[#allocation4 + $0x498] sm:$0xff]
      %v2512 = vld [vmem:[#allocation4 + $0x4a0] sm:$0xff]
      %v2513 = vld [vmem:[#allocation4 + $0x4a8] sm:$0xff]
      %v2514 = vld [vmem:[#allocation4 + $0x4b0] sm:$0xff]
      %v2515 = vld [vmem:[#allocation4 + $0x4b8] sm:$0xff]
      %v2516 = vld [vmem:[#allocation4 + $0x4c0] sm:$0xff]
      %v2517 = vld [vmem:[#allocation4 + $0x4c8] sm:$0xff]
      %v2518 = vld [vmem:[#allocation4 + $0x4d0] sm:$0xff]
      %v2519 = vld [vmem:[#allocation4 + $0x4d8] sm:$0xff]
      %v2520 = vld [vmem:[#allocation4 + $0x4e0] sm:$0xff]
      %v2521 = vld [vmem:[#allocation4 + $0x4e8] sm:$0xff]
      %v2522 = vld [vmem:[#allocation4 + $0x4f0] sm:$0xff]
      %v2523 = vld [vmem:[#allocation4 + $0x4f8] sm:$0xff]
      %v2524 = vld [vmem:[#allocation4 + $0x500] sm:$0xff]
      %v2525 = vld [vmem:[#allocation4 + $0x508] sm:$0xff]
      %v2526 = vld [vmem:[#allocation4 + $0x510] sm:$0xff]
      %v2527 = vld [vmem:[#allocation4 + $0x518] sm:$0xff]
      %v2528 = vld [vmem:[#allocation4 + $0x520] sm:$0xff]
      %v2529 = vld [vmem:[#allocation4 + $0x528] sm:$0xff]
      %v2530 = vld [vmem:[#allocation4 + $0x530] sm:$0xff]
      %v2531 = vld [vmem:[#allocation4 + $0x538] sm:$0xff]
      %v2532 = vld [vmem:[#allocation4 + $0x540] sm:$0xff]
      %v2533 = vld [vmem:[#allocation4 + $0x548] sm:$0xff]
      %v2534 = vld [vmem:[#allocation4 + $0x550] sm:$0xff]
      %v2535 = vld [vmem:[#allocation4 + $0x558] sm:$0xff]
      %v2536 = vld [vmem:[#allocation4 + $0x560] sm:$0xff]
      %v2537 = vld [vmem:[#allocation4 + $0x568] sm:$0xff]
      %v2538 = vld [vmem:[#allocation4 + $0x570] sm:$0xff]
      %v2539 = vld [vmem:[#allocation4 + $0x578] sm:$0xff]
      %v2540 = vld [vmem:[#allocation4 + $0x580] sm:$0xff]
      %v2541 = vld [vmem:[#allocation4 + $0x588] sm:$0xff]
      %v2542 = vld [vmem:[#allocation4 + $0x590] sm:$0xff]
      %v2543 = vld [vmem:[#allocation4 + $0x598] sm:$0xff]
      %v2544 = vld [vmem:[%s4] sm:$0xff]
      %v2545 = vld [vmem:[%s4 + $0x8] sm:$0xff]
      %v2546 = vld [vmem:[%s4 + $0x10] sm:$0xff]
      %v2547 = vld [vmem:[%s4 + $0x18] sm:$0xff]
      %v2548 = vld [vmem:[%s4 + $0x20] sm:$0xff]
      %v2549 = vld [vmem:[%s4 + $0x28] sm:$0xff]
      %v2550 = vld [vmem:[%s4 + $0x30] sm:$0xff]
      %v2551 = vld [vmem:[%s4 + $0x38] sm:$0xff]
      %v2552 = vld [vmem:[%s4 + $0x40] sm:$0xff]
      %v2553 = vld [vmem:[%s4 + $0x48] sm:$0xff]
      %v2554 = vld [vmem:[%s4 + $0x50] sm:$0xff]
      %v2555 = vld [vmem:[%s4 + $0x58] sm:$0xff]
      %v2556 = vld [vmem:[%s4 + $0x60] sm:$0xff]
      %v2557 = vld [vmem:[%s4 + $0x68] sm:$0xff]
      %v2558 = vld [vmem:[%s4 + $0x70] sm:$0xff]
      %v2559 = vld [vmem:[%s4 + $0x78] sm:$0xff]
      %v2560 = vld [vmem:[%s4 + $0x80] sm:$0xff]
      %v2561 = vld [vmem:[%s4 + $0x88] sm:$0xff]
      %v2562 = vld [vmem:[%s4 + $0x90] sm:$0xff]
      %v2563 = vld [vmem:[%s4 + $0x98] sm:$0xff]
      %v2564 = vld [vmem:[%s4 + $0xa0] sm:$0xff]
      %v2565 = vld [vmem:[%s4 + $0xa8] sm:$0xff]
      %v2566 = vld [vmem:[%s4 + $0xb0] sm:$0xff]
      %v2567 = vld [vmem:[%s4 + $0xb8] sm:$0xff]
      %v2568 = vld [vmem:[%s4 + $0xc0] sm:$0xff]
      %v2569 = vld [vmem:[%s4 + $0xc8] sm:$0xff]
      %v2570 = vld [vmem:[%s4 + $0xd0] sm:$0xff]
      %v2571 = vld [vmem:[%s4 + $0xd8] sm:$0xff]
      %v2572 = vld [vmem:[%s4 + $0xe0] sm:$0xff]
      %v2573 = vld [vmem:[%s4 + $0xe8] sm:$0xff]
      %v2574 = vld [vmem:[%s4 + $0xf0] sm:$0xff]
      %v2575 = vld [vmem:[%s4 + $0xf8] sm:$0xff]
      %v2576 = vld [vmem:[%s4 + $0x100] sm:$0xff]
      %v2577 = vld [vmem:[%s4 + $0x108] sm:$0xff]
      %v2578 = vld [vmem:[%s4 + $0x110] sm:$0xff]
      %v2579 = vld [vmem:[%s4 + $0x118] sm:$0xff]
      %v2580 = vld [vmem:[%s4 + $0x120] sm:$0xff]
      %v2581 = vld [vmem:[%s4 + $0x128] sm:$0xff]
      %v2582 = vld [vmem:[%s4 + $0x130] sm:$0xff]
      %v2583 = vld [vmem:[%s4 + $0x138] sm:$0xff]
      %v2584 = vld [vmem:[%s4 + $0x140] sm:$0xff]
      %v2585 = vld [vmem:[%s4 + $0x148] sm:$0xff]
      %v2586 = vld [vmem:[%s4 + $0x150] sm:$0xff]
      %v2587 = vld [vmem:[%s4 + $0x158] sm:$0xff]
      %v2588 = vld [vmem:[%s4 + $0x160] sm:$0xff]
      %v2589 = vld [vmem:[%s4 + $0x168] sm:$0xff]
      %v2590 = vld [vmem:[%s4 + $0x170] sm:$0xff]
      %v2591 = vld [vmem:[%s4 + $0x178] sm:$0xff]
      %v2592 = vld [vmem:[%s4 + $0x180] sm:$0xff]
      %v2593 = vld [vmem:[%s4 + $0x188] sm:$0xff]
      %v2594 = vld [vmem:[%s4 + $0x190] sm:$0xff]
      %v2595 = vld [vmem:[%s4 + $0x198] sm:$0xff]
      %v2596 = vld [vmem:[%s4 + $0x1a0] sm:$0xff]
      %v2597 = vld [vmem:[%s4 + $0x1a8] sm:$0xff]
      %v2598 = vld [vmem:[%s4 + $0x1b0] sm:$0xff]
      %v2599 = vld [vmem:[%s4 + $0x1b8] sm:$0xff]
      %v2600 = vld [vmem:[%s4 + $0x1c0] sm:$0xff]
      %v2601 = vld [vmem:[%s4 + $0x1c8] sm:$0xff]
      %v2602 = vld [vmem:[%s4 + $0x1d0] sm:$0xff]
      %v2603 = vld [vmem:[%s4 + $0x1d8] sm:$0xff]
      %v2604 = vld [vmem:[%s4 + $0x1e0] sm:$0xff]
      %v2605 = vld [vmem:[%s4 + $0x1e8] sm:$0xff]
      %v2606 = vld [vmem:[%s4 + $0x1f0] sm:$0xff]
      %v2607 = vld [vmem:[%s4 + $0x1f8] sm:$0xff]
      %v2608 = vld [vmem:[%s4 + $0x200] sm:$0xff]
      %v2609 = vld [vmem:[%s4 + $0x208] sm:$0xff]
      %v2610 = vld [vmem:[%s4 + $0x210] sm:$0xff]
      %v2611 = vld [vmem:[%s4 + $0x218] sm:$0xff]
      %v2612 = vld [vmem:[%s4 + $0x220] sm:$0xff]
      %v2613 = vld [vmem:[%s4 + $0x228] sm:$0xff]
      %v2614 = vld [vmem:[%s4 + $0x230] sm:$0xff]
      %v2615 = vld [vmem:[%s4 + $0x238] sm:$0xff]
      %v2616 = vld [vmem:[%s4 + $0x240] sm:$0xff]
      %v2617 = vld [vmem:[%s4 + $0x248] sm:$0xff]
      %v2618 = vld [vmem:[%s4 + $0x250] sm:$0xff]
      %v2619 = vld [vmem:[%s4 + $0x258] sm:$0xff]
      %v2620 = vld [vmem:[%s4 + $0x260] sm:$0xff]
      %v2621 = vld [vmem:[%s4 + $0x268] sm:$0xff]
      %v2622 = vld [vmem:[%s4 + $0x270] sm:$0xff]
      %v2623 = vld [vmem:[%s4 + $0x278] sm:$0xff]
      %v2624 = vld [vmem:[%s5] sm:$0x1]
      %v2626 = vlaneseq
      %v2627 = vshrl.u32 %v2626, 7
      %v2628 = vsub.s32 0, %v2627
      %v2629 = vrot.slane %v2624, %v2628
      %2631 = vmatprep.subr.mxu0 0.0
      %2632 = vmatpush1.msra.mxu0 %v2559
      %2633 = vmatprep.subr.mxu0 0.0
      %2634 = vmatpush1.msra.mxu0 %v2558
      %2635 = vmatprep.subr.mxu0 0.0
      %2636 = vmatpush1.msra.mxu0 %v2557
      %2637 = vmatprep.subr.mxu0 0.0
      %2638 = vmatpush1.msra.mxu0 %v2556
      %2639 = vmatprep.subr.mxu0 0.0
      %2640 = vmatpush1.msra.mxu0 %v2555
      %2641 = vmatprep.subr.mxu0 0.0
      %2642 = vmatpush1.msra.mxu0 %v2554
      %2643 = vmatprep.subr.mxu0 0.0
      %2644 = vmatpush1.msra.mxu0 %v2553
      %2645 = vmatprep.subr.mxu0 0.0
      %2646 = vmatpush1.msra.mxu0 %v2552
      %2647 = vmatprep.subr.mxu0 0.0
      %2648 = vmatpush1.msra.mxu0 %v2551
      %2649 = vmatprep.subr.mxu0 0.0
      %2650 = vmatpush1.msra.mxu0 %v2550
      %2651 = vmatprep.subr.mxu0 0.0
      %2652 = vmatpush1.msra.mxu0 %v2549
      %2653 = vmatprep.subr.mxu0 0.0
      %2654 = vmatpush1.msra.mxu0 %v2548
      %2655 = vmatprep.subr.mxu0 0.0
      %2656 = vmatpush1.msra.mxu0 %v2547
      %2657 = vmatprep.subr.mxu0 0.0
      %2658 = vmatpush1.msra.mxu0 %v2546
      %2659 = vmatprep.subr.mxu0 0.0
      %2660 = vmatpush1.msra.mxu0 %v2545
      %2661 = vmatprep.subr.mxu0 0.0
      %2662 = vmatpush1.msra.mxu0 %v2544
      %2663 = vmatprep.subr.mxu0 0.0
      %2664 = vmatpush2.msra.mxu0 %v2575
      %2665 = vmatprep.subr.mxu0 0.0
      %2666 = vmatpush2.msra.mxu0 %v2574
      %2667 = vmatprep.subr.mxu0 0.0
      %2668 = vmatpush2.msra.mxu0 %v2573
      %2669 = vmatprep.subr.mxu0 0.0
      %2670 = vmatpush2.msra.mxu0 %v2572
      %2671 = vmatprep.subr.mxu0 0.0
      %2672 = vmatpush2.msra.mxu0 %v2571
      %2673 = vmatprep.subr.mxu0 0.0
      %2674 = vmatpush2.msra.mxu0 %v2570
      %2675 = vmatprep.subr.mxu0 0.0
      %2676 = vmatpush2.msra.mxu0 %v2569
      %2677 = vmatprep.subr.mxu0 0.0
      %2678 = vmatpush2.msra.mxu0 %v2568
      %2679 = vmatprep.subr.mxu0 0.0
      %2680 = vmatpush2.msra.mxu0 %v2567
      %2681 = vmatprep.subr.mxu0 0.0
      %2682 = vmatpush2.msra.mxu0 %v2566
      %2683 = vmatprep.subr.mxu0 0.0
      %2684 = vmatpush2.msra.mxu0 %v2565
      %2685 = vmatprep.subr.mxu0 0.0
      %2686 = vmatpush2.msra.mxu0 %v2564
      %2687 = vmatprep.subr.mxu0 0.0
      %2688 = vmatpush2.msra.mxu0 %v2563
      %2689 = vmatprep.subr.mxu0 0.0
      %2690 = vmatpush2.msra.mxu0 %v2562
      %2691 = vmatprep.subr.mxu0 0.0
      %2692 = vmatpush2.msra.mxu0 %v2561
      %2693 = vmatprep.subr.mxu0 0.0
      %2694 = vmatpush2.msra.mxu0 %v2560
      %2695 = vmatprep.mubr.f32.mxu0 %v2365
      %2696 = vmatmul.mubr.f32.gmra.mxu0 %v2364
      %v2697 = vpop.f32.mrf.mxu0
      %v2698 = vadd.f32 %v2629, %v2697
      %v2699 = vpop.f32.mrf.mxu0
      %2700 = vmatprep.mubr.f32.mxu0 %v2370
      %2701 = vmatmul.mubr.f32.gmra.mxu0 %v2369
      %v2702 = vpop.f32.mrf.mxu0
      %v2703 = vadd.f32 %v2629, %v2702
      %v2704 = vpop.f32.mrf.mxu0
      %2705 = vmatprep.mubr.f32.mxu0 %v2375
      %2706 = vmatmul.mubr.f32.gmra.mxu0 %v2374
      %v2707 = vpop.f32.mrf.mxu0
      %v2708 = vadd.f32 %v2629, %v2707
      %v2709 = vpop.f32.mrf.mxu0
      %2710 = vmatprep.mubr.f32.mxu0 %v2380
      %2711 = vmatmul.mubr.f32.gmra.mxu0 %v2379
      %v2712 = vpop.f32.mrf.mxu0
      %v2713 = vadd.f32 %v2629, %v2712
      %v2714 = vpop.f32.mrf.mxu0
      %2715 = vmatprep.mubr.f32.mxu0 %v2385
      %2716 = vmatmul.mubr.f32.gmra.mxu0 %v2384
      %v2717 = vpop.f32.mrf.mxu0
      %v2718 = vadd.f32 %v2629, %v2717
      %v2719 = vpop.f32.mrf.mxu0
      %2720 = vmatprep.mubr.f32.mxu0 %v2390
      %2721 = vmatmul.mubr.f32.gmra.mxu0 %v2389
      %v2722 = vpop.f32.mrf.mxu0
      %v2723 = vadd.f32 %v2629, %v2722
      %v2724 = vpop.f32.mrf.mxu0
      %2725 = vmatprep.mubr.f32.mxu0 %v2395
      %2726 = vmatmul.mubr.f32.gmra.mxu0 %v2394
      %v2727 = vpop.f32.mrf.mxu0
      %v2728 = vadd.f32 %v2629, %v2727
      %v2729 = vpop.f32.mrf.mxu0
      %2730 = vmatprep.mubr.f32.mxu0 %v2400
      %2731 = vmatmul.mubr.f32.gmra.mxu0 %v2399
      %v2732 = vpop.f32.mrf.mxu0
      %v2733 = vadd.f32 %v2629, %v2732
      %v2734 = vpop.f32.mrf.mxu0
      %2735 = vmatprep.mubr.f32.mxu0 %v2405
      %2736 = vmatmul.mubr.f32.gmra.mxu0 %v2404
      %v2737 = vpop.f32.mrf.mxu0
      %v2738 = vadd.f32 %v2629, %v2737
      %v2739 = vpop.f32.mrf.mxu0
      %2740 = vmatprep.mubr.f32.mxu0 %v2410
      %2741 = vmatmul.mubr.f32.gmra.mxu0 %v2409
      %v2742 = vpop.f32.mrf.mxu0
      %v2743 = vadd.f32 %v2629, %v2742
      %v2744 = vpop.f32.mrf.mxu0
      %2745 = vmatprep.mubr.f32.mxu0 %v2415
      %2746 = vmatmul.mubr.f32.gmra.mxu0 %v2414
      %v2747 = vpop.f32.mrf.mxu0
      %v2748 = vadd.f32 %v2629, %v2747
      %v2749 = vpop.f32.mrf.mxu0
      %2750 = vmatprep.mubr.f32.mxu0 %v2420
      %2751 = vmatmul.mubr.f32.gmra.mxu0 %v2419
      %v2752 = vpop.f32.mrf.mxu0
      %v2753 = vadd.f32 %v2629, %v2752
      %v2754 = vpop.f32.mrf.mxu0
      %2755 = vmatprep.mubr.f32.mxu0 %v2425
      %2756 = vmatmul.mubr.f32.gmra.mxu0 %v2424
      %v2757 = vpop.f32.mrf.mxu0
      %v2758 = vadd.f32 %v2629, %v2757
      %v2759 = vpop.f32.mrf.mxu0
      %2760 = vmatprep.mubr.f32.mxu0 %v2430
      %2761 = vmatmul.mubr.f32.gmra.mxu0 %v2429
      %v2762 = vpop.f32.mrf.mxu0
      %v2763 = vadd.f32 %v2629, %v2762
      %v2764 = vpop.f32.mrf.mxu0
      %2765 = vmatprep.mubr.f32.mxu0 %v2435
      %2766 = vmatmul.mubr.f32.gmra.mxu0 %v2434
      %v2767 = vpop.f32.mrf.mxu0
      %v2768 = vadd.f32 %v2629, %v2767
      %v2769 = vpop.f32.mrf.mxu0
      %2770 = vmatprep.mubr.f32.mxu0 %v2440
      %2771 = vmatmul.mubr.f32.gmra.mxu0 %v2439
      %v2772 = vpop.f32.mrf.mxu0
      %v2773 = vadd.f32 %v2629, %v2772
      %v2774 = vpop.f32.mrf.mxu0
      %2775 = vmatprep.mubr.f32.mxu0 %v2445
      %2776 = vmatmul.mubr.f32.gmra.mxu0 %v2444
      %v2777 = vpop.f32.mrf.mxu0
      %v2778 = vadd.f32 %v2629, %v2777
      %v2779 = vpop.f32.mrf.mxu0
      %2780 = vmatprep.mubr.f32.mxu0 %v2450
      %2781 = vmatmul.mubr.f32.gmra.mxu0 %v2449
      %v2782 = vpop.f32.mrf.mxu0
      %v2783 = vadd.f32 %v2629, %v2782
      %v2784 = vpop.f32.mrf.mxu0
      %2785 = vmatprep.mubr.f32.mxu0 %v2455
      %2786 = vmatmul.mubr.f32.gmra.mxu0 %v2454
      %v2787 = vpop.f32.mrf.mxu0
      %v2788 = vadd.f32 %v2629, %v2787
      %v2789 = vpop.f32.mrf.mxu0
      %2790 = vmatprep.mubr.f32.mxu0 %v2460
      %2791 = vmatmul.mubr.f32.gmra.mxu0 %v2459
      %v2792 = vpop.f32.mrf.mxu0
      %v2793 = vadd.f32 %v2629, %v2792
      %v2794 = vpop.f32.mrf.mxu0
      %2795 = vmatprep.mubr.f32.mxu0 %v2465
      %2796 = vmatmul.mubr.f32.gmra.mxu0 %v2464
      %v2797 = vpop.f32.mrf.mxu0
      %v2798 = vadd.f32 %v2629, %v2797
      %v2799 = vpop.f32.mrf.mxu0
      %2800 = vmatprep.mubr.f32.mxu0 %v2470
      %2801 = vmatmul.mubr.f32.gmra.mxu0 %v2469
      %v2802 = vpop.f32.mrf.mxu0
      %v2803 = vadd.f32 %v2629, %v2802
      %v2804 = vpop.f32.mrf.mxu0
      %2805 = vmatprep.mubr.f32.mxu0 %v2475
      %2806 = vmatmul.mubr.f32.gmra.mxu0 %v2474
      %v2807 = vpop.f32.mrf.mxu0
      %v2808 = vadd.f32 %v2629, %v2807
      %v2809 = vpop.f32.mrf.mxu0
      %2810 = vmatprep.mubr.f32.mxu0 %v2480
      %2811 = vmatmul.mubr.f32.gmra.mxu0 %v2479
      %v2812 = vpop.f32.mrf.mxu0
      %v2813 = vadd.f32 %v2629, %v2812
      %v2814 = vpop.f32.mrf.mxu0
      %2815 = vmatprep.mubr.f32.mxu0 %v2485
      %2816 = vmatmul.mubr.f32.gmra.mxu0 %v2484
      %v2817 = vpop.f32.mrf.mxu0
      %v2818 = vadd.f32 %v2629, %v2817
      %v2819 = vpop.f32.mrf.mxu0
      %2820 = vmatprep.mubr.f32.mxu0 %v2490
      %2821 = vmatmul.mubr.f32.gmra.mxu0 %v2489
      %v2822 = vpop.f32.mrf.mxu0
      %v2823 = vadd.f32 %v2629, %v2822
      %v2824 = vpop.f32.mrf.mxu0
      %2825 = vmatprep.mubr.f32.mxu0 %v2495
      %2826 = vmatmul.mubr.f32.gmra.mxu0 %v2494
      %v2827 = vpop.f32.mrf.mxu0
      %v2828 = vadd.f32 %v2629, %v2827
      %v2829 = vpop.f32.mrf.mxu0
      %2830 = vmatprep.mubr.f32.mxu0 %v2500
      %2831 = vmatmul.mubr.f32.gmra.mxu0 %v2499
      %v2832 = vpop.f32.mrf.mxu0
      %v2833 = vadd.f32 %v2629, %v2832
      %v2834 = vpop.f32.mrf.mxu0
      %2835 = vmatprep.mubr.f32.mxu0 %v2505
      %2836 = vmatmul.mubr.f32.gmra.mxu0 %v2504
      %v2837 = vpop.f32.mrf.mxu0
      %v2838 = vadd.f32 %v2629, %v2837
      %v2839 = vpop.f32.mrf.mxu0
      %2840 = vmatprep.mubr.f32.mxu0 %v2510
      %2841 = vmatmul.mubr.f32.gmra.mxu0 %v2509
      %v2842 = vpop.f32.mrf.mxu0
      %v2843 = vadd.f32 %v2629, %v2842
      %v2844 = vpop.f32.mrf.mxu0
      %2845 = vmatprep.mubr.f32.mxu0 %v2515
      %2846 = vmatmul.mubr.f32.gmra.mxu0 %v2514
      %v2847 = vpop.f32.mrf.mxu0
      %v2848 = vadd.f32 %v2629, %v2847
      %v2849 = vpop.f32.mrf.mxu0
      %2850 = vmatprep.mubr.f32.mxu0 %v2520
      %2851 = vmatmul.mubr.f32.gmra.mxu0 %v2519
      %v2852 = vpop.f32.mrf.mxu0
      %v2853 = vadd.f32 %v2629, %v2852
      %v2854 = vpop.f32.mrf.mxu0
      %2855 = vmatprep.mubr.f32.mxu0 %v2525
      %2856 = vmatmul.mubr.f32.gmra.mxu0 %v2524
      %v2857 = vpop.f32.mrf.mxu0
      %v2858 = vadd.f32 %v2629, %v2857
      %v2859 = vpop.f32.mrf.mxu0
      %2860 = vmatprep.mubr.f32.mxu0 %v2530
      %2861 = vmatmul.mubr.f32.gmra.mxu0 %v2529
      %v2862 = vpop.f32.mrf.mxu0
      %v2863 = vadd.f32 %v2629, %v2862
      %v2864 = vpop.f32.mrf.mxu0
      %2865 = vmatprep.mubr.f32.mxu0 %v2535
      %2866 = vmatmul.mubr.f32.gmra.mxu0 %v2534
      %v2867 = vpop.f32.mrf.mxu0
      %v2868 = vadd.f32 %v2629, %v2867
      %v2869 = vpop.f32.mrf.mxu0
      %2870 = vmatprep.mubr.f32.mxu0 %v2540
      %2871 = vmatmul.mubr.f32.gmra.mxu0 %v2539
      %v2872 = vpop.f32.mrf.mxu0
      %v2873 = vadd.f32 %v2629, %v2872
      %v2874 = vpop.f32.mrf.mxu0
      %2875 = vdwg.mxu0
      %2876 = vmatprep.subr.mxu0 0.0
      %2877 = vmatpush1.msra.mxu0 %v2591
      %2878 = vmatprep.subr.mxu0 0.0
      %2879 = vmatpush1.msra.mxu0 %v2590
      %2880 = vmatprep.subr.mxu0 0.0
      %2881 = vmatpush1.msra.mxu0 %v2589
      %2882 = vmatprep.subr.mxu0 0.0
      %2883 = vmatpush1.msra.mxu0 %v2588
      %2884 = vmatprep.subr.mxu0 0.0
      %2885 = vmatpush1.msra.mxu0 %v2587
      %2886 = vmatprep.subr.mxu0 0.0
      %2887 = vmatpush1.msra.mxu0 %v2586
      %2888 = vmatprep.subr.mxu0 0.0
      %2889 = vmatpush1.msra.mxu0 %v2585
      %2890 = vmatprep.subr.mxu0 0.0
      %2891 = vmatpush1.msra.mxu0 %v2584
      %2892 = vmatprep.subr.mxu0 0.0
      %2893 = vmatpush1.msra.mxu0 %v2583
      %2894 = vmatprep.subr.mxu0 0.0
      %2895 = vmatpush1.msra.mxu0 %v2582
      %2896 = vmatprep.subr.mxu0 0.0
      %2897 = vmatpush1.msra.mxu0 %v2581
      %2898 = vmatprep.subr.mxu0 0.0
      %2899 = vmatpush1.msra.mxu0 %v2580
      %2900 = vmatprep.subr.mxu0 0.0
      %2901 = vmatpush1.msra.mxu0 %v2579
      %2902 = vmatprep.subr.mxu0 0.0
      %2903 = vmatpush1.msra.mxu0 %v2578
      %2904 = vmatprep.subr.mxu0 0.0
      %2905 = vmatpush1.msra.mxu0 %v2577
      %2906 = vmatprep.subr.mxu0 0.0
      %2907 = vmatpush1.msra.mxu0 %v2576
      %2908 = vmatprep.subr.mxu0 0.0
      %2909 = vmatpush2.msra.mxu0 %v2607
      %2910 = vmatprep.subr.mxu0 0.0
      %2911 = vmatpush2.msra.mxu0 %v2606
      %2912 = vmatprep.subr.mxu0 0.0
      %2913 = vmatpush2.msra.mxu0 %v2605
      %2914 = vmatprep.subr.mxu0 0.0
      %2915 = vmatpush2.msra.mxu0 %v2604
      %2916 = vmatprep.subr.mxu0 0.0
      %2917 = vmatpush2.msra.mxu0 %v2603
      %2918 = vmatprep.subr.mxu0 0.0
      %2919 = vmatpush2.msra.mxu0 %v2602
      %2920 = vmatprep.subr.mxu0 0.0
      %2921 = vmatpush2.msra.mxu0 %v2601
      %2922 = vmatprep.subr.mxu0 0.0
      %2923 = vmatpush2.msra.mxu0 %v2600
      %2924 = vmatprep.subr.mxu0 0.0
      %2925 = vmatpush2.msra.mxu0 %v2599
      %2926 = vmatprep.subr.mxu0 0.0
      %2927 = vmatpush2.msra.mxu0 %v2598
      %2928 = vmatprep.subr.mxu0 0.0
      %2929 = vmatpush2.msra.mxu0 %v2597
      %2930 = vmatprep.subr.mxu0 0.0
      %2931 = vmatpush2.msra.mxu0 %v2596
      %2932 = vmatprep.subr.mxu0 0.0
      %2933 = vmatpush2.msra.mxu0 %v2595
      %2934 = vmatprep.subr.mxu0 0.0
      %2935 = vmatpush2.msra.mxu0 %v2594
      %2936 = vmatprep.subr.mxu0 0.0
      %2937 = vmatpush2.msra.mxu0 %v2593
      %2938 = vmatprep.subr.mxu0 0.0
      %2939 = vmatpush2.msra.mxu0 %v2592
      %2940 = vmatprep.mubr.f32.mxu0 %v2367
      %2941 = vmatmul.mubr.f32.gmra.mxu0 %v2366
      %v2942 = vpop.f32.mrf.mxu0
      %v2943 = vadd.f32 %v2698, %v2942
      %v2944 = vpop.f32.mrf.mxu0
      %2945 = vmatprep.mubr.f32.mxu0 %v2372
      %2946 = vmatmul.mubr.f32.gmra.mxu0 %v2371
      %v2947 = vpop.f32.mrf.mxu0
      %v2948 = vadd.f32 %v2703, %v2947
      %v2949 = vpop.f32.mrf.mxu0
      %2950 = vmatprep.mubr.f32.mxu0 %v2377
      %2951 = vmatmul.mubr.f32.gmra.mxu0 %v2376
      %v2952 = vpop.f32.mrf.mxu0
      %v2953 = vadd.f32 %v2708, %v2952
      %v2954 = vpop.f32.mrf.mxu0
      %2955 = vmatprep.mubr.f32.mxu0 %v2382
      %2956 = vmatmul.mubr.f32.gmra.mxu0 %v2381
      %v2957 = vpop.f32.mrf.mxu0
      %v2958 = vadd.f32 %v2713, %v2957
      %v2959 = vpop.f32.mrf.mxu0
      %2960 = vmatprep.mubr.f32.mxu0 %v2387
      %2961 = vmatmul.mubr.f32.gmra.mxu0 %v2386
      %v2962 = vpop.f32.mrf.mxu0
      %v2963 = vadd.f32 %v2718, %v2962
      %v2964 = vpop.f32.mrf.mxu0
      %2965 = vmatprep.mubr.f32.mxu0 %v2392
      %2966 = vmatmul.mubr.f32.gmra.mxu0 %v2391
      %v2967 = vpop.f32.mrf.mxu0
      %v2968 = vadd.f32 %v2723, %v2967
      %v2969 = vpop.f32.mrf.mxu0
      %2970 = vmatprep.mubr.f32.mxu0 %v2397
      %2971 = vmatmul.mubr.f32.gmra.mxu0 %v2396
      %v2972 = vpop.f32.mrf.mxu0
      %v2973 = vadd.f32 %v2728, %v2972
      %v2974 = vpop.f32.mrf.mxu0
      %2975 = vmatprep.mubr.f32.mxu0 %v2402
      %2976 = vmatmul.mubr.f32.gmra.mxu0 %v2401
      %v2977 = vpop.f32.mrf.mxu0
      %v2978 = vadd.f32 %v2733, %v2977
      %v2979 = vpop.f32.mrf.mxu0
      %2980 = vmatprep.mubr.f32.mxu0 %v2407
      %2981 = vmatmul.mubr.f32.gmra.mxu0 %v2406
      %v2982 = vpop.f32.mrf.mxu0
      %v2983 = vadd.f32 %v2738, %v2982
      %v2984 = vpop.f32.mrf.mxu0
      %2985 = vmatprep.mubr.f32.mxu0 %v2412
      %2986 = vmatmul.mubr.f32.gmra.mxu0 %v2411
      %v2987 = vpop.f32.mrf.mxu0
      %v2988 = vadd.f32 %v2743, %v2987
      %v2989 = vpop.f32.mrf.mxu0
      %2990 = vmatprep.mubr.f32.mxu0 %v2417
      %2991 = vmatmul.mubr.f32.gmra.mxu0 %v2416
      %v2992 = vpop.f32.mrf.mxu0
      %v2993 = vadd.f32 %v2748, %v2992
      %v2994 = vpop.f32.mrf.mxu0
      %2995 = vmatprep.mubr.f32.mxu0 %v2422
      %2996 = vmatmul.mubr.f32.gmra.mxu0 %v2421
      %v2997 = vpop.f32.mrf.mxu0
      %v2998 = vadd.f32 %v2753, %v2997
      %v2999 = vpop.f32.mrf.mxu0
      %3000 = vmatprep.mubr.f32.mxu0 %v2427
      %3001 = vmatmul.mubr.f32.gmra.mxu0 %v2426
      %v3002 = vpop.f32.mrf.mxu0
      %v3003 = vadd.f32 %v2758, %v3002
      %v3004 = vpop.f32.mrf.mxu0
      %3005 = vmatprep.mubr.f32.mxu0 %v2432
      %3006 = vmatmul.mubr.f32.gmra.mxu0 %v2431
      %v3007 = vpop.f32.mrf.mxu0
      %v3008 = vadd.f32 %v2763, %v3007
      %v3009 = vpop.f32.mrf.mxu0
      %3010 = vmatprep.mubr.f32.mxu0 %v2437
      %3011 = vmatmul.mubr.f32.gmra.mxu0 %v2436
      %v3012 = vpop.f32.mrf.mxu0
      %v3013 = vadd.f32 %v2768, %v3012
      %v3014 = vpop.f32.mrf.mxu0
      %3015 = vmatprep.mubr.f32.mxu0 %v2442
      %3016 = vmatmul.mubr.f32.gmra.mxu0 %v2441
      %v3017 = vpop.f32.mrf.mxu0
      %v3018 = vadd.f32 %v2773, %v3017
      %v3019 = vpop.f32.mrf.mxu0
      %3020 = vmatprep.mubr.f32.mxu0 %v2447
      %3021 = vmatmul.mubr.f32.gmra.mxu0 %v2446
      %v3022 = vpop.f32.mrf.mxu0
      %v3023 = vadd.f32 %v2778, %v3022
      %v3024 = vpop.f32.mrf.mxu0
      %3025 = vmatprep.mubr.f32.mxu0 %v2452
      %3026 = vmatmul.mubr.f32.gmra.mxu0 %v2451
      %v3027 = vpop.f32.mrf.mxu0
      %v3028 = vadd.f32 %v2783, %v3027
      %v3029 = vpop.f32.mrf.mxu0
      %3030 = vmatprep.mubr.f32.mxu0 %v2457
      %3031 = vmatmul.mubr.f32.gmra.mxu0 %v2456
      %v3032 = vpop.f32.mrf.mxu0
      %v3033 = vadd.f32 %v2788, %v3032
      %v3034 = vpop.f32.mrf.mxu0
      %3035 = vmatprep.mubr.f32.mxu0 %v2462
      %3036 = vmatmul.mubr.f32.gmra.mxu0 %v2461
      %v3037 = vpop.f32.mrf.mxu0
      %v3038 = vadd.f32 %v2793, %v3037
      %v3039 = vpop.f32.mrf.mxu0
      %3040 = vmatprep.mubr.f32.mxu0 %v2467
      %3041 = vmatmul.mubr.f32.gmra.mxu0 %v2466
      %v3042 = vpop.f32.mrf.mxu0
      %v3043 = vadd.f32 %v2798, %v3042
      %v3044 = vpop.f32.mrf.mxu0
      %3045 = vmatprep.mubr.f32.mxu0 %v2472
      %3046 = vmatmul.mubr.f32.gmra.mxu0 %v2471
      %v3047 = vpop.f32.mrf.mxu0
      %v3048 = vadd.f32 %v2803, %v3047
      %v3049 = vpop.f32.mrf.mxu0
      %3050 = vmatprep.mubr.f32.mxu0 %v2477
      %3051 = vmatmul.mubr.f32.gmra.mxu0 %v2476
      %v3052 = vpop.f32.mrf.mxu0
      %v3053 = vadd.f32 %v2808, %v3052
      %v3054 = vpop.f32.mrf.mxu0
      %3055 = vmatprep.mubr.f32.mxu0 %v2482
      %3056 = vmatmul.mubr.f32.gmra.mxu0 %v2481
      %v3057 = vpop.f32.mrf.mxu0
      %v3058 = vadd.f32 %v2813, %v3057
      %v3059 = vpop.f32.mrf.mxu0
      %3060 = vmatprep.mubr.f32.mxu0 %v2487
      %3061 = vmatmul.mubr.f32.gmra.mxu0 %v2486
      %v3062 = vpop.f32.mrf.mxu0
      %v3063 = vadd.f32 %v2818, %v3062
      %v3064 = vpop.f32.mrf.mxu0
      %3065 = vmatprep.mubr.f32.mxu0 %v2492
      %3066 = vmatmul.mubr.f32.gmra.mxu0 %v2491
      %v3067 = vpop.f32.mrf.mxu0
      %v3068 = vadd.f32 %v2823, %v3067
      %v3069 = vpop.f32.mrf.mxu0
      %3070 = vmatprep.mubr.f32.mxu0 %v2497
      %3071 = vmatmul.mubr.f32.gmra.mxu0 %v2496
      %v3072 = vpop.f32.mrf.mxu0
      %v3073 = vadd.f32 %v2828, %v3072
      %v3074 = vpop.f32.mrf.mxu0
      %3075 = vmatprep.mubr.f32.mxu0 %v2502
      %3076 = vmatmul.mubr.f32.gmra.mxu0 %v2501
      %v3077 = vpop.f32.mrf.mxu0
      %v3078 = vadd.f32 %v2833, %v3077
      %v3079 = vpop.f32.mrf.mxu0
      %3080 = vmatprep.mubr.f32.mxu0 %v2507
      %3081 = vmatmul.mubr.f32.gmra.mxu0 %v2506
      %v3082 = vpop.f32.mrf.mxu0
      %v3083 = vadd.f32 %v2838, %v3082
      %v3084 = vpop.f32.mrf.mxu0
      %3085 = vmatprep.mubr.f32.mxu0 %v2512
      %3086 = vmatmul.mubr.f32.gmra.mxu0 %v2511
      %v3087 = vpop.f32.mrf.mxu0
      %v3088 = vadd.f32 %v2843, %v3087
      %v3089 = vpop.f32.mrf.mxu0
      %3090 = vmatprep.mubr.f32.mxu0 %v2517
      %3091 = vmatmul.mubr.f32.gmra.mxu0 %v2516
      %v3092 = vpop.f32.mrf.mxu0
      %v3093 = vadd.f32 %v2848, %v3092
      %v3094 = vpop.f32.mrf.mxu0
      %3095 = vmatprep.mubr.f32.mxu0 %v2522
      %3096 = vmatmul.mubr.f32.gmra.mxu0 %v2521
      %v3097 = vpop.f32.mrf.mxu0
      %v3098 = vadd.f32 %v2853, %v3097
      %v3099 = vpop.f32.mrf.mxu0
      %3100 = vmatprep.mubr.f32.mxu0 %v2527
      %3101 = vmatmul.mubr.f32.gmra.mxu0 %v2526
      %v3102 = vpop.f32.mrf.mxu0
      %v3103 = vadd.f32 %v2858, %v3102
      %v3104 = vpop.f32.mrf.mxu0
      %3105 = vmatprep.mubr.f32.mxu0 %v2532
      %3106 = vmatmul.mubr.f32.gmra.mxu0 %v2531
      %v3107 = vpop.f32.mrf.mxu0
      %v3108 = vadd.f32 %v2863, %v3107
      %v3109 = vpop.f32.mrf.mxu0
      %3110 = vmatprep.mubr.f32.mxu0 %v2537
      %3111 = vmatmul.mubr.f32.gmra.mxu0 %v2536
      %v3112 = vpop.f32.mrf.mxu0
      %v3113 = vadd.f32 %v2868, %v3112
      %v3114 = vpop.f32.mrf.mxu0
      %3115 = vmatprep.mubr.f32.mxu0 %v2542
      %3116 = vmatmul.mubr.f32.gmra.mxu0 %v2541
      %v3117 = vpop.f32.mrf.mxu0
      %v3118 = vadd.f32 %v2873, %v3117
      %v3119 = vpop.f32.mrf.mxu0
      %3120 = vdwg.mxu0
      %3121 = vmatprep.subr.mxu0 0.0
      %3122 = vmatpush1.msra.mxu0 %v2623
      %3123 = vmatprep.subr.mxu0 0.0
      %3124 = vmatpush1.msra.mxu0 %v2622
      %3125 = vmatprep.subr.mxu0 0.0
      %3126 = vmatpush1.msra.mxu0 %v2621
      %3127 = vmatprep.subr.mxu0 0.0
      %3128 = vmatpush1.msra.mxu0 %v2620
      %3129 = vmatprep.subr.mxu0 0.0
      %3130 = vmatpush1.msra.mxu0 %v2619
      %3131 = vmatprep.subr.mxu0 0.0
      %3132 = vmatpush1.msra.mxu0 %v2618
      %3133 = vmatprep.subr.mxu0 0.0
      %3134 = vmatpush1.msra.mxu0 %v2617
      %3135 = vmatprep.subr.mxu0 0.0
      %3136 = vmatpush1.msra.mxu0 %v2616
      %3137 = vmatprep.subr.mxu0 0.0
      %3138 = vmatpush1.msra.mxu0 %v2615
      %3139 = vmatprep.subr.mxu0 0.0
      %3140 = vmatpush1.msra.mxu0 %v2614
      %3141 = vmatprep.subr.mxu0 0.0
      %3142 = vmatpush1.msra.mxu0 %v2613
      %3143 = vmatprep.subr.mxu0 0.0
      %3144 = vmatpush1.msra.mxu0 %v2612
      %3145 = vmatprep.subr.mxu0 0.0
      %3146 = vmatpush1.msra.mxu0 %v2611
      %3147 = vmatprep.subr.mxu0 0.0
      %3148 = vmatpush1.msra.mxu0 %v2610
      %3149 = vmatprep.subr.mxu0 0.0
      %3150 = vmatpush1.msra.mxu0 %v2609
      %3151 = vmatprep.subr.mxu0 0.0
      %3152 = vmatpush1.msra.mxu0 %v2608
      %3153 = vmatprep.subr.mxu0 0.0
      %3154 = vmatpush2.msra.mxu0 0.0
      %3155 = vmatprep.subr.mxu0 0.0
      %3156 = vmatpush2.msra.mxu0 0.0
      %3157 = vmatprep.subr.mxu0 0.0
      %3158 = vmatpush2.msra.mxu0 0.0
      %3159 = vmatprep.subr.mxu0 0.0
      %3160 = vmatpush2.msra.mxu0 0.0
      %3161 = vmatprep.subr.mxu0 0.0
      %3162 = vmatpush2.msra.mxu0 0.0
      %3163 = vmatprep.subr.mxu0 0.0
      %3164 = vmatpush2.msra.mxu0 0.0
      %3165 = vmatprep.subr.mxu0 0.0
      %3166 = vmatpush2.msra.mxu0 0.0
      %3167 = vmatprep.subr.mxu0 0.0
      %3168 = vmatpush2.msra.mxu0 0.0
      %3169 = vmatprep.subr.mxu0 0.0
      %3170 = vmatpush2.msra.mxu0 0.0
      %3171 = vmatprep.subr.mxu0 0.0
      %3172 = vmatpush2.msra.mxu0 0.0
      %3173 = vmatprep.subr.mxu0 0.0
      %3174 = vmatpush2.msra.mxu0 0.0
      %3175 = vmatprep.subr.mxu0 0.0
      %3176 = vmatpush2.msra.mxu0 0.0
      %3177 = vmatprep.subr.mxu0 0.0
      %3178 = vmatpush2.msra.mxu0 0.0
      %3179 = vmatprep.subr.mxu0 0.0
      %3180 = vmatpush2.msra.mxu0 0.0
      %3181 = vmatprep.subr.mxu0 0.0
      %3182 = vmatpush2.msra.mxu0 0.0
      %3183 = vmatprep.subr.mxu0 0.0
      %3184 = vmatpush2.msra.mxu0 0.0
      %3185 = vmatprep.mubr.f32.mxu0 0.0
      %3186 = vmatmul.mubr.f32.gmra.mxu0 %v2368
      %v3187 = vpop.f32.mrf.mxu0
      %v3188 = vadd.f32 %v2943, %v3187
      %v3189 = vpop.f32.mrf.mxu0
      %3190 = vmatprep.mubr.f32.mxu0 0.0
      %3191 = vmatmul.mubr.f32.gmra.mxu0 %v2373
      %v3192 = vpop.f32.mrf.mxu0
      %v3193 = vadd.f32 %v2948, %v3192
      %v3194 = vpop.f32.mrf.mxu0
      %3195 = vmatprep.mubr.f32.mxu0 0.0
      %3196 = vmatmul.mubr.f32.gmra.mxu0 %v2378
      %v3197 = vpop.f32.mrf.mxu0
      %v3198 = vadd.f32 %v2953, %v3197
      %v3199 = vpop.f32.mrf.mxu0
      %3200 = vmatprep.mubr.f32.mxu0 0.0
      %3201 = vmatmul.mubr.f32.gmra.mxu0 %v2383
      %v3202 = vpop.f32.mrf.mxu0
      %v3203 = vadd.f32 %v2958, %v3202
      %v3204 = vpop.f32.mrf.mxu0
      %3205 = vmatprep.mubr.f32.mxu0 0.0
      %3206 = vmatmul.mubr.f32.gmra.mxu0 %v2388
      %v3207 = vpop.f32.mrf.mxu0
      %v3208 = vadd.f32 %v2963, %v3207
      %v3209 = vpop.f32.mrf.mxu0
      %3210 = vmatprep.mubr.f32.mxu0 0.0
      %3211 = vmatmul.mubr.f32.gmra.mxu0 %v2393
      %v3212 = vpop.f32.mrf.mxu0
      %v3213 = vadd.f32 %v2968, %v3212
      %v3214 = vpop.f32.mrf.mxu0
      %3215 = vmatprep.mubr.f32.mxu0 0.0
      %3216 = vmatmul.mubr.f32.gmra.mxu0 %v2398
      %v3217 = vpop.f32.mrf.mxu0
      %v3218 = vadd.f32 %v2973, %v3217
      %v3219 = vpop.f32.mrf.mxu0
      %3220 = vmatprep.mubr.f32.mxu0 0.0
      %3221 = vmatmul.mubr.f32.gmra.mxu0 %v2403
      %v3222 = vpop.f32.mrf.mxu0
      %v3223 = vadd.f32 %v2978, %v3222
      %v3224 = vpop.f32.mrf.mxu0
      %3225 = vmatprep.mubr.f32.mxu0 0.0
      %3226 = vmatmul.mubr.f32.gmra.mxu0 %v2408
      %v3227 = vpop.f32.mrf.mxu0
      %v3228 = vadd.f32 %v2983, %v3227
      %v3229 = vpop.f32.mrf.mxu0
      %3230 = vmatprep.mubr.f32.mxu0 0.0
      %3231 = vmatmul.mubr.f32.gmra.mxu0 %v2413
      %v3232 = vpop.f32.mrf.mxu0
      %v3233 = vadd.f32 %v2988, %v3232
      %v3234 = vpop.f32.mrf.mxu0
      %3235 = vmatprep.mubr.f32.mxu0 0.0
      %3236 = vmatmul.mubr.f32.gmra.mxu0 %v2418
      %v3237 = vpop.f32.mrf.mxu0
      %v3238 = vadd.f32 %v2993, %v3237
      %v3239 = vpop.f32.mrf.mxu0
      %3240 = vmatprep.mubr.f32.mxu0 0.0
      %3241 = vmatmul.mubr.f32.gmra.mxu0 %v2423
      %v3242 = vpop.f32.mrf.mxu0
      %v3243 = vadd.f32 %v2998, %v3242
      %v3244 = vpop.f32.mrf.mxu0
      %3245 = vmatprep.mubr.f32.mxu0 0.0
      %3246 = vmatmul.mubr.f32.gmra.mxu0 %v2428
      %v3247 = vpop.f32.mrf.mxu0
      %v3248 = vadd.f32 %v3003, %v3247
      %v3249 = vpop.f32.mrf.mxu0
      %3250 = vmatprep.mubr.f32.mxu0 0.0
      %3251 = vmatmul.mubr.f32.gmra.mxu0 %v2433
      %v3252 = vpop.f32.mrf.mxu0
      %v3253 = vadd.f32 %v3008, %v3252
      %v3254 = vpop.f32.mrf.mxu0
      %3255 = vmatprep.mubr.f32.mxu0 0.0
      %3256 = vmatmul.mubr.f32.gmra.mxu0 %v2438
      %v3257 = vpop.f32.mrf.mxu0
      %v3258 = vadd.f32 %v3013, %v3257
      %v3259 = vpop.f32.mrf.mxu0
      %3260 = vmatprep.mubr.f32.mxu0 0.0
      %3261 = vmatmul.mubr.f32.gmra.mxu0 %v2443
      %v3262 = vpop.f32.mrf.mxu0
      %v3263 = vadd.f32 %v3018, %v3262
      %v3264 = vpop.f32.mrf.mxu0
      %3265 = vmatprep.mubr.f32.mxu0 0.0
      %3266 = vmatmul.mubr.f32.gmra.mxu0 %v2448
      %v3267 = vpop.f32.mrf.mxu0
      %v3268 = vadd.f32 %v3023, %v3267
      %v3269 = vpop.f32.mrf.mxu0
      %3270 = vmatprep.mubr.f32.mxu0 0.0
      %3271 = vmatmul.mubr.f32.gmra.mxu0 %v2453
      %v3272 = vpop.f32.mrf.mxu0
      %v3273 = vadd.f32 %v3028, %v3272
      %v3274 = vpop.f32.mrf.mxu0
      %3275 = vmatprep.mubr.f32.mxu0 0.0
      %3276 = vmatmul.mubr.f32.gmra.mxu0 %v2458
      %v3277 = vpop.f32.mrf.mxu0
      %v3278 = vadd.f32 %v3033, %v3277
      %v3279 = vpop.f32.mrf.mxu0
      %3280 = vmatprep.mubr.f32.mxu0 0.0
      %3281 = vmatmul.mubr.f32.gmra.mxu0 %v2463
      %v3282 = vpop.f32.mrf.mxu0
      %v3283 = vadd.f32 %v3038, %v3282
      %v3284 = vpop.f32.mrf.mxu0
      %3285 = vmatprep.mubr.f32.mxu0 0.0
      %3286 = vmatmul.mubr.f32.gmra.mxu0 %v2468
      %v3287 = vpop.f32.mrf.mxu0
      %v3288 = vadd.f32 %v3043, %v3287
      %v3289 = vpop.f32.mrf.mxu0
      %3290 = vmatprep.mubr.f32.mxu0 0.0
      %3291 = vmatmul.mubr.f32.gmra.mxu0 %v2473
      %v3292 = vpop.f32.mrf.mxu0
      %v3293 = vadd.f32 %v3048, %v3292
      %v3294 = vpop.f32.mrf.mxu0
      %3295 = vmatprep.mubr.f32.mxu0 0.0
      %3296 = vmatmul.mubr.f32.gmra.mxu0 %v2478
      %v3297 = vpop.f32.mrf.mxu0
      %v3298 = vadd.f32 %v3053, %v3297
      %v3299 = vpop.f32.mrf.mxu0
      %3300 = vmatprep.mubr.f32.mxu0 0.0
      %3301 = vmatmul.mubr.f32.gmra.mxu0 %v2483
      %v3302 = vpop.f32.mrf.mxu0
      %v3303 = vadd.f32 %v3058, %v3302
      %v3304 = vpop.f32.mrf.mxu0
      %3305 = vmatprep.mubr.f32.mxu0 0.0
      %3306 = vmatmul.mubr.f32.gmra.mxu0 %v2488
      %v3307 = vpop.f32.mrf.mxu0
      %v3308 = vadd.f32 %v3063, %v3307
      %v3309 = vpop.f32.mrf.mxu0
      %3310 = vmatprep.mubr.f32.mxu0 0.0
      %3311 = vmatmul.mubr.f32.gmra.mxu0 %v2493
      %v3312 = vpop.f32.mrf.mxu0
      %v3313 = vadd.f32 %v3068, %v3312
      %v3314 = vpop.f32.mrf.mxu0
      %3315 = vmatprep.mubr.f32.mxu0 0.0
      %3316 = vmatmul.mubr.f32.gmra.mxu0 %v2498
      %v3317 = vpop.f32.mrf.mxu0
      %v3318 = vadd.f32 %v3073, %v3317
      %v3319 = vpop.f32.mrf.mxu0
      %3320 = vmatprep.mubr.f32.mxu0 0.0
      %3321 = vmatmul.mubr.f32.gmra.mxu0 %v2503
      %v3322 = vpop.f32.mrf.mxu0
      %v3323 = vadd.f32 %v3078, %v3322
      %v3324 = vpop.f32.mrf.mxu0
      %3325 = vmatprep.mubr.f32.mxu0 0.0
      %3326 = vmatmul.mubr.f32.gmra.mxu0 %v2508
      %v3327 = vpop.f32.mrf.mxu0
      %v3328 = vadd.f32 %v3083, %v3327
      %v3329 = vpop.f32.mrf.mxu0
      %3330 = vmatprep.mubr.f32.mxu0 0.0
      %3331 = vmatmul.mubr.f32.gmra.mxu0 %v2513
      %v3332 = vpop.f32.mrf.mxu0
      %v3333 = vadd.f32 %v3088, %v3332
      %v3334 = vpop.f32.mrf.mxu0
      %3335 = vmatprep.mubr.f32.mxu0 0.0
      %3336 = vmatmul.mubr.f32.gmra.mxu0 %v2518
      %v3337 = vpop.f32.mrf.mxu0
      %v3338 = vadd.f32 %v3093, %v3337
      %v3339 = vpop.f32.mrf.mxu0
      %3340 = vmatprep.mubr.f32.mxu0 0.0
      %3341 = vmatmul.mubr.f32.gmra.mxu0 %v2523
      %v3342 = vpop.f32.mrf.mxu0
      %v3343 = vadd.f32 %v3098, %v3342
      %v3344 = vpop.f32.mrf.mxu0
      %3345 = vmatprep.mubr.f32.mxu0 0.0
      %3346 = vmatmul.mubr.f32.gmra.mxu0 %v2528
      %v3347 = vpop.f32.mrf.mxu0
      %v3348 = vadd.f32 %v3103, %v3347
      %v3349 = vpop.f32.mrf.mxu0
      %3350 = vmatprep.mubr.f32.mxu0 0.0
      %3351 = vmatmul.mubr.f32.gmra.mxu0 %v2533
      %v3352 = vpop.f32.mrf.mxu0
      %v3353 = vadd.f32 %v3108, %v3352
      %v3354 = vpop.f32.mrf.mxu0
      %3355 = vmatprep.mubr.f32.mxu0 0.0
      %3356 = vmatmul.mubr.f32.gmra.mxu0 %v2538
      %v3357 = vpop.f32.mrf.mxu0
      %v3358 = vadd.f32 %v3113, %v3357
      %v3359 = vpop.f32.mrf.mxu0
      %3360 = vmatprep.mubr.f32.mxu0 0.0
      %3361 = vmatmul.mubr.f32.gmra.mxu0 %v2543
      %v3362 = vpop.f32.mrf.mxu0
      %v3363 = vadd.f32 %v3118, %v3362
      %v3364 = vpop.f32.mrf.mxu0
      %3365 = vdwg.mxu0
      %v3366 = vmax.f32 %v3188, 0.0
      %v3367 = vmax.f32 %v3193, 0.0
      %v3368 = vmax.f32 %v3198, 0.0
      %v3369 = vmax.f32 %v3203, 0.0
      %v3370 = vmax.f32 %v3208, 0.0
      %v3371 = vmax.f32 %v3213, 0.0
      %v3372 = vmax.f32 %v3218, 0.0
      %v3373 = vmax.f32 %v3223, 0.0
      %v3374 = vmax.f32 %v3228, 0.0
      %v3375 = vmax.f32 %v3233, 0.0
      %v3376 = vmax.f32 %v3238, 0.0
      %v3377 = vmax.f32 %v3243, 0.0
      %v3378 = vmax.f32 %v3248, 0.0
      %v3379 = vmax.f32 %v3253, 0.0
      %v3380 = vmax.f32 %v3258, 0.0
      %v3381 = vmax.f32 %v3263, 0.0
      %v3382 = vmax.f32 %v3268, 0.0
      %v3383 = vmax.f32 %v3273, 0.0
      %v3384 = vmax.f32 %v3278, 0.0
      %v3385 = vmax.f32 %v3283, 0.0
      %v3386 = vmax.f32 %v3288, 0.0
      %v3387 = vmax.f32 %v3293, 0.0
      %v3388 = vmax.f32 %v3298, 0.0
      %v3389 = vmax.f32 %v3303, 0.0
      %v3390 = vmax.f32 %v3308, 0.0
      %v3391 = vmax.f32 %v3313, 0.0
      %v3392 = vmax.f32 %v3318, 0.0
      %v3393 = vmax.f32 %v3323, 0.0
      %v3394 = vmax.f32 %v3328, 0.0
      %v3395 = vmax.f32 %v3333, 0.0
      %v3396 = vmax.f32 %v3338, 0.0
      %v3397 = vmax.f32 %v3343, 0.0
      %v3398 = vmax.f32 %v3348, 0.0
      %v3399 = vmax.f32 %v3353, 0.0
      %v3400 = vmax.f32 %v3358, 0.0
      %v3401 = vmax.f32 %v3363, 0.0
      %v3402 = vmul.f32 %v3366, %v891
      %v3403 = vmul.f32 %v3367, %v896
      %v3404 = vmul.f32 %v3368, %v901
      %v3405 = vmul.f32 %v3369, %v906
      %v3406 = vmul.f32 %v3370, %v911
      %v3407 = vmul.f32 %v3371, %v916
      %v3408 = vmul.f32 %v3372, %v921
      %v3409 = vmul.f32 %v3373, %v926
      %v3410 = vmul.f32 %v3374, %v931
      %v3411 = vmul.f32 %v3375, %v936
      %v3412 = vmul.f32 %v3376, %v941
      %v3413 = vmul.f32 %v3377, %v946
      %v3414 = vmul.f32 %v3378, %v951
      %v3415 = vmul.f32 %v3379, %v956
      %v3416 = vmul.f32 %v3380, %v961
      %v3417 = vmul.f32 %v3381, %v966
      %v3418 = vmul.f32 %v3382, %v971
      %v3419 = vmul.f32 %v3383, %v976
      %v3420 = vmul.f32 %v3384, %v981
      %v3421 = vmul.f32 %v3385, %v986
      %v3422 = vmul.f32 %v3386, %v991
      %v3423 = vmul.f32 %v3387, %v996
      %v3424 = vmul.f32 %v3388, %v1001
      %v3425 = vmul.f32 %v3389, %v1006
      %v3426 = vmul.f32 %v3390, %v1011
      %v3427 = vmul.f32 %v3391, %v1016
      %v3428 = vmul.f32 %v3392, %v1021
      %v3429 = vmul.f32 %v3393, %v1026
      %v3430 = vmul.f32 %v3394, %v1031
      %v3431 = vmul.f32 %v3395, %v1036
      %v3432 = vmul.f32 %v3396, %v1041
      %v3433 = vmul.f32 %v3397, %v1046
      %v3434 = vmul.f32 %v3398, %v1051
      %v3435 = vmul.f32 %v3399, %v1056
      %v3436 = vmul.f32 %v3400, %v1061
      %v3437 = vmul.f32 %v3401, %v1066
      %3438 = vst.msk [vmem:[#allocation3 + $0x18] sm:$0xff] %vm360, %v3402
      %3439 = vst.msk [vmem:[#allocation3 + $0x20] sm:$0xff] %vm360, %v3403
      %3440 = vst.msk [vmem:[#allocation3 + $0x28] sm:$0xff] %vm360, %v3404
      %3441 = vst.msk [vmem:[#allocation3 + $0x30] sm:$0xff] %vm360, %v3405
      %3442 = vst.msk [vmem:[#allocation3 + $0x38] sm:$0xff] %vm360, %v3406
      %3443 = vst.msk [vmem:[#allocation3 + $0x40] sm:$0xff] %vm360, %v3407
      %3444 = vst.msk [vmem:[#allocation3 + $0x48] sm:$0xff] %vm360, %v3408
      %3445 = vst.msk [vmem:[#allocation3 + $0x50] sm:$0xff] %vm360, %v3409
      %3446 = vst.msk [vmem:[#allocation3 + $0x58] sm:$0xff] %vm360, %v3410
      %3447 = vst.msk [vmem:[#allocation3 + $0x60] sm:$0xff] %vm360, %v3411
      %3448 = vst.msk [vmem:[#allocation3 + $0x68] sm:$0xff] %vm360, %v3412
      %3449 = vst.msk [vmem:[#allocation3 + $0x70] sm:$0xff] %vm360, %v3413
      %3450 = vst.msk [vmem:[#allocation3 + $0x78] sm:$0xff] %vm360, %v3414
      %3451 = vst.msk [vmem:[#allocation3 + $0x80] sm:$0xff] %vm360, %v3415
      %3452 = vst.msk [vmem:[#allocation3 + $0x88] sm:$0xff] %vm360, %v3416
      %3453 = vst.msk [vmem:[#allocation3 + $0x90] sm:$0xff] %vm360, %v3417
      %3454 = vst.msk [vmem:[#allocation3 + $0x98] sm:$0xff] %vm360, %v3418
      %3455 = vst.msk [vmem:[#allocation3 + $0xa0] sm:$0xff] %vm360, %v3419
      %3456 = vst.msk [vmem:[#allocation3 + $0xa8] sm:$0xff] %vm360, %v3420
      %3457 = vst.msk [vmem:[#allocation3 + $0xb0] sm:$0xff] %vm360, %v3421
      %3458 = vst.msk [vmem:[#allocation3 + $0xb8] sm:$0xff] %vm360, %v3422
      %3459 = vst.msk [vmem:[#allocation3 + $0xc0] sm:$0xff] %vm360, %v3423
      %3460 = vst.msk [vmem:[#allocation3 + $0xc8] sm:$0xff] %vm360, %v3424
      %3461 = vst.msk [vmem:[#allocation3 + $0xd0] sm:$0xff] %vm360, %v3425
      %3462 = vst.msk [vmem:[#allocation3 + $0xd8] sm:$0xff] %vm360, %v3426
      %3463 = vst.msk [vmem:[#allocation3 + $0xe0] sm:$0xff] %vm360, %v3427
      %3464 = vst.msk [vmem:[#allocation3 + $0xe8] sm:$0xff] %vm360, %v3428
      %3465 = vst.msk [vmem:[#allocation3 + $0xf0] sm:$0xff] %vm360, %v3429
      %3466 = vst.msk [vmem:[#allocation3 + $0xf8] sm:$0xff] %vm360, %v3430
      %3467 = vst.msk [vmem:[#allocation3 + $0x100] sm:$0xff] %vm360, %v3431
      %3468 = vst.msk [vmem:[#allocation3 + $0x108] sm:$0xff] %vm360, %v3432
      %3469 = vst.msk [vmem:[#allocation3 + $0x110] sm:$0xff] %vm360, %v3433
      %3470 = vst.msk [vmem:[#allocation3 + $0x118] sm:$0xff] %vm360, %v3434
      %3471 = vst.msk [vmem:[#allocation3 + $0x120] sm:$0xff] %vm360, %v3435
      %3472 = vst.msk [vmem:[#allocation3 + $0x128] sm:$0xff] %vm360, %v3436
      %3473 = vst.msk [vmem:[#allocation3 + $0x130] sm:$0xff] %vm360, %v3437
      %v3474 = vld [vmem:[#allocation3 + $0x5] sm:$0xff]
      %v3475 = vld [vmem:[#allocation3 + $0xd] sm:$0xff]
      %v3476 = vld [vmem:[#allocation3 + $0x15] sm:$0xff]
      %v3477 = vld [vmem:[#allocation3 + $0x1d] sm:$0xff]
      %v3478 = vld [vmem:[#allocation3 + $0x25] sm:$0xff]
      %v3479 = vld [vmem:[#allocation3 + $0x2d] sm:$0xff]
      %v3480 = vld [vmem:[#allocation3 + $0x35] sm:$0xff]
      %v3481 = vld [vmem:[#allocation3 + $0x3d] sm:$0xff]
      %v3482 = vld [vmem:[#allocation3 + $0x45] sm:$0xff]
      %v3483 = vld [vmem:[#allocation3 + $0x4d] sm:$0xff]
      %v3484 = vld [vmem:[#allocation3 + $0x55] sm:$0xff]
      %v3485 = vld [vmem:[#allocation3 + $0x5d] sm:$0xff]
      %v3486 = vld [vmem:[#allocation3 + $0x65] sm:$0xff]
      %v3487 = vld [vmem:[#allocation3 + $0x6d] sm:$0xff]
      %v3488 = vld [vmem:[#allocation3 + $0x75] sm:$0xff]
      %v3489 = vld [vmem:[#allocation3 + $0x7d] sm:$0xff]
      %v3490 = vld [vmem:[#allocation3 + $0x85] sm:$0xff]
      %v3491 = vld [vmem:[#allocation3 + $0x8d] sm:$0xff]
      %v3492 = vld [vmem:[#allocation3 + $0x95] sm:$0xff]
      %v3493 = vld [vmem:[#allocation3 + $0x9d] sm:$0xff]
      %v3494 = vld [vmem:[#allocation3 + $0xa5] sm:$0xff]
      %v3495 = vld [vmem:[#allocation3 + $0xad] sm:$0xff]
      %v3496 = vld [vmem:[#allocation3 + $0xb5] sm:$0xff]
      %v3497 = vld [vmem:[#allocation3 + $0xbd] sm:$0xff]
      %v3498 = vld [vmem:[#allocation3 + $0xc5] sm:$0xff]
      %v3499 = vld [vmem:[#allocation3 + $0xcd] sm:$0xff]
      %v3500 = vld [vmem:[#allocation3 + $0xd5] sm:$0xff]
      %v3501 = vld [vmem:[#allocation3 + $0xdd] sm:$0xff]
      %v3502 = vld [vmem:[#allocation3 + $0xe5] sm:$0xff]
      %v3503 = vld [vmem:[#allocation3 + $0xed] sm:$0xff]
      %v3504 = vld [vmem:[#allocation3 + $0xf5] sm:$0xff]
      %v3505 = vld [vmem:[#allocation3 + $0xfd] sm:$0xff]
      %v3506 = vld [vmem:[#allocation3 + $0x105] sm:$0xff]
      %v3507 = vld [vmem:[#allocation3 + $0x10d] sm:$0xff]
      %v3508 = vld [vmem:[#allocation3 + $0x115] sm:$0xff]
      %v3509 = vld [vmem:[#allocation3 + $0x11d] sm:$0xff]
      %3510 = vst.msk [vmem:[#allocation4] sm:$0xff] %vm360, %v3474
      %3511 = vst.msk [vmem:[#allocation4 + $0x28] sm:$0xff] %vm360, %v3475
      %3512 = vst.msk [vmem:[#allocation4 + $0x50] sm:$0xff] %vm360, %v3476
      %3513 = vst.msk [vmem:[#allocation4 + $0x78] sm:$0xff] %vm360, %v3477
      %3514 = vst.msk [vmem:[#allocation4 + $0xa0] sm:$0xff] %vm360, %v3478
      %3515 = vst.msk [vmem:[#allocation4 + $0xc8] sm:$0xff] %vm360, %v3479
      %3516 = vst.msk [vmem:[#allocation4 + $0xf0] sm:$0xff] %vm360, %v3480
      %3517 = vst.msk [vmem:[#allocation4 + $0x118] sm:$0xff] %vm360, %v3481
      %3518 = vst.msk [vmem:[#allocation4 + $0x140] sm:$0xff] %vm360, %v3482
      %3519 = vst.msk [vmem:[#allocation4 + $0x168] sm:$0xff] %vm360, %v3483
      %3520 = vst.msk [vmem:[#allocation4 + $0x190] sm:$0xff] %vm360, %v3484
      %3521 = vst.msk [vmem:[#allocation4 + $0x1b8] sm:$0xff] %vm360, %v3485
      %3522 = vst.msk [vmem:[#allocation4 + $0x1e0] sm:$0xff] %vm360, %v3486
      %3523 = vst.msk [vmem:[#allocation4 + $0x208] sm:$0xff] %vm360, %v3487
      %3524 = vst.msk [vmem:[#allocation4 + $0x230] sm:$0xff] %vm360, %v3488
      %3525 = vst.msk [vmem:[#allocation4 + $0x258] sm:$0xff] %vm360, %v3489
      %3526 = vst.msk [vmem:[#allocation4 + $0x280] sm:$0xff] %vm360, %v3490
      %3527 = vst.msk [vmem:[#allocation4 + $0x2a8] sm:$0xff] %vm360, %v3491
      %3528 = vst.msk [vmem:[#allocation4 + $0x2d0] sm:$0xff] %vm360, %v3492
      %3529 = vst.msk [vmem:[#allocation4 + $0x2f8] sm:$0xff] %vm360, %v3493
      %3530 = vst.msk [vmem:[#allocation4 + $0x320] sm:$0xff] %vm360, %v3494
      %3531 = vst.msk [vmem:[#allocation4 + $0x348] sm:$0xff] %vm360, %v3495
      %3532 = vst.msk [vmem:[#allocation4 + $0x370] sm:$0xff] %vm360, %v3496
      %3533 = vst.msk [vmem:[#allocation4 + $0x398] sm:$0xff] %vm360, %v3497
      %3534 = vst.msk [vmem:[#allocation4 + $0x3c0] sm:$0xff] %vm360, %v3498
      %3535 = vst.msk [vmem:[#allocation4 + $0x3e8] sm:$0xff] %vm360, %v3499
      %3536 = vst.msk [vmem:[#allocation4 + $0x410] sm:$0xff] %vm360, %v3500
      %3537 = vst.msk [vmem:[#allocation4 + $0x438] sm:$0xff] %vm360, %v3501
      %3538 = vst.msk [vmem:[#allocation4 + $0x460] sm:$0xff] %vm360, %v3502
      %3539 = vst.msk [vmem:[#allocation4 + $0x488] sm:$0xff] %vm360, %v3503
      %3540 = vst.msk [vmem:[#allocation4 + $0x4b0] sm:$0xff] %vm360, %v3504
      %3541 = vst.msk [vmem:[#allocation4 + $0x4d8] sm:$0xff] %vm360, %v3505
      %3542 = vst.msk [vmem:[#allocation4 + $0x500] sm:$0xff] %vm360, %v3506
      %3543 = vst.msk [vmem:[#allocation4 + $0x528] sm:$0xff] %vm360, %v3507
      %3544 = vst.msk [vmem:[#allocation4 + $0x550] sm:$0xff] %vm360, %v3508
      %3545 = vst.msk [vmem:[#allocation4 + $0x578] sm:$0xff] %vm360, %v3509
      %v3546 = vld [vmem:[#allocation3 + $0x6] sm:$0xff]
      %v3547 = vld [vmem:[#allocation3 + $0xe] sm:$0xff]
      %v3548 = vld [vmem:[#allocation3 + $0x16] sm:$0xff]
      %v3549 = vld [vmem:[#allocation3 + $0x1e] sm:$0xff]
      %v3550 = vld [vmem:[#allocation3 + $0x26] sm:$0xff]
      %v3551 = vld [vmem:[#allocation3 + $0x2e] sm:$0xff]
      %v3552 = vld [vmem:[#allocation3 + $0x36] sm:$0xff]
      %v3553 = vld [vmem:[#allocation3 + $0x3e] sm:$0xff]
      %v3554 = vld [vmem:[#allocation3 + $0x46] sm:$0xff]
      %v3555 = vld [vmem:[#allocation3 + $0x4e] sm:$0xff]
      %v3556 = vld [vmem:[#allocation3 + $0x56] sm:$0xff]
      %v3557 = vld [vmem:[#allocation3 + $0x5e] sm:$0xff]
      %v3558 = vld [vmem:[#allocation3 + $0x66] sm:$0xff]
      %v3559 = vld [vmem:[#allocation3 + $0x6e] sm:$0xff]
      %v3560 = vld [vmem:[#allocation3 + $0x76] sm:$0xff]
      %v3561 = vld [vmem:[#allocation3 + $0x7e] sm:$0xff]
      %v3562 = vld [vmem:[#allocation3 + $0x86] sm:$0xff]
      %v3563 = vld [vmem:[#allocation3 + $0x8e] sm:$0xff]
      %v3564 = vld [vmem:[#allocation3 + $0x96] sm:$0xff]
      %v3565 = vld [vmem:[#allocation3 + $0x9e] sm:$0xff]
      %v3566 = vld [vmem:[#allocation3 + $0xa6] sm:$0xff]
      %v3567 = vld [vmem:[#allocation3 + $0xae] sm:$0xff]
      %v3568 = vld [vmem:[#allocation3 + $0xb6] sm:$0xff]
      %v3569 = vld [vmem:[#allocation3 + $0xbe] sm:$0xff]
      %v3570 = vld [vmem:[#allocation3 + $0xc6] sm:$0xff]
      %v3571 = vld [vmem:[#allocation3 + $0xce] sm:$0xff]
      %v3572 = vld [vmem:[#allocation3 + $0xd6] sm:$0xff]
      %v3573 = vld [vmem:[#allocation3 + $0xde] sm:$0xff]
      %v3574 = vld [vmem:[#allocation3 + $0xe6] sm:$0xff]
      %v3575 = vld [vmem:[#allocation3 + $0xee] sm:$0xff]
      %v3576 = vld [vmem:[#allocation3 + $0xf6] sm:$0xff]
      %v3577 = vld [vmem:[#allocation3 + $0xfe] sm:$0xff]
      %v3578 = vld [vmem:[#allocation3 + $0x106] sm:$0xff]
      %v3579 = vld [vmem:[#allocation3 + $0x10e] sm:$0xff]
      %v3580 = vld [vmem:[#allocation3 + $0x116] sm:$0xff]
      %v3581 = vld [vmem:[#allocation3 + $0x11e] sm:$0xff]
      %3618 = vrot.lane.b32.xlu0 %v3546, 64
      %v3619 = vpop.permute.xlu0 %3618
      %3620 = vrot.lane.b32.xlu0 %v3547, 64
      %v3621 = vpop.permute.xlu0 %3620
      %3622 = vrot.lane.b32.xlu0 %v3548, 64
      %v3623 = vpop.permute.xlu0 %3622
      %3624 = vrot.lane.b32.xlu0 %v3549, 64
      %v3625 = vpop.permute.xlu0 %3624
      %3626 = vrot.lane.b32.xlu0 %v3550, 64
      %v3627 = vpop.permute.xlu0 %3626
      %3628 = vrot.lane.b32.xlu0 %v3551, 64
      %v3629 = vpop.permute.xlu0 %3628
      %3630 = vrot.lane.b32.xlu0 %v3552, 64
      %v3631 = vpop.permute.xlu0 %3630
      %3632 = vrot.lane.b32.xlu0 %v3553, 64
      %v3633 = vpop.permute.xlu0 %3632
      %3634 = vrot.lane.b32.xlu0 %v3554, 64
      %v3635 = vpop.permute.xlu0 %3634
      %3636 = vrot.lane.b32.xlu0 %v3555, 64
      %v3637 = vpop.permute.xlu0 %3636
      %3638 = vrot.lane.b32.xlu0 %v3556, 64
      %v3639 = vpop.permute.xlu0 %3638
      %3640 = vrot.lane.b32.xlu0 %v3557, 64
      %v3641 = vpop.permute.xlu0 %3640
      %3642 = vrot.lane.b32.xlu0 %v3558, 64
      %v3643 = vpop.permute.xlu0 %3642
      %3644 = vrot.lane.b32.xlu0 %v3559, 64
      %v3645 = vpop.permute.xlu0 %3644
      %3646 = vrot.lane.b32.xlu0 %v3560, 64
      %v3647 = vpop.permute.xlu0 %3646
      %3648 = vrot.lane.b32.xlu0 %v3561, 64
      %v3649 = vpop.permute.xlu0 %3648
      %3650 = vrot.lane.b32.xlu0 %v3562, 64
      %v3651 = vpop.permute.xlu0 %3650
      %3652 = vrot.lane.b32.xlu0 %v3563, 64
      %v3653 = vpop.permute.xlu0 %3652
      %3654 = vrot.lane.b32.xlu0 %v3564, 64
      %v3655 = vpop.permute.xlu0 %3654
      %3656 = vrot.lane.b32.xlu0 %v3565, 64
      %v3657 = vpop.permute.xlu0 %3656
      %3658 = vrot.lane.b32.xlu0 %v3566, 64
      %v3659 = vpop.permute.xlu0 %3658
      %3660 = vrot.lane.b32.xlu0 %v3567, 64
      %v3661 = vpop.permute.xlu0 %3660
      %3662 = vrot.lane.b32.xlu0 %v3568, 64
      %v3663 = vpop.permute.xlu0 %3662
      %3664 = vrot.lane.b32.xlu0 %v3569, 64
      %v3665 = vpop.permute.xlu0 %3664
      %3666 = vrot.lane.b32.xlu0 %v3570, 64
      %v3667 = vpop.permute.xlu0 %3666
      %3668 = vrot.lane.b32.xlu0 %v3571, 64
      %v3669 = vpop.permute.xlu0 %3668
      %3670 = vrot.lane.b32.xlu0 %v3572, 64
      %v3671 = vpop.permute.xlu0 %3670
      %3672 = vrot.lane.b32.xlu0 %v3573, 64
      %v3673 = vpop.permute.xlu0 %3672
      %3674 = vrot.lane.b32.xlu0 %v3574, 64
      %v3675 = vpop.permute.xlu0 %3674
      %3676 = vrot.lane.b32.xlu0 %v3575, 64
      %v3677 = vpop.permute.xlu0 %3676
      %3678 = vrot.lane.b32.xlu0 %v3576, 64
      %v3679 = vpop.permute.xlu0 %3678
      %3680 = vrot.lane.b32.xlu0 %v3577, 64
      %v3681 = vpop.permute.xlu0 %3680
      %3682 = vrot.lane.b32.xlu0 %v3578, 64
      %v3683 = vpop.permute.xlu0 %3682
      %3684 = vrot.lane.b32.xlu0 %v3579, 64
      %v3685 = vpop.permute.xlu0 %3684
      %3686 = vrot.lane.b32.xlu0 %v3580, 64
      %v3687 = vpop.permute.xlu0 %3686
      %3688 = vrot.lane.b32.xlu0 %v3581, 64
      %v3689 = vpop.permute.xlu0 %3688
      %3726 = vst.msk [vmem:[#allocation4] sm:$0xff] %vm373, %v3619
      %3727 = vst.msk [vmem:[#allocation4 + $0x28] sm:$0xff] %vm373, %v3621
      %3728 = vst.msk [vmem:[#allocation4 + $0x50] sm:$0xff] %vm373, %v3623
      %3729 = vst.msk [vmem:[#allocation4 + $0x78] sm:$0xff] %vm373, %v3625
      %3730 = vst.msk [vmem:[#allocation4 + $0xa0] sm:$0xff] %vm373, %v3627
      %3731 = vst.msk [vmem:[#allocation4 + $0xc8] sm:$0xff] %vm373, %v3629
      %3732 = vst.msk [vmem:[#allocation4 + $0xf0] sm:$0xff] %vm373, %v3631
      %3733 = vst.msk [vmem:[#allocation4 + $0x118] sm:$0xff] %vm373, %v3633
      %3734 = vst.msk [vmem:[#allocation4 + $0x140] sm:$0xff] %vm373, %v3635
      %3735 = vst.msk [vmem:[#allocation4 + $0x168] sm:$0xff] %vm373, %v3637
      %3736 = vst.msk [vmem:[#allocation4 + $0x190] sm:$0xff] %vm373, %v3639
      %3737 = vst.msk [vmem:[#allocation4 + $0x1b8] sm:$0xff] %vm373, %v3641
      %3738 = vst.msk [vmem:[#allocation4 + $0x1e0] sm:$0xff] %vm373, %v3643
      %3739 = vst.msk [vmem:[#allocation4 + $0x208] sm:$0xff] %vm373, %v3645
      %3740 = vst.msk [vmem:[#allocation4 + $0x230] sm:$0xff] %vm373, %v3647
      %3741 = vst.msk [vmem:[#allocation4 + $0x258] sm:$0xff] %vm373, %v3649
      %3742 = vst.msk [vmem:[#allocation4 + $0x280] sm:$0xff] %vm373, %v3651
      %3743 = vst.msk [vmem:[#allocation4 + $0x2a8] sm:$0xff] %vm373, %v3653
      %3744 = vst.msk [vmem:[#allocation4 + $0x2d0] sm:$0xff] %vm373, %v3655
      %3745 = vst.msk [vmem:[#allocation4 + $0x2f8] sm:$0xff] %vm373, %v3657
      %3746 = vst.msk [vmem:[#allocation4 + $0x320] sm:$0xff] %vm373, %v3659
      %3747 = vst.msk [vmem:[#allocation4 + $0x348] sm:$0xff] %vm373, %v3661
      %3748 = vst.msk [vmem:[#allocation4 + $0x370] sm:$0xff] %vm373, %v3663
      %3749 = vst.msk [vmem:[#allocation4 + $0x398] sm:$0xff] %vm373, %v3665
      %3750 = vst.msk [vmem:[#allocation4 + $0x3c0] sm:$0xff] %vm373, %v3667
      %3751 = vst.msk [vmem:[#allocation4 + $0x3e8] sm:$0xff] %vm373, %v3669
      %3752 = vst.msk [vmem:[#allocation4 + $0x410] sm:$0xff] %vm373, %v3671
      %3753 = vst.msk [vmem:[#allocation4 + $0x438] sm:$0xff] %vm373, %v3673
      %3754 = vst.msk [vmem:[#allocation4 + $0x460] sm:$0xff] %vm373, %v3675
      %3755 = vst.msk [vmem:[#allocation4 + $0x488] sm:$0xff] %vm373, %v3677
      %3756 = vst.msk [vmem:[#allocation4 + $0x4b0] sm:$0xff] %vm373, %v3679
      %3757 = vst.msk [vmem:[#allocation4 + $0x4d8] sm:$0xff] %vm373, %v3681
      %3758 = vst.msk [vmem:[#allocation4 + $0x500] sm:$0xff] %vm373, %v3683
      %3759 = vst.msk [vmem:[#allocation4 + $0x528] sm:$0xff] %vm373, %v3685
      %3760 = vst.msk [vmem:[#allocation4 + $0x550] sm:$0xff] %vm373, %v3687
      %3761 = vst.msk [vmem:[#allocation4 + $0x578] sm:$0xff] %vm373, %v3689
      %v3762 = vld [vmem:[#allocation3 + $0x7] sm:$0xff]
      %v3763 = vld [vmem:[#allocation3 + $0xf] sm:$0xff]
      %v3764 = vld [vmem:[#allocation3 + $0x17] sm:$0xff]
      %v3765 = vld [vmem:[#allocation3 + $0x1f] sm:$0xff]
      %v3766 = vld [vmem:[#allocation3 + $0x27] sm:$0xff]
      %v3767 = vld [vmem:[#allocation3 + $0x2f] sm:$0xff]
      %v3768 = vld [vmem:[#allocation3 + $0x37] sm:$0xff]
      %v3769 = vld [vmem:[#allocation3 + $0x3f] sm:$0xff]
      %v3770 = vld [vmem:[#allocation3 + $0x47] sm:$0xff]
      %v3771 = vld [vmem:[#allocation3 + $0x4f] sm:$0xff]
      %v3772 = vld [vmem:[#allocation3 + $0x57] sm:$0xff]
      %v3773 = vld [vmem:[#allocation3 + $0x5f] sm:$0xff]
      %v3774 = vld [vmem:[#allocation3 + $0x67] sm:$0xff]
      %v3775 = vld [vmem:[#allocation3 + $0x6f] sm:$0xff]
      %v3776 = vld [vmem:[#allocation3 + $0x77] sm:$0xff]
      %v3777 = vld [vmem:[#allocation3 + $0x7f] sm:$0xff]
      %v3778 = vld [vmem:[#allocation3 + $0x87] sm:$0xff]
      %v3779 = vld [vmem:[#allocation3 + $0x8f] sm:$0xff]
      %v3780 = vld [vmem:[#allocation3 + $0x97] sm:$0xff]
      %v3781 = vld [vmem:[#allocation3 + $0x9f] sm:$0xff]
      %v3782 = vld [vmem:[#allocation3 + $0xa7] sm:$0xff]
      %v3783 = vld [vmem:[#allocation3 + $0xaf] sm:$0xff]
      %v3784 = vld [vmem:[#allocation3 + $0xb7] sm:$0xff]
      %v3785 = vld [vmem:[#allocation3 + $0xbf] sm:$0xff]
      %v3786 = vld [vmem:[#allocation3 + $0xc7] sm:$0xff]
      %v3787 = vld [vmem:[#allocation3 + $0xcf] sm:$0xff]
      %v3788 = vld [vmem:[#allocation3 + $0xd7] sm:$0xff]
      %v3789 = vld [vmem:[#allocation3 + $0xdf] sm:$0xff]
      %v3790 = vld [vmem:[#allocation3 + $0xe7] sm:$0xff]
      %v3791 = vld [vmem:[#allocation3 + $0xef] sm:$0xff]
      %v3792 = vld [vmem:[#allocation3 + $0xf7] sm:$0xff]
      %v3793 = vld [vmem:[#allocation3 + $0xff] sm:$0xff]
      %v3794 = vld [vmem:[#allocation3 + $0x107] sm:$0xff]
      %v3795 = vld [vmem:[#allocation3 + $0x10f] sm:$0xff]
      %v3796 = vld [vmem:[#allocation3 + $0x117] sm:$0xff]
      %v3797 = vld [vmem:[#allocation3 + $0x11f] sm:$0xff]
      %3798 = vst.msk [vmem:[#allocation4 + $0x8] sm:$0xff] %vm360, %v3762
      %3799 = vst.msk [vmem:[#allocation4 + $0x30] sm:$0xff] %vm360, %v3763
      %3800 = vst.msk [vmem:[#allocation4 + $0x58] sm:$0xff] %vm360, %v3764
      %3801 = vst.msk [vmem:[#allocation4 + $0x80] sm:$0xff] %vm360, %v3765
      %3802 = vst.msk [vmem:[#allocation4 + $0xa8] sm:$0xff] %vm360, %v3766
      %3803 = vst.msk [vmem:[#allocation4 + $0xd0] sm:$0xff] %vm360, %v3767
      %3804 = vst.msk [vmem:[#allocation4 + $0xf8] sm:$0xff] %vm360, %v3768
      %3805 = vst.msk [vmem:[#allocation4 + $0x120] sm:$0xff] %vm360, %v3769
      %3806 = vst.msk [vmem:[#allocation4 + $0x148] sm:$0xff] %vm360, %v3770
      %3807 = vst.msk [vmem:[#allocation4 + $0x170] sm:$0xff] %vm360, %v3771
      %3808 = vst.msk [vmem:[#allocation4 + $0x198] sm:$0xff] %vm360, %v3772
      %3809 = vst.msk [vmem:[#allocation4 + $0x1c0] sm:$0xff] %vm360, %v3773
      %3810 = vst.msk [vmem:[#allocation4 + $0x1e8] sm:$0xff] %vm360, %v3774
      %3811 = vst.msk [vmem:[#allocation4 + $0x210] sm:$0xff] %vm360, %v3775
      %3812 = vst.msk [vmem:[#allocation4 + $0x238] sm:$0xff] %vm360, %v3776
      %3813 = vst.msk [vmem:[#allocation4 + $0x260] sm:$0xff] %vm360, %v3777
      %3814 = vst.msk [vmem:[#allocation4 + $0x288] sm:$0xff] %vm360, %v3778
      %3815 = vst.msk [vmem:[#allocation4 + $0x2b0] sm:$0xff] %vm360, %v3779
      %3816 = vst.msk [vmem:[#allocation4 + $0x2d8] sm:$0xff] %vm360, %v3780
      %3817 = vst.msk [vmem:[#allocation4 + $0x300] sm:$0xff] %vm360, %v3781
      %3818 = vst.msk [vmem:[#allocation4 + $0x328] sm:$0xff] %vm360, %v3782
      %3819 = vst.msk [vmem:[#allocation4 + $0x350] sm:$0xff] %vm360, %v3783
      %3820 = vst.msk [vmem:[#allocation4 + $0x378] sm:$0xff] %vm360, %v3784
      %3821 = vst.msk [vmem:[#allocation4 + $0x3a0] sm:$0xff] %vm360, %v3785
      %3822 = vst.msk [vmem:[#allocation4 + $0x3c8] sm:$0xff] %vm360, %v3786
      %3823 = vst.msk [vmem:[#allocation4 + $0x3f0] sm:$0xff] %vm360, %v3787
      %3824 = vst.msk [vmem:[#allocation4 + $0x418] sm:$0xff] %vm360, %v3788
      %3825 = vst.msk [vmem:[#allocation4 + $0x440] sm:$0xff] %vm360, %v3789
      %3826 = vst.msk [vmem:[#allocation4 + $0x468] sm:$0xff] %vm360, %v3790
      %3827 = vst.msk [vmem:[#allocation4 + $0x490] sm:$0xff] %vm360, %v3791
      %3828 = vst.msk [vmem:[#allocation4 + $0x4b8] sm:$0xff] %vm360, %v3792
      %3829 = vst.msk [vmem:[#allocation4 + $0x4e0] sm:$0xff] %vm360, %v3793
      %3830 = vst.msk [vmem:[#allocation4 + $0x508] sm:$0xff] %vm360, %v3794
      %3831 = vst.msk [vmem:[#allocation4 + $0x530] sm:$0xff] %vm360, %v3795
      %3832 = vst.msk [vmem:[#allocation4 + $0x558] sm:$0xff] %vm360, %v3796
      %3833 = vst.msk [vmem:[#allocation4 + $0x580] sm:$0xff] %vm360, %v3797
      %v3834 = vld [vmem:[#allocation3 + $0x17] sm:$0xff]
      %v3835 = vld [vmem:[#allocation3 + $0x1f] sm:$0xff]
      %v3836 = vld [vmem:[#allocation3 + $0x27] sm:$0xff]
      %v3837 = vld [vmem:[#allocation3 + $0x2f] sm:$0xff]
      %v3838 = vld [vmem:[#allocation3 + $0x37] sm:$0xff]
      %v3839 = vld [vmem:[#allocation3 + $0x3f] sm:$0xff]
      %v3840 = vld [vmem:[#allocation3 + $0x47] sm:$0xff]
      %v3841 = vld [vmem:[#allocation3 + $0x4f] sm:$0xff]
      %v3842 = vld [vmem:[#allocation3 + $0x57] sm:$0xff]
      %v3843 = vld [vmem:[#allocation3 + $0x5f] sm:$0xff]
      %v3844 = vld [vmem:[#allocation3 + $0x67] sm:$0xff]
      %v3845 = vld [vmem:[#allocation3 + $0x6f] sm:$0xff]
      %v3846 = vld [vmem:[#allocation3 + $0x77] sm:$0xff]
      %v3847 = vld [vmem:[#allocation3 + $0x7f] sm:$0xff]
      %v3848 = vld [vmem:[#allocation3 + $0x87] sm:$0xff]
      %v3849 = vld [vmem:[#allocation3 + $0x8f] sm:$0xff]
      %v3850 = vld [vmem:[#allocation3 + $0x97] sm:$0xff]
      %v3851 = vld [vmem:[#allocation3 + $0x9f] sm:$0xff]
      %v3852 = vld [vmem:[#allocation3 + $0xa7] sm:$0xff]
      %v3853 = vld [vmem:[#allocation3 + $0xaf] sm:$0xff]
      %v3854 = vld [vmem:[#allocation3 + $0xb7] sm:$0xff]
      %v3855 = vld [vmem:[#allocation3 + $0xbf] sm:$0xff]
      %v3856 = vld [vmem:[#allocation3 + $0xc7] sm:$0xff]
      %v3857 = vld [vmem:[#allocation3 + $0xcf] sm:$0xff]
      %v3858 = vld [vmem:[#allocation3 + $0xd7] sm:$0xff]
      %v3859 = vld [vmem:[#allocation3 + $0xdf] sm:$0xff]
      %v3860 = vld [vmem:[#allocation3 + $0xe7] sm:$0xff]
      %v3861 = vld [vmem:[#allocation3 + $0xef] sm:$0xff]
      %v3862 = vld [vmem:[#allocation3 + $0xf7] sm:$0xff]
      %v3863 = vld [vmem:[#allocation3 + $0xff] sm:$0xff]
      %v3864 = vld [vmem:[#allocation3 + $0x107] sm:$0xff]
      %v3865 = vld [vmem:[#allocation3 + $0x10f] sm:$0xff]
      %v3866 = vld [vmem:[#allocation3 + $0x117] sm:$0xff]
      %v3867 = vld [vmem:[#allocation3 + $0x11f] sm:$0xff]
      %v3868 = vld [vmem:[#allocation3 + $0x127] sm:$0xff]
      %v3869 = vld [vmem:[#allocation3 + $0x12f] sm:$0xff]
      %3906 = vrot.lane.b32.xlu0 %v3834, 64
      %v3907 = vpop.permute.xlu0 %3906
      %3908 = vrot.lane.b32.xlu0 %v3835, 64
      %v3909 = vpop.permute.xlu0 %3908
      %3910 = vrot.lane.b32.xlu0 %v3836, 64
      %v3911 = vpop.permute.xlu0 %3910
      %3912 = vrot.lane.b32.xlu0 %v3837, 64
      %v3913 = vpop.permute.xlu0 %3912
      %3914 = vrot.lane.b32.xlu0 %v3838, 64
      %v3915 = vpop.permute.xlu0 %3914
      %3916 = vrot.lane.b32.xlu0 %v3839, 64
      %v3917 = vpop.permute.xlu0 %3916
      %3918 = vrot.lane.b32.xlu0 %v3840, 64
      %v3919 = vpop.permute.xlu0 %3918
      %3920 = vrot.lane.b32.xlu0 %v3841, 64
      %v3921 = vpop.permute.xlu0 %3920
      %3922 = vrot.lane.b32.xlu0 %v3842, 64
      %v3923 = vpop.permute.xlu0 %3922
      %3924 = vrot.lane.b32.xlu0 %v3843, 64
      %v3925 = vpop.permute.xlu0 %3924
      %3926 = vrot.lane.b32.xlu0 %v3844, 64
      %v3927 = vpop.permute.xlu0 %3926
      %3928 = vrot.lane.b32.xlu0 %v3845, 64
      %v3929 = vpop.permute.xlu0 %3928
      %3930 = vrot.lane.b32.xlu0 %v3846, 64
      %v3931 = vpop.permute.xlu0 %3930
      %3932 = vrot.lane.b32.xlu0 %v3847, 64
      %v3933 = vpop.permute.xlu0 %3932
      %3934 = vrot.lane.b32.xlu0 %v3848, 64
      %v3935 = vpop.permute.xlu0 %3934
      %3936 = vrot.lane.b32.xlu0 %v3849, 64
      %v3937 = vpop.permute.xlu0 %3936
      %3938 = vrot.lane.b32.xlu0 %v3850, 64
      %v3939 = vpop.permute.xlu0 %3938
      %3940 = vrot.lane.b32.xlu0 %v3851, 64
      %v3941 = vpop.permute.xlu0 %3940
      %3942 = vrot.lane.b32.xlu0 %v3852, 64
      %v3943 = vpop.permute.xlu0 %3942
      %3944 = vrot.lane.b32.xlu0 %v3853, 64
      %v3945 = vpop.permute.xlu0 %3944
      %3946 = vrot.lane.b32.xlu0 %v3854, 64
      %v3947 = vpop.permute.xlu0 %3946
      %3948 = vrot.lane.b32.xlu0 %v3855, 64
      %v3949 = vpop.permute.xlu0 %3948
      %3950 = vrot.lane.b32.xlu0 %v3856, 64
      %v3951 = vpop.permute.xlu0 %3950
      %3952 = vrot.lane.b32.xlu0 %v3857, 64
      %v3953 = vpop.permute.xlu0 %3952
      %3954 = vrot.lane.b32.xlu0 %v3858, 64
      %v3955 = vpop.permute.xlu0 %3954
      %3956 = vrot.lane.b32.xlu0 %v3859, 64
      %v3957 = vpop.permute.xlu0 %3956
      %3958 = vrot.lane.b32.xlu0 %v3860, 64
      %v3959 = vpop.permute.xlu0 %3958
      %3960 = vrot.lane.b32.xlu0 %v3861, 64
      %v3961 = vpop.permute.xlu0 %3960
      %3962 = vrot.lane.b32.xlu0 %v3862, 64
      %v3963 = vpop.permute.xlu0 %3962
      %3964 = vrot.lane.b32.xlu0 %v3863, 64
      %v3965 = vpop.permute.xlu0 %3964
      %3966 = vrot.lane.b32.xlu0 %v3864, 64
      %v3967 = vpop.permute.xlu0 %3966
      %3968 = vrot.lane.b32.xlu0 %v3865, 64
      %v3969 = vpop.permute.xlu0 %3968
      %3970 = vrot.lane.b32.xlu0 %v3866, 64
      %v3971 = vpop.permute.xlu0 %3970
      %3972 = vrot.lane.b32.xlu0 %v3867, 64
      %v3973 = vpop.permute.xlu0 %3972
      %3974 = vrot.lane.b32.xlu0 %v3868, 64
      %v3975 = vpop.permute.xlu0 %3974
      %3976 = vrot.lane.b32.xlu0 %v3869, 64
      %v3977 = vpop.permute.xlu0 %3976
      %4014 = vst.msk [vmem:[#allocation4 + $0x8] sm:$0xff] %vm373, %v3907
      %4015 = vst.msk [vmem:[#allocation4 + $0x30] sm:$0xff] %vm373, %v3909
      %4016 = vst.msk [vmem:[#allocation4 + $0x58] sm:$0xff] %vm373, %v3911
      %4017 = vst.msk [vmem:[#allocation4 + $0x80] sm:$0xff] %vm373, %v3913
      %4018 = vst.msk [vmem:[#allocation4 + $0xa8] sm:$0xff] %vm373, %v3915
      %4019 = vst.msk [vmem:[#allocation4 + $0xd0] sm:$0xff] %vm373, %v3917
      %4020 = vst.msk [vmem:[#allocation4 + $0xf8] sm:$0xff] %vm373, %v3919
      %4021 = vst.msk [vmem:[#allocation4 + $0x120] sm:$0xff] %vm373, %v3921
      %4022 = vst.msk [vmem:[#allocation4 + $0x148] sm:$0xff] %vm373, %v3923
      %4023 = vst.msk [vmem:[#allocation4 + $0x170] sm:$0xff] %vm373, %v3925
      %4024 = vst.msk [vmem:[#allocation4 + $0x198] sm:$0xff] %vm373, %v3927
      %4025 = vst.msk [vmem:[#allocation4 + $0x1c0] sm:$0xff] %vm373, %v3929
      %4026 = vst.msk [vmem:[#allocation4 + $0x1e8] sm:$0xff] %vm373, %v3931
      %4027 = vst.msk [vmem:[#allocation4 + $0x210] sm:$0xff] %vm373, %v3933
      %4028 = vst.msk [vmem:[#allocation4 + $0x238] sm:$0xff] %vm373, %v3935
      %4029 = vst.msk [vmem:[#allocation4 + $0x260] sm:$0xff] %vm373, %v3937
      %4030 = vst.msk [vmem:[#allocation4 + $0x288] sm:$0xff] %vm373, %v3939
      %4031 = vst.msk [vmem:[#allocation4 + $0x2b0] sm:$0xff] %vm373, %v3941
      %4032 = vst.msk [vmem:[#allocation4 + $0x2d8] sm:$0xff] %vm373, %v3943
      %4033 = vst.msk [vmem:[#allocation4 + $0x300] sm:$0xff] %vm373, %v3945
      %4034 = vst.msk [vmem:[#allocation4 + $0x328] sm:$0xff] %vm373, %v3947
      %4035 = vst.msk [vmem:[#allocation4 + $0x350] sm:$0xff] %vm373, %v3949
      %4036 = vst.msk [vmem:[#allocation4 + $0x378] sm:$0xff] %vm373, %v3951
      %4037 = vst.msk [vmem:[#allocation4 + $0x3a0] sm:$0xff] %vm373, %v3953
      %4038 = vst.msk [vmem:[#allocation4 + $0x3c8] sm:$0xff] %vm373, %v3955
      %4039 = vst.msk [vmem:[#allocation4 + $0x3f0] sm:$0xff] %vm373, %v3957
      %4040 = vst.msk [vmem:[#allocation4 + $0x418] sm:$0xff] %vm373, %v3959
      %4041 = vst.msk [vmem:[#allocation4 + $0x440] sm:$0xff] %vm373, %v3961
      %4042 = vst.msk [vmem:[#allocation4 + $0x468] sm:$0xff] %vm373, %v3963
      %4043 = vst.msk [vmem:[#allocation4 + $0x490] sm:$0xff] %vm373, %v3965
      %4044 = vst.msk [vmem:[#allocation4 + $0x4b8] sm:$0xff] %vm373, %v3967
      %4045 = vst.msk [vmem:[#allocation4 + $0x4e0] sm:$0xff] %vm373, %v3969
      %4046 = vst.msk [vmem:[#allocation4 + $0x508] sm:$0xff] %vm373, %v3971
      %4047 = vst.msk [vmem:[#allocation4 + $0x530] sm:$0xff] %vm373, %v3973
      %4048 = vst.msk [vmem:[#allocation4 + $0x558] sm:$0xff] %vm373, %v3975
      %4049 = vst.msk [vmem:[#allocation4 + $0x580] sm:$0xff] %vm373, %v3977
      %v4050 = vld [vmem:[#allocation3 + $0x18] sm:$0xff]
      %v4051 = vld [vmem:[#allocation3 + $0x20] sm:$0xff]
      %v4052 = vld [vmem:[#allocation3 + $0x28] sm:$0xff]
      %v4053 = vld [vmem:[#allocation3 + $0x30] sm:$0xff]
      %v4054 = vld [vmem:[#allocation3 + $0x38] sm:$0xff]
      %v4055 = vld [vmem:[#allocation3 + $0x40] sm:$0xff]
      %v4056 = vld [vmem:[#allocation3 + $0x48] sm:$0xff]
      %v4057 = vld [vmem:[#allocation3 + $0x50] sm:$0xff]
      %v4058 = vld [vmem:[#allocation3 + $0x58] sm:$0xff]
      %v4059 = vld [vmem:[#allocation3 + $0x60] sm:$0xff]
      %v4060 = vld [vmem:[#allocation3 + $0x68] sm:$0xff]
      %v4061 = vld [vmem:[#allocation3 + $0x70] sm:$0xff]
      %v4062 = vld [vmem:[#allocation3 + $0x78] sm:$0xff]
      %v4063 = vld [vmem:[#allocation3 + $0x80] sm:$0xff]
      %v4064 = vld [vmem:[#allocation3 + $0x88] sm:$0xff]
      %v4065 = vld [vmem:[#allocation3 + $0x90] sm:$0xff]
      %v4066 = vld [vmem:[#allocation3 + $0x98] sm:$0xff]
      %v4067 = vld [vmem:[#allocation3 + $0xa0] sm:$0xff]
      %v4068 = vld [vmem:[#allocation3 + $0xa8] sm:$0xff]
      %v4069 = vld [vmem:[#allocation3 + $0xb0] sm:$0xff]
      %v4070 = vld [vmem:[#allocation3 + $0xb8] sm:$0xff]
      %v4071 = vld [vmem:[#allocation3 + $0xc0] sm:$0xff]
      %v4072 = vld [vmem:[#allocation3 + $0xc8] sm:$0xff]
      %v4073 = vld [vmem:[#allocation3 + $0xd0] sm:$0xff]
      %v4074 = vld [vmem:[#allocation3 + $0xd8] sm:$0xff]
      %v4075 = vld [vmem:[#allocation3 + $0xe0] sm:$0xff]
      %v4076 = vld [vmem:[#allocation3 + $0xe8] sm:$0xff]
      %v4077 = vld [vmem:[#allocation3 + $0xf0] sm:$0xff]
      %v4078 = vld [vmem:[#allocation3 + $0xf8] sm:$0xff]
      %v4079 = vld [vmem:[#allocation3 + $0x100] sm:$0xff]
      %v4080 = vld [vmem:[#allocation3 + $0x108] sm:$0xff]
      %v4081 = vld [vmem:[#allocation3 + $0x110] sm:$0xff]
      %v4082 = vld [vmem:[#allocation3 + $0x118] sm:$0xff]
      %v4083 = vld [vmem:[#allocation3 + $0x120] sm:$0xff]
      %v4084 = vld [vmem:[#allocation3 + $0x128] sm:$0xff]
      %v4085 = vld [vmem:[#allocation3 + $0x130] sm:$0xff]
      %4086 = vst.msk [vmem:[#allocation4 + $0x10] sm:$0xff] %vm360, %v4050
      %4087 = vst.msk [vmem:[#allocation4 + $0x38] sm:$0xff] %vm360, %v4051
      %4088 = vst.msk [vmem:[#allocation4 + $0x60] sm:$0xff] %vm360, %v4052
      %4089 = vst.msk [vmem:[#allocation4 + $0x88] sm:$0xff] %vm360, %v4053
      %4090 = vst.msk [vmem:[#allocation4 + $0xb0] sm:$0xff] %vm360, %v4054
      %4091 = vst.msk [vmem:[#allocation4 + $0xd8] sm:$0xff] %vm360, %v4055
      %4092 = vst.msk [vmem:[#allocation4 + $0x100] sm:$0xff] %vm360, %v4056
      %4093 = vst.msk [vmem:[#allocation4 + $0x128] sm:$0xff] %vm360, %v4057
      %4094 = vst.msk [vmem:[#allocation4 + $0x150] sm:$0xff] %vm360, %v4058
      %4095 = vst.msk [vmem:[#allocation4 + $0x178] sm:$0xff] %vm360, %v4059
      %4096 = vst.msk [vmem:[#allocation4 + $0x1a0] sm:$0xff] %vm360, %v4060
      %4097 = vst.msk [vmem:[#allocation4 + $0x1c8] sm:$0xff] %vm360, %v4061
      %4098 = vst.msk [vmem:[#allocation4 + $0x1f0] sm:$0xff] %vm360, %v4062
      %4099 = vst.msk [vmem:[#allocation4 + $0x218] sm:$0xff] %vm360, %v4063
      %4100 = vst.msk [vmem:[#allocation4 + $0x240] sm:$0xff] %vm360, %v4064
      %4101 = vst.msk [vmem:[#allocation4 + $0x268] sm:$0xff] %vm360, %v4065
      %4102 = vst.msk [vmem:[#allocation4 + $0x290] sm:$0xff] %vm360, %v4066
      %4103 = vst.msk [vmem:[#allocation4 + $0x2b8] sm:$0xff] %vm360, %v4067
      %4104 = vst.msk [vmem:[#allocation4 + $0x2e0] sm:$0xff] %vm360, %v4068
      %4105 = vst.msk [vmem:[#allocation4 + $0x308] sm:$0xff] %vm360, %v4069
      %4106 = vst.msk [vmem:[#allocation4 + $0x330] sm:$0xff] %vm360, %v4070
      %4107 = vst.msk [vmem:[#allocation4 + $0x358] sm:$0xff] %vm360, %v4071
      %4108 = vst.msk [vmem:[#allocation4 + $0x380] sm:$0xff] %vm360, %v4072
      %4109 = vst.msk [vmem:[#allocation4 + $0x3a8] sm:$0xff] %vm360, %v4073
      %4110 = vst.msk [vmem:[#allocation4 + $0x3d0] sm:$0xff] %vm360, %v4074
      %4111 = vst.msk [vmem:[#allocation4 + $0x3f8] sm:$0xff] %vm360, %v4075
      %4112 = vst.msk [vmem:[#allocation4 + $0x420] sm:$0xff] %vm360, %v4076
      %4113 = vst.msk [vmem:[#allocation4 + $0x448] sm:$0xff] %vm360, %v4077
      %4114 = vst.msk [vmem:[#allocation4 + $0x470] sm:$0xff] %vm360, %v4078
      %4115 = vst.msk [vmem:[#allocation4 + $0x498] sm:$0xff] %vm360, %v4079
      %4116 = vst.msk [vmem:[#allocation4 + $0x4c0] sm:$0xff] %vm360, %v4080
      %4117 = vst.msk [vmem:[#allocation4 + $0x4e8] sm:$0xff] %vm360, %v4081
      %4118 = vst.msk [vmem:[#allocation4 + $0x510] sm:$0xff] %vm360, %v4082
      %4119 = vst.msk [vmem:[#allocation4 + $0x538] sm:$0xff] %vm360, %v4083
      %4120 = vst.msk [vmem:[#allocation4 + $0x560] sm:$0xff] %vm360, %v4084
      %4121 = vst.msk [vmem:[#allocation4 + $0x588] sm:$0xff] %vm360, %v4085
      %v4122 = vld [vmem:[#allocation3 + $0x19] sm:$0xff]
      %v4123 = vld [vmem:[#allocation3 + $0x21] sm:$0xff]
      %v4124 = vld [vmem:[#allocation3 + $0x29] sm:$0xff]
      %v4125 = vld [vmem:[#allocation3 + $0x31] sm:$0xff]
      %v4126 = vld [vmem:[#allocation3 + $0x39] sm:$0xff]
      %v4127 = vld [vmem:[#allocation3 + $0x41] sm:$0xff]
      %v4128 = vld [vmem:[#allocation3 + $0x49] sm:$0xff]
      %v4129 = vld [vmem:[#allocation3 + $0x51] sm:$0xff]
      %v4130 = vld [vmem:[#allocation3 + $0x59] sm:$0xff]
      %v4131 = vld [vmem:[#allocation3 + $0x61] sm:$0xff]
      %v4132 = vld [vmem:[#allocation3 + $0x69] sm:$0xff]
      %v4133 = vld [vmem:[#allocation3 + $0x71] sm:$0xff]
      %v4134 = vld [vmem:[#allocation3 + $0x79] sm:$0xff]
      %v4135 = vld [vmem:[#allocation3 + $0x81] sm:$0xff]
      %v4136 = vld [vmem:[#allocation3 + $0x89] sm:$0xff]
      %v4137 = vld [vmem:[#allocation3 + $0x91] sm:$0xff]
      %v4138 = vld [vmem:[#allocation3 + $0x99] sm:$0xff]
      %v4139 = vld [vmem:[#allocation3 + $0xa1] sm:$0xff]
      %v4140 = vld [vmem:[#allocation3 + $0xa9] sm:$0xff]
      %v4141 = vld [vmem:[#allocation3 + $0xb1] sm:$0xff]
      %v4142 = vld [vmem:[#allocation3 + $0xb9] sm:$0xff]
      %v4143 = vld [vmem:[#allocation3 + $0xc1] sm:$0xff]
      %v4144 = vld [vmem:[#allocation3 + $0xc9] sm:$0xff]
      %v4145 = vld [vmem:[#allocation3 + $0xd1] sm:$0xff]
      %v4146 = vld [vmem:[#allocation3 + $0xd9] sm:$0xff]
      %v4147 = vld [vmem:[#allocation3 + $0xe1] sm:$0xff]
      %v4148 = vld [vmem:[#allocation3 + $0xe9] sm:$0xff]
      %v4149 = vld [vmem:[#allocation3 + $0xf1] sm:$0xff]
      %v4150 = vld [vmem:[#allocation3 + $0xf9] sm:$0xff]
      %v4151 = vld [vmem:[#allocation3 + $0x101] sm:$0xff]
      %v4152 = vld [vmem:[#allocation3 + $0x109] sm:$0xff]
      %v4153 = vld [vmem:[#allocation3 + $0x111] sm:$0xff]
      %v4154 = vld [vmem:[#allocation3 + $0x119] sm:$0xff]
      %v4155 = vld [vmem:[#allocation3 + $0x121] sm:$0xff]
      %v4156 = vld [vmem:[#allocation3 + $0x129] sm:$0xff]
      %v4157 = vld [vmem:[#allocation3 + $0x131] sm:$0xff]
      %4194 = vrot.lane.b32.xlu0 %v4122, 64
      %v4195 = vpop.permute.xlu0 %4194
      %4196 = vrot.lane.b32.xlu0 %v4123, 64
      %v4197 = vpop.permute.xlu0 %4196
      %4198 = vrot.lane.b32.xlu0 %v4124, 64
      %v4199 = vpop.permute.xlu0 %4198
      %4200 = vrot.lane.b32.xlu0 %v4125, 64
      %v4201 = vpop.permute.xlu0 %4200
      %4202 = vrot.lane.b32.xlu0 %v4126, 64
      %v4203 = vpop.permute.xlu0 %4202
      %4204 = vrot.lane.b32.xlu0 %v4127, 64
      %v4205 = vpop.permute.xlu0 %4204
      %4206 = vrot.lane.b32.xlu0 %v4128, 64
      %v4207 = vpop.permute.xlu0 %4206
      %4208 = vrot.lane.b32.xlu0 %v4129, 64
      %v4209 = vpop.permute.xlu0 %4208
      %4210 = vrot.lane.b32.xlu0 %v4130, 64
      %v4211 = vpop.permute.xlu0 %4210
      %4212 = vrot.lane.b32.xlu0 %v4131, 64
      %v4213 = vpop.permute.xlu0 %4212
      %4214 = vrot.lane.b32.xlu0 %v4132, 64
      %v4215 = vpop.permute.xlu0 %4214
      %4216 = vrot.lane.b32.xlu0 %v4133, 64
      %v4217 = vpop.permute.xlu0 %4216
      %4218 = vrot.lane.b32.xlu0 %v4134, 64
      %v4219 = vpop.permute.xlu0 %4218
      %4220 = vrot.lane.b32.xlu0 %v4135, 64
      %v4221 = vpop.permute.xlu0 %4220
      %4222 = vrot.lane.b32.xlu0 %v4136, 64
      %v4223 = vpop.permute.xlu0 %4222
      %4224 = vrot.lane.b32.xlu0 %v4137, 64
      %v4225 = vpop.permute.xlu0 %4224
      %4226 = vrot.lane.b32.xlu0 %v4138, 64
      %v4227 = vpop.permute.xlu0 %4226
      %4228 = vrot.lane.b32.xlu0 %v4139, 64
      %v4229 = vpop.permute.xlu0 %4228
      %4230 = vrot.lane.b32.xlu0 %v4140, 64
      %v4231 = vpop.permute.xlu0 %4230
      %4232 = vrot.lane.b32.xlu0 %v4141, 64
      %v4233 = vpop.permute.xlu0 %4232
      %4234 = vrot.lane.b32.xlu0 %v4142, 64
      %v4235 = vpop.permute.xlu0 %4234
      %4236 = vrot.lane.b32.xlu0 %v4143, 64
      %v4237 = vpop.permute.xlu0 %4236
      %4238 = vrot.lane.b32.xlu0 %v4144, 64
      %v4239 = vpop.permute.xlu0 %4238
      %4240 = vrot.lane.b32.xlu0 %v4145, 64
      %v4241 = vpop.permute.xlu0 %4240
      %4242 = vrot.lane.b32.xlu0 %v4146, 64
      %v4243 = vpop.permute.xlu0 %4242
      %4244 = vrot.lane.b32.xlu0 %v4147, 64
      %v4245 = vpop.permute.xlu0 %4244
      %4246 = vrot.lane.b32.xlu0 %v4148, 64
      %v4247 = vpop.permute.xlu0 %4246
      %4248 = vrot.lane.b32.xlu0 %v4149, 64
      %v4249 = vpop.permute.xlu0 %4248
      %4250 = vrot.lane.b32.xlu0 %v4150, 64
      %v4251 = vpop.permute.xlu0 %4250
      %4252 = vrot.lane.b32.xlu0 %v4151, 64
      %v4253 = vpop.permute.xlu0 %4252
      %4254 = vrot.lane.b32.xlu0 %v4152, 64
      %v4255 = vpop.permute.xlu0 %4254
      %4256 = vrot.lane.b32.xlu0 %v4153, 64
      %v4257 = vpop.permute.xlu0 %4256
      %4258 = vrot.lane.b32.xlu0 %v4154, 64
      %v4259 = vpop.permute.xlu0 %4258
      %4260 = vrot.lane.b32.xlu0 %v4155, 64
      %v4261 = vpop.permute.xlu0 %4260
      %4262 = vrot.lane.b32.xlu0 %v4156, 64
      %v4263 = vpop.permute.xlu0 %4262
      %4264 = vrot.lane.b32.xlu0 %v4157, 64
      %v4265 = vpop.permute.xlu0 %4264
      %4302 = vst.msk [vmem:[#allocation4 + $0x10] sm:$0xff] %vm373, %v4195
      %4303 = vst.msk [vmem:[#allocation4 + $0x38] sm:$0xff] %vm373, %v4197
      %4304 = vst.msk [vmem:[#allocation4 + $0x60] sm:$0xff] %vm373, %v4199
      %4305 = vst.msk [vmem:[#allocation4 + $0x88] sm:$0xff] %vm373, %v4201
      %4306 = vst.msk [vmem:[#allocation4 + $0xb0] sm:$0xff] %vm373, %v4203
      %4307 = vst.msk [vmem:[#allocation4 + $0xd8] sm:$0xff] %vm373, %v4205
      %4308 = vst.msk [vmem:[#allocation4 + $0x100] sm:$0xff] %vm373, %v4207
      %4309 = vst.msk [vmem:[#allocation4 + $0x128] sm:$0xff] %vm373, %v4209
      %4310 = vst.msk [vmem:[#allocation4 + $0x150] sm:$0xff] %vm373, %v4211
      %4311 = vst.msk [vmem:[#allocation4 + $0x178] sm:$0xff] %vm373, %v4213
      %4312 = vst.msk [vmem:[#allocation4 + $0x1a0] sm:$0xff] %vm373, %v4215
      %4313 = vst.msk [vmem:[#allocation4 + $0x1c8] sm:$0xff] %vm373, %v4217
      %4314 = vst.msk [vmem:[#allocation4 + $0x1f0] sm:$0xff] %vm373, %v4219
      %4315 = vst.msk [vmem:[#allocation4 + $0x218] sm:$0xff] %vm373, %v4221
      %4316 = vst.msk [vmem:[#allocation4 + $0x240] sm:$0xff] %vm373, %v4223
      %4317 = vst.msk [vmem:[#allocation4 + $0x268] sm:$0xff] %vm373, %v4225
      %4318 = vst.msk [vmem:[#allocation4 + $0x290] sm:$0xff] %vm373, %v4227
      %4319 = vst.msk [vmem:[#allocation4 + $0x2b8] sm:$0xff] %vm373, %v4229
      %4320 = vst.msk [vmem:[#allocation4 + $0x2e0] sm:$0xff] %vm373, %v4231
      %4321 = vst.msk [vmem:[#allocation4 + $0x308] sm:$0xff] %vm373, %v4233
      %4322 = vst.msk [vmem:[#allocation4 + $0x330] sm:$0xff] %vm373, %v4235
      %4323 = vst.msk [vmem:[#allocation4 + $0x358] sm:$0xff] %vm373, %v4237
      %4324 = vst.msk [vmem:[#allocation4 + $0x380] sm:$0xff] %vm373, %v4239
      %4325 = vst.msk [vmem:[#allocation4 + $0x3a8] sm:$0xff] %vm373, %v4241
      %4326 = vst.msk [vmem:[#allocation4 + $0x3d0] sm:$0xff] %vm373, %v4243
      %4327 = vst.msk [vmem:[#allocation4 + $0x3f8] sm:$0xff] %vm373, %v4245
      %4328 = vst.msk [vmem:[#allocation4 + $0x420] sm:$0xff] %vm373, %v4247
      %4329 = vst.msk [vmem:[#allocation4 + $0x448] sm:$0xff] %vm373, %v4249
      %4330 = vst.msk [vmem:[#allocation4 + $0x470] sm:$0xff] %vm373, %v4251
      %4331 = vst.msk [vmem:[#allocation4 + $0x498] sm:$0xff] %vm373, %v4253
      %4332 = vst.msk [vmem:[#allocation4 + $0x4c0] sm:$0xff] %vm373, %v4255
      %4333 = vst.msk [vmem:[#allocation4 + $0x4e8] sm:$0xff] %vm373, %v4257
      %4334 = vst.msk [vmem:[#allocation4 + $0x510] sm:$0xff] %vm373, %v4259
      %4335 = vst.msk [vmem:[#allocation4 + $0x538] sm:$0xff] %vm373, %v4261
      %4336 = vst.msk [vmem:[#allocation4 + $0x560] sm:$0xff] %vm373, %v4263
      %4337 = vst.msk [vmem:[#allocation4 + $0x588] sm:$0xff] %vm373, %v4265
      %v4338 = vld [vmem:[#allocation3 + $0x29] sm:$0xff]
      %v4339 = vld [vmem:[#allocation3 + $0x31] sm:$0xff]
      %v4340 = vld [vmem:[#allocation3 + $0x39] sm:$0xff]
      %v4341 = vld [vmem:[#allocation3 + $0x41] sm:$0xff]
      %v4342 = vld [vmem:[#allocation3 + $0x49] sm:$0xff]
      %v4343 = vld [vmem:[#allocation3 + $0x51] sm:$0xff]
      %v4344 = vld [vmem:[#allocation3 + $0x59] sm:$0xff]
      %v4345 = vld [vmem:[#allocation3 + $0x61] sm:$0xff]
      %v4346 = vld [vmem:[#allocation3 + $0x69] sm:$0xff]
      %v4347 = vld [vmem:[#allocation3 + $0x71] sm:$0xff]
      %v4348 = vld [vmem:[#allocation3 + $0x79] sm:$0xff]
      %v4349 = vld [vmem:[#allocation3 + $0x81] sm:$0xff]
      %v4350 = vld [vmem:[#allocation3 + $0x89] sm:$0xff]
      %v4351 = vld [vmem:[#allocation3 + $0x91] sm:$0xff]
      %v4352 = vld [vmem:[#allocation3 + $0x99] sm:$0xff]
      %v4353 = vld [vmem:[#allocation3 + $0xa1] sm:$0xff]
      %v4354 = vld [vmem:[#allocation3 + $0xa9] sm:$0xff]
      %v4355 = vld [vmem:[#allocation3 + $0xb1] sm:$0xff]
      %v4356 = vld [vmem:[#allocation3 + $0xb9] sm:$0xff]
      %v4357 = vld [vmem:[#allocation3 + $0xc1] sm:$0xff]
      %v4358 = vld [vmem:[#allocation3 + $0xc9] sm:$0xff]
      %v4359 = vld [vmem:[#allocation3 + $0xd1] sm:$0xff]
      %v4360 = vld [vmem:[#allocation3 + $0xd9] sm:$0xff]
      %v4361 = vld [vmem:[#allocation3 + $0xe1] sm:$0xff]
      %v4362 = vld [vmem:[#allocation3 + $0xe9] sm:$0xff]
      %v4363 = vld [vmem:[#allocation3 + $0xf1] sm:$0xff]
      %v4364 = vld [vmem:[#allocation3 + $0xf9] sm:$0xff]
      %v4365 = vld [vmem:[#allocation3 + $0x101] sm:$0xff]
      %v4366 = vld [vmem:[#allocation3 + $0x109] sm:$0xff]
      %v4367 = vld [vmem:[#allocation3 + $0x111] sm:$0xff]
      %v4368 = vld [vmem:[#allocation3 + $0x119] sm:$0xff]
      %v4369 = vld [vmem:[#allocation3 + $0x121] sm:$0xff]
      %v4370 = vld [vmem:[#allocation3 + $0x129] sm:$0xff]
      %v4371 = vld [vmem:[#allocation3 + $0x131] sm:$0xff]
      %v4372 = vld [vmem:[#allocation3 + $0x139] sm:$0xff]
      %v4373 = vld [vmem:[#allocation3 + $0x141] sm:$0xff]
      %4374 = vst.msk [vmem:[#allocation4 + $0x18] sm:$0xff] %vm360, %v4338
      %4375 = vst.msk [vmem:[#allocation4 + $0x40] sm:$0xff] %vm360, %v4339
      %4376 = vst.msk [vmem:[#allocation4 + $0x68] sm:$0xff] %vm360, %v4340
      %4377 = vst.msk [vmem:[#allocation4 + $0x90] sm:$0xff] %vm360, %v4341
      %4378 = vst.msk [vmem:[#allocation4 + $0xb8] sm:$0xff] %vm360, %v4342
      %4379 = vst.msk [vmem:[#allocation4 + $0xe0] sm:$0xff] %vm360, %v4343
      %4380 = vst.msk [vmem:[#allocation4 + $0x108] sm:$0xff] %vm360, %v4344
      %4381 = vst.msk [vmem:[#allocation4 + $0x130] sm:$0xff] %vm360, %v4345
      %4382 = vst.msk [vmem:[#allocation4 + $0x158] sm:$0xff] %vm360, %v4346
      %4383 = vst.msk [vmem:[#allocation4 + $0x180] sm:$0xff] %vm360, %v4347
      %4384 = vst.msk [vmem:[#allocation4 + $0x1a8] sm:$0xff] %vm360, %v4348
      %4385 = vst.msk [vmem:[#allocation4 + $0x1d0] sm:$0xff] %vm360, %v4349
      %4386 = vst.msk [vmem:[#allocation4 + $0x1f8] sm:$0xff] %vm360, %v4350
      %4387 = vst.msk [vmem:[#allocation4 + $0x220] sm:$0xff] %vm360, %v4351
      %4388 = vst.msk [vmem:[#allocation4 + $0x248] sm:$0xff] %vm360, %v4352
      %4389 = vst.msk [vmem:[#allocation4 + $0x270] sm:$0xff] %vm360, %v4353
      %4390 = vst.msk [vmem:[#allocation4 + $0x298] sm:$0xff] %vm360, %v4354
      %4391 = vst.msk [vmem:[#allocation4 + $0x2c0] sm:$0xff] %vm360, %v4355
      %4392 = vst.msk [vmem:[#allocation4 + $0x2e8] sm:$0xff] %vm360, %v4356
      %4393 = vst.msk [vmem:[#allocation4 + $0x310] sm:$0xff] %vm360, %v4357
      %4394 = vst.msk [vmem:[#allocation4 + $0x338] sm:$0xff] %vm360, %v4358
      %4395 = vst.msk [vmem:[#allocation4 + $0x360] sm:$0xff] %vm360, %v4359
      %4396 = vst.msk [vmem:[#allocation4 + $0x388] sm:$0xff] %vm360, %v4360
      %4397 = vst.msk [vmem:[#allocation4 + $0x3b0] sm:$0xff] %vm360, %v4361
      %4398 = vst.msk [vmem:[#allocation4 + $0x3d8] sm:$0xff] %vm360, %v4362
      %4399 = vst.msk [vmem:[#allocation4 + $0x400] sm:$0xff] %vm360, %v4363
      %4400 = vst.msk [vmem:[#allocation4 + $0x428] sm:$0xff] %vm360, %v4364
      %4401 = vst.msk [vmem:[#allocation4 + $0x450] sm:$0xff] %vm360, %v4365
      %4402 = vst.msk [vmem:[#allocation4 + $0x478] sm:$0xff] %vm360, %v4366
      %4403 = vst.msk [vmem:[#allocation4 + $0x4a0] sm:$0xff] %vm360, %v4367
      %4404 = vst.msk [vmem:[#allocation4 + $0x4c8] sm:$0xff] %vm360, %v4368
      %4405 = vst.msk [vmem:[#allocation4 + $0x4f0] sm:$0xff] %vm360, %v4369
      %4406 = vst.msk [vmem:[#allocation4 + $0x518] sm:$0xff] %vm360, %v4370
      %4407 = vst.msk [vmem:[#allocation4 + $0x540] sm:$0xff] %vm360, %v4371
      %4408 = vst.msk [vmem:[#allocation4 + $0x568] sm:$0xff] %vm360, %v4372
      %4409 = vst.msk [vmem:[#allocation4 + $0x590] sm:$0xff] %vm360, %v4373
      %v4410 = vld [vmem:[#allocation3 + $0x2a] sm:$0xff]
      %v4411 = vld [vmem:[#allocation3 + $0x32] sm:$0xff]
      %v4412 = vld [vmem:[#allocation3 + $0x3a] sm:$0xff]
      %v4413 = vld [vmem:[#allocation3 + $0x42] sm:$0xff]
      %v4414 = vld [vmem:[#allocation3 + $0x4a] sm:$0xff]
      %v4415 = vld [vmem:[#allocation3 + $0x52] sm:$0xff]
      %v4416 = vld [vmem:[#allocation3 + $0x5a] sm:$0xff]
      %v4417 = vld [vmem:[#allocation3 + $0x62] sm:$0xff]
      %v4418 = vld [vmem:[#allocation3 + $0x6a] sm:$0xff]
      %v4419 = vld [vmem:[#allocation3 + $0x72] sm:$0xff]
      %v4420 = vld [vmem:[#allocation3 + $0x7a] sm:$0xff]
      %v4421 = vld [vmem:[#allocation3 + $0x82] sm:$0xff]
      %v4422 = vld [vmem:[#allocation3 + $0x8a] sm:$0xff]
      %v4423 = vld [vmem:[#allocation3 + $0x92] sm:$0xff]
      %v4424 = vld [vmem:[#allocation3 + $0x9a] sm:$0xff]
      %v4425 = vld [vmem:[#allocation3 + $0xa2] sm:$0xff]
      %v4426 = vld [vmem:[#allocation3 + $0xaa] sm:$0xff]
      %v4427 = vld [vmem:[#allocation3 + $0xb2] sm:$0xff]
      %v4428 = vld [vmem:[#allocation3 + $0xba] sm:$0xff]
      %v4429 = vld [vmem:[#allocation3 + $0xc2] sm:$0xff]
      %v4430 = vld [vmem:[#allocation3 + $0xca] sm:$0xff]
      %v4431 = vld [vmem:[#allocation3 + $0xd2] sm:$0xff]
      %v4432 = vld [vmem:[#allocation3 + $0xda] sm:$0xff]
      %v4433 = vld [vmem:[#allocation3 + $0xe2] sm:$0xff]
      %v4434 = vld [vmem:[#allocation3 + $0xea] sm:$0xff]
      %v4435 = vld [vmem:[#allocation3 + $0xf2] sm:$0xff]
      %v4436 = vld [vmem:[#allocation3 + $0xfa] sm:$0xff]
      %v4437 = vld [vmem:[#allocation3 + $0x102] sm:$0xff]
      %v4438 = vld [vmem:[#allocation3 + $0x10a] sm:$0xff]
      %v4439 = vld [vmem:[#allocation3 + $0x112] sm:$0xff]
      %v4440 = vld [vmem:[#allocation3 + $0x11a] sm:$0xff]
      %v4441 = vld [vmem:[#allocation3 + $0x122] sm:$0xff]
      %v4442 = vld [vmem:[#allocation3 + $0x12a] sm:$0xff]
      %v4443 = vld [vmem:[#allocation3 + $0x132] sm:$0xff]
      %v4444 = vld [vmem:[#allocation3 + $0x13a] sm:$0xff]
      %v4445 = vld [vmem:[#allocation3 + $0x142] sm:$0xff]
      %4482 = vrot.lane.b32.xlu0 %v4410, 64
      %v4483 = vpop.permute.xlu0 %4482
      %4484 = vrot.lane.b32.xlu0 %v4411, 64
      %v4485 = vpop.permute.xlu0 %4484
      %4486 = vrot.lane.b32.xlu0 %v4412, 64
      %v4487 = vpop.permute.xlu0 %4486
      %4488 = vrot.lane.b32.xlu0 %v4413, 64
      %v4489 = vpop.permute.xlu0 %4488
      %4490 = vrot.lane.b32.xlu0 %v4414, 64
      %v4491 = vpop.permute.xlu0 %4490
      %4492 = vrot.lane.b32.xlu0 %v4415, 64
      %v4493 = vpop.permute.xlu0 %4492
      %4494 = vrot.lane.b32.xlu0 %v4416, 64
      %v4495 = vpop.permute.xlu0 %4494
      %4496 = vrot.lane.b32.xlu0 %v4417, 64
      %v4497 = vpop.permute.xlu0 %4496
      %4498 = vrot.lane.b32.xlu0 %v4418, 64
      %v4499 = vpop.permute.xlu0 %4498
      %4500 = vrot.lane.b32.xlu0 %v4419, 64
      %v4501 = vpop.permute.xlu0 %4500
      %4502 = vrot.lane.b32.xlu0 %v4420, 64
      %v4503 = vpop.permute.xlu0 %4502
      %4504 = vrot.lane.b32.xlu0 %v4421, 64
      %v4505 = vpop.permute.xlu0 %4504
      %4506 = vrot.lane.b32.xlu0 %v4422, 64
      %v4507 = vpop.permute.xlu0 %4506
      %4508 = vrot.lane.b32.xlu0 %v4423, 64
      %v4509 = vpop.permute.xlu0 %4508
      %4510 = vrot.lane.b32.xlu0 %v4424, 64
      %v4511 = vpop.permute.xlu0 %4510
      %4512 = vrot.lane.b32.xlu0 %v4425, 64
      %v4513 = vpop.permute.xlu0 %4512
      %4514 = vrot.lane.b32.xlu0 %v4426, 64
      %v4515 = vpop.permute.xlu0 %4514
      %4516 = vrot.lane.b32.xlu0 %v4427, 64
      %v4517 = vpop.permute.xlu0 %4516
      %4518 = vrot.lane.b32.xlu0 %v4428, 64
      %v4519 = vpop.permute.xlu0 %4518
      %4520 = vrot.lane.b32.xlu0 %v4429, 64
      %v4521 = vpop.permute.xlu0 %4520
      %4522 = vrot.lane.b32.xlu0 %v4430, 64
      %v4523 = vpop.permute.xlu0 %4522
      %4524 = vrot.lane.b32.xlu0 %v4431, 64
      %v4525 = vpop.permute.xlu0 %4524
      %4526 = vrot.lane.b32.xlu0 %v4432, 64
      %v4527 = vpop.permute.xlu0 %4526
      %4528 = vrot.lane.b32.xlu0 %v4433, 64
      %v4529 = vpop.permute.xlu0 %4528
      %4530 = vrot.lane.b32.xlu0 %v4434, 64
      %v4531 = vpop.permute.xlu0 %4530
      %4532 = vrot.lane.b32.xlu0 %v4435, 64
      %v4533 = vpop.permute.xlu0 %4532
      %4534 = vrot.lane.b32.xlu0 %v4436, 64
      %v4535 = vpop.permute.xlu0 %4534
      %4536 = vrot.lane.b32.xlu0 %v4437, 64
      %v4537 = vpop.permute.xlu0 %4536
      %4538 = vrot.lane.b32.xlu0 %v4438, 64
      %v4539 = vpop.permute.xlu0 %4538
      %4540 = vrot.lane.b32.xlu0 %v4439, 64
      %v4541 = vpop.permute.xlu0 %4540
      %4542 = vrot.lane.b32.xlu0 %v4440, 64
      %v4543 = vpop.permute.xlu0 %4542
      %4544 = vrot.lane.b32.xlu0 %v4441, 64
      %v4545 = vpop.permute.xlu0 %4544
      %4546 = vrot.lane.b32.xlu0 %v4442, 64
      %v4547 = vpop.permute.xlu0 %4546
      %4548 = vrot.lane.b32.xlu0 %v4443, 64
      %v4549 = vpop.permute.xlu0 %4548
      %4550 = vrot.lane.b32.xlu0 %v4444, 64
      %v4551 = vpop.permute.xlu0 %4550
      %4552 = vrot.lane.b32.xlu0 %v4445, 64
      %v4553 = vpop.permute.xlu0 %4552
      %4590 = vst.msk [vmem:[#allocation4 + $0x18] sm:$0xff] %vm373, %v4483
      %4591 = vst.msk [vmem:[#allocation4 + $0x40] sm:$0xff] %vm373, %v4485
      %4592 = vst.msk [vmem:[#allocation4 + $0x68] sm:$0xff] %vm373, %v4487
      %4593 = vst.msk [vmem:[#allocation4 + $0x90] sm:$0xff] %vm373, %v4489
      %4594 = vst.msk [vmem:[#allocation4 + $0xb8] sm:$0xff] %vm373, %v4491
      %4595 = vst.msk [vmem:[#allocation4 + $0xe0] sm:$0xff] %vm373, %v4493
      %4596 = vst.msk [vmem:[#allocation4 + $0x108] sm:$0xff] %vm373, %v4495
      %4597 = vst.msk [vmem:[#allocation4 + $0x130] sm:$0xff] %vm373, %v4497
      %4598 = vst.msk [vmem:[#allocation4 + $0x158] sm:$0xff] %vm373, %v4499
      %4599 = vst.msk [vmem:[#allocation4 + $0x180] sm:$0xff] %vm373, %v4501
      %4600 = vst.msk [vmem:[#allocation4 + $0x1a8] sm:$0xff] %vm373, %v4503
      %4601 = vst.msk [vmem:[#allocation4 + $0x1d0] sm:$0xff] %vm373, %v4505
      %4602 = vst.msk [vmem:[#allocation4 + $0x1f8] sm:$0xff] %vm373, %v4507
      %4603 = vst.msk [vmem:[#allocation4 + $0x220] sm:$0xff] %vm373, %v4509
      %4604 = vst.msk [vmem:[#allocation4 + $0x248] sm:$0xff] %vm373, %v4511
      %4605 = vst.msk [vmem:[#allocation4 + $0x270] sm:$0xff] %vm373, %v4513
      %4606 = vst.msk [vmem:[#allocation4 + $0x298] sm:$0xff] %vm373, %v4515
      %4607 = vst.msk [vmem:[#allocation4 + $0x2c0] sm:$0xff] %vm373, %v4517
      %4608 = vst.msk [vmem:[#allocation4 + $0x2e8] sm:$0xff] %vm373, %v4519
      %4609 = vst.msk [vmem:[#allocation4 + $0x310] sm:$0xff] %vm373, %v4521
      %4610 = vst.msk [vmem:[#allocation4 + $0x338] sm:$0xff] %vm373, %v4523
      %4611 = vst.msk [vmem:[#allocation4 + $0x360] sm:$0xff] %vm373, %v4525
      %4612 = vst.msk [vmem:[#allocation4 + $0x388] sm:$0xff] %vm373, %v4527
      %4613 = vst.msk [vmem:[#allocation4 + $0x3b0] sm:$0xff] %vm373, %v4529
      %4614 = vst.msk [vmem:[#allocation4 + $0x3d8] sm:$0xff] %vm373, %v4531
      %4615 = vst.msk [vmem:[#allocation4 + $0x400] sm:$0xff] %vm373, %v4533
      %4616 = vst.msk [vmem:[#allocation4 + $0x428] sm:$0xff] %vm373, %v4535
      %4617 = vst.msk [vmem:[#allocation4 + $0x450] sm:$0xff] %vm373, %v4537
      %4618 = vst.msk [vmem:[#allocation4 + $0x478] sm:$0xff] %vm373, %v4539
      %4619 = vst.msk [vmem:[#allocation4 + $0x4a0] sm:$0xff] %vm373, %v4541
      %4620 = vst.msk [vmem:[#allocation4 + $0x4c8] sm:$0xff] %vm373, %v4543
      %4621 = vst.msk [vmem:[#allocation4 + $0x4f0] sm:$0xff] %vm373, %v4545
      %4622 = vst.msk [vmem:[#allocation4 + $0x518] sm:$0xff] %vm373, %v4547
      %4623 = vst.msk [vmem:[#allocation4 + $0x540] sm:$0xff] %vm373, %v4549
      %4624 = vst.msk [vmem:[#allocation4 + $0x568] sm:$0xff] %vm373, %v4551
      %4625 = vst.msk [vmem:[#allocation4 + $0x590] sm:$0xff] %vm373, %v4553
      %v4626 = vld [vmem:[#allocation3 + $0x2b] sm:$0xff]
      %v4627 = vld [vmem:[#allocation3 + $0x33] sm:$0xff]
      %v4628 = vld [vmem:[#allocation3 + $0x3b] sm:$0xff]
      %v4629 = vld [vmem:[#allocation3 + $0x43] sm:$0xff]
      %v4630 = vld [vmem:[#allocation3 + $0x4b] sm:$0xff]
      %v4631 = vld [vmem:[#allocation3 + $0x53] sm:$0xff]
      %v4632 = vld [vmem:[#allocation3 + $0x5b] sm:$0xff]
      %v4633 = vld [vmem:[#allocation3 + $0x63] sm:$0xff]
      %v4634 = vld [vmem:[#allocation3 + $0x6b] sm:$0xff]
      %v4635 = vld [vmem:[#allocation3 + $0x73] sm:$0xff]
      %v4636 = vld [vmem:[#allocation3 + $0x7b] sm:$0xff]
      %v4637 = vld [vmem:[#allocation3 + $0x83] sm:$0xff]
      %v4638 = vld [vmem:[#allocation3 + $0x8b] sm:$0xff]
      %v4639 = vld [vmem:[#allocation3 + $0x93] sm:$0xff]
      %v4640 = vld [vmem:[#allocation3 + $0x9b] sm:$0xff]
      %v4641 = vld [vmem:[#allocation3 + $0xa3] sm:$0xff]
      %v4642 = vld [vmem:[#allocation3 + $0xab] sm:$0xff]
      %v4643 = vld [vmem:[#allocation3 + $0xb3] sm:$0xff]
      %v4644 = vld [vmem:[#allocation3 + $0xbb] sm:$0xff]
      %v4645 = vld [vmem:[#allocation3 + $0xc3] sm:$0xff]
      %v4646 = vld [vmem:[#allocation3 + $0xcb] sm:$0xff]
      %v4647 = vld [vmem:[#allocation3 + $0xd3] sm:$0xff]
      %v4648 = vld [vmem:[#allocation3 + $0xdb] sm:$0xff]
      %v4649 = vld [vmem:[#allocation3 + $0xe3] sm:$0xff]
      %v4650 = vld [vmem:[#allocation3 + $0xeb] sm:$0xff]
      %v4651 = vld [vmem:[#allocation3 + $0xf3] sm:$0xff]
      %v4652 = vld [vmem:[#allocation3 + $0xfb] sm:$0xff]
      %v4653 = vld [vmem:[#allocation3 + $0x103] sm:$0xff]
      %v4654 = vld [vmem:[#allocation3 + $0x10b] sm:$0xff]
      %v4655 = vld [vmem:[#allocation3 + $0x113] sm:$0xff]
      %v4656 = vld [vmem:[#allocation3 + $0x11b] sm:$0xff]
      %v4657 = vld [vmem:[#allocation3 + $0x123] sm:$0xff]
      %v4658 = vld [vmem:[#allocation3 + $0x12b] sm:$0xff]
      %v4659 = vld [vmem:[#allocation3 + $0x133] sm:$0xff]
      %v4660 = vld [vmem:[#allocation3 + $0x13b] sm:$0xff]
      %v4661 = vld [vmem:[#allocation3 + $0x143] sm:$0xff]
      %4662 = vst.msk [vmem:[#allocation4 + $0x20] sm:$0xff] %vm360, %v4626
      %4663 = vst.msk [vmem:[#allocation4 + $0x48] sm:$0xff] %vm360, %v4627
      %4664 = vst.msk [vmem:[#allocation4 + $0x70] sm:$0xff] %vm360, %v4628
      %4665 = vst.msk [vmem:[#allocation4 + $0x98] sm:$0xff] %vm360, %v4629
      %4666 = vst.msk [vmem:[#allocation4 + $0xc0] sm:$0xff] %vm360, %v4630
      %4667 = vst.msk [vmem:[#allocation4 + $0xe8] sm:$0xff] %vm360, %v4631
      %4668 = vst.msk [vmem:[#allocation4 + $0x110] sm:$0xff] %vm360, %v4632
      %4669 = vst.msk [vmem:[#allocation4 + $0x138] sm:$0xff] %vm360, %v4633
      %4670 = vst.msk [vmem:[#allocation4 + $0x160] sm:$0xff] %vm360, %v4634
      %4671 = vst.msk [vmem:[#allocation4 + $0x188] sm:$0xff] %vm360, %v4635
      %4672 = vst.msk [vmem:[#allocation4 + $0x1b0] sm:$0xff] %vm360, %v4636
      %4673 = vst.msk [vmem:[#allocation4 + $0x1d8] sm:$0xff] %vm360, %v4637
      %4674 = vst.msk [vmem:[#allocation4 + $0x200] sm:$0xff] %vm360, %v4638
      %4675 = vst.msk [vmem:[#allocation4 + $0x228] sm:$0xff] %vm360, %v4639
      %4676 = vst.msk [vmem:[#allocation4 + $0x250] sm:$0xff] %vm360, %v4640
      %4677 = vst.msk [vmem:[#allocation4 + $0x278] sm:$0xff] %vm360, %v4641
      %4678 = vst.msk [vmem:[#allocation4 + $0x2a0] sm:$0xff] %vm360, %v4642
      %4679 = vst.msk [vmem:[#allocation4 + $0x2c8] sm:$0xff] %vm360, %v4643
      %4680 = vst.msk [vmem:[#allocation4 + $0x2f0] sm:$0xff] %vm360, %v4644
      %4681 = vst.msk [vmem:[#allocation4 + $0x318] sm:$0xff] %vm360, %v4645
      %4682 = vst.msk [vmem:[#allocation4 + $0x340] sm:$0xff] %vm360, %v4646
      %4683 = vst.msk [vmem:[#allocation4 + $0x368] sm:$0xff] %vm360, %v4647
      %4684 = vst.msk [vmem:[#allocation4 + $0x390] sm:$0xff] %vm360, %v4648
      %4685 = vst.msk [vmem:[#allocation4 + $0x3b8] sm:$0xff] %vm360, %v4649
      %4686 = vst.msk [vmem:[#allocation4 + $0x3e0] sm:$0xff] %vm360, %v4650
      %4687 = vst.msk [vmem:[#allocation4 + $0x408] sm:$0xff] %vm360, %v4651
      %4688 = vst.msk [vmem:[#allocation4 + $0x430] sm:$0xff] %vm360, %v4652
      %4689 = vst.msk [vmem:[#allocation4 + $0x458] sm:$0xff] %vm360, %v4653
      %4690 = vst.msk [vmem:[#allocation4 + $0x480] sm:$0xff] %vm360, %v4654
      %4691 = vst.msk [vmem:[#allocation4 + $0x4a8] sm:$0xff] %vm360, %v4655
      %4692 = vst.msk [vmem:[#allocation4 + $0x4d0] sm:$0xff] %vm360, %v4656
      %4693 = vst.msk [vmem:[#allocation4 + $0x4f8] sm:$0xff] %vm360, %v4657
      %4694 = vst.msk [vmem:[#allocation4 + $0x520] sm:$0xff] %vm360, %v4658
      %4695 = vst.msk [vmem:[#allocation4 + $0x548] sm:$0xff] %vm360, %v4659
      %4696 = vst.msk [vmem:[#allocation4 + $0x570] sm:$0xff] %vm360, %v4660
      %4697 = vst.msk [vmem:[#allocation4 + $0x598] sm:$0xff] %vm360, %v4661
      %v4698 = vld [vmem:[#allocation4] sm:$0xff]
      %v4699 = vld [vmem:[#allocation4 + $0x8] sm:$0xff]
      %v4700 = vld [vmem:[#allocation4 + $0x10] sm:$0xff]
      %v4701 = vld [vmem:[#allocation4 + $0x18] sm:$0xff]
      %v4702 = vld [vmem:[#allocation4 + $0x20] sm:$0xff]
      %v4703 = vld [vmem:[#allocation4 + $0x28] sm:$0xff]
      %v4704 = vld [vmem:[#allocation4 + $0x30] sm:$0xff]
      %v4705 = vld [vmem:[#allocation4 + $0x38] sm:$0xff]
      %v4706 = vld [vmem:[#allocation4 + $0x40] sm:$0xff]
      %v4707 = vld [vmem:[#allocation4 + $0x48] sm:$0xff]
      %v4708 = vld [vmem:[#allocation4 + $0x50] sm:$0xff]
      %v4709 = vld [vmem:[#allocation4 + $0x58] sm:$0xff]
      %v4710 = vld [vmem:[#allocation4 + $0x60] sm:$0xff]
      %v4711 = vld [vmem:[#allocation4 + $0x68] sm:$0xff]
      %v4712 = vld [vmem:[#allocation4 + $0x70] sm:$0xff]
      %v4713 = vld [vmem:[#allocation4 + $0x78] sm:$0xff]
      %v4714 = vld [vmem:[#allocation4 + $0x80] sm:$0xff]
      %v4715 = vld [vmem:[#allocation4 + $0x88] sm:$0xff]
      %v4716 = vld [vmem:[#allocation4 + $0x90] sm:$0xff]
      %v4717 = vld [vmem:[#allocation4 + $0x98] sm:$0xff]
      %v4718 = vld [vmem:[#allocation4 + $0xa0] sm:$0xff]
      %v4719 = vld [vmem:[#allocation4 + $0xa8] sm:$0xff]
      %v4720 = vld [vmem:[#allocation4 + $0xb0] sm:$0xff]
      %v4721 = vld [vmem:[#allocation4 + $0xb8] sm:$0xff]
      %v4722 = vld [vmem:[#allocation4 + $0xc0] sm:$0xff]
      %v4723 = vld [vmem:[#allocation4 + $0xc8] sm:$0xff]
      %v4724 = vld [vmem:[#allocation4 + $0xd0] sm:$0xff]
      %v4725 = vld [vmem:[#allocation4 + $0xd8] sm:$0xff]
      %v4726 = vld [vmem:[#allocation4 + $0xe0] sm:$0xff]
      %v4727 = vld [vmem:[#allocation4 + $0xe8] sm:$0xff]
      %v4728 = vld [vmem:[#allocation4 + $0xf0] sm:$0xff]
      %v4729 = vld [vmem:[#allocation4 + $0xf8] sm:$0xff]
      %v4730 = vld [vmem:[#allocation4 + $0x100] sm:$0xff]
      %v4731 = vld [vmem:[#allocation4 + $0x108] sm:$0xff]
      %v4732 = vld [vmem:[#allocation4 + $0x110] sm:$0xff]
      %v4733 = vld [vmem:[#allocation4 + $0x118] sm:$0xff]
      %v4734 = vld [vmem:[#allocation4 + $0x120] sm:$0xff]
      %v4735 = vld [vmem:[#allocation4 + $0x128] sm:$0xff]
      %v4736 = vld [vmem:[#allocation4 + $0x130] sm:$0xff]
      %v4737 = vld [vmem:[#allocation4 + $0x138] sm:$0xff]
      %v4738 = vld [vmem:[#allocation4 + $0x140] sm:$0xff]
      %v4739 = vld [vmem:[#allocation4 + $0x148] sm:$0xff]
      %v4740 = vld [vmem:[#allocation4 + $0x150] sm:$0xff]
      %v4741 = vld [vmem:[#allocation4 + $0x158] sm:$0xff]
      %v4742 = vld [vmem:[#allocation4 + $0x160] sm:$0xff]
      %v4743 = vld [vmem:[#allocation4 + $0x168] sm:$0xff]
      %v4744 = vld [vmem:[#allocation4 + $0x170] sm:$0xff]
      %v4745 = vld [vmem:[#allocation4 + $0x178] sm:$0xff]
      %v4746 = vld [vmem:[#allocation4 + $0x180] sm:$0xff]
      %v4747 = vld [vmem:[#allocation4 + $0x188] sm:$0xff]
      %v4748 = vld [vmem:[#allocation4 + $0x190] sm:$0xff]
      %v4749 = vld [vmem:[#allocation4 + $0x198] sm:$0xff]
      %v4750 = vld [vmem:[#allocation4 + $0x1a0] sm:$0xff]
      %v4751 = vld [vmem:[#allocation4 + $0x1a8] sm:$0xff]
      %v4752 = vld [vmem:[#allocation4 + $0x1b0] sm:$0xff]
      %v4753 = vld [vmem:[#allocation4 + $0x1b8] sm:$0xff]
      %v4754 = vld [vmem:[#allocation4 + $0x1c0] sm:$0xff]
      %v4755 = vld [vmem:[#allocation4 + $0x1c8] sm:$0xff]
      %v4756 = vld [vmem:[#allocation4 + $0x1d0] sm:$0xff]
      %v4757 = vld [vmem:[#allocation4 + $0x1d8] sm:$0xff]
      %v4758 = vld [vmem:[#allocation4 + $0x1e0] sm:$0xff]
      %v4759 = vld [vmem:[#allocation4 + $0x1e8] sm:$0xff]
      %v4760 = vld [vmem:[#allocation4 + $0x1f0] sm:$0xff]
      %v4761 = vld [vmem:[#allocation4 + $0x1f8] sm:$0xff]
      %v4762 = vld [vmem:[#allocation4 + $0x200] sm:$0xff]
      %v4763 = vld [vmem:[#allocation4 + $0x208] sm:$0xff]
      %v4764 = vld [vmem:[#allocation4 + $0x210] sm:$0xff]
      %v4765 = vld [vmem:[#allocation4 + $0x218] sm:$0xff]
      %v4766 = vld [vmem:[#allocation4 + $0x220] sm:$0xff]
      %v4767 = vld [vmem:[#allocation4 + $0x228] sm:$0xff]
      %v4768 = vld [vmem:[#allocation4 + $0x230] sm:$0xff]
      %v4769 = vld [vmem:[#allocation4 + $0x238] sm:$0xff]
      %v4770 = vld [vmem:[#allocation4 + $0x240] sm:$0xff]
      %v4771 = vld [vmem:[#allocation4 + $0x248] sm:$0xff]
      %v4772 = vld [vmem:[#allocation4 + $0x250] sm:$0xff]
      %v4773 = vld [vmem:[#allocation4 + $0x258] sm:$0xff]
      %v4774 = vld [vmem:[#allocation4 + $0x260] sm:$0xff]
      %v4775 = vld [vmem:[#allocation4 + $0x268] sm:$0xff]
      %v4776 = vld [vmem:[#allocation4 + $0x270] sm:$0xff]
      %v4777 = vld [vmem:[#allocation4 + $0x278] sm:$0xff]
      %v4778 = vld [vmem:[#allocation4 + $0x280] sm:$0xff]
      %v4779 = vld [vmem:[#allocation4 + $0x288] sm:$0xff]
      %v4780 = vld [vmem:[#allocation4 + $0x290] sm:$0xff]
      %v4781 = vld [vmem:[#allocation4 + $0x298] sm:$0xff]
      %v4782 = vld [vmem:[#allocation4 + $0x2a0] sm:$0xff]
      %v4783 = vld [vmem:[#allocation4 + $0x2a8] sm:$0xff]
      %v4784 = vld [vmem:[#allocation4 + $0x2b0] sm:$0xff]
      %v4785 = vld [vmem:[#allocation4 + $0x2b8] sm:$0xff]
      %v4786 = vld [vmem:[#allocation4 + $0x2c0] sm:$0xff]
      %v4787 = vld [vmem:[#allocation4 + $0x2c8] sm:$0xff]
      %v4788 = vld [vmem:[#allocation4 + $0x2d0] sm:$0xff]
      %v4789 = vld [vmem:[#allocation4 + $0x2d8] sm:$0xff]
      %v4790 = vld [vmem:[#allocation4 + $0x2e0] sm:$0xff]
      %v4791 = vld [vmem:[#allocation4 + $0x2e8] sm:$0xff]
      %v4792 = vld [vmem:[#allocation4 + $0x2f0] sm:$0xff]
      %v4793 = vld [vmem:[#allocation4 + $0x2f8] sm:$0xff]
      %v4794 = vld [vmem:[#allocation4 + $0x300] sm:$0xff]
      %v4795 = vld [vmem:[#allocation4 + $0x308] sm:$0xff]
      %v4796 = vld [vmem:[#allocation4 + $0x310] sm:$0xff]
      %v4797 = vld [vmem:[#allocation4 + $0x318] sm:$0xff]
      %v4798 = vld [vmem:[#allocation4 + $0x320] sm:$0xff]
      %v4799 = vld [vmem:[#allocation4 + $0x328] sm:$0xff]
      %v4800 = vld [vmem:[#allocation4 + $0x330] sm:$0xff]
      %v4801 = vld [vmem:[#allocation4 + $0x338] sm:$0xff]
      %v4802 = vld [vmem:[#allocation4 + $0x340] sm:$0xff]
      %v4803 = vld [vmem:[#allocation4 + $0x348] sm:$0xff]
      %v4804 = vld [vmem:[#allocation4 + $0x350] sm:$0xff]
      %v4805 = vld [vmem:[#allocation4 + $0x358] sm:$0xff]
      %v4806 = vld [vmem:[#allocation4 + $0x360] sm:$0xff]
      %v4807 = vld [vmem:[#allocation4 + $0x368] sm:$0xff]
      %v4808 = vld [vmem:[#allocation4 + $0x370] sm:$0xff]
      %v4809 = vld [vmem:[#allocation4 + $0x378] sm:$0xff]
      %v4810 = vld [vmem:[#allocation4 + $0x380] sm:$0xff]
      %v4811 = vld [vmem:[#allocation4 + $0x388] sm:$0xff]
      %v4812 = vld [vmem:[#allocation4 + $0x390] sm:$0xff]
      %v4813 = vld [vmem:[#allocation4 + $0x398] sm:$0xff]
      %v4814 = vld [vmem:[#allocation4 + $0x3a0] sm:$0xff]
      %v4815 = vld [vmem:[#allocation4 + $0x3a8] sm:$0xff]
      %v4816 = vld [vmem:[#allocation4 + $0x3b0] sm:$0xff]
      %v4817 = vld [vmem:[#allocation4 + $0x3b8] sm:$0xff]
      %v4818 = vld [vmem:[#allocation4 + $0x3c0] sm:$0xff]
      %v4819 = vld [vmem:[#allocation4 + $0x3c8] sm:$0xff]
      %v4820 = vld [vmem:[#allocation4 + $0x3d0] sm:$0xff]
      %v4821 = vld [vmem:[#allocation4 + $0x3d8] sm:$0xff]
      %v4822 = vld [vmem:[#allocation4 + $0x3e0] sm:$0xff]
      %v4823 = vld [vmem:[#allocation4 + $0x3e8] sm:$0xff]
      %v4824 = vld [vmem:[#allocation4 + $0x3f0] sm:$0xff]
      %v4825 = vld [vmem:[#allocation4 + $0x3f8] sm:$0xff]
      %v4826 = vld [vmem:[#allocation4 + $0x400] sm:$0xff]
      %v4827 = vld [vmem:[#allocation4 + $0x408] sm:$0xff]
      %v4828 = vld [vmem:[#allocation4 + $0x410] sm:$0xff]
      %v4829 = vld [vmem:[#allocation4 + $0x418] sm:$0xff]
      %v4830 = vld [vmem:[#allocation4 + $0x420] sm:$0xff]
      %v4831 = vld [vmem:[#allocation4 + $0x428] sm:$0xff]
      %v4832 = vld [vmem:[#allocation4 + $0x430] sm:$0xff]
      %v4833 = vld [vmem:[#allocation4 + $0x438] sm:$0xff]
      %v4834 = vld [vmem:[#allocation4 + $0x440] sm:$0xff]
      %v4835 = vld [vmem:[#allocation4 + $0x448] sm:$0xff]
      %v4836 = vld [vmem:[#allocation4 + $0x450] sm:$0xff]
      %v4837 = vld [vmem:[#allocation4 + $0x458] sm:$0xff]
      %v4838 = vld [vmem:[#allocation4 + $0x460] sm:$0xff]
      %v4839 = vld [vmem:[#allocation4 + $0x468] sm:$0xff]
      %v4840 = vld [vmem:[#allocation4 + $0x470] sm:$0xff]
      %v4841 = vld [vmem:[#allocation4 + $0x478] sm:$0xff]
      %v4842 = vld [vmem:[#allocation4 + $0x480] sm:$0xff]
      %v4843 = vld [vmem:[#allocation4 + $0x488] sm:$0xff]
      %v4844 = vld [vmem:[#allocation4 + $0x490] sm:$0xff]
      %v4845 = vld [vmem:[#allocation4 + $0x498] sm:$0xff]
      %v4846 = vld [vmem:[#allocation4 + $0x4a0] sm:$0xff]
      %v4847 = vld [vmem:[#allocation4 + $0x4a8] sm:$0xff]
      %v4848 = vld [vmem:[#allocation4 + $0x4b0] sm:$0xff]
      %v4849 = vld [vmem:[#allocation4 + $0x4b8] sm:$0xff]
      %v4850 = vld [vmem:[#allocation4 + $0x4c0] sm:$0xff]
      %v4851 = vld [vmem:[#allocation4 + $0x4c8] sm:$0xff]
      %v4852 = vld [vmem:[#allocation4 + $0x4d0] sm:$0xff]
      %v4853 = vld [vmem:[#allocation4 + $0x4d8] sm:$0xff]
      %v4854 = vld [vmem:[#allocation4 + $0x4e0] sm:$0xff]
      %v4855 = vld [vmem:[#allocation4 + $0x4e8] sm:$0xff]
      %v4856 = vld [vmem:[#allocation4 + $0x4f0] sm:$0xff]
      %v4857 = vld [vmem:[#allocation4 + $0x4f8] sm:$0xff]
      %v4858 = vld [vmem:[#allocation4 + $0x500] sm:$0xff]
      %v4859 = vld [vmem:[#allocation4 + $0x508] sm:$0xff]
      %v4860 = vld [vmem:[#allocation4 + $0x510] sm:$0xff]
      %v4861 = vld [vmem:[#allocation4 + $0x518] sm:$0xff]
      %v4862 = vld [vmem:[#allocation4 + $0x520] sm:$0xff]
      %v4863 = vld [vmem:[#allocation4 + $0x528] sm:$0xff]
      %v4864 = vld [vmem:[#allocation4 + $0x530] sm:$0xff]
      %v4865 = vld [vmem:[#allocation4 + $0x538] sm:$0xff]
      %v4866 = vld [vmem:[#allocation4 + $0x540] sm:$0xff]
      %v4867 = vld [vmem:[#allocation4 + $0x548] sm:$0xff]
      %v4868 = vld [vmem:[#allocation4 + $0x550] sm:$0xff]
      %v4869 = vld [vmem:[#allocation4 + $0x558] sm:$0xff]
      %v4870 = vld [vmem:[#allocation4 + $0x560] sm:$0xff]
      %v4871 = vld [vmem:[#allocation4 + $0x568] sm:$0xff]
      %v4872 = vld [vmem:[#allocation4 + $0x570] sm:$0xff]
      %v4873 = vld [vmem:[#allocation4 + $0x578] sm:$0xff]
      %v4874 = vld [vmem:[#allocation4 + $0x580] sm:$0xff]
      %v4875 = vld [vmem:[#allocation4 + $0x588] sm:$0xff]
      %v4876 = vld [vmem:[#allocation4 + $0x590] sm:$0xff]
      %v4877 = vld [vmem:[#allocation4 + $0x598] sm:$0xff]
      %v4878 = vld [vmem:[%s6] sm:$0xff]
      %v4879 = vld [vmem:[%s6 + $0x8] sm:$0xff]
      %v4880 = vld [vmem:[%s6 + $0x10] sm:$0xff]
      %v4881 = vld [vmem:[%s6 + $0x18] sm:$0xff]
      %v4882 = vld [vmem:[%s6 + $0x20] sm:$0xff]
      %v4883 = vld [vmem:[%s6 + $0x28] sm:$0xff]
      %v4884 = vld [vmem:[%s6 + $0x30] sm:$0xff]
      %v4885 = vld [vmem:[%s6 + $0x38] sm:$0xff]
      %v4886 = vld [vmem:[%s6 + $0x40] sm:$0xff]
      %v4887 = vld [vmem:[%s6 + $0x48] sm:$0xff]
      %v4888 = vld [vmem:[%s6 + $0x50] sm:$0xff]
      %v4889 = vld [vmem:[%s6 + $0x58] sm:$0xff]
      %v4890 = vld [vmem:[%s6 + $0x60] sm:$0xff]
      %v4891 = vld [vmem:[%s6 + $0x68] sm:$0xff]
      %v4892 = vld [vmem:[%s6 + $0x70] sm:$0xff]
      %v4893 = vld [vmem:[%s6 + $0x78] sm:$0xff]
      %v4894 = vld [vmem:[%s6 + $0x80] sm:$0xff]
      %v4895 = vld [vmem:[%s6 + $0x88] sm:$0xff]
      %v4896 = vld [vmem:[%s6 + $0x90] sm:$0xff]
      %v4897 = vld [vmem:[%s6 + $0x98] sm:$0xff]
      %v4898 = vld [vmem:[%s6 + $0xa0] sm:$0xff]
      %v4899 = vld [vmem:[%s6 + $0xa8] sm:$0xff]
      %v4900 = vld [vmem:[%s6 + $0xb0] sm:$0xff]
      %v4901 = vld [vmem:[%s6 + $0xb8] sm:$0xff]
      %v4902 = vld [vmem:[%s6 + $0xc0] sm:$0xff]
      %v4903 = vld [vmem:[%s6 + $0xc8] sm:$0xff]
      %v4904 = vld [vmem:[%s6 + $0xd0] sm:$0xff]
      %v4905 = vld [vmem:[%s6 + $0xd8] sm:$0xff]
      %v4906 = vld [vmem:[%s6 + $0xe0] sm:$0xff]
      %v4907 = vld [vmem:[%s6 + $0xe8] sm:$0xff]
      %v4908 = vld [vmem:[%s6 + $0xf0] sm:$0xff]
      %v4909 = vld [vmem:[%s6 + $0xf8] sm:$0xff]
      %v4910 = vld [vmem:[%s6 + $0x100] sm:$0xff]
      %v4911 = vld [vmem:[%s6 + $0x108] sm:$0xff]
      %v4912 = vld [vmem:[%s6 + $0x110] sm:$0xff]
      %v4913 = vld [vmem:[%s6 + $0x118] sm:$0xff]
      %v4914 = vld [vmem:[%s6 + $0x120] sm:$0xff]
      %v4915 = vld [vmem:[%s6 + $0x128] sm:$0xff]
      %v4916 = vld [vmem:[%s6 + $0x130] sm:$0xff]
      %v4917 = vld [vmem:[%s6 + $0x138] sm:$0xff]
      %v4918 = vld [vmem:[%s6 + $0x140] sm:$0xff]
      %v4919 = vld [vmem:[%s6 + $0x148] sm:$0xff]
      %v4920 = vld [vmem:[%s6 + $0x150] sm:$0xff]
      %v4921 = vld [vmem:[%s6 + $0x158] sm:$0xff]
      %v4922 = vld [vmem:[%s6 + $0x160] sm:$0xff]
      %v4923 = vld [vmem:[%s6 + $0x168] sm:$0xff]
      %v4924 = vld [vmem:[%s6 + $0x170] sm:$0xff]
      %v4925 = vld [vmem:[%s6 + $0x178] sm:$0xff]
      %v4926 = vld [vmem:[%s6 + $0x180] sm:$0xff]
      %v4927 = vld [vmem:[%s6 + $0x188] sm:$0xff]
      %v4928 = vld [vmem:[%s6 + $0x190] sm:$0xff]
      %v4929 = vld [vmem:[%s6 + $0x198] sm:$0xff]
      %v4930 = vld [vmem:[%s6 + $0x1a0] sm:$0xff]
      %v4931 = vld [vmem:[%s6 + $0x1a8] sm:$0xff]
      %v4932 = vld [vmem:[%s6 + $0x1b0] sm:$0xff]
      %v4933 = vld [vmem:[%s6 + $0x1b8] sm:$0xff]
      %v4934 = vld [vmem:[%s6 + $0x1c0] sm:$0xff]
      %v4935 = vld [vmem:[%s6 + $0x1c8] sm:$0xff]
      %v4936 = vld [vmem:[%s6 + $0x1d0] sm:$0xff]
      %v4937 = vld [vmem:[%s6 + $0x1d8] sm:$0xff]
      %v4938 = vld [vmem:[%s6 + $0x1e0] sm:$0xff]
      %v4939 = vld [vmem:[%s6 + $0x1e8] sm:$0xff]
      %v4940 = vld [vmem:[%s6 + $0x1f0] sm:$0xff]
      %v4941 = vld [vmem:[%s6 + $0x1f8] sm:$0xff]
      %v4942 = vld [vmem:[%s6 + $0x200] sm:$0xff]
      %v4943 = vld [vmem:[%s6 + $0x208] sm:$0xff]
      %v4944 = vld [vmem:[%s6 + $0x210] sm:$0xff]
      %v4945 = vld [vmem:[%s6 + $0x218] sm:$0xff]
      %v4946 = vld [vmem:[%s6 + $0x220] sm:$0xff]
      %v4947 = vld [vmem:[%s6 + $0x228] sm:$0xff]
      %v4948 = vld [vmem:[%s6 + $0x230] sm:$0xff]
      %v4949 = vld [vmem:[%s6 + $0x238] sm:$0xff]
      %v4950 = vld [vmem:[%s6 + $0x240] sm:$0xff]
      %v4951 = vld [vmem:[%s6 + $0x248] sm:$0xff]
      %v4952 = vld [vmem:[%s6 + $0x250] sm:$0xff]
      %v4953 = vld [vmem:[%s6 + $0x258] sm:$0xff]
      %v4954 = vld [vmem:[%s6 + $0x260] sm:$0xff]
      %v4955 = vld [vmem:[%s6 + $0x268] sm:$0xff]
      %v4956 = vld [vmem:[%s6 + $0x270] sm:$0xff]
      %v4957 = vld [vmem:[%s6 + $0x278] sm:$0xff]
      %v4958 = vld [vmem:[%s7] sm:$0x1]
      %v4960 = vlaneseq
      %v4961 = vshrl.u32 %v4960, 7
      %v4962 = vsub.s32 0, %v4961
      %v4963 = vrot.slane %v4958, %v4962
      %4965 = vmatprep.subr.mxu0 0.0
      %4966 = vmatpush1.msra.mxu0 %v4893
      %4967 = vmatprep.subr.mxu0 0.0
      %4968 = vmatpush1.msra.mxu0 %v4892
      %4969 = vmatprep.subr.mxu0 0.0
      %4970 = vmatpush1.msra.mxu0 %v4891
      %4971 = vmatprep.subr.mxu0 0.0
      %4972 = vmatpush1.msra.mxu0 %v4890
      %4973 = vmatprep.subr.mxu0 0.0
      %4974 = vmatpush1.msra.mxu0 %v4889
      %4975 = vmatprep.subr.mxu0 0.0
      %4976 = vmatpush1.msra.mxu0 %v4888
      %4977 = vmatprep.subr.mxu0 0.0
      %4978 = vmatpush1.msra.mxu0 %v4887
      %4979 = vmatprep.subr.mxu0 0.0
      %4980 = vmatpush1.msra.mxu0 %v4886
      %4981 = vmatprep.subr.mxu0 0.0
      %4982 = vmatpush1.msra.mxu0 %v4885
      %4983 = vmatprep.subr.mxu0 0.0
      %4984 = vmatpush1.msra.mxu0 %v4884
      %4985 = vmatprep.subr.mxu0 0.0
      %4986 = vmatpush1.msra.mxu0 %v4883
      %4987 = vmatprep.subr.mxu0 0.0
      %4988 = vmatpush1.msra.mxu0 %v4882
      %4989 = vmatprep.subr.mxu0 0.0
      %4990 = vmatpush1.msra.mxu0 %v4881
      %4991 = vmatprep.subr.mxu0 0.0
      %4992 = vmatpush1.msra.mxu0 %v4880
      %4993 = vmatprep.subr.mxu0 0.0
      %4994 = vmatpush1.msra.mxu0 %v4879
      %4995 = vmatprep.subr.mxu0 0.0
      %4996 = vmatpush1.msra.mxu0 %v4878
      %4997 = vmatprep.subr.mxu0 0.0
      %4998 = vmatpush2.msra.mxu0 %v4909
      %4999 = vmatprep.subr.mxu0 0.0
      %5000 = vmatpush2.msra.mxu0 %v4908
      %5001 = vmatprep.subr.mxu0 0.0
      %5002 = vmatpush2.msra.mxu0 %v4907
      %5003 = vmatprep.subr.mxu0 0.0
      %5004 = vmatpush2.msra.mxu0 %v4906
      %5005 = vmatprep.subr.mxu0 0.0
      %5006 = vmatpush2.msra.mxu0 %v4905
      %5007 = vmatprep.subr.mxu0 0.0
      %5008 = vmatpush2.msra.mxu0 %v4904
      %5009 = vmatprep.subr.mxu0 0.0
      %5010 = vmatpush2.msra.mxu0 %v4903
      %5011 = vmatprep.subr.mxu0 0.0
      %5012 = vmatpush2.msra.mxu0 %v4902
      %5013 = vmatprep.subr.mxu0 0.0
      %5014 = vmatpush2.msra.mxu0 %v4901
      %5015 = vmatprep.subr.mxu0 0.0
      %5016 = vmatpush2.msra.mxu0 %v4900
      %5017 = vmatprep.subr.mxu0 0.0
      %5018 = vmatpush2.msra.mxu0 %v4899
      %5019 = vmatprep.subr.mxu0 0.0
      %5020 = vmatpush2.msra.mxu0 %v4898
      %5021 = vmatprep.subr.mxu0 0.0
      %5022 = vmatpush2.msra.mxu0 %v4897
      %5023 = vmatprep.subr.mxu0 0.0
      %5024 = vmatpush2.msra.mxu0 %v4896
      %5025 = vmatprep.subr.mxu0 0.0
      %5026 = vmatpush2.msra.mxu0 %v4895
      %5027 = vmatprep.subr.mxu0 0.0
      %5028 = vmatpush2.msra.mxu0 %v4894
      %5029 = vmatprep.mubr.f32.mxu0 %v4699
      %5030 = vmatmul.mubr.f32.gmra.mxu0 %v4698
      %v5031 = vpop.f32.mrf.mxu0
      %v5032 = vadd.f32 %v4963, %v5031
      %v5033 = vpop.f32.mrf.mxu0
      %5034 = vmatprep.mubr.f32.mxu0 %v4704
      %5035 = vmatmul.mubr.f32.gmra.mxu0 %v4703
      %v5036 = vpop.f32.mrf.mxu0
      %v5037 = vadd.f32 %v4963, %v5036
      %v5038 = vpop.f32.mrf.mxu0
      %5039 = vmatprep.mubr.f32.mxu0 %v4709
      %5040 = vmatmul.mubr.f32.gmra.mxu0 %v4708
      %v5041 = vpop.f32.mrf.mxu0
      %v5042 = vadd.f32 %v4963, %v5041
      %v5043 = vpop.f32.mrf.mxu0
      %5044 = vmatprep.mubr.f32.mxu0 %v4714
      %5045 = vmatmul.mubr.f32.gmra.mxu0 %v4713
      %v5046 = vpop.f32.mrf.mxu0
      %v5047 = vadd.f32 %v4963, %v5046
      %v5048 = vpop.f32.mrf.mxu0
      %5049 = vmatprep.mubr.f32.mxu0 %v4719
      %5050 = vmatmul.mubr.f32.gmra.mxu0 %v4718
      %v5051 = vpop.f32.mrf.mxu0
      %v5052 = vadd.f32 %v4963, %v5051
      %v5053 = vpop.f32.mrf.mxu0
      %5054 = vmatprep.mubr.f32.mxu0 %v4724
      %5055 = vmatmul.mubr.f32.gmra.mxu0 %v4723
      %v5056 = vpop.f32.mrf.mxu0
      %v5057 = vadd.f32 %v4963, %v5056
      %v5058 = vpop.f32.mrf.mxu0
      %5059 = vmatprep.mubr.f32.mxu0 %v4729
      %5060 = vmatmul.mubr.f32.gmra.mxu0 %v4728
      %v5061 = vpop.f32.mrf.mxu0
      %v5062 = vadd.f32 %v4963, %v5061
      %v5063 = vpop.f32.mrf.mxu0
      %5064 = vmatprep.mubr.f32.mxu0 %v4734
      %5065 = vmatmul.mubr.f32.gmra.mxu0 %v4733
      %v5066 = vpop.f32.mrf.mxu0
      %v5067 = vadd.f32 %v4963, %v5066
      %v5068 = vpop.f32.mrf.mxu0
      %5069 = vmatprep.mubr.f32.mxu0 %v4739
      %5070 = vmatmul.mubr.f32.gmra.mxu0 %v4738
      %v5071 = vpop.f32.mrf.mxu0
      %v5072 = vadd.f32 %v4963, %v5071
      %v5073 = vpop.f32.mrf.mxu0
      %5074 = vmatprep.mubr.f32.mxu0 %v4744
      %5075 = vmatmul.mubr.f32.gmra.mxu0 %v4743
      %v5076 = vpop.f32.mrf.mxu0
      %v5077 = vadd.f32 %v4963, %v5076
      %v5078 = vpop.f32.mrf.mxu0
      %5079 = vmatprep.mubr.f32.mxu0 %v4749
      %5080 = vmatmul.mubr.f32.gmra.mxu0 %v4748
      %v5081 = vpop.f32.mrf.mxu0
      %v5082 = vadd.f32 %v4963, %v5081
      %v5083 = vpop.f32.mrf.mxu0
      %5084 = vmatprep.mubr.f32.mxu0 %v4754
      %5085 = vmatmul.mubr.f32.gmra.mxu0 %v4753
      %v5086 = vpop.f32.mrf.mxu0
      %v5087 = vadd.f32 %v4963, %v5086
      %v5088 = vpop.f32.mrf.mxu0
      %5089 = vmatprep.mubr.f32.mxu0 %v4759
      %5090 = vmatmul.mubr.f32.gmra.mxu0 %v4758
      %v5091 = vpop.f32.mrf.mxu0
      %v5092 = vadd.f32 %v4963, %v5091
      %v5093 = vpop.f32.mrf.mxu0
      %5094 = vmatprep.mubr.f32.mxu0 %v4764
      %5095 = vmatmul.mubr.f32.gmra.mxu0 %v4763
      %v5096 = vpop.f32.mrf.mxu0
      %v5097 = vadd.f32 %v4963, %v5096
      %v5098 = vpop.f32.mrf.mxu0
      %5099 = vmatprep.mubr.f32.mxu0 %v4769
      %5100 = vmatmul.mubr.f32.gmra.mxu0 %v4768
      %v5101 = vpop.f32.mrf.mxu0
      %v5102 = vadd.f32 %v4963, %v5101
      %v5103 = vpop.f32.mrf.mxu0
      %5104 = vmatprep.mubr.f32.mxu0 %v4774
      %5105 = vmatmul.mubr.f32.gmra.mxu0 %v4773
      %v5106 = vpop.f32.mrf.mxu0
      %v5107 = vadd.f32 %v4963, %v5106
      %v5108 = vpop.f32.mrf.mxu0
      %5109 = vmatprep.mubr.f32.mxu0 %v4779
      %5110 = vmatmul.mubr.f32.gmra.mxu0 %v4778
      %v5111 = vpop.f32.mrf.mxu0
      %v5112 = vadd.f32 %v4963, %v5111
      %v5113 = vpop.f32.mrf.mxu0
      %5114 = vmatprep.mubr.f32.mxu0 %v4784
      %5115 = vmatmul.mubr.f32.gmra.mxu0 %v4783
      %v5116 = vpop.f32.mrf.mxu0
      %v5117 = vadd.f32 %v4963, %v5116
      %v5118 = vpop.f32.mrf.mxu0
      %5119 = vmatprep.mubr.f32.mxu0 %v4789
      %5120 = vmatmul.mubr.f32.gmra.mxu0 %v4788
      %v5121 = vpop.f32.mrf.mxu0
      %v5122 = vadd.f32 %v4963, %v5121
      %v5123 = vpop.f32.mrf.mxu0
      %5124 = vmatprep.mubr.f32.mxu0 %v4794
      %5125 = vmatmul.mubr.f32.gmra.mxu0 %v4793
      %v5126 = vpop.f32.mrf.mxu0
      %v5127 = vadd.f32 %v4963, %v5126
      %v5128 = vpop.f32.mrf.mxu0
      %5129 = vmatprep.mubr.f32.mxu0 %v4799
      %5130 = vmatmul.mubr.f32.gmra.mxu0 %v4798
      %v5131 = vpop.f32.mrf.mxu0
      %v5132 = vadd.f32 %v4963, %v5131
      %v5133 = vpop.f32.mrf.mxu0
      %5134 = vmatprep.mubr.f32.mxu0 %v4804
      %5135 = vmatmul.mubr.f32.gmra.mxu0 %v4803
      %v5136 = vpop.f32.mrf.mxu0
      %v5137 = vadd.f32 %v4963, %v5136
      %v5138 = vpop.f32.mrf.mxu0
      %5139 = vmatprep.mubr.f32.mxu0 %v4809
      %5140 = vmatmul.mubr.f32.gmra.mxu0 %v4808
      %v5141 = vpop.f32.mrf.mxu0
      %v5142 = vadd.f32 %v4963, %v5141
      %v5143 = vpop.f32.mrf.mxu0
      %5144 = vmatprep.mubr.f32.mxu0 %v4814
      %5145 = vmatmul.mubr.f32.gmra.mxu0 %v4813
      %v5146 = vpop.f32.mrf.mxu0
      %v5147 = vadd.f32 %v4963, %v5146
      %v5148 = vpop.f32.mrf.mxu0
      %5149 = vmatprep.mubr.f32.mxu0 %v4819
      %5150 = vmatmul.mubr.f32.gmra.mxu0 %v4818
      %v5151 = vpop.f32.mrf.mxu0
      %v5152 = vadd.f32 %v4963, %v5151
      %v5153 = vpop.f32.mrf.mxu0
      %5154 = vmatprep.mubr.f32.mxu0 %v4824
      %5155 = vmatmul.mubr.f32.gmra.mxu0 %v4823
      %v5156 = vpop.f32.mrf.mxu0
      %v5157 = vadd.f32 %v4963, %v5156
      %v5158 = vpop.f32.mrf.mxu0
      %5159 = vmatprep.mubr.f32.mxu0 %v4829
      %5160 = vmatmul.mubr.f32.gmra.mxu0 %v4828
      %v5161 = vpop.f32.mrf.mxu0
      %v5162 = vadd.f32 %v4963, %v5161
      %v5163 = vpop.f32.mrf.mxu0
      %5164 = vmatprep.mubr.f32.mxu0 %v4834
      %5165 = vmatmul.mubr.f32.gmra.mxu0 %v4833
      %v5166 = vpop.f32.mrf.mxu0
      %v5167 = vadd.f32 %v4963, %v5166
      %v5168 = vpop.f32.mrf.mxu0
      %5169 = vmatprep.mubr.f32.mxu0 %v4839
      %5170 = vmatmul.mubr.f32.gmra.mxu0 %v4838
      %v5171 = vpop.f32.mrf.mxu0
      %v5172 = vadd.f32 %v4963, %v5171
      %v5173 = vpop.f32.mrf.mxu0
      %5174 = vmatprep.mubr.f32.mxu0 %v4844
      %5175 = vmatmul.mubr.f32.gmra.mxu0 %v4843
      %v5176 = vpop.f32.mrf.mxu0
      %v5177 = vadd.f32 %v4963, %v5176
      %v5178 = vpop.f32.mrf.mxu0
      %5179 = vmatprep.mubr.f32.mxu0 %v4849
      %5180 = vmatmul.mubr.f32.gmra.mxu0 %v4848
      %v5181 = vpop.f32.mrf.mxu0
      %v5182 = vadd.f32 %v4963, %v5181
      %v5183 = vpop.f32.mrf.mxu0
      %5184 = vmatprep.mubr.f32.mxu0 %v4854
      %5185 = vmatmul.mubr.f32.gmra.mxu0 %v4853
      %v5186 = vpop.f32.mrf.mxu0
      %v5187 = vadd.f32 %v4963, %v5186
      %v5188 = vpop.f32.mrf.mxu0
      %5189 = vmatprep.mubr.f32.mxu0 %v4859
      %5190 = vmatmul.mubr.f32.gmra.mxu0 %v4858
      %v5191 = vpop.f32.mrf.mxu0
      %v5192 = vadd.f32 %v4963, %v5191
      %v5193 = vpop.f32.mrf.mxu0
      %5194 = vmatprep.mubr.f32.mxu0 %v4864
      %5195 = vmatmul.mubr.f32.gmra.mxu0 %v4863
      %v5196 = vpop.f32.mrf.mxu0
      %v5197 = vadd.f32 %v4963, %v5196
      %v5198 = vpop.f32.mrf.mxu0
      %5199 = vmatprep.mubr.f32.mxu0 %v4869
      %5200 = vmatmul.mubr.f32.gmra.mxu0 %v4868
      %v5201 = vpop.f32.mrf.mxu0
      %v5202 = vadd.f32 %v4963, %v5201
      %v5203 = vpop.f32.mrf.mxu0
      %5204 = vmatprep.mubr.f32.mxu0 %v4874
      %5205 = vmatmul.mubr.f32.gmra.mxu0 %v4873
      %v5206 = vpop.f32.mrf.mxu0
      %v5207 = vadd.f32 %v4963, %v5206
      %v5208 = vpop.f32.mrf.mxu0
      %5209 = vdwg.mxu0
      %5210 = vmatprep.subr.mxu0 0.0
      %5211 = vmatpush1.msra.mxu0 %v4925
      %5212 = vmatprep.subr.mxu0 0.0
      %5213 = vmatpush1.msra.mxu0 %v4924
      %5214 = vmatprep.subr.mxu0 0.0
      %5215 = vmatpush1.msra.mxu0 %v4923
      %5216 = vmatprep.subr.mxu0 0.0
      %5217 = vmatpush1.msra.mxu0 %v4922
      %5218 = vmatprep.subr.mxu0 0.0
      %5219 = vmatpush1.msra.mxu0 %v4921
      %5220 = vmatprep.subr.mxu0 0.0
      %5221 = vmatpush1.msra.mxu0 %v4920
      %5222 = vmatprep.subr.mxu0 0.0
      %5223 = vmatpush1.msra.mxu0 %v4919
      %5224 = vmatprep.subr.mxu0 0.0
      %5225 = vmatpush1.msra.mxu0 %v4918
      %5226 = vmatprep.subr.mxu0 0.0
      %5227 = vmatpush1.msra.mxu0 %v4917
      %5228 = vmatprep.subr.mxu0 0.0
      %5229 = vmatpush1.msra.mxu0 %v4916
      %5230 = vmatprep.subr.mxu0 0.0
      %5231 = vmatpush1.msra.mxu0 %v4915
      %5232 = vmatprep.subr.mxu0 0.0
      %5233 = vmatpush1.msra.mxu0 %v4914
      %5234 = vmatprep.subr.mxu0 0.0
      %5235 = vmatpush1.msra.mxu0 %v4913
      %5236 = vmatprep.subr.mxu0 0.0
      %5237 = vmatpush1.msra.mxu0 %v4912
      %5238 = vmatprep.subr.mxu0 0.0
      %5239 = vmatpush1.msra.mxu0 %v4911
      %5240 = vmatprep.subr.mxu0 0.0
      %5241 = vmatpush1.msra.mxu0 %v4910
      %5242 = vmatprep.subr.mxu0 0.0
      %5243 = vmatpush2.msra.mxu0 %v4941
      %5244 = vmatprep.subr.mxu0 0.0
      %5245 = vmatpush2.msra.mxu0 %v4940
      %5246 = vmatprep.subr.mxu0 0.0
      %5247 = vmatpush2.msra.mxu0 %v4939
      %5248 = vmatprep.subr.mxu0 0.0
      %5249 = vmatpush2.msra.mxu0 %v4938
      %5250 = vmatprep.subr.mxu0 0.0
      %5251 = vmatpush2.msra.mxu0 %v4937
      %5252 = vmatprep.subr.mxu0 0.0
      %5253 = vmatpush2.msra.mxu0 %v4936
      %5254 = vmatprep.subr.mxu0 0.0
      %5255 = vmatpush2.msra.mxu0 %v4935
      %5256 = vmatprep.subr.mxu0 0.0
      %5257 = vmatpush2.msra.mxu0 %v4934
      %5258 = vmatprep.subr.mxu0 0.0
      %5259 = vmatpush2.msra.mxu0 %v4933
      %5260 = vmatprep.subr.mxu0 0.0
      %5261 = vmatpush2.msra.mxu0 %v4932
      %5262 = vmatprep.subr.mxu0 0.0
      %5263 = vmatpush2.msra.mxu0 %v4931
      %5264 = vmatprep.subr.mxu0 0.0
      %5265 = vmatpush2.msra.mxu0 %v4930
      %5266 = vmatprep.subr.mxu0 0.0
      %5267 = vmatpush2.msra.mxu0 %v4929
      %5268 = vmatprep.subr.mxu0 0.0
      %5269 = vmatpush2.msra.mxu0 %v4928
      %5270 = vmatprep.subr.mxu0 0.0
      %5271 = vmatpush2.msra.mxu0 %v4927
      %5272 = vmatprep.subr.mxu0 0.0
      %5273 = vmatpush2.msra.mxu0 %v4926
      %5274 = vmatprep.mubr.f32.mxu0 %v4701
      %5275 = vmatmul.mubr.f32.gmra.mxu0 %v4700
      %v5276 = vpop.f32.mrf.mxu0
      %v5277 = vadd.f32 %v5032, %v5276
      %v5278 = vpop.f32.mrf.mxu0
      %5279 = vmatprep.mubr.f32.mxu0 %v4706
      %5280 = vmatmul.mubr.f32.gmra.mxu0 %v4705
      %v5281 = vpop.f32.mrf.mxu0
      %v5282 = vadd.f32 %v5037, %v5281
      %v5283 = vpop.f32.mrf.mxu0
      %5284 = vmatprep.mubr.f32.mxu0 %v4711
      %5285 = vmatmul.mubr.f32.gmra.mxu0 %v4710
      %v5286 = vpop.f32.mrf.mxu0
      %v5287 = vadd.f32 %v5042, %v5286
      %v5288 = vpop.f32.mrf.mxu0
      %5289 = vmatprep.mubr.f32.mxu0 %v4716
      %5290 = vmatmul.mubr.f32.gmra.mxu0 %v4715
      %v5291 = vpop.f32.mrf.mxu0
      %v5292 = vadd.f32 %v5047, %v5291
      %v5293 = vpop.f32.mrf.mxu0
      %5294 = vmatprep.mubr.f32.mxu0 %v4721
      %5295 = vmatmul.mubr.f32.gmra.mxu0 %v4720
      %v5296 = vpop.f32.mrf.mxu0
      %v5297 = vadd.f32 %v5052, %v5296
      %v5298 = vpop.f32.mrf.mxu0
      %5299 = vmatprep.mubr.f32.mxu0 %v4726
      %5300 = vmatmul.mubr.f32.gmra.mxu0 %v4725
      %v5301 = vpop.f32.mrf.mxu0
      %v5302 = vadd.f32 %v5057, %v5301
      %v5303 = vpop.f32.mrf.mxu0
      %5304 = vmatprep.mubr.f32.mxu0 %v4731
      %5305 = vmatmul.mubr.f32.gmra.mxu0 %v4730
      %v5306 = vpop.f32.mrf.mxu0
      %v5307 = vadd.f32 %v5062, %v5306
      %v5308 = vpop.f32.mrf.mxu0
      %5309 = vmatprep.mubr.f32.mxu0 %v4736
      %5310 = vmatmul.mubr.f32.gmra.mxu0 %v4735
      %v5311 = vpop.f32.mrf.mxu0
      %v5312 = vadd.f32 %v5067, %v5311
      %v5313 = vpop.f32.mrf.mxu0
      %5314 = vmatprep.mubr.f32.mxu0 %v4741
      %5315 = vmatmul.mubr.f32.gmra.mxu0 %v4740
      %v5316 = vpop.f32.mrf.mxu0
      %v5317 = vadd.f32 %v5072, %v5316
      %v5318 = vpop.f32.mrf.mxu0
      %5319 = vmatprep.mubr.f32.mxu0 %v4746
      %5320 = vmatmul.mubr.f32.gmra.mxu0 %v4745
      %v5321 = vpop.f32.mrf.mxu0
      %v5322 = vadd.f32 %v5077, %v5321
      %v5323 = vpop.f32.mrf.mxu0
      %5324 = vmatprep.mubr.f32.mxu0 %v4751
      %5325 = vmatmul.mubr.f32.gmra.mxu0 %v4750
      %v5326 = vpop.f32.mrf.mxu0
      %v5327 = vadd.f32 %v5082, %v5326
      %v5328 = vpop.f32.mrf.mxu0
      %5329 = vmatprep.mubr.f32.mxu0 %v4756
      %5330 = vmatmul.mubr.f32.gmra.mxu0 %v4755
      %v5331 = vpop.f32.mrf.mxu0
      %v5332 = vadd.f32 %v5087, %v5331
      %v5333 = vpop.f32.mrf.mxu0
      %5334 = vmatprep.mubr.f32.mxu0 %v4761
      %5335 = vmatmul.mubr.f32.gmra.mxu0 %v4760
      %v5336 = vpop.f32.mrf.mxu0
      %v5337 = vadd.f32 %v5092, %v5336
      %v5338 = vpop.f32.mrf.mxu0
      %5339 = vmatprep.mubr.f32.mxu0 %v4766
      %5340 = vmatmul.mubr.f32.gmra.mxu0 %v4765
      %v5341 = vpop.f32.mrf.mxu0
      %v5342 = vadd.f32 %v5097, %v5341
      %v5343 = vpop.f32.mrf.mxu0
      %5344 = vmatprep.mubr.f32.mxu0 %v4771
      %5345 = vmatmul.mubr.f32.gmra.mxu0 %v4770
      %v5346 = vpop.f32.mrf.mxu0
      %v5347 = vadd.f32 %v5102, %v5346
      %v5348 = vpop.f32.mrf.mxu0
      %5349 = vmatprep.mubr.f32.mxu0 %v4776
      %5350 = vmatmul.mubr.f32.gmra.mxu0 %v4775
      %v5351 = vpop.f32.mrf.mxu0
      %v5352 = vadd.f32 %v5107, %v5351
      %v5353 = vpop.f32.mrf.mxu0
      %5354 = vmatprep.mubr.f32.mxu0 %v4781
      %5355 = vmatmul.mubr.f32.gmra.mxu0 %v4780
      %v5356 = vpop.f32.mrf.mxu0
      %v5357 = vadd.f32 %v5112, %v5356
      %v5358 = vpop.f32.mrf.mxu0
      %5359 = vmatprep.mubr.f32.mxu0 %v4786
      %5360 = vmatmul.mubr.f32.gmra.mxu0 %v4785
      %v5361 = vpop.f32.mrf.mxu0
      %v5362 = vadd.f32 %v5117, %v5361
      %v5363 = vpop.f32.mrf.mxu0
      %5364 = vmatprep.mubr.f32.mxu0 %v4791
      %5365 = vmatmul.mubr.f32.gmra.mxu0 %v4790
      %v5366 = vpop.f32.mrf.mxu0
      %v5367 = vadd.f32 %v5122, %v5366
      %v5368 = vpop.f32.mrf.mxu0
      %5369 = vmatprep.mubr.f32.mxu0 %v4796
      %5370 = vmatmul.mubr.f32.gmra.mxu0 %v4795
      %v5371 = vpop.f32.mrf.mxu0
      %v5372 = vadd.f32 %v5127, %v5371
      %v5373 = vpop.f32.mrf.mxu0
      %5374 = vmatprep.mubr.f32.mxu0 %v4801
      %5375 = vmatmul.mubr.f32.gmra.mxu0 %v4800
      %v5376 = vpop.f32.mrf.mxu0
      %v5377 = vadd.f32 %v5132, %v5376
      %v5378 = vpop.f32.mrf.mxu0
      %5379 = vmatprep.mubr.f32.mxu0 %v4806
      %5380 = vmatmul.mubr.f32.gmra.mxu0 %v4805
      %v5381 = vpop.f32.mrf.mxu0
      %v5382 = vadd.f32 %v5137, %v5381
      %v5383 = vpop.f32.mrf.mxu0
      %5384 = vmatprep.mubr.f32.mxu0 %v4811
      %5385 = vmatmul.mubr.f32.gmra.mxu0 %v4810
      %v5386 = vpop.f32.mrf.mxu0
      %v5387 = vadd.f32 %v5142, %v5386
      %v5388 = vpop.f32.mrf.mxu0
      %5389 = vmatprep.mubr.f32.mxu0 %v4816
      %5390 = vmatmul.mubr.f32.gmra.mxu0 %v4815
      %v5391 = vpop.f32.mrf.mxu0
      %v5392 = vadd.f32 %v5147, %v5391
      %v5393 = vpop.f32.mrf.mxu0
      %5394 = vmatprep.mubr.f32.mxu0 %v4821
      %5395 = vmatmul.mubr.f32.gmra.mxu0 %v4820
      %v5396 = vpop.f32.mrf.mxu0
      %v5397 = vadd.f32 %v5152, %v5396
      %v5398 = vpop.f32.mrf.mxu0
      %5399 = vmatprep.mubr.f32.mxu0 %v4826
      %5400 = vmatmul.mubr.f32.gmra.mxu0 %v4825
      %v5401 = vpop.f32.mrf.mxu0
      %v5402 = vadd.f32 %v5157, %v5401
      %v5403 = vpop.f32.mrf.mxu0
      %5404 = vmatprep.mubr.f32.mxu0 %v4831
      %5405 = vmatmul.mubr.f32.gmra.mxu0 %v4830
      %v5406 = vpop.f32.mrf.mxu0
      %v5407 = vadd.f32 %v5162, %v5406
      %v5408 = vpop.f32.mrf.mxu0
      %5409 = vmatprep.mubr.f32.mxu0 %v4836
      %5410 = vmatmul.mubr.f32.gmra.mxu0 %v4835
      %v5411 = vpop.f32.mrf.mxu0
      %v5412 = vadd.f32 %v5167, %v5411
      %v5413 = vpop.f32.mrf.mxu0
      %5414 = vmatprep.mubr.f32.mxu0 %v4841
      %5415 = vmatmul.mubr.f32.gmra.mxu0 %v4840
      %v5416 = vpop.f32.mrf.mxu0
      %v5417 = vadd.f32 %v5172, %v5416
      %v5418 = vpop.f32.mrf.mxu0
      %5419 = vmatprep.mubr.f32.mxu0 %v4846
      %5420 = vmatmul.mubr.f32.gmra.mxu0 %v4845
      %v5421 = vpop.f32.mrf.mxu0
      %v5422 = vadd.f32 %v5177, %v5421
      %v5423 = vpop.f32.mrf.mxu0
      %5424 = vmatprep.mubr.f32.mxu0 %v4851
      %5425 = vmatmul.mubr.f32.gmra.mxu0 %v4850
      %v5426 = vpop.f32.mrf.mxu0
      %v5427 = vadd.f32 %v5182, %v5426
      %v5428 = vpop.f32.mrf.mxu0
      %5429 = vmatprep.mubr.f32.mxu0 %v4856
      %5430 = vmatmul.mubr.f32.gmra.mxu0 %v4855
      %v5431 = vpop.f32.mrf.mxu0
      %v5432 = vadd.f32 %v5187, %v5431
      %v5433 = vpop.f32.mrf.mxu0
      %5434 = vmatprep.mubr.f32.mxu0 %v4861
      %5435 = vmatmul.mubr.f32.gmra.mxu0 %v4860
      %v5436 = vpop.f32.mrf.mxu0
      %v5437 = vadd.f32 %v5192, %v5436
      %v5438 = vpop.f32.mrf.mxu0
      %5439 = vmatprep.mubr.f32.mxu0 %v4866
      %5440 = vmatmul.mubr.f32.gmra.mxu0 %v4865
      %v5441 = vpop.f32.mrf.mxu0
      %v5442 = vadd.f32 %v5197, %v5441
      %v5443 = vpop.f32.mrf.mxu0
      %5444 = vmatprep.mubr.f32.mxu0 %v4871
      %5445 = vmatmul.mubr.f32.gmra.mxu0 %v4870
      %v5446 = vpop.f32.mrf.mxu0
      %v5447 = vadd.f32 %v5202, %v5446
      %v5448 = vpop.f32.mrf.mxu0
      %5449 = vmatprep.mubr.f32.mxu0 %v4876
      %5450 = vmatmul.mubr.f32.gmra.mxu0 %v4875
      %v5451 = vpop.f32.mrf.mxu0
      %v5452 = vadd.f32 %v5207, %v5451
      %v5453 = vpop.f32.mrf.mxu0
      %5454 = vdwg.mxu0
      %5455 = vmatprep.subr.mxu0 0.0
      %5456 = vmatpush1.msra.mxu0 %v4957
      %5457 = vmatprep.subr.mxu0 0.0
      %5458 = vmatpush1.msra.mxu0 %v4956
      %5459 = vmatprep.subr.mxu0 0.0
      %5460 = vmatpush1.msra.mxu0 %v4955
      %5461 = vmatprep.subr.mxu0 0.0
      %5462 = vmatpush1.msra.mxu0 %v4954
      %5463 = vmatprep.subr.mxu0 0.0
      %5464 = vmatpush1.msra.mxu0 %v4953
      %5465 = vmatprep.subr.mxu0 0.0
      %5466 = vmatpush1.msra.mxu0 %v4952
      %5467 = vmatprep.subr.mxu0 0.0
      %5468 = vmatpush1.msra.mxu0 %v4951
      %5469 = vmatprep.subr.mxu0 0.0
      %5470 = vmatpush1.msra.mxu0 %v4950
      %5471 = vmatprep.subr.mxu0 0.0
      %5472 = vmatpush1.msra.mxu0 %v4949
      %5473 = vmatprep.subr.mxu0 0.0
      %5474 = vmatpush1.msra.mxu0 %v4948
      %5475 = vmatprep.subr.mxu0 0.0
      %5476 = vmatpush1.msra.mxu0 %v4947
      %5477 = vmatprep.subr.mxu0 0.0
      %5478 = vmatpush1.msra.mxu0 %v4946
      %5479 = vmatprep.subr.mxu0 0.0
      %5480 = vmatpush1.msra.mxu0 %v4945
      %5481 = vmatprep.subr.mxu0 0.0
      %5482 = vmatpush1.msra.mxu0 %v4944
      %5483 = vmatprep.subr.mxu0 0.0
      %5484 = vmatpush1.msra.mxu0 %v4943
      %5485 = vmatprep.subr.mxu0 0.0
      %5486 = vmatpush1.msra.mxu0 %v4942
      %5487 = vmatprep.subr.mxu0 0.0
      %5488 = vmatpush2.msra.mxu0 0.0
      %5489 = vmatprep.subr.mxu0 0.0
      %5490 = vmatpush2.msra.mxu0 0.0
      %5491 = vmatprep.subr.mxu0 0.0
      %5492 = vmatpush2.msra.mxu0 0.0
      %5493 = vmatprep.subr.mxu0 0.0
      %5494 = vmatpush2.msra.mxu0 0.0
      %5495 = vmatprep.subr.mxu0 0.0
      %5496 = vmatpush2.msra.mxu0 0.0
      %5497 = vmatprep.subr.mxu0 0.0
      %5498 = vmatpush2.msra.mxu0 0.0
      %5499 = vmatprep.subr.mxu0 0.0
      %5500 = vmatpush2.msra.mxu0 0.0
      %5501 = vmatprep.subr.mxu0 0.0
      %5502 = vmatpush2.msra.mxu0 0.0
      %5503 = vmatprep.subr.mxu0 0.0
      %5504 = vmatpush2.msra.mxu0 0.0
      %5505 = vmatprep.subr.mxu0 0.0
      %5506 = vmatpush2.msra.mxu0 0.0
      %5507 = vmatprep.subr.mxu0 0.0
      %5508 = vmatpush2.msra.mxu0 0.0
      %5509 = vmatprep.subr.mxu0 0.0
      %5510 = vmatpush2.msra.mxu0 0.0
      %5511 = vmatprep.subr.mxu0 0.0
      %5512 = vmatpush2.msra.mxu0 0.0
      %5513 = vmatprep.subr.mxu0 0.0
      %5514 = vmatpush2.msra.mxu0 0.0
      %5515 = vmatprep.subr.mxu0 0.0
      %5516 = vmatpush2.msra.mxu0 0.0
      %5517 = vmatprep.subr.mxu0 0.0
      %5518 = vmatpush2.msra.mxu0 0.0
      %5519 = vmatprep.mubr.f32.mxu0 0.0
      %5520 = vmatmul.mubr.f32.gmra.mxu0 %v4702
      %v5521 = vpop.f32.mrf.mxu0
      %v5522 = vadd.f32 %v5277, %v5521
      %v5523 = vpop.f32.mrf.mxu0
      %5524 = vmatprep.mubr.f32.mxu0 0.0
      %5525 = vmatmul.mubr.f32.gmra.mxu0 %v4707
      %v5526 = vpop.f32.mrf.mxu0
      %v5527 = vadd.f32 %v5282, %v5526
      %v5528 = vpop.f32.mrf.mxu0
      %5529 = vmatprep.mubr.f32.mxu0 0.0
      %5530 = vmatmul.mubr.f32.gmra.mxu0 %v4712
      %v5531 = vpop.f32.mrf.mxu0
      %v5532 = vadd.f32 %v5287, %v5531
      %v5533 = vpop.f32.mrf.mxu0
      %5534 = vmatprep.mubr.f32.mxu0 0.0
      %5535 = vmatmul.mubr.f32.gmra.mxu0 %v4717
      %v5536 = vpop.f32.mrf.mxu0
      %v5537 = vadd.f32 %v5292, %v5536
      %v5538 = vpop.f32.mrf.mxu0
      %5539 = vmatprep.mubr.f32.mxu0 0.0
      %5540 = vmatmul.mubr.f32.gmra.mxu0 %v4722
      %v5541 = vpop.f32.mrf.mxu0
      %v5542 = vadd.f32 %v5297, %v5541
      %v5543 = vpop.f32.mrf.mxu0
      %5544 = vmatprep.mubr.f32.mxu0 0.0
      %5545 = vmatmul.mubr.f32.gmra.mxu0 %v4727
      %v5546 = vpop.f32.mrf.mxu0
      %v5547 = vadd.f32 %v5302, %v5546
      %v5548 = vpop.f32.mrf.mxu0
      %5549 = vmatprep.mubr.f32.mxu0 0.0
      %5550 = vmatmul.mubr.f32.gmra.mxu0 %v4732
      %v5551 = vpop.f32.mrf.mxu0
      %v5552 = vadd.f32 %v5307, %v5551
      %v5553 = vpop.f32.mrf.mxu0
      %5554 = vmatprep.mubr.f32.mxu0 0.0
      %5555 = vmatmul.mubr.f32.gmra.mxu0 %v4737
      %v5556 = vpop.f32.mrf.mxu0
      %v5557 = vadd.f32 %v5312, %v5556
      %v5558 = vpop.f32.mrf.mxu0
      %5559 = vmatprep.mubr.f32.mxu0 0.0
      %5560 = vmatmul.mubr.f32.gmra.mxu0 %v4742
      %v5561 = vpop.f32.mrf.mxu0
      %v5562 = vadd.f32 %v5317, %v5561
      %v5563 = vpop.f32.mrf.mxu0
      %5564 = vmatprep.mubr.f32.mxu0 0.0
      %5565 = vmatmul.mubr.f32.gmra.mxu0 %v4747
      %v5566 = vpop.f32.mrf.mxu0
      %v5567 = vadd.f32 %v5322, %v5566
      %v5568 = vpop.f32.mrf.mxu0
      %5569 = vmatprep.mubr.f32.mxu0 0.0
      %5570 = vmatmul.mubr.f32.gmra.mxu0 %v4752
      %v5571 = vpop.f32.mrf.mxu0
      %v5572 = vadd.f32 %v5327, %v5571
      %v5573 = vpop.f32.mrf.mxu0
      %5574 = vmatprep.mubr.f32.mxu0 0.0
      %5575 = vmatmul.mubr.f32.gmra.mxu0 %v4757
      %v5576 = vpop.f32.mrf.mxu0
      %v5577 = vadd.f32 %v5332, %v5576
      %v5578 = vpop.f32.mrf.mxu0
      %5579 = vmatprep.mubr.f32.mxu0 0.0
      %5580 = vmatmul.mubr.f32.gmra.mxu0 %v4762
      %v5581 = vpop.f32.mrf.mxu0
      %v5582 = vadd.f32 %v5337, %v5581
      %v5583 = vpop.f32.mrf.mxu0
      %5584 = vmatprep.mubr.f32.mxu0 0.0
      %5585 = vmatmul.mubr.f32.gmra.mxu0 %v4767
      %v5586 = vpop.f32.mrf.mxu0
      %v5587 = vadd.f32 %v5342, %v5586
      %v5588 = vpop.f32.mrf.mxu0
      %5589 = vmatprep.mubr.f32.mxu0 0.0
      %5590 = vmatmul.mubr.f32.gmra.mxu0 %v4772
      %v5591 = vpop.f32.mrf.mxu0
      %v5592 = vadd.f32 %v5347, %v5591
      %v5593 = vpop.f32.mrf.mxu0
      %5594 = vmatprep.mubr.f32.mxu0 0.0
      %5595 = vmatmul.mubr.f32.gmra.mxu0 %v4777
      %v5596 = vpop.f32.mrf.mxu0
      %v5597 = vadd.f32 %v5352, %v5596
      %v5598 = vpop.f32.mrf.mxu0
      %5599 = vmatprep.mubr.f32.mxu0 0.0
      %5600 = vmatmul.mubr.f32.gmra.mxu0 %v4782
      %v5601 = vpop.f32.mrf.mxu0
      %v5602 = vadd.f32 %v5357, %v5601
      %v5603 = vpop.f32.mrf.mxu0
      %5604 = vmatprep.mubr.f32.mxu0 0.0
      %5605 = vmatmul.mubr.f32.gmra.mxu0 %v4787
      %v5606 = vpop.f32.mrf.mxu0
      %v5607 = vadd.f32 %v5362, %v5606
      %v5608 = vpop.f32.mrf.mxu0
      %5609 = vmatprep.mubr.f32.mxu0 0.0
      %5610 = vmatmul.mubr.f32.gmra.mxu0 %v4792
      %v5611 = vpop.f32.mrf.mxu0
      %v5612 = vadd.f32 %v5367, %v5611
      %v5613 = vpop.f32.mrf.mxu0
      %5614 = vmatprep.mubr.f32.mxu0 0.0
      %5615 = vmatmul.mubr.f32.gmra.mxu0 %v4797
      %v5616 = vpop.f32.mrf.mxu0
      %v5617 = vadd.f32 %v5372, %v5616
      %v5618 = vpop.f32.mrf.mxu0
      %5619 = vmatprep.mubr.f32.mxu0 0.0
      %5620 = vmatmul.mubr.f32.gmra.mxu0 %v4802
      %v5621 = vpop.f32.mrf.mxu0
      %v5622 = vadd.f32 %v5377, %v5621
      %v5623 = vpop.f32.mrf.mxu0
      %5624 = vmatprep.mubr.f32.mxu0 0.0
      %5625 = vmatmul.mubr.f32.gmra.mxu0 %v4807
      %v5626 = vpop.f32.mrf.mxu0
      %v5627 = vadd.f32 %v5382, %v5626
      %v5628 = vpop.f32.mrf.mxu0
      %5629 = vmatprep.mubr.f32.mxu0 0.0
      %5630 = vmatmul.mubr.f32.gmra.mxu0 %v4812
      %v5631 = vpop.f32.mrf.mxu0
      %v5632 = vadd.f32 %v5387, %v5631
      %v5633 = vpop.f32.mrf.mxu0
      %5634 = vmatprep.mubr.f32.mxu0 0.0
      %5635 = vmatmul.mubr.f32.gmra.mxu0 %v4817
      %v5636 = vpop.f32.mrf.mxu0
      %v5637 = vadd.f32 %v5392, %v5636
      %v5638 = vpop.f32.mrf.mxu0
      %5639 = vmatprep.mubr.f32.mxu0 0.0
      %5640 = vmatmul.mubr.f32.gmra.mxu0 %v4822
      %v5641 = vpop.f32.mrf.mxu0
      %v5642 = vadd.f32 %v5397, %v5641
      %v5643 = vpop.f32.mrf.mxu0
      %5644 = vmatprep.mubr.f32.mxu0 0.0
      %5645 = vmatmul.mubr.f32.gmra.mxu0 %v4827
      %v5646 = vpop.f32.mrf.mxu0
      %v5647 = vadd.f32 %v5402, %v5646
      %v5648 = vpop.f32.mrf.mxu0
      %5649 = vmatprep.mubr.f32.mxu0 0.0
      %5650 = vmatmul.mubr.f32.gmra.mxu0 %v4832
      %v5651 = vpop.f32.mrf.mxu0
      %v5652 = vadd.f32 %v5407, %v5651
      %v5653 = vpop.f32.mrf.mxu0
      %5654 = vmatprep.mubr.f32.mxu0 0.0
      %5655 = vmatmul.mubr.f32.gmra.mxu0 %v4837
      %v5656 = vpop.f32.mrf.mxu0
      %v5657 = vadd.f32 %v5412, %v5656
      %v5658 = vpop.f32.mrf.mxu0
      %5659 = vmatprep.mubr.f32.mxu0 0.0
      %5660 = vmatmul.mubr.f32.gmra.mxu0 %v4842
      %v5661 = vpop.f32.mrf.mxu0
      %v5662 = vadd.f32 %v5417, %v5661
      %v5663 = vpop.f32.mrf.mxu0
      %5664 = vmatprep.mubr.f32.mxu0 0.0
      %5665 = vmatmul.mubr.f32.gmra.mxu0 %v4847
      %v5666 = vpop.f32.mrf.mxu0
      %v5667 = vadd.f32 %v5422, %v5666
      %v5668 = vpop.f32.mrf.mxu0
      %5669 = vmatprep.mubr.f32.mxu0 0.0
      %5670 = vmatmul.mubr.f32.gmra.mxu0 %v4852
      %v5671 = vpop.f32.mrf.mxu0
      %v5672 = vadd.f32 %v5427, %v5671
      %v5673 = vpop.f32.mrf.mxu0
      %5674 = vmatprep.mubr.f32.mxu0 0.0
      %5675 = vmatmul.mubr.f32.gmra.mxu0 %v4857
      %v5676 = vpop.f32.mrf.mxu0
      %v5677 = vadd.f32 %v5432, %v5676
      %v5678 = vpop.f32.mrf.mxu0
      %5679 = vmatprep.mubr.f32.mxu0 0.0
      %5680 = vmatmul.mubr.f32.gmra.mxu0 %v4862
      %v5681 = vpop.f32.mrf.mxu0
      %v5682 = vadd.f32 %v5437, %v5681
      %v5683 = vpop.f32.mrf.mxu0
      %5684 = vmatprep.mubr.f32.mxu0 0.0
      %5685 = vmatmul.mubr.f32.gmra.mxu0 %v4867
      %v5686 = vpop.f32.mrf.mxu0
      %v5687 = vadd.f32 %v5442, %v5686
      %v5688 = vpop.f32.mrf.mxu0
      %5689 = vmatprep.mubr.f32.mxu0 0.0
      %5690 = vmatmul.mubr.f32.gmra.mxu0 %v4872
      %v5691 = vpop.f32.mrf.mxu0
      %v5692 = vadd.f32 %v5447, %v5691
      %v5693 = vpop.f32.mrf.mxu0
      %5694 = vmatprep.mubr.f32.mxu0 0.0
      %5695 = vmatmul.mubr.f32.gmra.mxu0 %v4877
      %v5696 = vpop.f32.mrf.mxu0
      %v5697 = vadd.f32 %v5452, %v5696
      %v5698 = vpop.f32.mrf.mxu0
      %5699 = vdwg.mxu0
      %v5700 = vmax.f32 %v5522, 0.0
      %v5701 = vmax.f32 %v5527, 0.0
      %v5702 = vmax.f32 %v5532, 0.0
      %v5703 = vmax.f32 %v5537, 0.0
      %v5704 = vmax.f32 %v5542, 0.0
      %v5705 = vmax.f32 %v5547, 0.0
      %v5706 = vmax.f32 %v5552, 0.0
      %v5707 = vmax.f32 %v5557, 0.0
      %v5708 = vmax.f32 %v5562, 0.0
      %v5709 = vmax.f32 %v5567, 0.0
      %v5710 = vmax.f32 %v5572, 0.0
      %v5711 = vmax.f32 %v5577, 0.0
      %v5712 = vmax.f32 %v5582, 0.0
      %v5713 = vmax.f32 %v5587, 0.0
      %v5714 = vmax.f32 %v5592, 0.0
      %v5715 = vmax.f32 %v5597, 0.0
      %v5716 = vmax.f32 %v5602, 0.0
      %v5717 = vmax.f32 %v5607, 0.0
      %v5718 = vmax.f32 %v5612, 0.0
      %v5719 = vmax.f32 %v5617, 0.0
      %v5720 = vmax.f32 %v5622, 0.0
      %v5721 = vmax.f32 %v5627, 0.0
      %v5722 = vmax.f32 %v5632, 0.0
      %v5723 = vmax.f32 %v5637, 0.0
      %v5724 = vmax.f32 %v5642, 0.0
      %v5725 = vmax.f32 %v5647, 0.0
      %v5726 = vmax.f32 %v5652, 0.0
      %v5727 = vmax.f32 %v5657, 0.0
      %v5728 = vmax.f32 %v5662, 0.0
      %v5729 = vmax.f32 %v5667, 0.0
      %v5730 = vmax.f32 %v5672, 0.0
      %v5731 = vmax.f32 %v5677, 0.0
      %v5732 = vmax.f32 %v5682, 0.0
      %v5733 = vmax.f32 %v5687, 0.0
      %v5734 = vmax.f32 %v5692, 0.0
      %v5735 = vmax.f32 %v5697, 0.0
      %v5736 = vmul.f32 %v5700, %v891
      %v5737 = vmul.f32 %v5701, %v896
      %v5738 = vmul.f32 %v5702, %v901
      %v5739 = vmul.f32 %v5703, %v906
      %v5740 = vmul.f32 %v5704, %v911
      %v5741 = vmul.f32 %v5705, %v916
      %v5742 = vmul.f32 %v5706, %v921
      %v5743 = vmul.f32 %v5707, %v926
      %v5744 = vmul.f32 %v5708, %v931
      %v5745 = vmul.f32 %v5709, %v936
      %v5746 = vmul.f32 %v5710, %v941
      %v5747 = vmul.f32 %v5711, %v946
      %v5748 = vmul.f32 %v5712, %v951
      %v5749 = vmul.f32 %v5713, %v956
      %v5750 = vmul.f32 %v5714, %v961
      %v5751 = vmul.f32 %v5715, %v966
      %v5752 = vmul.f32 %v5716, %v971
      %v5753 = vmul.f32 %v5717, %v976
      %v5754 = vmul.f32 %v5718, %v981
      %v5755 = vmul.f32 %v5719, %v986
      %v5756 = vmul.f32 %v5720, %v991
      %v5757 = vmul.f32 %v5721, %v996
      %v5758 = vmul.f32 %v5722, %v1001
      %v5759 = vmul.f32 %v5723, %v1006
      %v5760 = vmul.f32 %v5724, %v1011
      %v5761 = vmul.f32 %v5725, %v1016
      %v5762 = vmul.f32 %v5726, %v1021
      %v5763 = vmul.f32 %v5727, %v1026
      %v5764 = vmul.f32 %v5728, %v1031
      %v5765 = vmul.f32 %v5729, %v1036
      %v5766 = vmul.f32 %v5730, %v1041
      %v5767 = vmul.f32 %v5731, %v1046
      %v5768 = vmul.f32 %v5732, %v1051
      %v5769 = vmul.f32 %v5733, %v1056
      %v5770 = vmul.f32 %v5734, %v1061
      %v5771 = vmul.f32 %v5735, %v1066
      %5772 = vst.msk [vmem:[#allocation2 + $0x18] sm:$0xff] %vm360, %v5736
      %5773 = vst.msk [vmem:[#allocation2 + $0x20] sm:$0xff] %vm360, %v5737
      %5774 = vst.msk [vmem:[#allocation2 + $0x28] sm:$0xff] %vm360, %v5738
      %5775 = vst.msk [vmem:[#allocation2 + $0x30] sm:$0xff] %vm360, %v5739
      %5776 = vst.msk [vmem:[#allocation2 + $0x38] sm:$0xff] %vm360, %v5740
      %5777 = vst.msk [vmem:[#allocation2 + $0x40] sm:$0xff] %vm360, %v5741
      %5778 = vst.msk [vmem:[#allocation2 + $0x48] sm:$0xff] %vm360, %v5742
      %5779 = vst.msk [vmem:[#allocation2 + $0x50] sm:$0xff] %vm360, %v5743
      %5780 = vst.msk [vmem:[#allocation2 + $0x58] sm:$0xff] %vm360, %v5744
      %5781 = vst.msk [vmem:[#allocation2 + $0x60] sm:$0xff] %vm360, %v5745
      %5782 = vst.msk [vmem:[#allocation2 + $0x68] sm:$0xff] %vm360, %v5746
      %5783 = vst.msk [vmem:[#allocation2 + $0x70] sm:$0xff] %vm360, %v5747
      %5784 = vst.msk [vmem:[#allocation2 + $0x78] sm:$0xff] %vm360, %v5748
      %5785 = vst.msk [vmem:[#allocation2 + $0x80] sm:$0xff] %vm360, %v5749
      %5786 = vst.msk [vmem:[#allocation2 + $0x88] sm:$0xff] %vm360, %v5750
      %5787 = vst.msk [vmem:[#allocation2 + $0x90] sm:$0xff] %vm360, %v5751
      %5788 = vst.msk [vmem:[#allocation2 + $0x98] sm:$0xff] %vm360, %v5752
      %5789 = vst.msk [vmem:[#allocation2 + $0xa0] sm:$0xff] %vm360, %v5753
      %5790 = vst.msk [vmem:[#allocation2 + $0xa8] sm:$0xff] %vm360, %v5754
      %5791 = vst.msk [vmem:[#allocation2 + $0xb0] sm:$0xff] %vm360, %v5755
      %5792 = vst.msk [vmem:[#allocation2 + $0xb8] sm:$0xff] %vm360, %v5756
      %5793 = vst.msk [vmem:[#allocation2 + $0xc0] sm:$0xff] %vm360, %v5757
      %5794 = vst.msk [vmem:[#allocation2 + $0xc8] sm:$0xff] %vm360, %v5758
      %5795 = vst.msk [vmem:[#allocation2 + $0xd0] sm:$0xff] %vm360, %v5759
      %5796 = vst.msk [vmem:[#allocation2 + $0xd8] sm:$0xff] %vm360, %v5760
      %5797 = vst.msk [vmem:[#allocation2 + $0xe0] sm:$0xff] %vm360, %v5761
      %5798 = vst.msk [vmem:[#allocation2 + $0xe8] sm:$0xff] %vm360, %v5762
      %5799 = vst.msk [vmem:[#allocation2 + $0xf0] sm:$0xff] %vm360, %v5763
      %5800 = vst.msk [vmem:[#allocation2 + $0xf8] sm:$0xff] %vm360, %v5764
      %5801 = vst.msk [vmem:[#allocation2 + $0x100] sm:$0xff] %vm360, %v5765
      %5802 = vst.msk [vmem:[#allocation2 + $0x108] sm:$0xff] %vm360, %v5766
      %5803 = vst.msk [vmem:[#allocation2 + $0x110] sm:$0xff] %vm360, %v5767
      %5804 = vst.msk [vmem:[#allocation2 + $0x118] sm:$0xff] %vm360, %v5768
      %5805 = vst.msk [vmem:[#allocation2 + $0x120] sm:$0xff] %vm360, %v5769
      %5806 = vst.msk [vmem:[#allocation2 + $0x128] sm:$0xff] %vm360, %v5770
      %5807 = vst.msk [vmem:[#allocation2 + $0x130] sm:$0xff] %vm360, %v5771
      %v5808 = vld [vmem:[#allocation2 + $0x5] sm:$0xff]
      %v5809 = vld [vmem:[#allocation2 + $0xd] sm:$0xff]
      %v5810 = vld [vmem:[#allocation2 + $0x15] sm:$0xff]
      %v5811 = vld [vmem:[#allocation2 + $0x1d] sm:$0xff]
      %v5812 = vld [vmem:[#allocation2 + $0x25] sm:$0xff]
      %v5813 = vld [vmem:[#allocation2 + $0x2d] sm:$0xff]
      %v5814 = vld [vmem:[#allocation2 + $0x35] sm:$0xff]
      %v5815 = vld [vmem:[#allocation2 + $0x3d] sm:$0xff]
      %v5816 = vld [vmem:[#allocation2 + $0x45] sm:$0xff]
      %v5817 = vld [vmem:[#allocation2 + $0x4d] sm:$0xff]
      %v5818 = vld [vmem:[#allocation2 + $0x55] sm:$0xff]
      %v5819 = vld [vmem:[#allocation2 + $0x5d] sm:$0xff]
      %v5820 = vld [vmem:[#allocation2 + $0x65] sm:$0xff]
      %v5821 = vld [vmem:[#allocation2 + $0x6d] sm:$0xff]
      %v5822 = vld [vmem:[#allocation2 + $0x75] sm:$0xff]
      %v5823 = vld [vmem:[#allocation2 + $0x7d] sm:$0xff]
      %v5824 = vld [vmem:[#allocation2 + $0x85] sm:$0xff]
      %v5825 = vld [vmem:[#allocation2 + $0x8d] sm:$0xff]
      %v5826 = vld [vmem:[#allocation2 + $0x95] sm:$0xff]
      %v5827 = vld [vmem:[#allocation2 + $0x9d] sm:$0xff]
      %v5828 = vld [vmem:[#allocation2 + $0xa5] sm:$0xff]
      %v5829 = vld [vmem:[#allocation2 + $0xad] sm:$0xff]
      %v5830 = vld [vmem:[#allocation2 + $0xb5] sm:$0xff]
      %v5831 = vld [vmem:[#allocation2 + $0xbd] sm:$0xff]
      %v5832 = vld [vmem:[#allocation2 + $0xc5] sm:$0xff]
      %v5833 = vld [vmem:[#allocation2 + $0xcd] sm:$0xff]
      %v5834 = vld [vmem:[#allocation2 + $0xd5] sm:$0xff]
      %v5835 = vld [vmem:[#allocation2 + $0xdd] sm:$0xff]
      %v5836 = vld [vmem:[#allocation2 + $0xe5] sm:$0xff]
      %v5837 = vld [vmem:[#allocation2 + $0xed] sm:$0xff]
      %v5838 = vld [vmem:[#allocation2 + $0xf5] sm:$0xff]
      %v5839 = vld [vmem:[#allocation2 + $0xfd] sm:$0xff]
      %v5840 = vld [vmem:[#allocation2 + $0x105] sm:$0xff]
      %v5841 = vld [vmem:[#allocation2 + $0x10d] sm:$0xff]
      %v5842 = vld [vmem:[#allocation2 + $0x115] sm:$0xff]
      %v5843 = vld [vmem:[#allocation2 + $0x11d] sm:$0xff]
      %5844 = vst.msk [vmem:[#allocation4] sm:$0xff] %vm360, %v5808
      %5845 = vst.msk [vmem:[#allocation4 + $0x28] sm:$0xff] %vm360, %v5809
      %5846 = vst.msk [vmem:[#allocation4 + $0x50] sm:$0xff] %vm360, %v5810
      %5847 = vst.msk [vmem:[#allocation4 + $0x78] sm:$0xff] %vm360, %v5811
      %5848 = vst.msk [vmem:[#allocation4 + $0xa0] sm:$0xff] %vm360, %v5812
      %5849 = vst.msk [vmem:[#allocation4 + $0xc8] sm:$0xff] %vm360, %v5813
      %5850 = vst.msk [vmem:[#allocation4 + $0xf0] sm:$0xff] %vm360, %v5814
      %5851 = vst.msk [vmem:[#allocation4 + $0x118] sm:$0xff] %vm360, %v5815
      %5852 = vst.msk [vmem:[#allocation4 + $0x140] sm:$0xff] %vm360, %v5816
      %5853 = vst.msk [vmem:[#allocation4 + $0x168] sm:$0xff] %vm360, %v5817
      %5854 = vst.msk [vmem:[#allocation4 + $0x190] sm:$0xff] %vm360, %v5818
      %5855 = vst.msk [vmem:[#allocation4 + $0x1b8] sm:$0xff] %vm360, %v5819
      %5856 = vst.msk [vmem:[#allocation4 + $0x1e0] sm:$0xff] %vm360, %v5820
      %5857 = vst.msk [vmem:[#allocation4 + $0x208] sm:$0xff] %vm360, %v5821
      %5858 = vst.msk [vmem:[#allocation4 + $0x230] sm:$0xff] %vm360, %v5822
      %5859 = vst.msk [vmem:[#allocation4 + $0x258] sm:$0xff] %vm360, %v5823
      %5860 = vst.msk [vmem:[#allocation4 + $0x280] sm:$0xff] %vm360, %v5824
      %5861 = vst.msk [vmem:[#allocation4 + $0x2a8] sm:$0xff] %vm360, %v5825
      %5862 = vst.msk [vmem:[#allocation4 + $0x2d0] sm:$0xff] %vm360, %v5826
      %5863 = vst.msk [vmem:[#allocation4 + $0x2f8] sm:$0xff] %vm360, %v5827
      %5864 = vst.msk [vmem:[#allocation4 + $0x320] sm:$0xff] %vm360, %v5828
      %5865 = vst.msk [vmem:[#allocation4 + $0x348] sm:$0xff] %vm360, %v5829
      %5866 = vst.msk [vmem:[#allocation4 + $0x370] sm:$0xff] %vm360, %v5830
      %5867 = vst.msk [vmem:[#allocation4 + $0x398] sm:$0xff] %vm360, %v5831
      %5868 = vst.msk [vmem:[#allocation4 + $0x3c0] sm:$0xff] %vm360, %v5832
      %5869 = vst.msk [vmem:[#allocation4 + $0x3e8] sm:$0xff] %vm360, %v5833
      %5870 = vst.msk [vmem:[#allocation4 + $0x410] sm:$0xff] %vm360, %v5834
      %5871 = vst.msk [vmem:[#allocation4 + $0x438] sm:$0xff] %vm360, %v5835
      %5872 = vst.msk [vmem:[#allocation4 + $0x460] sm:$0xff] %vm360, %v5836
      %5873 = vst.msk [vmem:[#allocation4 + $0x488] sm:$0xff] %vm360, %v5837
      %5874 = vst.msk [vmem:[#allocation4 + $0x4b0] sm:$0xff] %vm360, %v5838
      %5875 = vst.msk [vmem:[#allocation4 + $0x4d8] sm:$0xff] %vm360, %v5839
      %5876 = vst.msk [vmem:[#allocation4 + $0x500] sm:$0xff] %vm360, %v5840
      %5877 = vst.msk [vmem:[#allocation4 + $0x528] sm:$0xff] %vm360, %v5841
      %5878 = vst.msk [vmem:[#allocation4 + $0x550] sm:$0xff] %vm360, %v5842
      %5879 = vst.msk [vmem:[#allocation4 + $0x578] sm:$0xff] %vm360, %v5843
      %v5880 = vld [vmem:[#allocation2 + $0x6] sm:$0xff]
      %v5881 = vld [vmem:[#allocation2 + $0xe] sm:$0xff]
      %v5882 = vld [vmem:[#allocation2 + $0x16] sm:$0xff]
      %v5883 = vld [vmem:[#allocation2 + $0x1e] sm:$0xff]
      %v5884 = vld [vmem:[#allocation2 + $0x26] sm:$0xff]
      %v5885 = vld [vmem:[#allocation2 + $0x2e] sm:$0xff]
      %v5886 = vld [vmem:[#allocation2 + $0x36] sm:$0xff]
      %v5887 = vld [vmem:[#allocation2 + $0x3e] sm:$0xff]
      %v5888 = vld [vmem:[#allocation2 + $0x46] sm:$0xff]
      %v5889 = vld [vmem:[#allocation2 + $0x4e] sm:$0xff]
      %v5890 = vld [vmem:[#allocation2 + $0x56] sm:$0xff]
      %v5891 = vld [vmem:[#allocation2 + $0x5e] sm:$0xff]
      %v5892 = vld [vmem:[#allocation2 + $0x66] sm:$0xff]
      %v5893 = vld [vmem:[#allocation2 + $0x6e] sm:$0xff]
      %v5894 = vld [vmem:[#allocation2 + $0x76] sm:$0xff]
      %v5895 = vld [vmem:[#allocation2 + $0x7e] sm:$0xff]
      %v5896 = vld [vmem:[#allocation2 + $0x86] sm:$0xff]
      %v5897 = vld [vmem:[#allocation2 + $0x8e] sm:$0xff]
      %v5898 = vld [vmem:[#allocation2 + $0x96] sm:$0xff]
      %v5899 = vld [vmem:[#allocation2 + $0x9e] sm:$0xff]
      %v5900 = vld [vmem:[#allocation2 + $0xa6] sm:$0xff]
      %v5901 = vld [vmem:[#allocation2 + $0xae] sm:$0xff]
      %v5902 = vld [vmem:[#allocation2 + $0xb6] sm:$0xff]
      %v5903 = vld [vmem:[#allocation2 + $0xbe] sm:$0xff]
      %v5904 = vld [vmem:[#allocation2 + $0xc6] sm:$0xff]
      %v5905 = vld [vmem:[#allocation2 + $0xce] sm:$0xff]
      %v5906 = vld [vmem:[#allocation2 + $0xd6] sm:$0xff]
      %v5907 = vld [vmem:[#allocation2 + $0xde] sm:$0xff]
      %v5908 = vld [vmem:[#allocation2 + $0xe6] sm:$0xff]
      %v5909 = vld [vmem:[#allocation2 + $0xee] sm:$0xff]
      %v5910 = vld [vmem:[#allocation2 + $0xf6] sm:$0xff]
      %v5911 = vld [vmem:[#allocation2 + $0xfe] sm:$0xff]
      %v5912 = vld [vmem:[#allocation2 + $0x106] sm:$0xff]
      %v5913 = vld [vmem:[#allocation2 + $0x10e] sm:$0xff]
      %v5914 = vld [vmem:[#allocation2 + $0x116] sm:$0xff]
      %v5915 = vld [vmem:[#allocation2 + $0x11e] sm:$0xff]
      %5952 = vrot.lane.b32.xlu0 %v5880, 64
      %v5953 = vpop.permute.xlu0 %5952
      %5954 = vrot.lane.b32.xlu0 %v5881, 64
      %v5955 = vpop.permute.xlu0 %5954
      %5956 = vrot.lane.b32.xlu0 %v5882, 64
      %v5957 = vpop.permute.xlu0 %5956
      %5958 = vrot.lane.b32.xlu0 %v5883, 64
      %v5959 = vpop.permute.xlu0 %5958
      %5960 = vrot.lane.b32.xlu0 %v5884, 64
      %v5961 = vpop.permute.xlu0 %5960
      %5962 = vrot.lane.b32.xlu0 %v5885, 64
      %v5963 = vpop.permute.xlu0 %5962
      %5964 = vrot.lane.b32.xlu0 %v5886, 64
      %v5965 = vpop.permute.xlu0 %5964
      %5966 = vrot.lane.b32.xlu0 %v5887, 64
      %v5967 = vpop.permute.xlu0 %5966
      %5968 = vrot.lane.b32.xlu0 %v5888, 64
      %v5969 = vpop.permute.xlu0 %5968
      %5970 = vrot.lane.b32.xlu0 %v5889, 64
      %v5971 = vpop.permute.xlu0 %5970
      %5972 = vrot.lane.b32.xlu0 %v5890, 64
      %v5973 = vpop.permute.xlu0 %5972
      %5974 = vrot.lane.b32.xlu0 %v5891, 64
      %v5975 = vpop.permute.xlu0 %5974
      %5976 = vrot.lane.b32.xlu0 %v5892, 64
      %v5977 = vpop.permute.xlu0 %5976
      %5978 = vrot.lane.b32.xlu0 %v5893, 64
      %v5979 = vpop.permute.xlu0 %5978
      %5980 = vrot.lane.b32.xlu0 %v5894, 64
      %v5981 = vpop.permute.xlu0 %5980
      %5982 = vrot.lane.b32.xlu0 %v5895, 64
      %v5983 = vpop.permute.xlu0 %5982
      %5984 = vrot.lane.b32.xlu0 %v5896, 64
      %v5985 = vpop.permute.xlu0 %5984
      %5986 = vrot.lane.b32.xlu0 %v5897, 64
      %v5987 = vpop.permute.xlu0 %5986
      %5988 = vrot.lane.b32.xlu0 %v5898, 64
      %v5989 = vpop.permute.xlu0 %5988
      %5990 = vrot.lane.b32.xlu0 %v5899, 64
      %v5991 = vpop.permute.xlu0 %5990
      %5992 = vrot.lane.b32.xlu0 %v5900, 64
      %v5993 = vpop.permute.xlu0 %5992
      %5994 = vrot.lane.b32.xlu0 %v5901, 64
      %v5995 = vpop.permute.xlu0 %5994
      %5996 = vrot.lane.b32.xlu0 %v5902, 64
      %v5997 = vpop.permute.xlu0 %5996
      %5998 = vrot.lane.b32.xlu0 %v5903, 64
      %v5999 = vpop.permute.xlu0 %5998
      %6000 = vrot.lane.b32.xlu0 %v5904, 64
      %v6001 = vpop.permute.xlu0 %6000
      %6002 = vrot.lane.b32.xlu0 %v5905, 64
      %v6003 = vpop.permute.xlu0 %6002
      %6004 = vrot.lane.b32.xlu0 %v5906, 64
      %v6005 = vpop.permute.xlu0 %6004
      %6006 = vrot.lane.b32.xlu0 %v5907, 64
      %v6007 = vpop.permute.xlu0 %6006
      %6008 = vrot.lane.b32.xlu0 %v5908, 64
      %v6009 = vpop.permute.xlu0 %6008
      %6010 = vrot.lane.b32.xlu0 %v5909, 64
      %v6011 = vpop.permute.xlu0 %6010
      %6012 = vrot.lane.b32.xlu0 %v5910, 64
      %v6013 = vpop.permute.xlu0 %6012
      %6014 = vrot.lane.b32.xlu0 %v5911, 64
      %v6015 = vpop.permute.xlu0 %6014
      %6016 = vrot.lane.b32.xlu0 %v5912, 64
      %v6017 = vpop.permute.xlu0 %6016
      %6018 = vrot.lane.b32.xlu0 %v5913, 64
      %v6019 = vpop.permute.xlu0 %6018
      %6020 = vrot.lane.b32.xlu0 %v5914, 64
      %v6021 = vpop.permute.xlu0 %6020
      %6022 = vrot.lane.b32.xlu0 %v5915, 64
      %v6023 = vpop.permute.xlu0 %6022
      %6060 = vst.msk [vmem:[#allocation4] sm:$0xff] %vm373, %v5953
      %6061 = vst.msk [vmem:[#allocation4 + $0x28] sm:$0xff] %vm373, %v5955
      %6062 = vst.msk [vmem:[#allocation4 + $0x50] sm:$0xff] %vm373, %v5957
      %6063 = vst.msk [vmem:[#allocation4 + $0x78] sm:$0xff] %vm373, %v5959
      %6064 = vst.msk [vmem:[#allocation4 + $0xa0] sm:$0xff] %vm373, %v5961
      %6065 = vst.msk [vmem:[#allocation4 + $0xc8] sm:$0xff] %vm373, %v5963
      %6066 = vst.msk [vmem:[#allocation4 + $0xf0] sm:$0xff] %vm373, %v5965
      %6067 = vst.msk [vmem:[#allocation4 + $0x118] sm:$0xff] %vm373, %v5967
      %6068 = vst.msk [vmem:[#allocation4 + $0x140] sm:$0xff] %vm373, %v5969
      %6069 = vst.msk [vmem:[#allocation4 + $0x168] sm:$0xff] %vm373, %v5971
      %6070 = vst.msk [vmem:[#allocation4 + $0x190] sm:$0xff] %vm373, %v5973
      %6071 = vst.msk [vmem:[#allocation4 + $0x1b8] sm:$0xff] %vm373, %v5975
      %6072 = vst.msk [vmem:[#allocation4 + $0x1e0] sm:$0xff] %vm373, %v5977
      %6073 = vst.msk [vmem:[#allocation4 + $0x208] sm:$0xff] %vm373, %v5979
      %6074 = vst.msk [vmem:[#allocation4 + $0x230] sm:$0xff] %vm373, %v5981
      %6075 = vst.msk [vmem:[#allocation4 + $0x258] sm:$0xff] %vm373, %v5983
      %6076 = vst.msk [vmem:[#allocation4 + $0x280] sm:$0xff] %vm373, %v5985
      %6077 = vst.msk [vmem:[#allocation4 + $0x2a8] sm:$0xff] %vm373, %v5987
      %6078 = vst.msk [vmem:[#allocation4 + $0x2d0] sm:$0xff] %vm373, %v5989
      %6079 = vst.msk [vmem:[#allocation4 + $0x2f8] sm:$0xff] %vm373, %v5991
      %6080 = vst.msk [vmem:[#allocation4 + $0x320] sm:$0xff] %vm373, %v5993
      %6081 = vst.msk [vmem:[#allocation4 + $0x348] sm:$0xff] %vm373, %v5995
      %6082 = vst.msk [vmem:[#allocation4 + $0x370] sm:$0xff] %vm373, %v5997
      %6083 = vst.msk [vmem:[#allocation4 + $0x398] sm:$0xff] %vm373, %v5999
      %6084 = vst.msk [vmem:[#allocation4 + $0x3c0] sm:$0xff] %vm373, %v6001
      %6085 = vst.msk [vmem:[#allocation4 + $0x3e8] sm:$0xff] %vm373, %v6003
      %6086 = vst.msk [vmem:[#allocation4 + $0x410] sm:$0xff] %vm373, %v6005
      %6087 = vst.msk [vmem:[#allocation4 + $0x438] sm:$0xff] %vm373, %v6007
      %6088 = vst.msk [vmem:[#allocation4 + $0x460] sm:$0xff] %vm373, %v6009
      %6089 = vst.msk [vmem:[#allocation4 + $0x488] sm:$0xff] %vm373, %v6011
      %6090 = vst.msk [vmem:[#allocation4 + $0x4b0] sm:$0xff] %vm373, %v6013
      %6091 = vst.msk [vmem:[#allocation4 + $0x4d8] sm:$0xff] %vm373, %v6015
      %6092 = vst.msk [vmem:[#allocation4 + $0x500] sm:$0xff] %vm373, %v6017
      %6093 = vst.msk [vmem:[#allocation4 + $0x528] sm:$0xff] %vm373, %v6019
      %6094 = vst.msk [vmem:[#allocation4 + $0x550] sm:$0xff] %vm373, %v6021
      %6095 = vst.msk [vmem:[#allocation4 + $0x578] sm:$0xff] %vm373, %v6023
      %v6096 = vld [vmem:[#allocation2 + $0x7] sm:$0xff]
      %v6097 = vld [vmem:[#allocation2 + $0xf] sm:$0xff]
      %v6098 = vld [vmem:[#allocation2 + $0x17] sm:$0xff]
      %v6099 = vld [vmem:[#allocation2 + $0x1f] sm:$0xff]
      %v6100 = vld [vmem:[#allocation2 + $0x27] sm:$0xff]
      %v6101 = vld [vmem:[#allocation2 + $0x2f] sm:$0xff]
      %v6102 = vld [vmem:[#allocation2 + $0x37] sm:$0xff]
      %v6103 = vld [vmem:[#allocation2 + $0x3f] sm:$0xff]
      %v6104 = vld [vmem:[#allocation2 + $0x47] sm:$0xff]
      %v6105 = vld [vmem:[#allocation2 + $0x4f] sm:$0xff]
      %v6106 = vld [vmem:[#allocation2 + $0x57] sm:$0xff]
      %v6107 = vld [vmem:[#allocation2 + $0x5f] sm:$0xff]
      %v6108 = vld [vmem:[#allocation2 + $0x67] sm:$0xff]
      %v6109 = vld [vmem:[#allocation2 + $0x6f] sm:$0xff]
      %v6110 = vld [vmem:[#allocation2 + $0x77] sm:$0xff]
      %v6111 = vld [vmem:[#allocation2 + $0x7f] sm:$0xff]
      %v6112 = vld [vmem:[#allocation2 + $0x87] sm:$0xff]
      %v6113 = vld [vmem:[#allocation2 + $0x8f] sm:$0xff]
      %v6114 = vld [vmem:[#allocation2 + $0x97] sm:$0xff]
      %v6115 = vld [vmem:[#allocation2 + $0x9f] sm:$0xff]
      %v6116 = vld [vmem:[#allocation2 + $0xa7] sm:$0xff]
      %v6117 = vld [vmem:[#allocation2 + $0xaf] sm:$0xff]
      %v6118 = vld [vmem:[#allocation2 + $0xb7] sm:$0xff]
      %v6119 = vld [vmem:[#allocation2 + $0xbf] sm:$0xff]
      %v6120 = vld [vmem:[#allocation2 + $0xc7] sm:$0xff]
      %v6121 = vld [vmem:[#allocation2 + $0xcf] sm:$0xff]
      %v6122 = vld [vmem:[#allocation2 + $0xd7] sm:$0xff]
      %v6123 = vld [vmem:[#allocation2 + $0xdf] sm:$0xff]
      %v6124 = vld [vmem:[#allocation2 + $0xe7] sm:$0xff]
      %v6125 = vld [vmem:[#allocation2 + $0xef] sm:$0xff]
      %v6126 = vld [vmem:[#allocation2 + $0xf7] sm:$0xff]
      %v6127 = vld [vmem:[#allocation2 + $0xff] sm:$0xff]
      %v6128 = vld [vmem:[#allocation2 + $0x107] sm:$0xff]
      %v6129 = vld [vmem:[#allocation2 + $0x10f] sm:$0xff]
      %v6130 = vld [vmem:[#allocation2 + $0x117] sm:$0xff]
      %v6131 = vld [vmem:[#allocation2 + $0x11f] sm:$0xff]
      %6132 = vst.msk [vmem:[#allocation4 + $0x8] sm:$0xff] %vm360, %v6096
      %6133 = vst.msk [vmem:[#allocation4 + $0x30] sm:$0xff] %vm360, %v6097
      %6134 = vst.msk [vmem:[#allocation4 + $0x58] sm:$0xff] %vm360, %v6098
      %6135 = vst.msk [vmem:[#allocation4 + $0x80] sm:$0xff] %vm360, %v6099
      %6136 = vst.msk [vmem:[#allocation4 + $0xa8] sm:$0xff] %vm360, %v6100
      %6137 = vst.msk [vmem:[#allocation4 + $0xd0] sm:$0xff] %vm360, %v6101
      %6138 = vst.msk [vmem:[#allocation4 + $0xf8] sm:$0xff] %vm360, %v6102
      %6139 = vst.msk [vmem:[#allocation4 + $0x120] sm:$0xff] %vm360, %v6103
      %6140 = vst.msk [vmem:[#allocation4 + $0x148] sm:$0xff] %vm360, %v6104
      %6141 = vst.msk [vmem:[#allocation4 + $0x170] sm:$0xff] %vm360, %v6105
      %6142 = vst.msk [vmem:[#allocation4 + $0x198] sm:$0xff] %vm360, %v6106
      %6143 = vst.msk [vmem:[#allocation4 + $0x1c0] sm:$0xff] %vm360, %v6107
      %6144 = vst.msk [vmem:[#allocation4 + $0x1e8] sm:$0xff] %vm360, %v6108
      %6145 = vst.msk [vmem:[#allocation4 + $0x210] sm:$0xff] %vm360, %v6109
      %6146 = vst.msk [vmem:[#allocation4 + $0x238] sm:$0xff] %vm360, %v6110
      %6147 = vst.msk [vmem:[#allocation4 + $0x260] sm:$0xff] %vm360, %v6111
      %6148 = vst.msk [vmem:[#allocation4 + $0x288] sm:$0xff] %vm360, %v6112
      %6149 = vst.msk [vmem:[#allocation4 + $0x2b0] sm:$0xff] %vm360, %v6113
      %6150 = vst.msk [vmem:[#allocation4 + $0x2d8] sm:$0xff] %vm360, %v6114
      %6151 = vst.msk [vmem:[#allocation4 + $0x300] sm:$0xff] %vm360, %v6115
      %6152 = vst.msk [vmem:[#allocation4 + $0x328] sm:$0xff] %vm360, %v6116
      %6153 = vst.msk [vmem:[#allocation4 + $0x350] sm:$0xff] %vm360, %v6117
      %6154 = vst.msk [vmem:[#allocation4 + $0x378] sm:$0xff] %vm360, %v6118
      %6155 = vst.msk [vmem:[#allocation4 + $0x3a0] sm:$0xff] %vm360, %v6119
      %6156 = vst.msk [vmem:[#allocation4 + $0x3c8] sm:$0xff] %vm360, %v6120
      %6157 = vst.msk [vmem:[#allocation4 + $0x3f0] sm:$0xff] %vm360, %v6121
      %6158 = vst.msk [vmem:[#allocation4 + $0x418] sm:$0xff] %vm360, %v6122
      %6159 = vst.msk [vmem:[#allocation4 + $0x440] sm:$0xff] %vm360, %v6123
      %6160 = vst.msk [vmem:[#allocation4 + $0x468] sm:$0xff] %vm360, %v6124
      %6161 = vst.msk [vmem:[#allocation4 + $0x490] sm:$0xff] %vm360, %v6125
      %6162 = vst.msk [vmem:[#allocation4 + $0x4b8] sm:$0xff] %vm360, %v6126
      %6163 = vst.msk [vmem:[#allocation4 + $0x4e0] sm:$0xff] %vm360, %v6127
      %6164 = vst.msk [vmem:[#allocation4 + $0x508] sm:$0xff] %vm360, %v6128
      %6165 = vst.msk [vmem:[#allocation4 + $0x530] sm:$0xff] %vm360, %v6129
      %6166 = vst.msk [vmem:[#allocation4 + $0x558] sm:$0xff] %vm360, %v6130
      %6167 = vst.msk [vmem:[#allocation4 + $0x580] sm:$0xff] %vm360, %v6131
      %v6168 = vld [vmem:[#allocation2 + $0x17] sm:$0xff]
      %v6169 = vld [vmem:[#allocation2 + $0x1f] sm:$0xff]
      %v6170 = vld [vmem:[#allocation2 + $0x27] sm:$0xff]
      %v6171 = vld [vmem:[#allocation2 + $0x2f] sm:$0xff]
      %v6172 = vld [vmem:[#allocation2 + $0x37] sm:$0xff]
      %v6173 = vld [vmem:[#allocation2 + $0x3f] sm:$0xff]
      %v6174 = vld [vmem:[#allocation2 + $0x47] sm:$0xff]
      %v6175 = vld [vmem:[#allocation2 + $0x4f] sm:$0xff]
      %v6176 = vld [vmem:[#allocation2 + $0x57] sm:$0xff]
      %v6177 = vld [vmem:[#allocation2 + $0x5f] sm:$0xff]
      %v6178 = vld [vmem:[#allocation2 + $0x67] sm:$0xff]
      %v6179 = vld [vmem:[#allocation2 + $0x6f] sm:$0xff]
      %v6180 = vld [vmem:[#allocation2 + $0x77] sm:$0xff]
      %v6181 = vld [vmem:[#allocation2 + $0x7f] sm:$0xff]
      %v6182 = vld [vmem:[#allocation2 + $0x87] sm:$0xff]
      %v6183 = vld [vmem:[#allocation2 + $0x8f] sm:$0xff]
      %v6184 = vld [vmem:[#allocation2 + $0x97] sm:$0xff]
      %v6185 = vld [vmem:[#allocation2 + $0x9f] sm:$0xff]
      %v6186 = vld [vmem:[#allocation2 + $0xa7] sm:$0xff]
      %v6187 = vld [vmem:[#allocation2 + $0xaf] sm:$0xff]
      %v6188 = vld [vmem:[#allocation2 + $0xb7] sm:$0xff]
      %v6189 = vld [vmem:[#allocation2 + $0xbf] sm:$0xff]
      %v6190 = vld [vmem:[#allocation2 + $0xc7] sm:$0xff]
      %v6191 = vld [vmem:[#allocation2 + $0xcf] sm:$0xff]
      %v6192 = vld [vmem:[#allocation2 + $0xd7] sm:$0xff]
      %v6193 = vld [vmem:[#allocation2 + $0xdf] sm:$0xff]
      %v6194 = vld [vmem:[#allocation2 + $0xe7] sm:$0xff]
      %v6195 = vld [vmem:[#allocation2 + $0xef] sm:$0xff]
      %v6196 = vld [vmem:[#allocation2 + $0xf7] sm:$0xff]
      %v6197 = vld [vmem:[#allocation2 + $0xff] sm:$0xff]
      %v6198 = vld [vmem:[#allocation2 + $0x107] sm:$0xff]
      %v6199 = vld [vmem:[#allocation2 + $0x10f] sm:$0xff]
      %v6200 = vld [vmem:[#allocation2 + $0x117] sm:$0xff]
      %v6201 = vld [vmem:[#allocation2 + $0x11f] sm:$0xff]
      %v6202 = vld [vmem:[#allocation2 + $0x127] sm:$0xff]
      %v6203 = vld [vmem:[#allocation2 + $0x12f] sm:$0xff]
      %6240 = vrot.lane.b32.xlu0 %v6168, 64
      %v6241 = vpop.permute.xlu0 %6240
      %6242 = vrot.lane.b32.xlu0 %v6169, 64
      %v6243 = vpop.permute.xlu0 %6242
      %6244 = vrot.lane.b32.xlu0 %v6170, 64
      %v6245 = vpop.permute.xlu0 %6244
      %6246 = vrot.lane.b32.xlu0 %v6171, 64
      %v6247 = vpop.permute.xlu0 %6246
      %6248 = vrot.lane.b32.xlu0 %v6172, 64
      %v6249 = vpop.permute.xlu0 %6248
      %6250 = vrot.lane.b32.xlu0 %v6173, 64
      %v6251 = vpop.permute.xlu0 %6250
      %6252 = vrot.lane.b32.xlu0 %v6174, 64
      %v6253 = vpop.permute.xlu0 %6252
      %6254 = vrot.lane.b32.xlu0 %v6175, 64
      %v6255 = vpop.permute.xlu0 %6254
      %6256 = vrot.lane.b32.xlu0 %v6176, 64
      %v6257 = vpop.permute.xlu0 %6256
      %6258 = vrot.lane.b32.xlu0 %v6177, 64
      %v6259 = vpop.permute.xlu0 %6258
      %6260 = vrot.lane.b32.xlu0 %v6178, 64
      %v6261 = vpop.permute.xlu0 %6260
      %6262 = vrot.lane.b32.xlu0 %v6179, 64
      %v6263 = vpop.permute.xlu0 %6262
      %6264 = vrot.lane.b32.xlu0 %v6180, 64
      %v6265 = vpop.permute.xlu0 %6264
      %6266 = vrot.lane.b32.xlu0 %v6181, 64
      %v6267 = vpop.permute.xlu0 %6266
      %6268 = vrot.lane.b32.xlu0 %v6182, 64
      %v6269 = vpop.permute.xlu0 %6268
      %6270 = vrot.lane.b32.xlu0 %v6183, 64
      %v6271 = vpop.permute.xlu0 %6270
      %6272 = vrot.lane.b32.xlu0 %v6184, 64
      %v6273 = vpop.permute.xlu0 %6272
      %6274 = vrot.lane.b32.xlu0 %v6185, 64
      %v6275 = vpop.permute.xlu0 %6274
      %6276 = vrot.lane.b32.xlu0 %v6186, 64
      %v6277 = vpop.permute.xlu0 %6276
      %6278 = vrot.lane.b32.xlu0 %v6187, 64
      %v6279 = vpop.permute.xlu0 %6278
      %6280 = vrot.lane.b32.xlu0 %v6188, 64
      %v6281 = vpop.permute.xlu0 %6280
      %6282 = vrot.lane.b32.xlu0 %v6189, 64
      %v6283 = vpop.permute.xlu0 %6282
      %6284 = vrot.lane.b32.xlu0 %v6190, 64
      %v6285 = vpop.permute.xlu0 %6284
      %6286 = vrot.lane.b32.xlu0 %v6191, 64
      %v6287 = vpop.permute.xlu0 %6286
      %6288 = vrot.lane.b32.xlu0 %v6192, 64
      %v6289 = vpop.permute.xlu0 %6288
      %6290 = vrot.lane.b32.xlu0 %v6193, 64
      %v6291 = vpop.permute.xlu0 %6290
      %6292 = vrot.lane.b32.xlu0 %v6194, 64
      %v6293 = vpop.permute.xlu0 %6292
      %6294 = vrot.lane.b32.xlu0 %v6195, 64
      %v6295 = vpop.permute.xlu0 %6294
      %6296 = vrot.lane.b32.xlu0 %v6196, 64
      %v6297 = vpop.permute.xlu0 %6296
      %6298 = vrot.lane.b32.xlu0 %v6197, 64
      %v6299 = vpop.permute.xlu0 %6298
      %6300 = vrot.lane.b32.xlu0 %v6198, 64
      %v6301 = vpop.permute.xlu0 %6300
      %6302 = vrot.lane.b32.xlu0 %v6199, 64
      %v6303 = vpop.permute.xlu0 %6302
      %6304 = vrot.lane.b32.xlu0 %v6200, 64
      %v6305 = vpop.permute.xlu0 %6304
      %6306 = vrot.lane.b32.xlu0 %v6201, 64
      %v6307 = vpop.permute.xlu0 %6306
      %6308 = vrot.lane.b32.xlu0 %v6202, 64
      %v6309 = vpop.permute.xlu0 %6308
      %6310 = vrot.lane.b32.xlu0 %v6203, 64
      %v6311 = vpop.permute.xlu0 %6310
      %6348 = vst.msk [vmem:[#allocation4 + $0x8] sm:$0xff] %vm373, %v6241
      %6349 = vst.msk [vmem:[#allocation4 + $0x30] sm:$0xff] %vm373, %v6243
      %6350 = vst.msk [vmem:[#allocation4 + $0x58] sm:$0xff] %vm373, %v6245
      %6351 = vst.msk [vmem:[#allocation4 + $0x80] sm:$0xff] %vm373, %v6247
      %6352 = vst.msk [vmem:[#allocation4 + $0xa8] sm:$0xff] %vm373, %v6249
      %6353 = vst.msk [vmem:[#allocation4 + $0xd0] sm:$0xff] %vm373, %v6251
      %6354 = vst.msk [vmem:[#allocation4 + $0xf8] sm:$0xff] %vm373, %v6253
      %6355 = vst.msk [vmem:[#allocation4 + $0x120] sm:$0xff] %vm373, %v6255
      %6356 = vst.msk [vmem:[#allocation4 + $0x148] sm:$0xff] %vm373, %v6257
      %6357 = vst.msk [vmem:[#allocation4 + $0x170] sm:$0xff] %vm373, %v6259
      %6358 = vst.msk [vmem:[#allocation4 + $0x198] sm:$0xff] %vm373, %v6261
      %6359 = vst.msk [vmem:[#allocation4 + $0x1c0] sm:$0xff] %vm373, %v6263
      %6360 = vst.msk [vmem:[#allocation4 + $0x1e8] sm:$0xff] %vm373, %v6265
      %6361 = vst.msk [vmem:[#allocation4 + $0x210] sm:$0xff] %vm373, %v6267
      %6362 = vst.msk [vmem:[#allocation4 + $0x238] sm:$0xff] %vm373, %v6269
      %6363 = vst.msk [vmem:[#allocation4 + $0x260] sm:$0xff] %vm373, %v6271
      %6364 = vst.msk [vmem:[#allocation4 + $0x288] sm:$0xff] %vm373, %v6273
      %6365 = vst.msk [vmem:[#allocation4 + $0x2b0] sm:$0xff] %vm373, %v6275
      %6366 = vst.msk [vmem:[#allocation4 + $0x2d8] sm:$0xff] %vm373, %v6277
      %6367 = vst.msk [vmem:[#allocation4 + $0x300] sm:$0xff] %vm373, %v6279
      %6368 = vst.msk [vmem:[#allocation4 + $0x328] sm:$0xff] %vm373, %v6281
      %6369 = vst.msk [vmem:[#allocation4 + $0x350] sm:$0xff] %vm373, %v6283
      %6370 = vst.msk [vmem:[#allocation4 + $0x378] sm:$0xff] %vm373, %v6285
      %6371 = vst.msk [vmem:[#allocation4 + $0x3a0] sm:$0xff] %vm373, %v6287
      %6372 = vst.msk [vmem:[#allocation4 + $0x3c8] sm:$0xff] %vm373, %v6289
      %6373 = vst.msk [vmem:[#allocation4 + $0x3f0] sm:$0xff] %vm373, %v6291
      %6374 = vst.msk [vmem:[#allocation4 + $0x418] sm:$0xff] %vm373, %v6293
      %6375 = vst.msk [vmem:[#allocation4 + $0x440] sm:$0xff] %vm373, %v6295
      %6376 = vst.msk [vmem:[#allocation4 + $0x468] sm:$0xff] %vm373, %v6297
      %6377 = vst.msk [vmem:[#allocation4 + $0x490] sm:$0xff] %vm373, %v6299
      %6378 = vst.msk [vmem:[#allocation4 + $0x4b8] sm:$0xff] %vm373, %v6301
      %6379 = vst.msk [vmem:[#allocation4 + $0x4e0] sm:$0xff] %vm373, %v6303
      %6380 = vst.msk [vmem:[#allocation4 + $0x508] sm:$0xff] %vm373, %v6305
      %6381 = vst.msk [vmem:[#allocation4 + $0x530] sm:$0xff] %vm373, %v6307
      %6382 = vst.msk [vmem:[#allocation4 + $0x558] sm:$0xff] %vm373, %v6309
      %6383 = vst.msk [vmem:[#allocation4 + $0x580] sm:$0xff] %vm373, %v6311
      %v6384 = vld [vmem:[#allocation2 + $0x18] sm:$0xff]
      %v6385 = vld [vmem:[#allocation2 + $0x20] sm:$0xff]
      %v6386 = vld [vmem:[#allocation2 + $0x28] sm:$0xff]
      %v6387 = vld [vmem:[#allocation2 + $0x30] sm:$0xff]
      %v6388 = vld [vmem:[#allocation2 + $0x38] sm:$0xff]
      %v6389 = vld [vmem:[#allocation2 + $0x40] sm:$0xff]
      %v6390 = vld [vmem:[#allocation2 + $0x48] sm:$0xff]
      %v6391 = vld [vmem:[#allocation2 + $0x50] sm:$0xff]
      %v6392 = vld [vmem:[#allocation2 + $0x58] sm:$0xff]
      %v6393 = vld [vmem:[#allocation2 + $0x60] sm:$0xff]
      %v6394 = vld [vmem:[#allocation2 + $0x68] sm:$0xff]
      %v6395 = vld [vmem:[#allocation2 + $0x70] sm:$0xff]
      %v6396 = vld [vmem:[#allocation2 + $0x78] sm:$0xff]
      %v6397 = vld [vmem:[#allocation2 + $0x80] sm:$0xff]
      %v6398 = vld [vmem:[#allocation2 + $0x88] sm:$0xff]
      %v6399 = vld [vmem:[#allocation2 + $0x90] sm:$0xff]
      %v6400 = vld [vmem:[#allocation2 + $0x98] sm:$0xff]
      %v6401 = vld [vmem:[#allocation2 + $0xa0] sm:$0xff]
      %v6402 = vld [vmem:[#allocation2 + $0xa8] sm:$0xff]
      %v6403 = vld [vmem:[#allocation2 + $0xb0] sm:$0xff]
      %v6404 = vld [vmem:[#allocation2 + $0xb8] sm:$0xff]
      %v6405 = vld [vmem:[#allocation2 + $0xc0] sm:$0xff]
      %v6406 = vld [vmem:[#allocation2 + $0xc8] sm:$0xff]
      %v6407 = vld [vmem:[#allocation2 + $0xd0] sm:$0xff]
      %v6408 = vld [vmem:[#allocation2 + $0xd8] sm:$0xff]
      %v6409 = vld [vmem:[#allocation2 + $0xe0] sm:$0xff]
      %v6410 = vld [vmem:[#allocation2 + $0xe8] sm:$0xff]
      %v6411 = vld [vmem:[#allocation2 + $0xf0] sm:$0xff]
      %v6412 = vld [vmem:[#allocation2 + $0xf8] sm:$0xff]
      %v6413 = vld [vmem:[#allocation2 + $0x100] sm:$0xff]
      %v6414 = vld [vmem:[#allocation2 + $0x108] sm:$0xff]
      %v6415 = vld [vmem:[#allocation2 + $0x110] sm:$0xff]
      %v6416 = vld [vmem:[#allocation2 + $0x118] sm:$0xff]
      %v6417 = vld [vmem:[#allocation2 + $0x120] sm:$0xff]
      %v6418 = vld [vmem:[#allocation2 + $0x128] sm:$0xff]
      %v6419 = vld [vmem:[#allocation2 + $0x130] sm:$0xff]
      %6420 = vst.msk [vmem:[#allocation4 + $0x10] sm:$0xff] %vm360, %v6384
      %6421 = vst.msk [vmem:[#allocation4 + $0x38] sm:$0xff] %vm360, %v6385
      %6422 = vst.msk [vmem:[#allocation4 + $0x60] sm:$0xff] %vm360, %v6386
      %6423 = vst.msk [vmem:[#allocation4 + $0x88] sm:$0xff] %vm360, %v6387
      %6424 = vst.msk [vmem:[#allocation4 + $0xb0] sm:$0xff] %vm360, %v6388
      %6425 = vst.msk [vmem:[#allocation4 + $0xd8] sm:$0xff] %vm360, %v6389
      %6426 = vst.msk [vmem:[#allocation4 + $0x100] sm:$0xff] %vm360, %v6390
      %6427 = vst.msk [vmem:[#allocation4 + $0x128] sm:$0xff] %vm360, %v6391
      %6428 = vst.msk [vmem:[#allocation4 + $0x150] sm:$0xff] %vm360, %v6392
      %6429 = vst.msk [vmem:[#allocation4 + $0x178] sm:$0xff] %vm360, %v6393
      %6430 = vst.msk [vmem:[#allocation4 + $0x1a0] sm:$0xff] %vm360, %v6394
      %6431 = vst.msk [vmem:[#allocation4 + $0x1c8] sm:$0xff] %vm360, %v6395
      %6432 = vst.msk [vmem:[#allocation4 + $0x1f0] sm:$0xff] %vm360, %v6396
      %6433 = vst.msk [vmem:[#allocation4 + $0x218] sm:$0xff] %vm360, %v6397
      %6434 = vst.msk [vmem:[#allocation4 + $0x240] sm:$0xff] %vm360, %v6398
      %6435 = vst.msk [vmem:[#allocation4 + $0x268] sm:$0xff] %vm360, %v6399
      %6436 = vst.msk [vmem:[#allocation4 + $0x290] sm:$0xff] %vm360, %v6400
      %6437 = vst.msk [vmem:[#allocation4 + $0x2b8] sm:$0xff] %vm360, %v6401
      %6438 = vst.msk [vmem:[#allocation4 + $0x2e0] sm:$0xff] %vm360, %v6402
      %6439 = vst.msk [vmem:[#allocation4 + $0x308] sm:$0xff] %vm360, %v6403
      %6440 = vst.msk [vmem:[#allocation4 + $0x330] sm:$0xff] %vm360, %v6404
      %6441 = vst.msk [vmem:[#allocation4 + $0x358] sm:$0xff] %vm360, %v6405
      %6442 = vst.msk [vmem:[#allocation4 + $0x380] sm:$0xff] %vm360, %v6406
      %6443 = vst.msk [vmem:[#allocation4 + $0x3a8] sm:$0xff] %vm360, %v6407
      %6444 = vst.msk [vmem:[#allocation4 + $0x3d0] sm:$0xff] %vm360, %v6408
      %6445 = vst.msk [vmem:[#allocation4 + $0x3f8] sm:$0xff] %vm360, %v6409
      %6446 = vst.msk [vmem:[#allocation4 + $0x420] sm:$0xff] %vm360, %v6410
      %6447 = vst.msk [vmem:[#allocation4 + $0x448] sm:$0xff] %vm360, %v6411
      %6448 = vst.msk [vmem:[#allocation4 + $0x470] sm:$0xff] %vm360, %v6412
      %6449 = vst.msk [vmem:[#allocation4 + $0x498] sm:$0xff] %vm360, %v6413
      %6450 = vst.msk [vmem:[#allocation4 + $0x4c0] sm:$0xff] %vm360, %v6414
      %6451 = vst.msk [vmem:[#allocation4 + $0x4e8] sm:$0xff] %vm360, %v6415
      %6452 = vst.msk [vmem:[#allocation4 + $0x510] sm:$0xff] %vm360, %v6416
      %6453 = vst.msk [vmem:[#allocation4 + $0x538] sm:$0xff] %vm360, %v6417
      %6454 = vst.msk [vmem:[#allocation4 + $0x560] sm:$0xff] %vm360, %v6418
      %6455 = vst.msk [vmem:[#allocation4 + $0x588] sm:$0xff] %vm360, %v6419
      %v6456 = vld [vmem:[#allocation2 + $0x19] sm:$0xff]
      %v6457 = vld [vmem:[#allocation2 + $0x21] sm:$0xff]
      %v6458 = vld [vmem:[#allocation2 + $0x29] sm:$0xff]
      %v6459 = vld [vmem:[#allocation2 + $0x31] sm:$0xff]
      %v6460 = vld [vmem:[#allocation2 + $0x39] sm:$0xff]
      %v6461 = vld [vmem:[#allocation2 + $0x41] sm:$0xff]
      %v6462 = vld [vmem:[#allocation2 + $0x49] sm:$0xff]
      %v6463 = vld [vmem:[#allocation2 + $0x51] sm:$0xff]
      %v6464 = vld [vmem:[#allocation2 + $0x59] sm:$0xff]
      %v6465 = vld [vmem:[#allocation2 + $0x61] sm:$0xff]
      %v6466 = vld [vmem:[#allocation2 + $0x69] sm:$0xff]
      %v6467 = vld [vmem:[#allocation2 + $0x71] sm:$0xff]
      %v6468 = vld [vmem:[#allocation2 + $0x79] sm:$0xff]
      %v6469 = vld [vmem:[#allocation2 + $0x81] sm:$0xff]
      %v6470 = vld [vmem:[#allocation2 + $0x89] sm:$0xff]
      %v6471 = vld [vmem:[#allocation2 + $0x91] sm:$0xff]
      %v6472 = vld [vmem:[#allocation2 + $0x99] sm:$0xff]
      %v6473 = vld [vmem:[#allocation2 + $0xa1] sm:$0xff]
      %v6474 = vld [vmem:[#allocation2 + $0xa9] sm:$0xff]
      %v6475 = vld [vmem:[#allocation2 + $0xb1] sm:$0xff]
      %v6476 = vld [vmem:[#allocation2 + $0xb9] sm:$0xff]
      %v6477 = vld [vmem:[#allocation2 + $0xc1] sm:$0xff]
      %v6478 = vld [vmem:[#allocation2 + $0xc9] sm:$0xff]
      %v6479 = vld [vmem:[#allocation2 + $0xd1] sm:$0xff]
      %v6480 = vld [vmem:[#allocation2 + $0xd9] sm:$0xff]
      %v6481 = vld [vmem:[#allocation2 + $0xe1] sm:$0xff]
      %v6482 = vld [vmem:[#allocation2 + $0xe9] sm:$0xff]
      %v6483 = vld [vmem:[#allocation2 + $0xf1] sm:$0xff]
      %v6484 = vld [vmem:[#allocation2 + $0xf9] sm:$0xff]
      %v6485 = vld [vmem:[#allocation2 + $0x101] sm:$0xff]
      %v6486 = vld [vmem:[#allocation2 + $0x109] sm:$0xff]
      %v6487 = vld [vmem:[#allocation2 + $0x111] sm:$0xff]
      %v6488 = vld [vmem:[#allocation2 + $0x119] sm:$0xff]
      %v6489 = vld [vmem:[#allocation2 + $0x121] sm:$0xff]
      %v6490 = vld [vmem:[#allocation2 + $0x129] sm:$0xff]
      %v6491 = vld [vmem:[#allocation2 + $0x131] sm:$0xff]
      %6528 = vrot.lane.b32.xlu0 %v6456, 64
      %v6529 = vpop.permute.xlu0 %6528
      %6530 = vrot.lane.b32.xlu0 %v6457, 64
      %v6531 = vpop.permute.xlu0 %6530
      %6532 = vrot.lane.b32.xlu0 %v6458, 64
      %v6533 = vpop.permute.xlu0 %6532
      %6534 = vrot.lane.b32.xlu0 %v6459, 64
      %v6535 = vpop.permute.xlu0 %6534
      %6536 = vrot.lane.b32.xlu0 %v6460, 64
      %v6537 = vpop.permute.xlu0 %6536
      %6538 = vrot.lane.b32.xlu0 %v6461, 64
      %v6539 = vpop.permute.xlu0 %6538
      %6540 = vrot.lane.b32.xlu0 %v6462, 64
      %v6541 = vpop.permute.xlu0 %6540
      %6542 = vrot.lane.b32.xlu0 %v6463, 64
      %v6543 = vpop.permute.xlu0 %6542
      %6544 = vrot.lane.b32.xlu0 %v6464, 64
      %v6545 = vpop.permute.xlu0 %6544
      %6546 = vrot.lane.b32.xlu0 %v6465, 64
      %v6547 = vpop.permute.xlu0 %6546
      %6548 = vrot.lane.b32.xlu0 %v6466, 64
      %v6549 = vpop.permute.xlu0 %6548
      %6550 = vrot.lane.b32.xlu0 %v6467, 64
      %v6551 = vpop.permute.xlu0 %6550
      %6552 = vrot.lane.b32.xlu0 %v6468, 64
      %v6553 = vpop.permute.xlu0 %6552
      %6554 = vrot.lane.b32.xlu0 %v6469, 64
      %v6555 = vpop.permute.xlu0 %6554
      %6556 = vrot.lane.b32.xlu0 %v6470, 64
      %v6557 = vpop.permute.xlu0 %6556
      %6558 = vrot.lane.b32.xlu0 %v6471, 64
      %v6559 = vpop.permute.xlu0 %6558
      %6560 = vrot.lane.b32.xlu0 %v6472, 64
      %v6561 = vpop.permute.xlu0 %6560
      %6562 = vrot.lane.b32.xlu0 %v6473, 64
      %v6563 = vpop.permute.xlu0 %6562
      %6564 = vrot.lane.b32.xlu0 %v6474, 64
      %v6565 = vpop.permute.xlu0 %6564
      %6566 = vrot.lane.b32.xlu0 %v6475, 64
      %v6567 = vpop.permute.xlu0 %6566
      %6568 = vrot.lane.b32.xlu0 %v6476, 64
      %v6569 = vpop.permute.xlu0 %6568
      %6570 = vrot.lane.b32.xlu0 %v6477, 64
      %v6571 = vpop.permute.xlu0 %6570
      %6572 = vrot.lane.b32.xlu0 %v6478, 64
      %v6573 = vpop.permute.xlu0 %6572
      %6574 = vrot.lane.b32.xlu0 %v6479, 64
      %v6575 = vpop.permute.xlu0 %6574
      %6576 = vrot.lane.b32.xlu0 %v6480, 64
      %v6577 = vpop.permute.xlu0 %6576
      %6578 = vrot.lane.b32.xlu0 %v6481, 64
      %v6579 = vpop.permute.xlu0 %6578
      %6580 = vrot.lane.b32.xlu0 %v6482, 64
      %v6581 = vpop.permute.xlu0 %6580
      %6582 = vrot.lane.b32.xlu0 %v6483, 64
      %v6583 = vpop.permute.xlu0 %6582
      %6584 = vrot.lane.b32.xlu0 %v6484, 64
      %v6585 = vpop.permute.xlu0 %6584
      %6586 = vrot.lane.b32.xlu0 %v6485, 64
      %v6587 = vpop.permute.xlu0 %6586
      %6588 = vrot.lane.b32.xlu0 %v6486, 64
      %v6589 = vpop.permute.xlu0 %6588
      %6590 = vrot.lane.b32.xlu0 %v6487, 64
      %v6591 = vpop.permute.xlu0 %6590
      %6592 = vrot.lane.b32.xlu0 %v6488, 64
      %v6593 = vpop.permute.xlu0 %6592
      %6594 = vrot.lane.b32.xlu0 %v6489, 64
      %v6595 = vpop.permute.xlu0 %6594
      %6596 = vrot.lane.b32.xlu0 %v6490, 64
      %v6597 = vpop.permute.xlu0 %6596
      %6598 = vrot.lane.b32.xlu0 %v6491, 64
      %v6599 = vpop.permute.xlu0 %6598
      %6636 = vst.msk [vmem:[#allocation4 + $0x10] sm:$0xff] %vm373, %v6529
      %6637 = vst.msk [vmem:[#allocation4 + $0x38] sm:$0xff] %vm373, %v6531
      %6638 = vst.msk [vmem:[#allocation4 + $0x60] sm:$0xff] %vm373, %v6533
      %6639 = vst.msk [vmem:[#allocation4 + $0x88] sm:$0xff] %vm373, %v6535
      %6640 = vst.msk [vmem:[#allocation4 + $0xb0] sm:$0xff] %vm373, %v6537
      %6641 = vst.msk [vmem:[#allocation4 + $0xd8] sm:$0xff] %vm373, %v6539
      %6642 = vst.msk [vmem:[#allocation4 + $0x100] sm:$0xff] %vm373, %v6541
      %6643 = vst.msk [vmem:[#allocation4 + $0x128] sm:$0xff] %vm373, %v6543
      %6644 = vst.msk [vmem:[#allocation4 + $0x150] sm:$0xff] %vm373, %v6545
      %6645 = vst.msk [vmem:[#allocation4 + $0x178] sm:$0xff] %vm373, %v6547
      %6646 = vst.msk [vmem:[#allocation4 + $0x1a0] sm:$0xff] %vm373, %v6549
      %6647 = vst.msk [vmem:[#allocation4 + $0x1c8] sm:$0xff] %vm373, %v6551
      %6648 = vst.msk [vmem:[#allocation4 + $0x1f0] sm:$0xff] %vm373, %v6553
      %6649 = vst.msk [vmem:[#allocation4 + $0x218] sm:$0xff] %vm373, %v6555
      %6650 = vst.msk [vmem:[#allocation4 + $0x240] sm:$0xff] %vm373, %v6557
      %6651 = vst.msk [vmem:[#allocation4 + $0x268] sm:$0xff] %vm373, %v6559
      %6652 = vst.msk [vmem:[#allocation4 + $0x290] sm:$0xff] %vm373, %v6561
      %6653 = vst.msk [vmem:[#allocation4 + $0x2b8] sm:$0xff] %vm373, %v6563
      %6654 = vst.msk [vmem:[#allocation4 + $0x2e0] sm:$0xff] %vm373, %v6565
      %6655 = vst.msk [vmem:[#allocation4 + $0x308] sm:$0xff] %vm373, %v6567
      %6656 = vst.msk [vmem:[#allocation4 + $0x330] sm:$0xff] %vm373, %v6569
      %6657 = vst.msk [vmem:[#allocation4 + $0x358] sm:$0xff] %vm373, %v6571
      %6658 = vst.msk [vmem:[#allocation4 + $0x380] sm:$0xff] %vm373, %v6573
      %6659 = vst.msk [vmem:[#allocation4 + $0x3a8] sm:$0xff] %vm373, %v6575
      %6660 = vst.msk [vmem:[#allocation4 + $0x3d0] sm:$0xff] %vm373, %v6577
      %6661 = vst.msk [vmem:[#allocation4 + $0x3f8] sm:$0xff] %vm373, %v6579
      %6662 = vst.msk [vmem:[#allocation4 + $0x420] sm:$0xff] %vm373, %v6581
      %6663 = vst.msk [vmem:[#allocation4 + $0x448] sm:$0xff] %vm373, %v6583
      %6664 = vst.msk [vmem:[#allocation4 + $0x470] sm:$0xff] %vm373, %v6585
      %6665 = vst.msk [vmem:[#allocation4 + $0x498] sm:$0xff] %vm373, %v6587
      %6666 = vst.msk [vmem:[#allocation4 + $0x4c0] sm:$0xff] %vm373, %v6589
      %6667 = vst.msk [vmem:[#allocation4 + $0x4e8] sm:$0xff] %vm373, %v6591
      %6668 = vst.msk [vmem:[#allocation4 + $0x510] sm:$0xff] %vm373, %v6593
      %6669 = vst.msk [vmem:[#allocation4 + $0x538] sm:$0xff] %vm373, %v6595
      %6670 = vst.msk [vmem:[#allocation4 + $0x560] sm:$0xff] %vm373, %v6597
      %6671 = vst.msk [vmem:[#allocation4 + $0x588] sm:$0xff] %vm373, %v6599
      %v6672 = vld [vmem:[#allocation2 + $0x29] sm:$0xff]
      %v6673 = vld [vmem:[#allocation2 + $0x31] sm:$0xff]
      %v6674 = vld [vmem:[#allocation2 + $0x39] sm:$0xff]
      %v6675 = vld [vmem:[#allocation2 + $0x41] sm:$0xff]
      %v6676 = vld [vmem:[#allocation2 + $0x49] sm:$0xff]
      %v6677 = vld [vmem:[#allocation2 + $0x51] sm:$0xff]
      %v6678 = vld [vmem:[#allocation2 + $0x59] sm:$0xff]
      %v6679 = vld [vmem:[#allocation2 + $0x61] sm:$0xff]
      %v6680 = vld [vmem:[#allocation2 + $0x69] sm:$0xff]
      %v6681 = vld [vmem:[#allocation2 + $0x71] sm:$0xff]
      %v6682 = vld [vmem:[#allocation2 + $0x79] sm:$0xff]
      %v6683 = vld [vmem:[#allocation2 + $0x81] sm:$0xff]
      %v6684 = vld [vmem:[#allocation2 + $0x89] sm:$0xff]
      %v6685 = vld [vmem:[#allocation2 + $0x91] sm:$0xff]
      %v6686 = vld [vmem:[#allocation2 + $0x99] sm:$0xff]
      %v6687 = vld [vmem:[#allocation2 + $0xa1] sm:$0xff]
      %v6688 = vld [vmem:[#allocation2 + $0xa9] sm:$0xff]
      %v6689 = vld [vmem:[#allocation2 + $0xb1] sm:$0xff]
      %v6690 = vld [vmem:[#allocation2 + $0xb9] sm:$0xff]
      %v6691 = vld [vmem:[#allocation2 + $0xc1] sm:$0xff]
      %v6692 = vld [vmem:[#allocation2 + $0xc9] sm:$0xff]
      %v6693 = vld [vmem:[#allocation2 + $0xd1] sm:$0xff]
      %v6694 = vld [vmem:[#allocation2 + $0xd9] sm:$0xff]
      %v6695 = vld [vmem:[#allocation2 + $0xe1] sm:$0xff]
      %v6696 = vld [vmem:[#allocation2 + $0xe9] sm:$0xff]
      %v6697 = vld [vmem:[#allocation2 + $0xf1] sm:$0xff]
      %v6698 = vld [vmem:[#allocation2 + $0xf9] sm:$0xff]
      %v6699 = vld [vmem:[#allocation2 + $0x101] sm:$0xff]
      %v6700 = vld [vmem:[#allocation2 + $0x109] sm:$0xff]
      %v6701 = vld [vmem:[#allocation2 + $0x111] sm:$0xff]
      %v6702 = vld [vmem:[#allocation2 + $0x119] sm:$0xff]
      %v6703 = vld [vmem:[#allocation2 + $0x121] sm:$0xff]
      %v6704 = vld [vmem:[#allocation2 + $0x129] sm:$0xff]
      %v6705 = vld [vmem:[#allocation2 + $0x131] sm:$0xff]
      %v6706 = vld [vmem:[#allocation2 + $0x139] sm:$0xff]
      %v6707 = vld [vmem:[#allocation2 + $0x141] sm:$0xff]
      %6708 = vst.msk [vmem:[#allocation4 + $0x18] sm:$0xff] %vm360, %v6672
      %6709 = vst.msk [vmem:[#allocation4 + $0x40] sm:$0xff] %vm360, %v6673
      %6710 = vst.msk [vmem:[#allocation4 + $0x68] sm:$0xff] %vm360, %v6674
      %6711 = vst.msk [vmem:[#allocation4 + $0x90] sm:$0xff] %vm360, %v6675
      %6712 = vst.msk [vmem:[#allocation4 + $0xb8] sm:$0xff] %vm360, %v6676
      %6713 = vst.msk [vmem:[#allocation4 + $0xe0] sm:$0xff] %vm360, %v6677
      %6714 = vst.msk [vmem:[#allocation4 + $0x108] sm:$0xff] %vm360, %v6678
      %6715 = vst.msk [vmem:[#allocation4 + $0x130] sm:$0xff] %vm360, %v6679
      %6716 = vst.msk [vmem:[#allocation4 + $0x158] sm:$0xff] %vm360, %v6680
      %6717 = vst.msk [vmem:[#allocation4 + $0x180] sm:$0xff] %vm360, %v6681
      %6718 = vst.msk [vmem:[#allocation4 + $0x1a8] sm:$0xff] %vm360, %v6682
      %6719 = vst.msk [vmem:[#allocation4 + $0x1d0] sm:$0xff] %vm360, %v6683
      %6720 = vst.msk [vmem:[#allocation4 + $0x1f8] sm:$0xff] %vm360, %v6684
      %6721 = vst.msk [vmem:[#allocation4 + $0x220] sm:$0xff] %vm360, %v6685
      %6722 = vst.msk [vmem:[#allocation4 + $0x248] sm:$0xff] %vm360, %v6686
      %6723 = vst.msk [vmem:[#allocation4 + $0x270] sm:$0xff] %vm360, %v6687
      %6724 = vst.msk [vmem:[#allocation4 + $0x298] sm:$0xff] %vm360, %v6688
      %6725 = vst.msk [vmem:[#allocation4 + $0x2c0] sm:$0xff] %vm360, %v6689
      %6726 = vst.msk [vmem:[#allocation4 + $0x2e8] sm:$0xff] %vm360, %v6690
      %6727 = vst.msk [vmem:[#allocation4 + $0x310] sm:$0xff] %vm360, %v6691
      %6728 = vst.msk [vmem:[#allocation4 + $0x338] sm:$0xff] %vm360, %v6692
      %6729 = vst.msk [vmem:[#allocation4 + $0x360] sm:$0xff] %vm360, %v6693
      %6730 = vst.msk [vmem:[#allocation4 + $0x388] sm:$0xff] %vm360, %v6694
      %6731 = vst.msk [vmem:[#allocation4 + $0x3b0] sm:$0xff] %vm360, %v6695
      %6732 = vst.msk [vmem:[#allocation4 + $0x3d8] sm:$0xff] %vm360, %v6696
      %6733 = vst.msk [vmem:[#allocation4 + $0x400] sm:$0xff] %vm360, %v6697
      %6734 = vst.msk [vmem:[#allocation4 + $0x428] sm:$0xff] %vm360, %v6698
      %6735 = vst.msk [vmem:[#allocation4 + $0x450] sm:$0xff] %vm360, %v6699
      %6736 = vst.msk [vmem:[#allocation4 + $0x478] sm:$0xff] %vm360, %v6700
      %6737 = vst.msk [vmem:[#allocation4 + $0x4a0] sm:$0xff] %vm360, %v6701
      %6738 = vst.msk [vmem:[#allocation4 + $0x4c8] sm:$0xff] %vm360, %v6702
      %6739 = vst.msk [vmem:[#allocation4 + $0x4f0] sm:$0xff] %vm360, %v6703
      %6740 = vst.msk [vmem:[#allocation4 + $0x518] sm:$0xff] %vm360, %v6704
      %6741 = vst.msk [vmem:[#allocation4 + $0x540] sm:$0xff] %vm360, %v6705
      %6742 = vst.msk [vmem:[#allocation4 + $0x568] sm:$0xff] %vm360, %v6706
      %6743 = vst.msk [vmem:[#allocation4 + $0x590] sm:$0xff] %vm360, %v6707
      %v6744 = vld [vmem:[#allocation2 + $0x2a] sm:$0xff]
      %v6745 = vld [vmem:[#allocation2 + $0x32] sm:$0xff]
      %v6746 = vld [vmem:[#allocation2 + $0x3a] sm:$0xff]
      %v6747 = vld [vmem:[#allocation2 + $0x42] sm:$0xff]
      %v6748 = vld [vmem:[#allocation2 + $0x4a] sm:$0xff]
      %v6749 = vld [vmem:[#allocation2 + $0x52] sm:$0xff]
      %v6750 = vld [vmem:[#allocation2 + $0x5a] sm:$0xff]
      %v6751 = vld [vmem:[#allocation2 + $0x62] sm:$0xff]
      %v6752 = vld [vmem:[#allocation2 + $0x6a] sm:$0xff]
      %v6753 = vld [vmem:[#allocation2 + $0x72] sm:$0xff]
      %v6754 = vld [vmem:[#allocation2 + $0x7a] sm:$0xff]
      %v6755 = vld [vmem:[#allocation2 + $0x82] sm:$0xff]
      %v6756 = vld [vmem:[#allocation2 + $0x8a] sm:$0xff]
      %v6757 = vld [vmem:[#allocation2 + $0x92] sm:$0xff]
      %v6758 = vld [vmem:[#allocation2 + $0x9a] sm:$0xff]
      %v6759 = vld [vmem:[#allocation2 + $0xa2] sm:$0xff]
      %v6760 = vld [vmem:[#allocation2 + $0xaa] sm:$0xff]
      %v6761 = vld [vmem:[#allocation2 + $0xb2] sm:$0xff]
      %v6762 = vld [vmem:[#allocation2 + $0xba] sm:$0xff]
      %v6763 = vld [vmem:[#allocation2 + $0xc2] sm:$0xff]
      %v6764 = vld [vmem:[#allocation2 + $0xca] sm:$0xff]
      %v6765 = vld [vmem:[#allocation2 + $0xd2] sm:$0xff]
      %v6766 = vld [vmem:[#allocation2 + $0xda] sm:$0xff]
      %v6767 = vld [vmem:[#allocation2 + $0xe2] sm:$0xff]
      %v6768 = vld [vmem:[#allocation2 + $0xea] sm:$0xff]
      %v6769 = vld [vmem:[#allocation2 + $0xf2] sm:$0xff]
      %v6770 = vld [vmem:[#allocation2 + $0xfa] sm:$0xff]
      %v6771 = vld [vmem:[#allocation2 + $0x102] sm:$0xff]
      %v6772 = vld [vmem:[#allocation2 + $0x10a] sm:$0xff]
      %v6773 = vld [vmem:[#allocation2 + $0x112] sm:$0xff]
      %v6774 = vld [vmem:[#allocation2 + $0x11a] sm:$0xff]
      %v6775 = vld [vmem:[#allocation2 + $0x122] sm:$0xff]
      %v6776 = vld [vmem:[#allocation2 + $0x12a] sm:$0xff]
      %v6777 = vld [vmem:[#allocation2 + $0x132] sm:$0xff]
      %v6778 = vld [vmem:[#allocation2 + $0x13a] sm:$0xff]
      %v6779 = vld [vmem:[#allocation2 + $0x142] sm:$0xff]
      %6816 = vrot.lane.b32.xlu0 %v6744, 64
      %v6817 = vpop.permute.xlu0 %6816
      %6818 = vrot.lane.b32.xlu0 %v6745, 64
      %v6819 = vpop.permute.xlu0 %6818
      %6820 = vrot.lane.b32.xlu0 %v6746, 64
      %v6821 = vpop.permute.xlu0 %6820
      %6822 = vrot.lane.b32.xlu0 %v6747, 64
      %v6823 = vpop.permute.xlu0 %6822
      %6824 = vrot.lane.b32.xlu0 %v6748, 64
      %v6825 = vpop.permute.xlu0 %6824
      %6826 = vrot.lane.b32.xlu0 %v6749, 64
      %v6827 = vpop.permute.xlu0 %6826
      %6828 = vrot.lane.b32.xlu0 %v6750, 64
      %v6829 = vpop.permute.xlu0 %6828
      %6830 = vrot.lane.b32.xlu0 %v6751, 64
      %v6831 = vpop.permute.xlu0 %6830
      %6832 = vrot.lane.b32.xlu0 %v6752, 64
      %v6833 = vpop.permute.xlu0 %6832
      %6834 = vrot.lane.b32.xlu0 %v6753, 64
      %v6835 = vpop.permute.xlu0 %6834
      %6836 = vrot.lane.b32.xlu0 %v6754, 64
      %v6837 = vpop.permute.xlu0 %6836
      %6838 = vrot.lane.b32.xlu0 %v6755, 64
      %v6839 = vpop.permute.xlu0 %6838
      %6840 = vrot.lane.b32.xlu0 %v6756, 64
      %v6841 = vpop.permute.xlu0 %6840
      %6842 = vrot.lane.b32.xlu0 %v6757, 64
      %v6843 = vpop.permute.xlu0 %6842
      %6844 = vrot.lane.b32.xlu0 %v6758, 64
      %v6845 = vpop.permute.xlu0 %6844
      %6846 = vrot.lane.b32.xlu0 %v6759, 64
      %v6847 = vpop.permute.xlu0 %6846
      %6848 = vrot.lane.b32.xlu0 %v6760, 64
      %v6849 = vpop.permute.xlu0 %6848
      %6850 = vrot.lane.b32.xlu0 %v6761, 64
      %v6851 = vpop.permute.xlu0 %6850
      %6852 = vrot.lane.b32.xlu0 %v6762, 64
      %v6853 = vpop.permute.xlu0 %6852
      %6854 = vrot.lane.b32.xlu0 %v6763, 64
      %v6855 = vpop.permute.xlu0 %6854
      %6856 = vrot.lane.b32.xlu0 %v6764, 64
      %v6857 = vpop.permute.xlu0 %6856
      %6858 = vrot.lane.b32.xlu0 %v6765, 64
      %v6859 = vpop.permute.xlu0 %6858
      %6860 = vrot.lane.b32.xlu0 %v6766, 64
      %v6861 = vpop.permute.xlu0 %6860
      %6862 = vrot.lane.b32.xlu0 %v6767, 64
      %v6863 = vpop.permute.xlu0 %6862
      %6864 = vrot.lane.b32.xlu0 %v6768, 64
      %v6865 = vpop.permute.xlu0 %6864
      %6866 = vrot.lane.b32.xlu0 %v6769, 64
      %v6867 = vpop.permute.xlu0 %6866
      %6868 = vrot.lane.b32.xlu0 %v6770, 64
      %v6869 = vpop.permute.xlu0 %6868
      %6870 = vrot.lane.b32.xlu0 %v6771, 64
      %v6871 = vpop.permute.xlu0 %6870
      %6872 = vrot.lane.b32.xlu0 %v6772, 64
      %v6873 = vpop.permute.xlu0 %6872
      %6874 = vrot.lane.b32.xlu0 %v6773, 64
      %v6875 = vpop.permute.xlu0 %6874
      %6876 = vrot.lane.b32.xlu0 %v6774, 64
      %v6877 = vpop.permute.xlu0 %6876
      %6878 = vrot.lane.b32.xlu0 %v6775, 64
      %v6879 = vpop.permute.xlu0 %6878
      %6880 = vrot.lane.b32.xlu0 %v6776, 64
      %v6881 = vpop.permute.xlu0 %6880
      %6882 = vrot.lane.b32.xlu0 %v6777, 64
      %v6883 = vpop.permute.xlu0 %6882
      %6884 = vrot.lane.b32.xlu0 %v6778, 64
      %v6885 = vpop.permute.xlu0 %6884
      %6886 = vrot.lane.b32.xlu0 %v6779, 64
      %v6887 = vpop.permute.xlu0 %6886
      %6924 = vst.msk [vmem:[#allocation4 + $0x18] sm:$0xff] %vm373, %v6817
      %6925 = vst.msk [vmem:[#allocation4 + $0x40] sm:$0xff] %vm373, %v6819
      %6926 = vst.msk [vmem:[#allocation4 + $0x68] sm:$0xff] %vm373, %v6821
      %6927 = vst.msk [vmem:[#allocation4 + $0x90] sm:$0xff] %vm373, %v6823
      %6928 = vst.msk [vmem:[#allocation4 + $0xb8] sm:$0xff] %vm373, %v6825
      %6929 = vst.msk [vmem:[#allocation4 + $0xe0] sm:$0xff] %vm373, %v6827
      %6930 = vst.msk [vmem:[#allocation4 + $0x108] sm:$0xff] %vm373, %v6829
      %6931 = vst.msk [vmem:[#allocation4 + $0x130] sm:$0xff] %vm373, %v6831
      %6932 = vst.msk [vmem:[#allocation4 + $0x158] sm:$0xff] %vm373, %v6833
      %6933 = vst.msk [vmem:[#allocation4 + $0x180] sm:$0xff] %vm373, %v6835
      %6934 = vst.msk [vmem:[#allocation4 + $0x1a8] sm:$0xff] %vm373, %v6837
      %6935 = vst.msk [vmem:[#allocation4 + $0x1d0] sm:$0xff] %vm373, %v6839
      %6936 = vst.msk [vmem:[#allocation4 + $0x1f8] sm:$0xff] %vm373, %v6841
      %6937 = vst.msk [vmem:[#allocation4 + $0x220] sm:$0xff] %vm373, %v6843
      %6938 = vst.msk [vmem:[#allocation4 + $0x248] sm:$0xff] %vm373, %v6845
      %6939 = vst.msk [vmem:[#allocation4 + $0x270] sm:$0xff] %vm373, %v6847
      %6940 = vst.msk [vmem:[#allocation4 + $0x298] sm:$0xff] %vm373, %v6849
      %6941 = vst.msk [vmem:[#allocation4 + $0x2c0] sm:$0xff] %vm373, %v6851
      %6942 = vst.msk [vmem:[#allocation4 + $0x2e8] sm:$0xff] %vm373, %v6853
      %6943 = vst.msk [vmem:[#allocation4 + $0x310] sm:$0xff] %vm373, %v6855
      %6944 = vst.msk [vmem:[#allocation4 + $0x338] sm:$0xff] %vm373, %v6857
      %6945 = vst.msk [vmem:[#allocation4 + $0x360] sm:$0xff] %vm373, %v6859
      %6946 = vst.msk [vmem:[#allocation4 + $0x388] sm:$0xff] %vm373, %v6861
      %6947 = vst.msk [vmem:[#allocation4 + $0x3b0] sm:$0xff] %vm373, %v6863
      %6948 = vst.msk [vmem:[#allocation4 + $0x3d8] sm:$0xff] %vm373, %v6865
      %6949 = vst.msk [vmem:[#allocation4 + $0x400] sm:$0xff] %vm373, %v6867
      %6950 = vst.msk [vmem:[#allocation4 + $0x428] sm:$0xff] %vm373, %v6869
      %6951 = vst.msk [vmem:[#allocation4 + $0x450] sm:$0xff] %vm373, %v6871
      %6952 = vst.msk [vmem:[#allocation4 + $0x478] sm:$0xff] %vm373, %v6873
      %6953 = vst.msk [vmem:[#allocation4 + $0x4a0] sm:$0xff] %vm373, %v6875
      %6954 = vst.msk [vmem:[#allocation4 + $0x4c8] sm:$0xff] %vm373, %v6877
      %6955 = vst.msk [vmem:[#allocation4 + $0x4f0] sm:$0xff] %vm373, %v6879
      %6956 = vst.msk [vmem:[#allocation4 + $0x518] sm:$0xff] %vm373, %v6881
      %6957 = vst.msk [vmem:[#allocation4 + $0x540] sm:$0xff] %vm373, %v6883
      %6958 = vst.msk [vmem:[#allocation4 + $0x568] sm:$0xff] %vm373, %v6885
      %6959 = vst.msk [vmem:[#allocation4 + $0x590] sm:$0xff] %vm373, %v6887
      %v6960 = vld [vmem:[#allocation2 + $0x2b] sm:$0xff]
      %v6961 = vld [vmem:[#allocation2 + $0x33] sm:$0xff]
      %v6962 = vld [vmem:[#allocation2 + $0x3b] sm:$0xff]
      %v6963 = vld [vmem:[#allocation2 + $0x43] sm:$0xff]
      %v6964 = vld [vmem:[#allocation2 + $0x4b] sm:$0xff]
      %v6965 = vld [vmem:[#allocation2 + $0x53] sm:$0xff]
      %v6966 = vld [vmem:[#allocation2 + $0x5b] sm:$0xff]
      %v6967 = vld [vmem:[#allocation2 + $0x63] sm:$0xff]
      %v6968 = vld [vmem:[#allocation2 + $0x6b] sm:$0xff]
      %v6969 = vld [vmem:[#allocation2 + $0x73] sm:$0xff]
      %v6970 = vld [vmem:[#allocation2 + $0x7b] sm:$0xff]
      %v6971 = vld [vmem:[#allocation2 + $0x83] sm:$0xff]
      %v6972 = vld [vmem:[#allocation2 + $0x8b] sm:$0xff]
      %v6973 = vld [vmem:[#allocation2 + $0x93] sm:$0xff]
      %v6974 = vld [vmem:[#allocation2 + $0x9b] sm:$0xff]
      %v6975 = vld [vmem:[#allocation2 + $0xa3] sm:$0xff]
      %v6976 = vld [vmem:[#allocation2 + $0xab] sm:$0xff]
      %v6977 = vld [vmem:[#allocation2 + $0xb3] sm:$0xff]
      %v6978 = vld [vmem:[#allocation2 + $0xbb] sm:$0xff]
      %v6979 = vld [vmem:[#allocation2 + $0xc3] sm:$0xff]
      %v6980 = vld [vmem:[#allocation2 + $0xcb] sm:$0xff]
      %v6981 = vld [vmem:[#allocation2 + $0xd3] sm:$0xff]
      %v6982 = vld [vmem:[#allocation2 + $0xdb] sm:$0xff]
      %v6983 = vld [vmem:[#allocation2 + $0xe3] sm:$0xff]
      %v6984 = vld [vmem:[#allocation2 + $0xeb] sm:$0xff]
      %v6985 = vld [vmem:[#allocation2 + $0xf3] sm:$0xff]
      %v6986 = vld [vmem:[#allocation2 + $0xfb] sm:$0xff]
      %v6987 = vld [vmem:[#allocation2 + $0x103] sm:$0xff]
      %v6988 = vld [vmem:[#allocation2 + $0x10b] sm:$0xff]
      %v6989 = vld [vmem:[#allocation2 + $0x113] sm:$0xff]
      %v6990 = vld [vmem:[#allocation2 + $0x11b] sm:$0xff]
      %v6991 = vld [vmem:[#allocation2 + $0x123] sm:$0xff]
      %v6992 = vld [vmem:[#allocation2 + $0x12b] sm:$0xff]
      %v6993 = vld [vmem:[#allocation2 + $0x133] sm:$0xff]
      %v6994 = vld [vmem:[#allocation2 + $0x13b] sm:$0xff]
      %v6995 = vld [vmem:[#allocation2 + $0x143] sm:$0xff]
      %6996 = vst.msk [vmem:[#allocation4 + $0x20] sm:$0xff] %vm360, %v6960
      %6997 = vst.msk [vmem:[#allocation4 + $0x48] sm:$0xff] %vm360, %v6961
      %6998 = vst.msk [vmem:[#allocation4 + $0x70] sm:$0xff] %vm360, %v6962
      %6999 = vst.msk [vmem:[#allocation4 + $0x98] sm:$0xff] %vm360, %v6963
      %7000 = vst.msk [vmem:[#allocation4 + $0xc0] sm:$0xff] %vm360, %v6964
      %7001 = vst.msk [vmem:[#allocation4 + $0xe8] sm:$0xff] %vm360, %v6965
      %7002 = vst.msk [vmem:[#allocation4 + $0x110] sm:$0xff] %vm360, %v6966
      %7003 = vst.msk [vmem:[#allocation4 + $0x138] sm:$0xff] %vm360, %v6967
      %7004 = vst.msk [vmem:[#allocation4 + $0x160] sm:$0xff] %vm360, %v6968
      %7005 = vst.msk [vmem:[#allocation4 + $0x188] sm:$0xff] %vm360, %v6969
      %7006 = vst.msk [vmem:[#allocation4 + $0x1b0] sm:$0xff] %vm360, %v6970
      %7007 = vst.msk [vmem:[#allocation4 + $0x1d8] sm:$0xff] %vm360, %v6971
      %7008 = vst.msk [vmem:[#allocation4 + $0x200] sm:$0xff] %vm360, %v6972
      %7009 = vst.msk [vmem:[#allocation4 + $0x228] sm:$0xff] %vm360, %v6973
      %7010 = vst.msk [vmem:[#allocation4 + $0x250] sm:$0xff] %vm360, %v6974
      %7011 = vst.msk [vmem:[#allocation4 + $0x278] sm:$0xff] %vm360, %v6975
      %7012 = vst.msk [vmem:[#allocation4 + $0x2a0] sm:$0xff] %vm360, %v6976
      %7013 = vst.msk [vmem:[#allocation4 + $0x2c8] sm:$0xff] %vm360, %v6977
      %7014 = vst.msk [vmem:[#allocation4 + $0x2f0] sm:$0xff] %vm360, %v6978
      %7015 = vst.msk [vmem:[#allocation4 + $0x318] sm:$0xff] %vm360, %v6979
      %7016 = vst.msk [vmem:[#allocation4 + $0x340] sm:$0xff] %vm360, %v6980
      %7017 = vst.msk [vmem:[#allocation4 + $0x368] sm:$0xff] %vm360, %v6981
      %7018 = vst.msk [vmem:[#allocation4 + $0x390] sm:$0xff] %vm360, %v6982
      %7019 = vst.msk [vmem:[#allocation4 + $0x3b8] sm:$0xff] %vm360, %v6983
      %7020 = vst.msk [vmem:[#allocation4 + $0x3e0] sm:$0xff] %vm360, %v6984
      %7021 = vst.msk [vmem:[#allocation4 + $0x408] sm:$0xff] %vm360, %v6985
      %7022 = vst.msk [vmem:[#allocation4 + $0x430] sm:$0xff] %vm360, %v6986
      %7023 = vst.msk [vmem:[#allocation4 + $0x458] sm:$0xff] %vm360, %v6987
      %7024 = vst.msk [vmem:[#allocation4 + $0x480] sm:$0xff] %vm360, %v6988
      %7025 = vst.msk [vmem:[#allocation4 + $0x4a8] sm:$0xff] %vm360, %v6989
      %7026 = vst.msk [vmem:[#allocation4 + $0x4d0] sm:$0xff] %vm360, %v6990
      %7027 = vst.msk [vmem:[#allocation4 + $0x4f8] sm:$0xff] %vm360, %v6991
      %7028 = vst.msk [vmem:[#allocation4 + $0x520] sm:$0xff] %vm360, %v6992
      %7029 = vst.msk [vmem:[#allocation4 + $0x548] sm:$0xff] %vm360, %v6993
      %7030 = vst.msk [vmem:[#allocation4 + $0x570] sm:$0xff] %vm360, %v6994
      %7031 = vst.msk [vmem:[#allocation4 + $0x598] sm:$0xff] %vm360, %v6995
      %v7032 = vld [vmem:[#allocation4] sm:$0xff]
      %v7033 = vld [vmem:[#allocation4 + $0x8] sm:$0xff]
      %v7034 = vld [vmem:[#allocation4 + $0x10] sm:$0xff]
      %v7035 = vld [vmem:[#allocation4 + $0x18] sm:$0xff]
      %v7036 = vld [vmem:[#allocation4 + $0x20] sm:$0xff]
      %v7037 = vld [vmem:[#allocation4 + $0x28] sm:$0xff]
      %v7038 = vld [vmem:[#allocation4 + $0x30] sm:$0xff]
      %v7039 = vld [vmem:[#allocation4 + $0x38] sm:$0xff]
      %v7040 = vld [vmem:[#allocation4 + $0x40] sm:$0xff]
      %v7041 = vld [vmem:[#allocation4 + $0x48] sm:$0xff]
      %v7042 = vld [vmem:[#allocation4 + $0x50] sm:$0xff]
      %v7043 = vld [vmem:[#allocation4 + $0x58] sm:$0xff]
      %v7044 = vld [vmem:[#allocation4 + $0x60] sm:$0xff]
      %v7045 = vld [vmem:[#allocation4 + $0x68] sm:$0xff]
      %v7046 = vld [vmem:[#allocation4 + $0x70] sm:$0xff]
      %v7047 = vld [vmem:[#allocation4 + $0x78] sm:$0xff]
      %v7048 = vld [vmem:[#allocation4 + $0x80] sm:$0xff]
      %v7049 = vld [vmem:[#allocation4 + $0x88] sm:$0xff]
      %v7050 = vld [vmem:[#allocation4 + $0x90] sm:$0xff]
      %v7051 = vld [vmem:[#allocation4 + $0x98] sm:$0xff]
      %v7052 = vld [vmem:[#allocation4 + $0xa0] sm:$0xff]
      %v7053 = vld [vmem:[#allocation4 + $0xa8] sm:$0xff]
      %v7054 = vld [vmem:[#allocation4 + $0xb0] sm:$0xff]
      %v7055 = vld [vmem:[#allocation4 + $0xb8] sm:$0xff]
      %v7056 = vld [vmem:[#allocation4 + $0xc0] sm:$0xff]
      %v7057 = vld [vmem:[#allocation4 + $0xc8] sm:$0xff]
      %v7058 = vld [vmem:[#allocation4 + $0xd0] sm:$0xff]
      %v7059 = vld [vmem:[#allocation4 + $0xd8] sm:$0xff]
      %v7060 = vld [vmem:[#allocation4 + $0xe0] sm:$0xff]
      %v7061 = vld [vmem:[#allocation4 + $0xe8] sm:$0xff]
      %v7062 = vld [vmem:[#allocation4 + $0xf0] sm:$0xff]
      %v7063 = vld [vmem:[#allocation4 + $0xf8] sm:$0xff]
      %v7064 = vld [vmem:[#allocation4 + $0x100] sm:$0xff]
      %v7065 = vld [vmem:[#allocation4 + $0x108] sm:$0xff]
      %v7066 = vld [vmem:[#allocation4 + $0x110] sm:$0xff]
      %v7067 = vld [vmem:[#allocation4 + $0x118] sm:$0xff]
      %v7068 = vld [vmem:[#allocation4 + $0x120] sm:$0xff]
      %v7069 = vld [vmem:[#allocation4 + $0x128] sm:$0xff]
      %v7070 = vld [vmem:[#allocation4 + $0x130] sm:$0xff]
      %v7071 = vld [vmem:[#allocation4 + $0x138] sm:$0xff]
      %v7072 = vld [vmem:[#allocation4 + $0x140] sm:$0xff]
      %v7073 = vld [vmem:[#allocation4 + $0x148] sm:$0xff]
      %v7074 = vld [vmem:[#allocation4 + $0x150] sm:$0xff]
      %v7075 = vld [vmem:[#allocation4 + $0x158] sm:$0xff]
      %v7076 = vld [vmem:[#allocation4 + $0x160] sm:$0xff]
      %v7077 = vld [vmem:[#allocation4 + $0x168] sm:$0xff]
      %v7078 = vld [vmem:[#allocation4 + $0x170] sm:$0xff]
      %v7079 = vld [vmem:[#allocation4 + $0x178] sm:$0xff]
      %v7080 = vld [vmem:[#allocation4 + $0x180] sm:$0xff]
      %v7081 = vld [vmem:[#allocation4 + $0x188] sm:$0xff]
      %v7082 = vld [vmem:[#allocation4 + $0x190] sm:$0xff]
      %v7083 = vld [vmem:[#allocation4 + $0x198] sm:$0xff]
      %v7084 = vld [vmem:[#allocation4 + $0x1a0] sm:$0xff]
      %v7085 = vld [vmem:[#allocation4 + $0x1a8] sm:$0xff]
      %v7086 = vld [vmem:[#allocation4 + $0x1b0] sm:$0xff]
      %v7087 = vld [vmem:[#allocation4 + $0x1b8] sm:$0xff]
      %v7088 = vld [vmem:[#allocation4 + $0x1c0] sm:$0xff]
      %v7089 = vld [vmem:[#allocation4 + $0x1c8] sm:$0xff]
      %v7090 = vld [vmem:[#allocation4 + $0x1d0] sm:$0xff]
      %v7091 = vld [vmem:[#allocation4 + $0x1d8] sm:$0xff]
      %v7092 = vld [vmem:[#allocation4 + $0x1e0] sm:$0xff]
      %v7093 = vld [vmem:[#allocation4 + $0x1e8] sm:$0xff]
      %v7094 = vld [vmem:[#allocation4 + $0x1f0] sm:$0xff]
      %v7095 = vld [vmem:[#allocation4 + $0x1f8] sm:$0xff]
      %v7096 = vld [vmem:[#allocation4 + $0x200] sm:$0xff]
      %v7097 = vld [vmem:[#allocation4 + $0x208] sm:$0xff]
      %v7098 = vld [vmem:[#allocation4 + $0x210] sm:$0xff]
      %v7099 = vld [vmem:[#allocation4 + $0x218] sm:$0xff]
      %v7100 = vld [vmem:[#allocation4 + $0x220] sm:$0xff]
      %v7101 = vld [vmem:[#allocation4 + $0x228] sm:$0xff]
      %v7102 = vld [vmem:[#allocation4 + $0x230] sm:$0xff]
      %v7103 = vld [vmem:[#allocation4 + $0x238] sm:$0xff]
      %v7104 = vld [vmem:[#allocation4 + $0x240] sm:$0xff]
      %v7105 = vld [vmem:[#allocation4 + $0x248] sm:$0xff]
      %v7106 = vld [vmem:[#allocation4 + $0x250] sm:$0xff]
      %v7107 = vld [vmem:[#allocation4 + $0x258] sm:$0xff]
      %v7108 = vld [vmem:[#allocation4 + $0x260] sm:$0xff]
      %v7109 = vld [vmem:[#allocation4 + $0x268] sm:$0xff]
      %v7110 = vld [vmem:[#allocation4 + $0x270] sm:$0xff]
      %v7111 = vld [vmem:[#allocation4 + $0x278] sm:$0xff]
      %v7112 = vld [vmem:[#allocation4 + $0x280] sm:$0xff]
      %v7113 = vld [vmem:[#allocation4 + $0x288] sm:$0xff]
      %v7114 = vld [vmem:[#allocation4 + $0x290] sm:$0xff]
      %v7115 = vld [vmem:[#allocation4 + $0x298] sm:$0xff]
      %v7116 = vld [vmem:[#allocation4 + $0x2a0] sm:$0xff]
      %v7117 = vld [vmem:[#allocation4 + $0x2a8] sm:$0xff]
      %v7118 = vld [vmem:[#allocation4 + $0x2b0] sm:$0xff]
      %v7119 = vld [vmem:[#allocation4 + $0x2b8] sm:$0xff]
      %v7120 = vld [vmem:[#allocation4 + $0x2c0] sm:$0xff]
      %v7121 = vld [vmem:[#allocation4 + $0x2c8] sm:$0xff]
      %v7122 = vld [vmem:[#allocation4 + $0x2d0] sm:$0xff]
      %v7123 = vld [vmem:[#allocation4 + $0x2d8] sm:$0xff]
      %v7124 = vld [vmem:[#allocation4 + $0x2e0] sm:$0xff]
      %v7125 = vld [vmem:[#allocation4 + $0x2e8] sm:$0xff]
      %v7126 = vld [vmem:[#allocation4 + $0x2f0] sm:$0xff]
      %v7127 = vld [vmem:[#allocation4 + $0x2f8] sm:$0xff]
      %v7128 = vld [vmem:[#allocation4 + $0x300] sm:$0xff]
      %v7129 = vld [vmem:[#allocation4 + $0x308] sm:$0xff]
      %v7130 = vld [vmem:[#allocation4 + $0x310] sm:$0xff]
      %v7131 = vld [vmem:[#allocation4 + $0x318] sm:$0xff]
      %v7132 = vld [vmem:[#allocation4 + $0x320] sm:$0xff]
      %v7133 = vld [vmem:[#allocation4 + $0x328] sm:$0xff]
      %v7134 = vld [vmem:[#allocation4 + $0x330] sm:$0xff]
      %v7135 = vld [vmem:[#allocation4 + $0x338] sm:$0xff]
      %v7136 = vld [vmem:[#allocation4 + $0x340] sm:$0xff]
      %v7137 = vld [vmem:[#allocation4 + $0x348] sm:$0xff]
      %v7138 = vld [vmem:[#allocation4 + $0x350] sm:$0xff]
      %v7139 = vld [vmem:[#allocation4 + $0x358] sm:$0xff]
      %v7140 = vld [vmem:[#allocation4 + $0x360] sm:$0xff]
      %v7141 = vld [vmem:[#allocation4 + $0x368] sm:$0xff]
      %v7142 = vld [vmem:[#allocation4 + $0x370] sm:$0xff]
      %v7143 = vld [vmem:[#allocation4 + $0x378] sm:$0xff]
      %v7144 = vld [vmem:[#allocation4 + $0x380] sm:$0xff]
      %v7145 = vld [vmem:[#allocation4 + $0x388] sm:$0xff]
      %v7146 = vld [vmem:[#allocation4 + $0x390] sm:$0xff]
      %v7147 = vld [vmem:[#allocation4 + $0x398] sm:$0xff]
      %v7148 = vld [vmem:[#allocation4 + $0x3a0] sm:$0xff]
      %v7149 = vld [vmem:[#allocation4 + $0x3a8] sm:$0xff]
      %v7150 = vld [vmem:[#allocation4 + $0x3b0] sm:$0xff]
      %v7151 = vld [vmem:[#allocation4 + $0x3b8] sm:$0xff]
      %v7152 = vld [vmem:[#allocation4 + $0x3c0] sm:$0xff]
      %v7153 = vld [vmem:[#allocation4 + $0x3c8] sm:$0xff]
      %v7154 = vld [vmem:[#allocation4 + $0x3d0] sm:$0xff]
      %v7155 = vld [vmem:[#allocation4 + $0x3d8] sm:$0xff]
      %v7156 = vld [vmem:[#allocation4 + $0x3e0] sm:$0xff]
      %v7157 = vld [vmem:[#allocation4 + $0x3e8] sm:$0xff]
      %v7158 = vld [vmem:[#allocation4 + $0x3f0] sm:$0xff]
      %v7159 = vld [vmem:[#allocation4 + $0x3f8] sm:$0xff]
      %v7160 = vld [vmem:[#allocation4 + $0x400] sm:$0xff]
      %v7161 = vld [vmem:[#allocation4 + $0x408] sm:$0xff]
      %v7162 = vld [vmem:[#allocation4 + $0x410] sm:$0xff]
      %v7163 = vld [vmem:[#allocation4 + $0x418] sm:$0xff]
      %v7164 = vld [vmem:[#allocation4 + $0x420] sm:$0xff]
      %v7165 = vld [vmem:[#allocation4 + $0x428] sm:$0xff]
      %v7166 = vld [vmem:[#allocation4 + $0x430] sm:$0xff]
      %v7167 = vld [vmem:[#allocation4 + $0x438] sm:$0xff]
      %v7168 = vld [vmem:[#allocation4 + $0x440] sm:$0xff]
      %v7169 = vld [vmem:[#allocation4 + $0x448] sm:$0xff]
      %v7170 = vld [vmem:[#allocation4 + $0x450] sm:$0xff]
      %v7171 = vld [vmem:[#allocation4 + $0x458] sm:$0xff]
      %v7172 = vld [vmem:[#allocation4 + $0x460] sm:$0xff]
      %v7173 = vld [vmem:[#allocation4 + $0x468] sm:$0xff]
      %v7174 = vld [vmem:[#allocation4 + $0x470] sm:$0xff]
      %v7175 = vld [vmem:[#allocation4 + $0x478] sm:$0xff]
      %v7176 = vld [vmem:[#allocation4 + $0x480] sm:$0xff]
      %v7177 = vld [vmem:[#allocation4 + $0x488] sm:$0xff]
      %v7178 = vld [vmem:[#allocation4 + $0x490] sm:$0xff]
      %v7179 = vld [vmem:[#allocation4 + $0x498] sm:$0xff]
      %v7180 = vld [vmem:[#allocation4 + $0x4a0] sm:$0xff]
      %v7181 = vld [vmem:[#allocation4 + $0x4a8] sm:$0xff]
      %v7182 = vld [vmem:[#allocation4 + $0x4b0] sm:$0xff]
      %v7183 = vld [vmem:[#allocation4 + $0x4b8] sm:$0xff]
      %v7184 = vld [vmem:[#allocation4 + $0x4c0] sm:$0xff]
      %v7185 = vld [vmem:[#allocation4 + $0x4c8] sm:$0xff]
      %v7186 = vld [vmem:[#allocation4 + $0x4d0] sm:$0xff]
      %v7187 = vld [vmem:[#allocation4 + $0x4d8] sm:$0xff]
      %v7188 = vld [vmem:[#allocation4 + $0x4e0] sm:$0xff]
      %v7189 = vld [vmem:[#allocation4 + $0x4e8] sm:$0xff]
      %v7190 = vld [vmem:[#allocation4 + $0x4f0] sm:$0xff]
      %v7191 = vld [vmem:[#allocation4 + $0x4f8] sm:$0xff]
      %v7192 = vld [vmem:[#allocation4 + $0x500] sm:$0xff]
      %v7193 = vld [vmem:[#allocation4 + $0x508] sm:$0xff]
      %v7194 = vld [vmem:[#allocation4 + $0x510] sm:$0xff]
      %v7195 = vld [vmem:[#allocation4 + $0x518] sm:$0xff]
      %v7196 = vld [vmem:[#allocation4 + $0x520] sm:$0xff]
      %v7197 = vld [vmem:[#allocation4 + $0x528] sm:$0xff]
      %v7198 = vld [vmem:[#allocation4 + $0x530] sm:$0xff]
      %v7199 = vld [vmem:[#allocation4 + $0x538] sm:$0xff]
      %v7200 = vld [vmem:[#allocation4 + $0x540] sm:$0xff]
      %v7201 = vld [vmem:[#allocation4 + $0x548] sm:$0xff]
      %v7202 = vld [vmem:[#allocation4 + $0x550] sm:$0xff]
      %v7203 = vld [vmem:[#allocation4 + $0x558] sm:$0xff]
      %v7204 = vld [vmem:[#allocation4 + $0x560] sm:$0xff]
      %v7205 = vld [vmem:[#allocation4 + $0x568] sm:$0xff]
      %v7206 = vld [vmem:[#allocation4 + $0x570] sm:$0xff]
      %v7207 = vld [vmem:[#allocation4 + $0x578] sm:$0xff]
      %v7208 = vld [vmem:[#allocation4 + $0x580] sm:$0xff]
      %v7209 = vld [vmem:[#allocation4 + $0x588] sm:$0xff]
      %v7210 = vld [vmem:[#allocation4 + $0x590] sm:$0xff]
      %v7211 = vld [vmem:[#allocation4 + $0x598] sm:$0xff]
      %v7212 = vld [vmem:[%s8] sm:$0xff]
      %v7213 = vld [vmem:[%s8 + $0x8] sm:$0xff]
      %v7214 = vld [vmem:[%s8 + $0x10] sm:$0xff]
      %v7215 = vld [vmem:[%s8 + $0x18] sm:$0xff]
      %v7216 = vld [vmem:[%s8 + $0x20] sm:$0xff]
      %v7217 = vld [vmem:[%s8 + $0x28] sm:$0xff]
      %v7218 = vld [vmem:[%s8 + $0x30] sm:$0xff]
      %v7219 = vld [vmem:[%s8 + $0x38] sm:$0xff]
      %v7220 = vld [vmem:[%s8 + $0x40] sm:$0xff]
      %v7221 = vld [vmem:[%s8 + $0x48] sm:$0xff]
      %v7222 = vld [vmem:[%s8 + $0x50] sm:$0xff]
      %v7223 = vld [vmem:[%s8 + $0x58] sm:$0xff]
      %v7224 = vld [vmem:[%s8 + $0x60] sm:$0xff]
      %v7225 = vld [vmem:[%s8 + $0x68] sm:$0xff]
      %v7226 = vld [vmem:[%s8 + $0x70] sm:$0xff]
      %v7227 = vld [vmem:[%s8 + $0x78] sm:$0xff]
      %v7228 = vld [vmem:[%s8 + $0x80] sm:$0xff]
      %v7229 = vld [vmem:[%s8 + $0x88] sm:$0xff]
      %v7230 = vld [vmem:[%s8 + $0x90] sm:$0xff]
      %v7231 = vld [vmem:[%s8 + $0x98] sm:$0xff]
      %v7232 = vld [vmem:[%s8 + $0xa0] sm:$0xff]
      %v7233 = vld [vmem:[%s8 + $0xa8] sm:$0xff]
      %v7234 = vld [vmem:[%s8 + $0xb0] sm:$0xff]
      %v7235 = vld [vmem:[%s8 + $0xb8] sm:$0xff]
      %v7236 = vld [vmem:[%s8 + $0xc0] sm:$0xff]
      %v7237 = vld [vmem:[%s8 + $0xc8] sm:$0xff]
      %v7238 = vld [vmem:[%s8 + $0xd0] sm:$0xff]
      %v7239 = vld [vmem:[%s8 + $0xd8] sm:$0xff]
      %v7240 = vld [vmem:[%s8 + $0xe0] sm:$0xff]
      %v7241 = vld [vmem:[%s8 + $0xe8] sm:$0xff]
      %v7242 = vld [vmem:[%s8 + $0xf0] sm:$0xff]
      %v7243 = vld [vmem:[%s8 + $0xf8] sm:$0xff]
      %v7244 = vld [vmem:[%s8 + $0x100] sm:$0xff]
      %v7245 = vld [vmem:[%s8 + $0x108] sm:$0xff]
      %v7246 = vld [vmem:[%s8 + $0x110] sm:$0xff]
      %v7247 = vld [vmem:[%s8 + $0x118] sm:$0xff]
      %v7248 = vld [vmem:[%s8 + $0x120] sm:$0xff]
      %v7249 = vld [vmem:[%s8 + $0x128] sm:$0xff]
      %v7250 = vld [vmem:[%s8 + $0x130] sm:$0xff]
      %v7251 = vld [vmem:[%s8 + $0x138] sm:$0xff]
      %v7252 = vld [vmem:[%s8 + $0x140] sm:$0xff]
      %v7253 = vld [vmem:[%s8 + $0x148] sm:$0xff]
      %v7254 = vld [vmem:[%s8 + $0x150] sm:$0xff]
      %v7255 = vld [vmem:[%s8 + $0x158] sm:$0xff]
      %v7256 = vld [vmem:[%s8 + $0x160] sm:$0xff]
      %v7257 = vld [vmem:[%s8 + $0x168] sm:$0xff]
      %v7258 = vld [vmem:[%s8 + $0x170] sm:$0xff]
      %v7259 = vld [vmem:[%s8 + $0x178] sm:$0xff]
      %v7260 = vld [vmem:[%s8 + $0x180] sm:$0xff]
      %v7261 = vld [vmem:[%s8 + $0x188] sm:$0xff]
      %v7262 = vld [vmem:[%s8 + $0x190] sm:$0xff]
      %v7263 = vld [vmem:[%s8 + $0x198] sm:$0xff]
      %v7264 = vld [vmem:[%s8 + $0x1a0] sm:$0xff]
      %v7265 = vld [vmem:[%s8 + $0x1a8] sm:$0xff]
      %v7266 = vld [vmem:[%s8 + $0x1b0] sm:$0xff]
      %v7267 = vld [vmem:[%s8 + $0x1b8] sm:$0xff]
      %v7268 = vld [vmem:[%s8 + $0x1c0] sm:$0xff]
      %v7269 = vld [vmem:[%s8 + $0x1c8] sm:$0xff]
      %v7270 = vld [vmem:[%s8 + $0x1d0] sm:$0xff]
      %v7271 = vld [vmem:[%s8 + $0x1d8] sm:$0xff]
      %v7272 = vld [vmem:[%s8 + $0x1e0] sm:$0xff]
      %v7273 = vld [vmem:[%s8 + $0x1e8] sm:$0xff]
      %v7274 = vld [vmem:[%s8 + $0x1f0] sm:$0xff]
      %v7275 = vld [vmem:[%s8 + $0x1f8] sm:$0xff]
      %v7276 = vld [vmem:[%s8 + $0x200] sm:$0xff]
      %v7277 = vld [vmem:[%s8 + $0x208] sm:$0xff]
      %v7278 = vld [vmem:[%s8 + $0x210] sm:$0xff]
      %v7279 = vld [vmem:[%s8 + $0x218] sm:$0xff]
      %v7280 = vld [vmem:[%s8 + $0x220] sm:$0xff]
      %v7281 = vld [vmem:[%s8 + $0x228] sm:$0xff]
      %v7282 = vld [vmem:[%s8 + $0x230] sm:$0xff]
      %v7283 = vld [vmem:[%s8 + $0x238] sm:$0xff]
      %v7284 = vld [vmem:[%s8 + $0x240] sm:$0xff]
      %v7285 = vld [vmem:[%s8 + $0x248] sm:$0xff]
      %v7286 = vld [vmem:[%s8 + $0x250] sm:$0xff]
      %v7287 = vld [vmem:[%s8 + $0x258] sm:$0xff]
      %v7288 = vld [vmem:[%s8 + $0x260] sm:$0xff]
      %v7289 = vld [vmem:[%s8 + $0x268] sm:$0xff]
      %v7290 = vld [vmem:[%s8 + $0x270] sm:$0xff]
      %v7291 = vld [vmem:[%s8 + $0x278] sm:$0xff]
      %v7292 = vld [vmem:[%s9] sm:$0x1]
      %v7294 = vlaneseq
      %v7295 = vshrl.u32 %v7294, 7
      %v7296 = vsub.s32 0, %v7295
      %v7297 = vrot.slane %v7292, %v7296
      %7299 = vmatprep.subr.mxu0 0.0
      %7300 = vmatpush1.msra.mxu0 %v7227
      %7301 = vmatprep.subr.mxu0 0.0
      %7302 = vmatpush1.msra.mxu0 %v7226
      %7303 = vmatprep.subr.mxu0 0.0
      %7304 = vmatpush1.msra.mxu0 %v7225
      %7305 = vmatprep.subr.mxu0 0.0
      %7306 = vmatpush1.msra.mxu0 %v7224
      %7307 = vmatprep.subr.mxu0 0.0
      %7308 = vmatpush1.msra.mxu0 %v7223
      %7309 = vmatprep.subr.mxu0 0.0
      %7310 = vmatpush1.msra.mxu0 %v7222
      %7311 = vmatprep.subr.mxu0 0.0
      %7312 = vmatpush1.msra.mxu0 %v7221
      %7313 = vmatprep.subr.mxu0 0.0
      %7314 = vmatpush1.msra.mxu0 %v7220
      %7315 = vmatprep.subr.mxu0 0.0
      %7316 = vmatpush1.msra.mxu0 %v7219
      %7317 = vmatprep.subr.mxu0 0.0
      %7318 = vmatpush1.msra.mxu0 %v7218
      %7319 = vmatprep.subr.mxu0 0.0
      %7320 = vmatpush1.msra.mxu0 %v7217
      %7321 = vmatprep.subr.mxu0 0.0
      %7322 = vmatpush1.msra.mxu0 %v7216
      %7323 = vmatprep.subr.mxu0 0.0
      %7324 = vmatpush1.msra.mxu0 %v7215
      %7325 = vmatprep.subr.mxu0 0.0
      %7326 = vmatpush1.msra.mxu0 %v7214
      %7327 = vmatprep.subr.mxu0 0.0
      %7328 = vmatpush1.msra.mxu0 %v7213
      %7329 = vmatprep.subr.mxu0 0.0
      %7330 = vmatpush1.msra.mxu0 %v7212
      %7331 = vmatprep.subr.mxu0 0.0
      %7332 = vmatpush2.msra.mxu0 %v7243
      %7333 = vmatprep.subr.mxu0 0.0
      %7334 = vmatpush2.msra.mxu0 %v7242
      %7335 = vmatprep.subr.mxu0 0.0
      %7336 = vmatpush2.msra.mxu0 %v7241
      %7337 = vmatprep.subr.mxu0 0.0
      %7338 = vmatpush2.msra.mxu0 %v7240
      %7339 = vmatprep.subr.mxu0 0.0
      %7340 = vmatpush2.msra.mxu0 %v7239
      %7341 = vmatprep.subr.mxu0 0.0
      %7342 = vmatpush2.msra.mxu0 %v7238
      %7343 = vmatprep.subr.mxu0 0.0
      %7344 = vmatpush2.msra.mxu0 %v7237
      %7345 = vmatprep.subr.mxu0 0.0
      %7346 = vmatpush2.msra.mxu0 %v7236
      %7347 = vmatprep.subr.mxu0 0.0
      %7348 = vmatpush2.msra.mxu0 %v7235
      %7349 = vmatprep.subr.mxu0 0.0
      %7350 = vmatpush2.msra.mxu0 %v7234
      %7351 = vmatprep.subr.mxu0 0.0
      %7352 = vmatpush2.msra.mxu0 %v7233
      %7353 = vmatprep.subr.mxu0 0.0
      %7354 = vmatpush2.msra.mxu0 %v7232
      %7355 = vmatprep.subr.mxu0 0.0
      %7356 = vmatpush2.msra.mxu0 %v7231
      %7357 = vmatprep.subr.mxu0 0.0
      %7358 = vmatpush2.msra.mxu0 %v7230
      %7359 = vmatprep.subr.mxu0 0.0
      %7360 = vmatpush2.msra.mxu0 %v7229
      %7361 = vmatprep.subr.mxu0 0.0
      %7362 = vmatpush2.msra.mxu0 %v7228
      %7363 = vmatprep.mubr.f32.mxu0 %v7033
      %7364 = vmatmul.mubr.f32.gmra.mxu0 %v7032
      %v7365 = vpop.f32.mrf.mxu0
      %v7366 = vadd.f32 %v7297, %v7365
      %v7367 = vpop.f32.mrf.mxu0
      %7368 = vmatprep.mubr.f32.mxu0 %v7038
      %7369 = vmatmul.mubr.f32.gmra.mxu0 %v7037
      %v7370 = vpop.f32.mrf.mxu0
      %v7371 = vadd.f32 %v7297, %v7370
      %v7372 = vpop.f32.mrf.mxu0
      %7373 = vmatprep.mubr.f32.mxu0 %v7043
      %7374 = vmatmul.mubr.f32.gmra.mxu0 %v7042
      %v7375 = vpop.f32.mrf.mxu0
      %v7376 = vadd.f32 %v7297, %v7375
      %v7377 = vpop.f32.mrf.mxu0
      %7378 = vmatprep.mubr.f32.mxu0 %v7048
      %7379 = vmatmul.mubr.f32.gmra.mxu0 %v7047
      %v7380 = vpop.f32.mrf.mxu0
      %v7381 = vadd.f32 %v7297, %v7380
      %v7382 = vpop.f32.mrf.mxu0
      %7383 = vmatprep.mubr.f32.mxu0 %v7053
      %7384 = vmatmul.mubr.f32.gmra.mxu0 %v7052
      %v7385 = vpop.f32.mrf.mxu0
      %v7386 = vadd.f32 %v7297, %v7385
      %v7387 = vpop.f32.mrf.mxu0
      %7388 = vmatprep.mubr.f32.mxu0 %v7058
      %7389 = vmatmul.mubr.f32.gmra.mxu0 %v7057
      %v7390 = vpop.f32.mrf.mxu0
      %v7391 = vadd.f32 %v7297, %v7390
      %v7392 = vpop.f32.mrf.mxu0
      %7393 = vmatprep.mubr.f32.mxu0 %v7063
      %7394 = vmatmul.mubr.f32.gmra.mxu0 %v7062
      %v7395 = vpop.f32.mrf.mxu0
      %v7396 = vadd.f32 %v7297, %v7395
      %v7397 = vpop.f32.mrf.mxu0
      %7398 = vmatprep.mubr.f32.mxu0 %v7068
      %7399 = vmatmul.mubr.f32.gmra.mxu0 %v7067
      %v7400 = vpop.f32.mrf.mxu0
      %v7401 = vadd.f32 %v7297, %v7400
      %v7402 = vpop.f32.mrf.mxu0
      %7403 = vmatprep.mubr.f32.mxu0 %v7073
      %7404 = vmatmul.mubr.f32.gmra.mxu0 %v7072
      %v7405 = vpop.f32.mrf.mxu0
      %v7406 = vadd.f32 %v7297, %v7405
      %v7407 = vpop.f32.mrf.mxu0
      %7408 = vmatprep.mubr.f32.mxu0 %v7078
      %7409 = vmatmul.mubr.f32.gmra.mxu0 %v7077
      %v7410 = vpop.f32.mrf.mxu0
      %v7411 = vadd.f32 %v7297, %v7410
      %v7412 = vpop.f32.mrf.mxu0
      %7413 = vmatprep.mubr.f32.mxu0 %v7083
      %7414 = vmatmul.mubr.f32.gmra.mxu0 %v7082
      %v7415 = vpop.f32.mrf.mxu0
      %v7416 = vadd.f32 %v7297, %v7415
      %v7417 = vpop.f32.mrf.mxu0
      %7418 = vmatprep.mubr.f32.mxu0 %v7088
      %7419 = vmatmul.mubr.f32.gmra.mxu0 %v7087
      %v7420 = vpop.f32.mrf.mxu0
      %v7421 = vadd.f32 %v7297, %v7420
      %v7422 = vpop.f32.mrf.mxu0
      %7423 = vmatprep.mubr.f32.mxu0 %v7093
      %7424 = vmatmul.mubr.f32.gmra.mxu0 %v7092
      %v7425 = vpop.f32.mrf.mxu0
      %v7426 = vadd.f32 %v7297, %v7425
      %v7427 = vpop.f32.mrf.mxu0
      %7428 = vmatprep.mubr.f32.mxu0 %v7098
      %7429 = vmatmul.mubr.f32.gmra.mxu0 %v7097
      %v7430 = vpop.f32.mrf.mxu0
      %v7431 = vadd.f32 %v7297, %v7430
      %v7432 = vpop.f32.mrf.mxu0
      %7433 = vmatprep.mubr.f32.mxu0 %v7103
      %7434 = vmatmul.mubr.f32.gmra.mxu0 %v7102
      %v7435 = vpop.f32.mrf.mxu0
      %v7436 = vadd.f32 %v7297, %v7435
      %v7437 = vpop.f32.mrf.mxu0
      %7438 = vmatprep.mubr.f32.mxu0 %v7108
      %7439 = vmatmul.mubr.f32.gmra.mxu0 %v7107
      %v7440 = vpop.f32.mrf.mxu0
      %v7441 = vadd.f32 %v7297, %v7440
      %v7442 = vpop.f32.mrf.mxu0
      %7443 = vmatprep.mubr.f32.mxu0 %v7113
      %7444 = vmatmul.mubr.f32.gmra.mxu0 %v7112
      %v7445 = vpop.f32.mrf.mxu0
      %v7446 = vadd.f32 %v7297, %v7445
      %v7447 = vpop.f32.mrf.mxu0
      %7448 = vmatprep.mubr.f32.mxu0 %v7118
      %7449 = vmatmul.mubr.f32.gmra.mxu0 %v7117
      %v7450 = vpop.f32.mrf.mxu0
      %v7451 = vadd.f32 %v7297, %v7450
      %v7452 = vpop.f32.mrf.mxu0
      %7453 = vmatprep.mubr.f32.mxu0 %v7123
      %7454 = vmatmul.mubr.f32.gmra.mxu0 %v7122
      %v7455 = vpop.f32.mrf.mxu0
      %v7456 = vadd.f32 %v7297, %v7455
      %v7457 = vpop.f32.mrf.mxu0
      %7458 = vmatprep.mubr.f32.mxu0 %v7128
      %7459 = vmatmul.mubr.f32.gmra.mxu0 %v7127
      %v7460 = vpop.f32.mrf.mxu0
      %v7461 = vadd.f32 %v7297, %v7460
      %v7462 = vpop.f32.mrf.mxu0
      %7463 = vmatprep.mubr.f32.mxu0 %v7133
      %7464 = vmatmul.mubr.f32.gmra.mxu0 %v7132
      %v7465 = vpop.f32.mrf.mxu0
      %v7466 = vadd.f32 %v7297, %v7465
      %v7467 = vpop.f32.mrf.mxu0
      %7468 = vmatprep.mubr.f32.mxu0 %v7138
      %7469 = vmatmul.mubr.f32.gmra.mxu0 %v7137
      %v7470 = vpop.f32.mrf.mxu0
      %v7471 = vadd.f32 %v7297, %v7470
      %v7472 = vpop.f32.mrf.mxu0
      %7473 = vmatprep.mubr.f32.mxu0 %v7143
      %7474 = vmatmul.mubr.f32.gmra.mxu0 %v7142
      %v7475 = vpop.f32.mrf.mxu0
      %v7476 = vadd.f32 %v7297, %v7475
      %v7477 = vpop.f32.mrf.mxu0
      %7478 = vmatprep.mubr.f32.mxu0 %v7148
      %7479 = vmatmul.mubr.f32.gmra.mxu0 %v7147
      %v7480 = vpop.f32.mrf.mxu0
      %v7481 = vadd.f32 %v7297, %v7480
      %v7482 = vpop.f32.mrf.mxu0
      %7483 = vmatprep.mubr.f32.mxu0 %v7153
      %7484 = vmatmul.mubr.f32.gmra.mxu0 %v7152
      %v7485 = vpop.f32.mrf.mxu0
      %v7486 = vadd.f32 %v7297, %v7485
      %v7487 = vpop.f32.mrf.mxu0
      %7488 = vmatprep.mubr.f32.mxu0 %v7158
      %7489 = vmatmul.mubr.f32.gmra.mxu0 %v7157
      %v7490 = vpop.f32.mrf.mxu0
      %v7491 = vadd.f32 %v7297, %v7490
      %v7492 = vpop.f32.mrf.mxu0
      %7493 = vmatprep.mubr.f32.mxu0 %v7163
      %7494 = vmatmul.mubr.f32.gmra.mxu0 %v7162
      %v7495 = vpop.f32.mrf.mxu0
      %v7496 = vadd.f32 %v7297, %v7495
      %v7497 = vpop.f32.mrf.mxu0
      %7498 = vmatprep.mubr.f32.mxu0 %v7168
      %7499 = vmatmul.mubr.f32.gmra.mxu0 %v7167
      %v7500 = vpop.f32.mrf.mxu0
      %v7501 = vadd.f32 %v7297, %v7500
      %v7502 = vpop.f32.mrf.mxu0
      %7503 = vmatprep.mubr.f32.mxu0 %v7173
      %7504 = vmatmul.mubr.f32.gmra.mxu0 %v7172
      %v7505 = vpop.f32.mrf.mxu0
      %v7506 = vadd.f32 %v7297, %v7505
      %v7507 = vpop.f32.mrf.mxu0
      %7508 = vmatprep.mubr.f32.mxu0 %v7178
      %7509 = vmatmul.mubr.f32.gmra.mxu0 %v7177
      %v7510 = vpop.f32.mrf.mxu0
      %v7511 = vadd.f32 %v7297, %v7510
      %v7512 = vpop.f32.mrf.mxu0
      %7513 = vmatprep.mubr.f32.mxu0 %v7183
      %7514 = vmatmul.mubr.f32.gmra.mxu0 %v7182
      %v7515 = vpop.f32.mrf.mxu0
      %v7516 = vadd.f32 %v7297, %v7515
      %v7517 = vpop.f32.mrf.mxu0
      %7518 = vmatprep.mubr.f32.mxu0 %v7188
      %7519 = vmatmul.mubr.f32.gmra.mxu0 %v7187
      %v7520 = vpop.f32.mrf.mxu0
      %v7521 = vadd.f32 %v7297, %v7520
      %v7522 = vpop.f32.mrf.mxu0
      %7523 = vmatprep.mubr.f32.mxu0 %v7193
      %7524 = vmatmul.mubr.f32.gmra.mxu0 %v7192
      %v7525 = vpop.f32.mrf.mxu0
      %v7526 = vadd.f32 %v7297, %v7525
      %v7527 = vpop.f32.mrf.mxu0
      %7528 = vmatprep.mubr.f32.mxu0 %v7198
      %7529 = vmatmul.mubr.f32.gmra.mxu0 %v7197
      %v7530 = vpop.f32.mrf.mxu0
      %v7531 = vadd.f32 %v7297, %v7530
      %v7532 = vpop.f32.mrf.mxu0
      %7533 = vmatprep.mubr.f32.mxu0 %v7203
      %7534 = vmatmul.mubr.f32.gmra.mxu0 %v7202
      %v7535 = vpop.f32.mrf.mxu0
      %v7536 = vadd.f32 %v7297, %v7535
      %v7537 = vpop.f32.mrf.mxu0
      %7538 = vmatprep.mubr.f32.mxu0 %v7208
      %7539 = vmatmul.mubr.f32.gmra.mxu0 %v7207
      %v7540 = vpop.f32.mrf.mxu0
      %v7541 = vadd.f32 %v7297, %v7540
      %v7542 = vpop.f32.mrf.mxu0
      %7543 = vdwg.mxu0
      %7544 = vmatprep.subr.mxu0 0.0
      %7545 = vmatpush1.msra.mxu0 %v7259
      %7546 = vmatprep.subr.mxu0 0.0
      %7547 = vmatpush1.msra.mxu0 %v7258
      %7548 = vmatprep.subr.mxu0 0.0
      %7549 = vmatpush1.msra.mxu0 %v7257
      %7550 = vmatprep.subr.mxu0 0.0
      %7551 = vmatpush1.msra.mxu0 %v7256
      %7552 = vmatprep.subr.mxu0 0.0
      %7553 = vmatpush1.msra.mxu0 %v7255
      %7554 = vmatprep.subr.mxu0 0.0
      %7555 = vmatpush1.msra.mxu0 %v7254
      %7556 = vmatprep.subr.mxu0 0.0
      %7557 = vmatpush1.msra.mxu0 %v7253
      %7558 = vmatprep.subr.mxu0 0.0
      %7559 = vmatpush1.msra.mxu0 %v7252
      %7560 = vmatprep.subr.mxu0 0.0
      %7561 = vmatpush1.msra.mxu0 %v7251
      %7562 = vmatprep.subr.mxu0 0.0
      %7563 = vmatpush1.msra.mxu0 %v7250
      %7564 = vmatprep.subr.mxu0 0.0
      %7565 = vmatpush1.msra.mxu0 %v7249
      %7566 = vmatprep.subr.mxu0 0.0
      %7567 = vmatpush1.msra.mxu0 %v7248
      %7568 = vmatprep.subr.mxu0 0.0
      %7569 = vmatpush1.msra.mxu0 %v7247
      %7570 = vmatprep.subr.mxu0 0.0
      %7571 = vmatpush1.msra.mxu0 %v7246
      %7572 = vmatprep.subr.mxu0 0.0
      %7573 = vmatpush1.msra.mxu0 %v7245
      %7574 = vmatprep.subr.mxu0 0.0
      %7575 = vmatpush1.msra.mxu0 %v7244
      %7576 = vmatprep.subr.mxu0 0.0
      %7577 = vmatpush2.msra.mxu0 %v7275
      %7578 = vmatprep.subr.mxu0 0.0
      %7579 = vmatpush2.msra.mxu0 %v7274
      %7580 = vmatprep.subr.mxu0 0.0
      %7581 = vmatpush2.msra.mxu0 %v7273
      %7582 = vmatprep.subr.mxu0 0.0
      %7583 = vmatpush2.msra.mxu0 %v7272
      %7584 = vmatprep.subr.mxu0 0.0
      %7585 = vmatpush2.msra.mxu0 %v7271
      %7586 = vmatprep.subr.mxu0 0.0
      %7587 = vmatpush2.msra.mxu0 %v7270
      %7588 = vmatprep.subr.mxu0 0.0
      %7589 = vmatpush2.msra.mxu0 %v7269
      %7590 = vmatprep.subr.mxu0 0.0
      %7591 = vmatpush2.msra.mxu0 %v7268
      %7592 = vmatprep.subr.mxu0 0.0
      %7593 = vmatpush2.msra.mxu0 %v7267
      %7594 = vmatprep.subr.mxu0 0.0
      %7595 = vmatpush2.msra.mxu0 %v7266
      %7596 = vmatprep.subr.mxu0 0.0
      %7597 = vmatpush2.msra.mxu0 %v7265
      %7598 = vmatprep.subr.mxu0 0.0
      %7599 = vmatpush2.msra.mxu0 %v7264
      %7600 = vmatprep.subr.mxu0 0.0
      %7601 = vmatpush2.msra.mxu0 %v7263
      %7602 = vmatprep.subr.mxu0 0.0
      %7603 = vmatpush2.msra.mxu0 %v7262
      %7604 = vmatprep.subr.mxu0 0.0
      %7605 = vmatpush2.msra.mxu0 %v7261
      %7606 = vmatprep.subr.mxu0 0.0
      %7607 = vmatpush2.msra.mxu0 %v7260
      %7608 = vmatprep.mubr.f32.mxu0 %v7035
      %7609 = vmatmul.mubr.f32.gmra.mxu0 %v7034
      %v7610 = vpop.f32.mrf.mxu0
      %v7611 = vadd.f32 %v7366, %v7610
      %v7612 = vpop.f32.mrf.mxu0
      %7613 = vmatprep.mubr.f32.mxu0 %v7040
      %7614 = vmatmul.mubr.f32.gmra.mxu0 %v7039
      %v7615 = vpop.f32.mrf.mxu0
      %v7616 = vadd.f32 %v7371, %v7615
      %v7617 = vpop.f32.mrf.mxu0
      %7618 = vmatprep.mubr.f32.mxu0 %v7045
      %7619 = vmatmul.mubr.f32.gmra.mxu0 %v7044
      %v7620 = vpop.f32.mrf.mxu0
      %v7621 = vadd.f32 %v7376, %v7620
      %v7622 = vpop.f32.mrf.mxu0
      %7623 = vmatprep.mubr.f32.mxu0 %v7050
      %7624 = vmatmul.mubr.f32.gmra.mxu0 %v7049
      %v7625 = vpop.f32.mrf.mxu0
      %v7626 = vadd.f32 %v7381, %v7625
      %v7627 = vpop.f32.mrf.mxu0
      %7628 = vmatprep.mubr.f32.mxu0 %v7055
      %7629 = vmatmul.mubr.f32.gmra.mxu0 %v7054
      %v7630 = vpop.f32.mrf.mxu0
      %v7631 = vadd.f32 %v7386, %v7630
      %v7632 = vpop.f32.mrf.mxu0
      %7633 = vmatprep.mubr.f32.mxu0 %v7060
      %7634 = vmatmul.mubr.f32.gmra.mxu0 %v7059
      %v7635 = vpop.f32.mrf.mxu0
      %v7636 = vadd.f32 %v7391, %v7635
      %v7637 = vpop.f32.mrf.mxu0
      %7638 = vmatprep.mubr.f32.mxu0 %v7065
      %7639 = vmatmul.mubr.f32.gmra.mxu0 %v7064
      %v7640 = vpop.f32.mrf.mxu0
      %v7641 = vadd.f32 %v7396, %v7640
      %v7642 = vpop.f32.mrf.mxu0
      %7643 = vmatprep.mubr.f32.mxu0 %v7070
      %7644 = vmatmul.mubr.f32.gmra.mxu0 %v7069
      %v7645 = vpop.f32.mrf.mxu0
      %v7646 = vadd.f32 %v7401, %v7645
      %v7647 = vpop.f32.mrf.mxu0
      %7648 = vmatprep.mubr.f32.mxu0 %v7075
      %7649 = vmatmul.mubr.f32.gmra.mxu0 %v7074
      %v7650 = vpop.f32.mrf.mxu0
      %v7651 = vadd.f32 %v7406, %v7650
      %v7652 = vpop.f32.mrf.mxu0
      %7653 = vmatprep.mubr.f32.mxu0 %v7080
      %7654 = vmatmul.mubr.f32.gmra.mxu0 %v7079
      %v7655 = vpop.f32.mrf.mxu0
      %v7656 = vadd.f32 %v7411, %v7655
      %v7657 = vpop.f32.mrf.mxu0
      %7658 = vmatprep.mubr.f32.mxu0 %v7085
      %7659 = vmatmul.mubr.f32.gmra.mxu0 %v7084
      %v7660 = vpop.f32.mrf.mxu0
      %v7661 = vadd.f32 %v7416, %v7660
      %v7662 = vpop.f32.mrf.mxu0
      %7663 = vmatprep.mubr.f32.mxu0 %v7090
      %7664 = vmatmul.mubr.f32.gmra.mxu0 %v7089
      %v7665 = vpop.f32.mrf.mxu0
      %v7666 = vadd.f32 %v7421, %v7665
      %v7667 = vpop.f32.mrf.mxu0
      %7668 = vmatprep.mubr.f32.mxu0 %v7095
      %7669 = vmatmul.mubr.f32.gmra.mxu0 %v7094
      %v7670 = vpop.f32.mrf.mxu0
      %v7671 = vadd.f32 %v7426, %v7670
      %v7672 = vpop.f32.mrf.mxu0
      %7673 = vmatprep.mubr.f32.mxu0 %v7100
      %7674 = vmatmul.mubr.f32.gmra.mxu0 %v7099
      %v7675 = vpop.f32.mrf.mxu0
      %v7676 = vadd.f32 %v7431, %v7675
      %v7677 = vpop.f32.mrf.mxu0
      %7678 = vmatprep.mubr.f32.mxu0 %v7105
      %7679 = vmatmul.mubr.f32.gmra.mxu0 %v7104
      %v7680 = vpop.f32.mrf.mxu0
      %v7681 = vadd.f32 %v7436, %v7680
      %v7682 = vpop.f32.mrf.mxu0
      %7683 = vmatprep.mubr.f32.mxu0 %v7110
      %7684 = vmatmul.mubr.f32.gmra.mxu0 %v7109
      %v7685 = vpop.f32.mrf.mxu0
      %v7686 = vadd.f32 %v7441, %v7685
      %v7687 = vpop.f32.mrf.mxu0
      %7688 = vmatprep.mubr.f32.mxu0 %v7115
      %7689 = vmatmul.mubr.f32.gmra.mxu0 %v7114
      %v7690 = vpop.f32.mrf.mxu0
      %v7691 = vadd.f32 %v7446, %v7690
      %v7692 = vpop.f32.mrf.mxu0
      %7693 = vmatprep.mubr.f32.mxu0 %v7120
      %7694 = vmatmul.mubr.f32.gmra.mxu0 %v7119
      %v7695 = vpop.f32.mrf.mxu0
      %v7696 = vadd.f32 %v7451, %v7695
      %v7697 = vpop.f32.mrf.mxu0
      %7698 = vmatprep.mubr.f32.mxu0 %v7125
      %7699 = vmatmul.mubr.f32.gmra.mxu0 %v7124
      %v7700 = vpop.f32.mrf.mxu0
      %v7701 = vadd.f32 %v7456, %v7700
      %v7702 = vpop.f32.mrf.mxu0
      %7703 = vmatprep.mubr.f32.mxu0 %v7130
      %7704 = vmatmul.mubr.f32.gmra.mxu0 %v7129
      %v7705 = vpop.f32.mrf.mxu0
      %v7706 = vadd.f32 %v7461, %v7705
      %v7707 = vpop.f32.mrf.mxu0
      %7708 = vmatprep.mubr.f32.mxu0 %v7135
      %7709 = vmatmul.mubr.f32.gmra.mxu0 %v7134
      %v7710 = vpop.f32.mrf.mxu0
      %v7711 = vadd.f32 %v7466, %v7710
      %v7712 = vpop.f32.mrf.mxu0
      %7713 = vmatprep.mubr.f32.mxu0 %v7140
      %7714 = vmatmul.mubr.f32.gmra.mxu0 %v7139
      %v7715 = vpop.f32.mrf.mxu0
      %v7716 = vadd.f32 %v7471, %v7715
      %v7717 = vpop.f32.mrf.mxu0
      %7718 = vmatprep.mubr.f32.mxu0 %v7145
      %7719 = vmatmul.mubr.f32.gmra.mxu0 %v7144
      %v7720 = vpop.f32.mrf.mxu0
      %v7721 = vadd.f32 %v7476, %v7720
      %v7722 = vpop.f32.mrf.mxu0
      %7723 = vmatprep.mubr.f32.mxu0 %v7150
      %7724 = vmatmul.mubr.f32.gmra.mxu0 %v7149
      %v7725 = vpop.f32.mrf.mxu0
      %v7726 = vadd.f32 %v7481, %v7725
      %v7727 = vpop.f32.mrf.mxu0
      %7728 = vmatprep.mubr.f32.mxu0 %v7155
      %7729 = vmatmul.mubr.f32.gmra.mxu0 %v7154
      %v7730 = vpop.f32.mrf.mxu0
      %v7731 = vadd.f32 %v7486, %v7730
      %v7732 = vpop.f32.mrf.mxu0
      %7733 = vmatprep.mubr.f32.mxu0 %v7160
      %7734 = vmatmul.mubr.f32.gmra.mxu0 %v7159
      %v7735 = vpop.f32.mrf.mxu0
      %v7736 = vadd.f32 %v7491, %v7735
      %v7737 = vpop.f32.mrf.mxu0
      %7738 = vmatprep.mubr.f32.mxu0 %v7165
      %7739 = vmatmul.mubr.f32.gmra.mxu0 %v7164
      %v7740 = vpop.f32.mrf.mxu0
      %v7741 = vadd.f32 %v7496, %v7740
      %v7742 = vpop.f32.mrf.mxu0
      %7743 = vmatprep.mubr.f32.mxu0 %v7170
      %7744 = vmatmul.mubr.f32.gmra.mxu0 %v7169
      %v7745 = vpop.f32.mrf.mxu0
      %v7746 = vadd.f32 %v7501, %v7745
      %v7747 = vpop.f32.mrf.mxu0
      %7748 = vmatprep.mubr.f32.mxu0 %v7175
      %7749 = vmatmul.mubr.f32.gmra.mxu0 %v7174
      %v7750 = vpop.f32.mrf.mxu0
      %v7751 = vadd.f32 %v7506, %v7750
      %v7752 = vpop.f32.mrf.mxu0
      %7753 = vmatprep.mubr.f32.mxu0 %v7180
      %7754 = vmatmul.mubr.f32.gmra.mxu0 %v7179
      %v7755 = vpop.f32.mrf.mxu0
      %v7756 = vadd.f32 %v7511, %v7755
      %v7757 = vpop.f32.mrf.mxu0
      %7758 = vmatprep.mubr.f32.mxu0 %v7185
      %7759 = vmatmul.mubr.f32.gmra.mxu0 %v7184
      %v7760 = vpop.f32.mrf.mxu0
      %v7761 = vadd.f32 %v7516, %v7760
      %v7762 = vpop.f32.mrf.mxu0
      %7763 = vmatprep.mubr.f32.mxu0 %v7190
      %7764 = vmatmul.mubr.f32.gmra.mxu0 %v7189
      %v7765 = vpop.f32.mrf.mxu0
      %v7766 = vadd.f32 %v7521, %v7765
      %v7767 = vpop.f32.mrf.mxu0
      %7768 = vmatprep.mubr.f32.mxu0 %v7195
      %7769 = vmatmul.mubr.f32.gmra.mxu0 %v7194
      %v7770 = vpop.f32.mrf.mxu0
      %v7771 = vadd.f32 %v7526, %v7770
      %v7772 = vpop.f32.mrf.mxu0
      %7773 = vmatprep.mubr.f32.mxu0 %v7200
      %7774 = vmatmul.mubr.f32.gmra.mxu0 %v7199
      %v7775 = vpop.f32.mrf.mxu0
      %v7776 = vadd.f32 %v7531, %v7775
      %v7777 = vpop.f32.mrf.mxu0
      %7778 = vmatprep.mubr.f32.mxu0 %v7205
      %7779 = vmatmul.mubr.f32.gmra.mxu0 %v7204
      %v7780 = vpop.f32.mrf.mxu0
      %v7781 = vadd.f32 %v7536, %v7780
      %v7782 = vpop.f32.mrf.mxu0
      %7783 = vmatprep.mubr.f32.mxu0 %v7210
      %7784 = vmatmul.mubr.f32.gmra.mxu0 %v7209
      %v7785 = vpop.f32.mrf.mxu0
      %v7786 = vadd.f32 %v7541, %v7785
      %v7787 = vpop.f32.mrf.mxu0
      %7788 = vdwg.mxu0
      %7789 = vmatprep.subr.mxu0 0.0
      %7790 = vmatpush1.msra.mxu0 %v7291
      %7791 = vmatprep.subr.mxu0 0.0
      %7792 = vmatpush1.msra.mxu0 %v7290
      %7793 = vmatprep.subr.mxu0 0.0
      %7794 = vmatpush1.msra.mxu0 %v7289
      %7795 = vmatprep.subr.mxu0 0.0
      %7796 = vmatpush1.msra.mxu0 %v7288
      %7797 = vmatprep.subr.mxu0 0.0
      %7798 = vmatpush1.msra.mxu0 %v7287
      %7799 = vmatprep.subr.mxu0 0.0
      %7800 = vmatpush1.msra.mxu0 %v7286
      %7801 = vmatprep.subr.mxu0 0.0
      %7802 = vmatpush1.msra.mxu0 %v7285
      %7803 = vmatprep.subr.mxu0 0.0
      %7804 = vmatpush1.msra.mxu0 %v7284
      %7805 = vmatprep.subr.mxu0 0.0
      %7806 = vmatpush1.msra.mxu0 %v7283
      %7807 = vmatprep.subr.mxu0 0.0
      %7808 = vmatpush1.msra.mxu0 %v7282
      %7809 = vmatprep.subr.mxu0 0.0
      %7810 = vmatpush1.msra.mxu0 %v7281
      %7811 = vmatprep.subr.mxu0 0.0
      %7812 = vmatpush1.msra.mxu0 %v7280
      %7813 = vmatprep.subr.mxu0 0.0
      %7814 = vmatpush1.msra.mxu0 %v7279
      %7815 = vmatprep.subr.mxu0 0.0
      %7816 = vmatpush1.msra.mxu0 %v7278
      %7817 = vmatprep.subr.mxu0 0.0
      %7818 = vmatpush1.msra.mxu0 %v7277
      %7819 = vmatprep.subr.mxu0 0.0
      %7820 = vmatpush1.msra.mxu0 %v7276
      %7821 = vmatprep.subr.mxu0 0.0
      %7822 = vmatpush2.msra.mxu0 0.0
      %7823 = vmatprep.subr.mxu0 0.0
      %7824 = vmatpush2.msra.mxu0 0.0
      %7825 = vmatprep.subr.mxu0 0.0
      %7826 = vmatpush2.msra.mxu0 0.0
      %7827 = vmatprep.subr.mxu0 0.0
      %7828 = vmatpush2.msra.mxu0 0.0
      %7829 = vmatprep.subr.mxu0 0.0
      %7830 = vmatpush2.msra.mxu0 0.0
      %7831 = vmatprep.subr.mxu0 0.0
      %7832 = vmatpush2.msra.mxu0 0.0
      %7833 = vmatprep.subr.mxu0 0.0
      %7834 = vmatpush2.msra.mxu0 0.0
      %7835 = vmatprep.subr.mxu0 0.0
      %7836 = vmatpush2.msra.mxu0 0.0
      %7837 = vmatprep.subr.mxu0 0.0
      %7838 = vmatpush2.msra.mxu0 0.0
      %7839 = vmatprep.subr.mxu0 0.0
      %7840 = vmatpush2.msra.mxu0 0.0
      %7841 = vmatprep.subr.mxu0 0.0
      %7842 = vmatpush2.msra.mxu0 0.0
      %7843 = vmatprep.subr.mxu0 0.0
      %7844 = vmatpush2.msra.mxu0 0.0
      %7845 = vmatprep.subr.mxu0 0.0
      %7846 = vmatpush2.msra.mxu0 0.0
      %7847 = vmatprep.subr.mxu0 0.0
      %7848 = vmatpush2.msra.mxu0 0.0
      %7849 = vmatprep.subr.mxu0 0.0
      %7850 = vmatpush2.msra.mxu0 0.0
      %7851 = vmatprep.subr.mxu0 0.0
      %7852 = vmatpush2.msra.mxu0 0.0
      %7853 = vmatprep.mubr.f32.mxu0 0.0
      %7854 = vmatmul.mubr.f32.gmra.mxu0 %v7036
      %v7855 = vpop.f32.mrf.mxu0
      %v7856 = vadd.f32 %v7611, %v7855
      %v7857 = vpop.f32.mrf.mxu0
      %7858 = vmatprep.mubr.f32.mxu0 0.0
      %7859 = vmatmul.mubr.f32.gmra.mxu0 %v7041
      %v7860 = vpop.f32.mrf.mxu0
      %v7861 = vadd.f32 %v7616, %v7860
      %v7862 = vpop.f32.mrf.mxu0
      %7863 = vmatprep.mubr.f32.mxu0 0.0
      %7864 = vmatmul.mubr.f32.gmra.mxu0 %v7046
      %v7865 = vpop.f32.mrf.mxu0
      %v7866 = vadd.f32 %v7621, %v7865
      %v7867 = vpop.f32.mrf.mxu0
      %7868 = vmatprep.mubr.f32.mxu0 0.0
      %7869 = vmatmul.mubr.f32.gmra.mxu0 %v7051
      %v7870 = vpop.f32.mrf.mxu0
      %v7871 = vadd.f32 %v7626, %v7870
      %v7872 = vpop.f32.mrf.mxu0
      %7873 = vmatprep.mubr.f32.mxu0 0.0
      %7874 = vmatmul.mubr.f32.gmra.mxu0 %v7056
      %v7875 = vpop.f32.mrf.mxu0
      %v7876 = vadd.f32 %v7631, %v7875
      %v7877 = vpop.f32.mrf.mxu0
      %7878 = vmatprep.mubr.f32.mxu0 0.0
      %7879 = vmatmul.mubr.f32.gmra.mxu0 %v7061
      %v7880 = vpop.f32.mrf.mxu0
      %v7881 = vadd.f32 %v7636, %v7880
      %v7882 = vpop.f32.mrf.mxu0
      %7883 = vmatprep.mubr.f32.mxu0 0.0
      %7884 = vmatmul.mubr.f32.gmra.mxu0 %v7066
      %v7885 = vpop.f32.mrf.mxu0
      %v7886 = vadd.f32 %v7641, %v7885
      %v7887 = vpop.f32.mrf.mxu0
      %7888 = vmatprep.mubr.f32.mxu0 0.0
      %7889 = vmatmul.mubr.f32.gmra.mxu0 %v7071
      %v7890 = vpop.f32.mrf.mxu0
      %v7891 = vadd.f32 %v7646, %v7890
      %v7892 = vpop.f32.mrf.mxu0
      %7893 = vmatprep.mubr.f32.mxu0 0.0
      %7894 = vmatmul.mubr.f32.gmra.mxu0 %v7076
      %v7895 = vpop.f32.mrf.mxu0
      %v7896 = vadd.f32 %v7651, %v7895
      %v7897 = vpop.f32.mrf.mxu0
      %7898 = vmatprep.mubr.f32.mxu0 0.0
      %7899 = vmatmul.mubr.f32.gmra.mxu0 %v7081
      %v7900 = vpop.f32.mrf.mxu0
      %v7901 = vadd.f32 %v7656, %v7900
      %v7902 = vpop.f32.mrf.mxu0
      %7903 = vmatprep.mubr.f32.mxu0 0.0
      %7904 = vmatmul.mubr.f32.gmra.mxu0 %v7086
      %v7905 = vpop.f32.mrf.mxu0
      %v7906 = vadd.f32 %v7661, %v7905
      %v7907 = vpop.f32.mrf.mxu0
      %7908 = vmatprep.mubr.f32.mxu0 0.0
      %7909 = vmatmul.mubr.f32.gmra.mxu0 %v7091
      %v7910 = vpop.f32.mrf.mxu0
      %v7911 = vadd.f32 %v7666, %v7910
      %v7912 = vpop.f32.mrf.mxu0
      %7913 = vmatprep.mubr.f32.mxu0 0.0
      %7914 = vmatmul.mubr.f32.gmra.mxu0 %v7096
      %v7915 = vpop.f32.mrf.mxu0
      %v7916 = vadd.f32 %v7671, %v7915
      %v7917 = vpop.f32.mrf.mxu0
      %7918 = vmatprep.mubr.f32.mxu0 0.0
      %7919 = vmatmul.mubr.f32.gmra.mxu0 %v7101
      %v7920 = vpop.f32.mrf.mxu0
      %v7921 = vadd.f32 %v7676, %v7920
      %v7922 = vpop.f32.mrf.mxu0
      %7923 = vmatprep.mubr.f32.mxu0 0.0
      %7924 = vmatmul.mubr.f32.gmra.mxu0 %v7106
      %v7925 = vpop.f32.mrf.mxu0
      %v7926 = vadd.f32 %v7681, %v7925
      %v7927 = vpop.f32.mrf.mxu0
      %7928 = vmatprep.mubr.f32.mxu0 0.0
      %7929 = vmatmul.mubr.f32.gmra.mxu0 %v7111
      %v7930 = vpop.f32.mrf.mxu0
      %v7931 = vadd.f32 %v7686, %v7930
      %v7932 = vpop.f32.mrf.mxu0
      %7933 = vmatprep.mubr.f32.mxu0 0.0
      %7934 = vmatmul.mubr.f32.gmra.mxu0 %v7116
      %v7935 = vpop.f32.mrf.mxu0
      %v7936 = vadd.f32 %v7691, %v7935
      %v7937 = vpop.f32.mrf.mxu0
      %7938 = vmatprep.mubr.f32.mxu0 0.0
      %7939 = vmatmul.mubr.f32.gmra.mxu0 %v7121
      %v7940 = vpop.f32.mrf.mxu0
      %v7941 = vadd.f32 %v7696, %v7940
      %v7942 = vpop.f32.mrf.mxu0
      %7943 = vmatprep.mubr.f32.mxu0 0.0
      %7944 = vmatmul.mubr.f32.gmra.mxu0 %v7126
      %v7945 = vpop.f32.mrf.mxu0
      %v7946 = vadd.f32 %v7701, %v7945
      %v7947 = vpop.f32.mrf.mxu0
      %7948 = vmatprep.mubr.f32.mxu0 0.0
      %7949 = vmatmul.mubr.f32.gmra.mxu0 %v7131
      %v7950 = vpop.f32.mrf.mxu0
      %v7951 = vadd.f32 %v7706, %v7950
      %v7952 = vpop.f32.mrf.mxu0
      %7953 = vmatprep.mubr.f32.mxu0 0.0
      %7954 = vmatmul.mubr.f32.gmra.mxu0 %v7136
      %v7955 = vpop.f32.mrf.mxu0
      %v7956 = vadd.f32 %v7711, %v7955
      %v7957 = vpop.f32.mrf.mxu0
      %7958 = vmatprep.mubr.f32.mxu0 0.0
      %7959 = vmatmul.mubr.f32.gmra.mxu0 %v7141
      %v7960 = vpop.f32.mrf.mxu0
      %v7961 = vadd.f32 %v7716, %v7960
      %v7962 = vpop.f32.mrf.mxu0
      %7963 = vmatprep.mubr.f32.mxu0 0.0
      %7964 = vmatmul.mubr.f32.gmra.mxu0 %v7146
      %v7965 = vpop.f32.mrf.mxu0
      %v7966 = vadd.f32 %v7721, %v7965
      %v7967 = vpop.f32.mrf.mxu0
      %7968 = vmatprep.mubr.f32.mxu0 0.0
      %7969 = vmatmul.mubr.f32.gmra.mxu0 %v7151
      %v7970 = vpop.f32.mrf.mxu0
      %v7971 = vadd.f32 %v7726, %v7970
      %v7972 = vpop.f32.mrf.mxu0
      %7973 = vmatprep.mubr.f32.mxu0 0.0
      %7974 = vmatmul.mubr.f32.gmra.mxu0 %v7156
      %v7975 = vpop.f32.mrf.mxu0
      %v7976 = vadd.f32 %v7731, %v7975
      %v7977 = vpop.f32.mrf.mxu0
      %7978 = vmatprep.mubr.f32.mxu0 0.0
      %7979 = vmatmul.mubr.f32.gmra.mxu0 %v7161
      %v7980 = vpop.f32.mrf.mxu0
      %v7981 = vadd.f32 %v7736, %v7980
      %v7982 = vpop.f32.mrf.mxu0
      %7983 = vmatprep.mubr.f32.mxu0 0.0
      %7984 = vmatmul.mubr.f32.gmra.mxu0 %v7166
      %v7985 = vpop.f32.mrf.mxu0
      %v7986 = vadd.f32 %v7741, %v7985
      %v7987 = vpop.f32.mrf.mxu0
      %7988 = vmatprep.mubr.f32.mxu0 0.0
      %7989 = vmatmul.mubr.f32.gmra.mxu0 %v7171
      %v7990 = vpop.f32.mrf.mxu0
      %v7991 = vadd.f32 %v7746, %v7990
      %v7992 = vpop.f32.mrf.mxu0
      %7993 = vmatprep.mubr.f32.mxu0 0.0
      %7994 = vmatmul.mubr.f32.gmra.mxu0 %v7176
      %v7995 = vpop.f32.mrf.mxu0
      %v7996 = vadd.f32 %v7751, %v7995
      %v7997 = vpop.f32.mrf.mxu0
      %7998 = vmatprep.mubr.f32.mxu0 0.0
      %7999 = vmatmul.mubr.f32.gmra.mxu0 %v7181
      %v8000 = vpop.f32.mrf.mxu0
      %v8001 = vadd.f32 %v7756, %v8000
      %v8002 = vpop.f32.mrf.mxu0
      %8003 = vmatprep.mubr.f32.mxu0 0.0
      %8004 = vmatmul.mubr.f32.gmra.mxu0 %v7186
      %v8005 = vpop.f32.mrf.mxu0
      %v8006 = vadd.f32 %v7761, %v8005
      %v8007 = vpop.f32.mrf.mxu0
      %8008 = vmatprep.mubr.f32.mxu0 0.0
      %8009 = vmatmul.mubr.f32.gmra.mxu0 %v7191
      %v8010 = vpop.f32.mrf.mxu0
      %v8011 = vadd.f32 %v7766, %v8010
      %v8012 = vpop.f32.mrf.mxu0
      %8013 = vmatprep.mubr.f32.mxu0 0.0
      %8014 = vmatmul.mubr.f32.gmra.mxu0 %v7196
      %v8015 = vpop.f32.mrf.mxu0
      %v8016 = vadd.f32 %v7771, %v8015
      %v8017 = vpop.f32.mrf.mxu0
      %8018 = vmatprep.mubr.f32.mxu0 0.0
      %8019 = vmatmul.mubr.f32.gmra.mxu0 %v7201
      %v8020 = vpop.f32.mrf.mxu0
      %v8021 = vadd.f32 %v7776, %v8020
      %v8022 = vpop.f32.mrf.mxu0
      %8023 = vmatprep.mubr.f32.mxu0 0.0
      %8024 = vmatmul.mubr.f32.gmra.mxu0 %v7206
      %v8025 = vpop.f32.mrf.mxu0
      %v8026 = vadd.f32 %v7781, %v8025
      %v8027 = vpop.f32.mrf.mxu0
      %8028 = vmatprep.mubr.f32.mxu0 0.0
      %8029 = vmatmul.mubr.f32.gmra.mxu0 %v7211
      %v8030 = vpop.f32.mrf.mxu0
      %v8031 = vadd.f32 %v7786, %v8030
      %v8032 = vpop.f32.mrf.mxu0
      %8033 = vdwg.mxu0
      %8034 = vst [vmem:[%s359] sm:$0xff] %v7856
      %8035 = vst [vmem:[%s359 + $0x8] sm:$0xff] %v7861
      %8036 = vst [vmem:[%s359 + $0x10] sm:$0xff] %v7866
      %8037 = vst [vmem:[%s359 + $0x18] sm:$0xff] %v7871
      %8038 = vst [vmem:[%s359 + $0x20] sm:$0xff] %v7876
      %8039 = vst [vmem:[%s359 + $0x28] sm:$0xff] %v7881
      %8040 = vst [vmem:[%s359 + $0x30] sm:$0xff] %v7886
      %8041 = vst [vmem:[%s359 + $0x38] sm:$0xff] %v7891
      %8042 = vst [vmem:[%s359 + $0x40] sm:$0xff] %v7896
      %8043 = vst [vmem:[%s359 + $0x48] sm:$0xff] %v7901
      %8044 = vst [vmem:[%s359 + $0x50] sm:$0xff] %v7906
      %8045 = vst [vmem:[%s359 + $0x58] sm:$0xff] %v7911
      %8046 = vst [vmem:[%s359 + $0x60] sm:$0xff] %v7916
      %8047 = vst [vmem:[%s359 + $0x68] sm:$0xff] %v7921
      %8048 = vst [vmem:[%s359 + $0x70] sm:$0xff] %v7926
      %8049 = vst [vmem:[%s359 + $0x78] sm:$0xff] %v7931
      %8050 = vst [vmem:[%s359 + $0x80] sm:$0xff] %v7936
      %8051 = vst [vmem:[%s359 + $0x88] sm:$0xff] %v7941
      %8052 = vst [vmem:[%s359 + $0x90] sm:$0xff] %v7946
      %8053 = vst [vmem:[%s359 + $0x98] sm:$0xff] %v7951
      %8054 = vst [vmem:[%s359 + $0xa0] sm:$0xff] %v7956
      %8055 = vst [vmem:[%s359 + $0xa8] sm:$0xff] %v7961
      %8056 = vst [vmem:[%s359 + $0xb0] sm:$0xff] %v7966
      %8057 = vst [vmem:[%s359 + $0xb8] sm:$0xff] %v7971
      %8058 = vst [vmem:[%s359 + $0xc0] sm:$0xff] %v7976
      %8059 = vst [vmem:[%s359 + $0xc8] sm:$0xff] %v7981
      %8060 = vst [vmem:[%s359 + $0xd0] sm:$0xff] %v7986
      %8061 = vst [vmem:[%s359 + $0xd8] sm:$0xff] %v7991
      %8062 = vst [vmem:[%s359 + $0xe0] sm:$0xff] %v7996
      %8063 = vst [vmem:[%s359 + $0xe8] sm:$0xff] %v8001
      %8064 = vst [vmem:[%s359 + $0xf0] sm:$0xff] %v8006
      %8065 = vst [vmem:[%s359 + $0xf8] sm:$0xff] %v8011
      %8066 = vst [vmem:[%s359 + $0x100] sm:$0xff] %v8016
      %8067 = vst [vmem:[%s359 + $0x108] sm:$0xff] %v8021
      %8068 = vst [vmem:[%s359 + $0x110] sm:$0xff] %v8026
      %8069 = vst [vmem:[%s359 + $0x118] sm:$0xff] %v8031
      %p8070 = scmp.lt.s32.totalorder %s21, 1
      %s8071 = scalar_select %p8070, %s21, 1
      %s8072 = smul.addr %s8071, 36
      %s8073 = smul.addr %s8072, 8
      %s8074 = scalar_lea.vmem %s10, %s8073
      // Predicated region
      $region61: #{cascade_block_pallas.1} parent=59 // pred_check
        %p8075 = pneg %p254
      $region62: #{cascade_block_pallas.1} parent=59 // pred_check_branch
        %8077 = sbr.rel (%p8075) target = $region64
      $region63: #{cascade_block_pallas.1} parent=59 // pred_region
        _
      $region64: #{cascade_block_pallas.1} parent=59 // pred_fallthru
        _
    $region60: #{cascade_block_pallas.1} parent=5 // pred_fallthru
      _
    %p8078 = scmp.le.s32.totalorder 2, %s16
    // Predicated region
    $region65: #{cascade_block_pallas.1} parent=5 // pred_check
      %p8079 = pneg %p8078
    $region66: #{cascade_block_pallas.1} parent=5 // pred_check_branch
      %8081 = sbr.rel (%p8079) target = $region68
    $region67: #{cascade_block_pallas.1} parent=5 // pred_region
      %s8082 = ssub.s32 %s16, 2
      // Predicated region
      $region69: #{cascade_block_pallas.1} parent=67 // pred_check
        %p8083 = pneg %p260
      $region70: #{cascade_block_pallas.1} parent=67 // pred_check_branch
        %8085 = sbr.rel (%p8083) target = $region72
      $region71: #{cascade_block_pallas.1} parent=67 // pred_region
        %p8086 = scmp.lt.s32.totalorder %s22, 1
        %s8087 = scalar_select %p8086, %s22, 1
        %s8088 = smul.addr %s8087, 36
        %s8089 = smul.addr %s8088, 8
        %s8090 = scalar_lea.vmem %s10, %s8089
      $region72: #{cascade_block_pallas.1} parent=67 // pred_fallthru
        _
    $region68: #{cascade_block_pallas.1} parent=5 // pred_fallthru
      _
  $region6: #{cascade_block_pallas.1} parent=0 // loop_footer
    %s20 = sadd.s32 1, %s16
  $region7: #{cascade_block_pallas.1} parent=0 // loop_footer_branch
    %15 = sbr.rel target = $region3
  $region8: #{cascade_block_pallas.1} parent=0 // loop_exit
    _

</llo_original>
